<compile_context>
chip_gen: v6e
topology: v6e:2x2x1
jax: 0.10.0
libtpu: 0.0.40
codegen_flags: <defaults>
</compile_context>

<pallas_src>
import functools

import jax
import jax.numpy as jnp
from jax.experimental import pallas as pl
from jax.experimental.pallas import tpu as pltpu


_LANE = 128


# -----------------------------------------------------------------------------
# Fused 2-layer 3x3 "same" conv stack:  conv -> act1 -> conv -> act2   (NHWC)
# -----------------------------------------------------------------------------
def _conv2stack_kernel(x_ref, w1_ref, b1_ref, w2_ref, b2_ref, o_ref,
                       xpad_ref, hpad_ref, *, act1, act2):
    # x_ref   : (N, H, W, Cin)        f32
    # w1_ref  : (9*Cin,  Chid)        bf16
    # b1_ref  : (1, Chid)             f32
    # w2_ref  : (9*Chid, Cout_pad)    bf16   (Cout_pad = 128-lane multiple)
    # b2_ref  : (1, Cout_pad)         f32
    # o_ref   : (N*H*W, Cout_pad)     f32    (lane-dense HBM store)
    # xpad_ref: (N, H+2, W+2, Cin)    f32 VMEM scratch (halo)
    # hpad_ref: (N, H+2, W+2, Chid)   f32 VMEM scratch (halo)
    N, H, W, cin = x_ref.shape
    chid = hpad_ref.shape[-1]
    M = N * H * W

    def im2col(pad_ref, c):
        taps = []
        for dy in range(3):
            for dx in range(3):
                taps.append(pad_ref[:, dy:dy + H, dx:dx + W, :])
        patches = jnp.concatenate(taps, axis=-1)            # (N, H, W, 9*c)
        return patches.reshape(M, 9 * c).astype(jnp.bfloat16)

    def activate(v, act):                                    # epilogue in f32
        if act == 'lrelu':
            return jnp.where(v > 0, v, 0.2 * v)
        if act == 'tanh':
            return jnp.tanh(v)
        return v

    # ---- layer 1: one MXU matmul, K = 9*Cin ----
    xpad_ref[...] = jnp.zeros_like(xpad_ref)
    xpad_ref[:, 1:H + 1, 1:W + 1, :] = x_ref[...]
    h = jnp.dot(im2col(xpad_ref, cin), w1_ref[...],
                preferred_element_type=jnp.float32)          # (M, Chid) f32
    h = activate(h + b1_ref[...], act1)

    # ---- layer 2: one MXU matmul, K = 9*Chid (hidden never leaves VMEM) ----
    hpad_ref[...] = jnp.zeros_like(hpad_ref)
    hpad_ref[:, 1:H + 1, 1:W + 1, :] = h.reshape(N, H, W, chid)
    o = jnp.dot(im2col(hpad_ref, chid), w2_ref[...],
                preferred_element_type=jnp.float32)          # (M, Cout_pad) f32
    o_ref[...] = activate(o + b2_ref[...], act2).astype(o_ref.dtype)


def conv2stack_nhwc(x, w1, b1, w2, b2, act1, act2, cout):
    """x: (N,H,W,Cin) f32.  w1:(9*Cin,Chid) bf16, b1:(1,Chid) f32,
    w2:(9*Chid,Cout_pad) bf16, b2:(1,Cout_pad) f32.  Returns (N,H,W,cout) f32."""
    N, H, W, Cin = x.shape
    Chid = w1.shape[-1]
    Cout_pad = w2.shape[-1]
    M = N * H * W
    kernel = functools.partial(_conv2stack_kernel, act1=act1, act2=act2)
    out = pl.pallas_call(
        kernel,
        out_shape=jax.ShapeDtypeStruct((M, Cout_pad), jnp.float32),
        grid=(1,),
        in_specs=[
            pl.BlockSpec((N, H, W, Cin), lambda i: (0, 0, 0, 0)),
            pl.BlockSpec(w1.shape, lambda i: (0, 0)),
            pl.BlockSpec(b1.shape, lambda i: (0, 0)),
            pl.BlockSpec(w2.shape, lambda i: (0, 0)),
            pl.BlockSpec(b2.shape, lambda i: (0, 0)),
        ],
        out_specs=pl.BlockSpec((M, Cout_pad), lambda i: (0, 0)),
        scratch_shapes=[
            pltpu.VMEM((N, H + 2, W + 2, Cin), jnp.float32),
            pltpu.VMEM((N, H + 2, W + 2, Chid), jnp.float32),
        ],
        compiler_params=pltpu.CompilerParams(
            dimension_semantics=("arbitrary",),
            vmem_limit_bytes=48 * 1024 * 1024,
        ),
    )(x, w1, b1, w2, b2)
    return out.reshape(N, H, W, Cout_pad)[..., :cout]


def _pack_conv(w, b, cout_pad=None):
    """(3,3,Cin,Cout) f32 conv weights -> ((9*Cin, Cp) bf16, (1, Cp) f32) slabs.
    Extra output columns are zero so padded channels stay exactly 0."""
    _, _, cin, cout = w.shape
    cp = cout if cout_pad is None else cout_pad
    wp = jnp.zeros((3, 3, cin, cp), jnp.float32).at[:, :, :, :cout].set(w)
    bp = jnp.zeros((1, cp), jnp.float32).at[0, :cout].set(b)
    return wp.reshape(9 * cin, cp).astype(jnp.bfloat16), bp


# -----------------------------------------------------------------------------
# generate_labelmix fused with building the [fake; real; mixed] 3N batch for D.
#   target = argmax(label, channel); each class id maps to a random {0,1} bit
#   (SMEM scalars); mixed = bit*real + (1-bit)*fake.
# -----------------------------------------------------------------------------
def _labelmix_batch_kernel(bits_ref, label_ref, fake_ref, real_ref,
                           dbatch_ref, mask_ref):
    N, H, W, nc = label_ref.shape
    lab = label_ref[...]                               # (N, H, W, nc) f32

    # first-max argmax over channels: VPU-only unrolled compare chain
    best = lab[..., 0]
    arg = jnp.zeros(best.shape, jnp.int32)
    for c in range(1, nc):
        v = lab[..., c]
        take = v > best
        best = jnp.where(take, v, best)
        arg = jnp.where(take, c, arg)

    # class id -> random {0,1} bit (scalars from SMEM), unrolled select chain
    m = jnp.zeros(arg.shape, jnp.float32)
    for c in range(nc):
        m = jnp.where(arg == c, bits_ref[c], m)
    m4 = m[..., None]                                  # (N, H, W, 1)

    fake = fake_ref[...]
    real = real_ref[...]
    dbatch_ref[0:N] = fake
    dbatch_ref[N:2 * N] = real
    dbatch_ref[2 * N:3 * N] = m4 * real + (1.0 - m4) * fake
    mask_ref[...] = m4


def labelmix_and_d_batch(label, fake_image, real_image, key):
    """label: (N,H,W,nc); fake/real: (N,H,W,C).
    Returns (d_batch (3N,H,W,C) = [fake; real; mixed], mask (N,H,W,1))."""
    N, H, W, nc = label.shape
    C = fake_image.shape[-1]
    bits = jax.random.randint(key, (nc,), 0, 2).astype(jnp.float32)
    return pl.pallas_call(
        _labelmix_batch_kernel,
        out_shape=(jax.ShapeDtypeStruct((3 * N, H, W, C), jnp.float32),
                   jax.ShapeDtypeStruct((N, H, W, 1), jnp.float32)),
        grid=(1,),
        in_specs=[
            pl.BlockSpec(memory_space=pltpu.MemorySpace.SMEM),     # bits
            pl.BlockSpec((N, H, W, nc), lambda i: (0, 0, 0, 0)),
            pl.BlockSpec((N, H, W, C), lambda i: (0, 0, 0, 0)),
            pl.BlockSpec((N, H, W, C), lambda i: (0, 0, 0, 0)),
        ],
        out_specs=(pl.BlockSpec((3 * N, H, W, C), lambda i: (0, 0, 0, 0)),
                   pl.BlockSpec((N, H, W, 1), lambda i: (0, 0, 0, 0))),
        compiler_params=pltpu.CompilerParams(
            dimension_semantics=("arbitrary",)),
    )(bits, label, fake_image, real_image)


# -----------------------------------------------------------------------------
# Deterministic parameter init (xavier_normal_, gain=0.02, zero bias),
# matching OASIS_model.init_networks.
# -----------------------------------------------------------------------------
def _xavier_conv(key, cin, cout, gain=0.02):
    fan_in, fan_out = cin * 9, cout * 9
    std = gain * jnp.sqrt(2.0 / (fan_in + fan_out))
    w = std * jax.random.normal(key, (3, 3, cin, cout), jnp.float32)
    b = jnp.zeros((cout,), jnp.float32)
    return w, b


class OASISModelPallas:
    """Pallas re-implementation of OASIS_model.forward (augment/vgg_loss
    disabled, labelmix enabled, EMA = copy of G)."""

    def __init__(self, semantic_nc=4, hidden=32, lambda_labelmix=10.0, seed=0):
        self.semantic_nc = semantic_nc
        self.lambda_labelmix = lambda_labelmix
        k = jax.random.PRNGKey(seed)
        kg1, kg2, kd1, kd2, self._mix_key = jax.random.split(k, 5)
        # TODO(synk): real OASIS_Generator (noise + SPADE resblocks) and
        # OASIS_Discriminator (U-Net) source was not provided; using small conv
        # stacks with identical I/O contracts (label->image, image->(N+1)-way seg).
        gw1, gb1 = _xavier_conv(kg1, semantic_nc, hidden)
        gw2, gb2 = _xavier_conv(kg2, hidden, 3)
        dw1, db1 = _xavier_conv(kd1, 3, hidden)
        dw2, db2 = _xavier_conv(kd2, hidden, semantic_nc + 1)
        self.g_cout = 3
        self.d_cout = semantic_nc + 1
        # pack to (9*Cin, Cout) bf16 slabs; final layer padded to 128 lanes
        self.gw1, self.gb1 = _pack_conv(gw1, gb1)
        self.gw2, self.gb2 = _pack_conv(gw2, gb2, cout_pad=_LANE)
        self.dw1, self.db1 = _pack_conv(dw1, db1)
        self.dw2, self.db2 = _pack_conv(dw2, db2, cout_pad=_LANE)
        # netEMA is a deepcopy of netG at init -> identical params; reuse G weights.

    # --- networks (NHWC internally) ---
    def _netG(self, label_nhwc):
        return conv2stack_nhwc(label_nhwc, self.gw1, self.gb1,
                               self.gw2, self.gb2, 'lrelu', 'tanh', self.g_cout)

    def _netD(self, img_nhwc):
        return conv2stack_nhwc(img_nhwc, self.dw1, self.db1,
                               self.dw2, self.db2, 'lrelu', None, self.d_cout)

    # --- forward; image/label in PyTorch NCHW, outputs returned in NCHW ---
    def forward(self, image, label, mode, losses_computer):
        to_nhwc = lambda t: jnp.transpose(t, (0, 2, 3, 1))
        to_nchw = lambda t: jnp.transpose(t, (0, 3, 1, 2))
        image_h, label_h = to_nhwc(image), to_nhwc(label)
        N = label_h.shape[0]

        if mode == 'losses_G':
            fake = self._netG(label_h)
            output_D = self._netD(fake)
            loss_G_adv = losses_computer.loss(output_D, label_h, for_real=True)
            loss_G = loss_G_adv
            loss_G_vgg = None  # opt.add_vgg_loss == False
            return loss_G, [loss_G_adv, loss_G_vgg]

        if mode == 'losses_D':
            fake = jax.lax.stop_gradient(self._netG(label_h))   # torch.no_grad()
            # fresh random class->bit assignment per call (matches torch randint)
            self._mix_key, sub = jax.random.split(self._mix_key)
            # labelmix fused with building the 3N-image D batch -> ONE netD call
            d_in, mask = labelmix_and_d_batch(label_h, fake, image_h, sub)
            d_out = self._netD(d_in)
            output_D_fake = d_out[:N]
            output_D_real = d_out[N:2 * N]
            output_D_mixed = d_out[2 * N:]
            loss_D_fake = losses_computer.loss(output_D_fake, label_h, for_real=False)
            loss_D_real = losses_computer.loss(output_D_real, label_h, for_real=True)
            loss_D_lm = self.lambda_labelmix * losses_computer.loss_labelmix(
                mask, output_D_mixed, output_D_fake, output_D_real)
            loss_D = loss_D_fake + loss_D_real + loss_D_lm
            return loss_D, [loss_D_fake, loss_D_real, loss_D_lm]

        if mode == 'generate':
            # netEMA is a deepcopy of netG (identical params) -> use G weights
            return to_nchw(self._netG(label_h))

        if mode == 'disc_out':
            return to_nchw(self._netD(image_h))

        raise ValueError(mode)


# -----------------------------------------------------------------------------
# losses_computer is an *external* argument to forward() in the PyTorch code;
# provide a simple OASIS-style (N+1)-class implementation in plain JAX.
# -----------------------------------------------------------------------------
class SimpleLossesComputer:
    def loss(self, output_D, label, for_real):
        # output_D, label in NHWC; class 0 == "fake", classes 1..N == semantics
        n_classes = output_D.shape[-1]
        if for_real:
            target = jnp.argmax(label, axis=-1) + 1
        else:
            target = jnp.zeros(label.shape[:-1], jnp.int32)
        logp = jax.nn.log_softmax(output_D, axis=-1)
        oh = jax.nn.one_hot(target, n_classes, dtype=logp.dtype)
        return -jnp.mean(jnp.sum(oh * logp, axis=-1))

    def loss_labelmix(self, mask, output_D_mixed, output_D_fake, output_D_real):
        mixed_D_output = mask * output_D_real + (1.0 - mask) * output_D_fake
        return jnp.mean((output_D_mixed - mixed_D_output) ** 2)


if __name__ == "__main__":
    key = jax.random.PRNGKey(0)
    k_img, k_lab = jax.random.split(key)

    N, C_IMG, H, W = 2, 3, 16, 16
    NC = 4  # semantic_nc

    # NCHW inputs like the PyTorch module
    image = jax.random.uniform(k_img, (N, C_IMG, H, W), jnp.float32, -1.0, 1.0)
    lab_idx = jax.random.randint(k_lab, (N, H, W), 0, NC)
    label = jnp.transpose(jax.nn.one_hot(lab_idx, NC, dtype=jnp.float32), (0, 3, 1, 2))

    model = OASISModelPallas(semantic_nc=NC, hidden=32, seed=0)
    lc = SimpleLossesComputer()

    fake = model.forward(image, label, 'generate', lc)
    seg = model.forward(image, label, 'disc_out', lc)
    loss_G, _ = model.forward(image, label, 'losses_G', lc)
    loss_D, _ = model.forward(image, label, 'losses_D', lc)

    jax.block_until_ready((fake, seg, loss_G, loss_D))

    assert fake.shape == (N, 3, H, W)
    assert seg.shape == (N, NC + 1, H, W)
    assert bool(jnp.isfinite(loss_G)) and bool(jnp.isfinite(loss_D))
    print("KERNEL_OK")
</pallas_src>

<mosaic_0001>
module attributes {stable_mosaic.version = 11 : i64} {
  func.func @_conv2stack_kernel(%arg0: i32, %arg1: memref<2x16x16x4xf32, #tpu.memory_space<vmem>>, %arg2: memref<36x32xbf16, #tpu.memory_space<vmem>>, %arg3: memref<1x32xf32, #tpu.memory_space<vmem>>, %arg4: memref<288x128xbf16, #tpu.memory_space<vmem>>, %arg5: memref<1x128xf32, #tpu.memory_space<vmem>>, %arg6: memref<512x128xf32, #tpu.memory_space<vmem>>, %arg7: memref<2x18x18x4xf32, #tpu.memory_space<vmem>>, %arg8: memref<2x18x18x32xf32, #tpu.memory_space<vmem>>) attributes {dimension_semantics = [#tpu.dimension_semantics<arbitrary>], iteration_bounds = array<i64: 1>, scalar_prefetch = 0 : i64, scratch_operands = 2 : i64, tpu.core_type = #tpu.core_type<tc>, window_params = [{pipeline_mode = #tpu.pipeline_mode<synchronous>, transform_indices = @transform_0, window_bounds = array<i64: 2, 16, 16, 4>}, {pipeline_mode = #tpu.pipeline_mode<synchronous>, transform_indices = @transform_1, window_bounds = array<i64: 36, 32>}, {pipeline_mode = #tpu.pipeline_mode<synchronous>, transform_indices = @transform_2, window_bounds = array<i64: 1, 32>}, {pipeline_mode = #tpu.pipeline_mode<synchronous>, transform_indices = @transform_3, window_bounds = array<i64: 288, 128>}, {pipeline_mode = #tpu.pipeline_mode<synchronous>, transform_indices = @transform_4, window_bounds = array<i64: 1, 128>}, {pipeline_mode = #tpu.pipeline_mode<synchronous>, transform_indices = @transform_5, window_bounds = array<i64: 512, 128>}]} {
    %cst = arith.constant 0.000000e+00 : f32
    %0 = vector.broadcast %cst : f32 to vector<2x18x18x4xf32>
    %c0 = arith.constant 0 : index
    %c0_0 = arith.constant 0 : index
    %c0_1 = arith.constant 0 : index
    %c0_2 = arith.constant 0 : index
    %1 = vector.load %arg7[%c0, %c0_0, %c0_1, %c0_2] : memref<2x18x18x4xf32, #tpu.memory_space<vmem>>, vector<2x18x18x4xf32>
    tpu.vector_store %arg7[%c0, %c0_0, %c0_1, %c0_2], %0 {strides = array<i32>} : memref<2x18x18x4xf32, #tpu.memory_space<vmem>>, vector<2x18x18x4xf32>,
    %c0_3 = arith.constant 0 : index
    %c0_4 = arith.constant 0 : index
    %c0_5 = arith.constant 0 : index
    %c0_6 = arith.constant 0 : index
    %2 = vector.load %arg1[%c0_3, %c0_4, %c0_5, %c0_6] : memref<2x16x16x4xf32, #tpu.memory_space<vmem>>, vector<2x16x16x4xf32>
    %c0_7 = arith.constant 0 : index
    %c1 = arith.constant 1 : index
    %c1_8 = arith.constant 1 : index
    %c0_9 = arith.constant 0 : index
    %3 = vector.load %arg7[%c0_7, %c1, %c1_8, %c0_9] : memref<2x18x18x4xf32, #tpu.memory_space<vmem>>, vector<2x16x16x4xf32>
    tpu.vector_store %arg7[%c0_7, %c1, %c1_8, %c0_9], %2 {strides = array<i32>} : memref<2x18x18x4xf32, #tpu.memory_space<vmem>>, vector<2x16x16x4xf32>,
    %c0_10 = arith.constant 0 : index
    %c0_11 = arith.constant 0 : index
    %c0_12 = arith.constant 0 : index
    %c0_13 = arith.constant 0 : index
    %4 = vector.load %arg7[%c0_10, %c0_11, %c0_12, %c0_13] : memref<2x18x18x4xf32, #tpu.memory_space<vmem>>, vector<2x16x16x4xf32>
    %c0_14 = arith.constant 0 : index
    %c0_15 = arith.constant 0 : index
    %c1_16 = arith.constant 1 : index
    %c0_17 = arith.constant 0 : index
    %5 = vector.load %arg7[%c0_14, %c0_15, %c1_16, %c0_17] : memref<2x18x18x4xf32, #tpu.memory_space<vmem>>, vector<2x16x16x4xf32>
    %c0_18 = arith.constant 0 : index
    %c0_19 = arith.constant 0 : index
    %c2 = arith.constant 2 : index
    %c0_20 = arith.constant 0 : index
    %6 = vector.load %arg7[%c0_18, %c0_19, %c2, %c0_20] : memref<2x18x18x4xf32, #tpu.memory_space<vmem>>, vector<2x16x16x4xf32>
    %c0_21 = arith.constant 0 : index
    %c1_22 = arith.constant 1 : index
    %c0_23 = arith.constant 0 : index
    %c0_24 = arith.constant 0 : index
    %7 = vector.load %arg7[%c0_21, %c1_22, %c0_23, %c0_24] : memref<2x18x18x4xf32, #tpu.memory_space<vmem>>, vector<2x16x16x4xf32>
    %c0_25 = arith.constant 0 : index
    %c1_26 = arith.constant 1 : index
    %c1_27 = arith.constant 1 : index
    %c0_28 = arith.constant 0 : index
    %8 = vector.load %arg7[%c0_25, %c1_26, %c1_27, %c0_28] : memref<2x18x18x4xf32, #tpu.memory_space<vmem>>, vector<2x16x16x4xf32>
    %c0_29 = arith.constant 0 : index
    %c1_30 = arith.constant 1 : index
    %c2_31 = arith.constant 2 : index
    %c0_32 = arith.constant 0 : index
    %9 = vector.load %arg7[%c0_29, %c1_30, %c2_31, %c0_32] : memref<2x18x18x4xf32, #tpu.memory_space<vmem>>, vector<2x16x16x4xf32>
    %c0_33 = arith.constant 0 : index
    %c2_34 = arith.constant 2 : index
    %c0_35 = arith.constant 0 : index
    %c0_36 = arith.constant 0 : index
    %10 = vector.load %arg7[%c0_33, %c2_34, %c0_35, %c0_36] : memref<2x18x18x4xf32, #tpu.memory_space<vmem>>, vector<2x16x16x4xf32>
    %c0_37 = arith.constant 0 : index
    %c2_38 = arith.constant 2 : index
    %c1_39 = arith.constant 1 : index
    %c0_40 = arith.constant 0 : index
    %11 = vector.load %arg7[%c0_37, %c2_38, %c1_39, %c0_40] : memref<2x18x18x4xf32, #tpu.memory_space<vmem>>, vector<2x16x16x4xf32>
    %c0_41 = arith.constant 0 : index
    %c2_42 = arith.constant 2 : index
    %c2_43 = arith.constant 2 : index
    %c0_44 = arith.constant 0 : index
    %12 = vector.load %arg7[%c0_41, %c2_42, %c2_43, %c0_44] : memref<2x18x18x4xf32, #tpu.memory_space<vmem>>, vector<2x16x16x4xf32>
    %13 = tpu.concatenate %4, %5, %6, %7, %8, %9, %10, %11, %12 in 3 : vector<2x16x16x4xf32>, vector<2x16x16x4xf32>, vector<2x16x16x4xf32>, vector<2x16x16x4xf32>, vector<2x16x16x4xf32>, vector<2x16x16x4xf32>, vector<2x16x16x4xf32>, vector<2x16x16x4xf32>, vector<2x16x16x4xf32> -> vector<2x16x16x36xf32>
    %14 = vector.shape_cast %13 : vector<2x16x16x36xf32> to vector<512x36xf32>
    %15 = arith.truncf %14 : vector<512x36xf32> to vector<512x36xbf16>
    %c0_45 = arith.constant 0 : index
    %c0_46 = arith.constant 0 : index
    %16 = vector.load %arg2[%c0_45, %c0_46] : memref<36x32xbf16, #tpu.memory_space<vmem>>, vector<36x32xbf16>
    %cst_47 = arith.constant dense<0.000000e+00> : vector<512x32xf32>
    %17 = tpu.matmul %15, %16, %cst_47 {dimension_numbers = #tpu.dot_dimension_numbers<[1], [0], [0], [1], [0, 0, 1, 1], [], []>} : vector<512x36xbf16>, vector<36x32xbf16>, vector<512x32xf32> -> vector<512x32xf32>
    %c0_48 = arith.constant 0 : index
    %c0_49 = arith.constant 0 : index
    %18 = vector.load %arg3[%c0_48, %c0_49] : memref<1x32xf32, #tpu.memory_space<vmem>>, vector<1x32xf32>
    %19 = vector.broadcast %18 : vector<1x32xf32> to vector<512x32xf32>
    %20 = arith.addf %17, %19 : vector<512x32xf32>
    %cst_50 = arith.constant 0.000000e+00 : f32
    %21 = vector.broadcast %cst_50 : f32 to vector<512x32xf32>
    %22 = arith.cmpf ogt, %20, %21 : vector<512x32xf32>
    %cst_51 = arith.constant 2.000000e-01 : f32
    %23 = vector.broadcast %cst_51 : f32 to vector<512x32xf32>
    %24 = arith.mulf %23, %20 : vector<512x32xf32>
    %25 = arith.select %22, %20, %24 : vector<512x32xi1>, vector<512x32xf32>
    %cst_52 = arith.constant 0.000000e+00 : f32
    %26 = vector.broadcast %cst_52 : f32 to vector<2x18x18x32xf32>
    %c0_53 = arith.constant 0 : index
    %c0_54 = arith.constant 0 : index
    %c0_55 = arith.constant 0 : index
    %c0_56 = arith.constant 0 : index
    %27 = vector.load %arg8[%c0_53, %c0_54, %c0_55, %c0_56] : memref<2x18x18x32xf32, #tpu.memory_space<vmem>>, vector<2x18x18x32xf32>
    tpu.vector_store %arg8[%c0_53, %c0_54, %c0_55, %c0_56], %26 {strides = array<i32>} : memref<2x18x18x32xf32, #tpu.memory_space<vmem>>, vector<2x18x18x32xf32>,
    %28 = vector.shape_cast %25 : vector<512x32xf32> to vector<2x16x16x32xf32>
    %c0_57 = arith.constant 0 : index
    %c1_58 = arith.constant 1 : index
    %c1_59 = arith.constant 1 : index
    %c0_60 = arith.constant 0 : index
    %29 = vector.load %arg8[%c0_57, %c1_58, %c1_59, %c0_60] : memref<2x18x18x32xf32, #tpu.memory_space<vmem>>, vector<2x16x16x32xf32>
    tpu.vector_store %arg8[%c0_57, %c1_58, %c1_59, %c0_60], %28 {strides = array<i32>} : memref<2x18x18x32xf32, #tpu.memory_space<vmem>>, vector<2x16x16x32xf32>,
    %c0_61 = arith.constant 0 : index
    %c0_62 = arith.constant 0 : index
    %c0_63 = arith.constant 0 : index
    %c0_64 = arith.constant 0 : index
    %30 = vector.load %arg8[%c0_61, %c0_62, %c0_63, %c0_64] : memref<2x18x18x32xf32, #tpu.memory_space<vmem>>, vector<2x16x16x32xf32>
    %c0_65 = arith.constant 0 : index
    %c0_66 = arith.constant 0 : index
    %c1_67 = arith.constant 1 : index
    %c0_68 = arith.constant 0 : index
    %31 = vector.load %arg8[%c0_65, %c0_66, %c1_67, %c0_68] : memref<2x18x18x32xf32, #tpu.memory_space<vmem>>, vector<2x16x16x32xf32>
    %c0_69 = arith.constant 0 : index
    %c0_70 = arith.constant 0 : index
    %c2_71 = arith.constant 2 : index
    %c0_72 = arith.constant 0 : index
    %32 = vector.load %arg8[%c0_69, %c0_70, %c2_71, %c0_72] : memref<2x18x18x32xf32, #tpu.memory_space<vmem>>, vector<2x16x16x32xf32>
    %c0_73 = arith.constant 0 : index
    %c1_74 = arith.constant 1 : index
    %c0_75 = arith.constant 0 : index
    %c0_76 = arith.constant 0 : index
    %33 = vector.load %arg8[%c0_73, %c1_74, %c0_75, %c0_76] : memref<2x18x18x32xf32, #tpu.memory_space<vmem>>, vector<2x16x16x32xf32>
    %c0_77 = arith.constant 0 : index
    %c1_78 = arith.constant 1 : index
    %c1_79 = arith.constant 1 : index
    %c0_80 = arith.constant 0 : index
    %34 = vector.load %arg8[%c0_77, %c1_78, %c1_79, %c0_80] : memref<2x18x18x32xf32, #tpu.memory_space<vmem>>, vector<2x16x16x32xf32>
    %c0_81 = arith.constant 0 : index
    %c1_82 = arith.constant 1 : index
    %c2_83 = arith.constant 2 : index
    %c0_84 = arith.constant 0 : index
    %35 = vector.load %arg8[%c0_81, %c1_82, %c2_83, %c0_84] : memref<2x18x18x32xf32, #tpu.memory_space<vmem>>, vector<2x16x16x32xf32>
    %c0_85 = arith.constant 0 : index
    %c2_86 = arith.constant 2 : index
    %c0_87 = arith.constant 0 : index
    %c0_88 = arith.constant 0 : index
    %36 = vector.load %arg8[%c0_85, %c2_86, %c0_87, %c0_88] : memref<2x18x18x32xf32, #tpu.memory_space<vmem>>, vector<2x16x16x32xf32>
    %c0_89 = arith.constant 0 : index
    %c2_90 = arith.constant 2 : index
    %c1_91 = arith.constant 1 : index
    %c0_92 = arith.constant 0 : index
    %37 = vector.load %arg8[%c0_89, %c2_90, %c1_91, %c0_92] : memref<2x18x18x32xf32, #tpu.memory_space<vmem>>, vector<2x16x16x32xf32>
    %c0_93 = arith.constant 0 : index
    %c2_94 = arith.constant 2 : index
    %c2_95 = arith.constant 2 : index
    %c0_96 = arith.constant 0 : index
    %38 = vector.load %arg8[%c0_93, %c2_94, %c2_95, %c0_96] : memref<2x18x18x32xf32, #tpu.memory_space<vmem>>, vector<2x16x16x32xf32>
    %39 = tpu.concatenate %30, %31, %32, %33, %34, %35, %36, %37, %38 in 3 : vector<2x16x16x32xf32>, vector<2x16x16x32xf32>, vector<2x16x16x32xf32>, vector<2x16x16x32xf32>, vector<2x16x16x32xf32>, vector<2x16x16x32xf32>, vector<2x16x16x32xf32>, vector<2x16x16x32xf32>, vector<2x16x16x32xf32> -> vector<2x16x16x288xf32>
    %40 = vector.shape_cast %39 : vector<2x16x16x288xf32> to vector<512x288xf32>
    %41 = arith.truncf %40 : vector<512x288xf32> to vector<512x288xbf16>
    %c0_97 = arith.constant 0 : index
    %c0_98 = arith.constant 0 : index
    %42 = vector.load %arg4[%c0_97, %c0_98] : memref<288x128xbf16, #tpu.memory_space<vmem>>, vector<288x128xbf16>
    %cst_99 = arith.constant dense<0.000000e+00> : vector<512x128xf32>
    %43 = tpu.matmul %41, %42, %cst_99 {dimension_numbers = #tpu.dot_dimension_numbers<[1], [0], [0], [1], [0, 0, 1, 1], [], []>} : vector<512x288xbf16>, vector<288x128xbf16>, vector<512x128xf32> -> vector<512x128xf32>
    %c0_100 = arith.constant 0 : index
    %c0_101 = arith.constant 0 : index
    %44 = vector.load %arg5[%c0_100, %c0_101] : memref<1x128xf32, #tpu.memory_space<vmem>>, vector<1x128xf32>
    %45 = vector.broadcast %44 : vector<1x128xf32> to vector<512x128xf32>
    %46 = arith.addf %43, %45 : vector<512x128xf32>
    %47 = math.tanh %46 : vector<512x128xf32>
    %c0_102 = arith.constant 0 : index
    %c0_103 = arith.constant 0 : index
    %48 = vector.load %arg6[%c0_102, %c0_103] : memref<512x128xf32, #tpu.memory_space<vmem>>, vector<512x128xf32>
    tpu.vector_store %arg6[%c0_102, %c0_103], %47 {strides = array<i32>} : memref<512x128xf32, #tpu.memory_space<vmem>>, vector<512x128xf32>,
    return
  }
  func.func @transform_0(%arg0: i32) -> (i32, i32, i32, i32) {
    %c0_i32 = arith.constant 0 : i32
    %c0_i32_0 = arith.constant 0 : i32
    %c0_i32_1 = arith.constant 0 : i32
    %c0_i32_2 = arith.constant 0 : i32
    %c0_i32_3 = arith.constant 0 : i32
    return %c0_i32, %c0_i32_0, %c0_i32_1, %c0_i32_2 : i32, i32, i32, i32
  }
  func.func @transform_1(%arg0: i32) -> (i32, i32) {
    %c0_i32 = arith.constant 0 : i32
    %c0_i32_0 = arith.constant 0 : i32
    %c0_i32_1 = arith.constant 0 : i32
    return %c0_i32, %c0_i32_0 : i32, i32
  }
  func.func @transform_2(%arg0: i32) -> (i32, i32) {
    %c0_i32 = arith.constant 0 : i32
    %c0_i32_0 = arith.constant 0 : i32
    %c0_i32_1 = arith.constant 0 : i32
    return %c0_i32, %c0_i32_0 : i32, i32
  }
  func.func @transform_3(%arg0: i32) -> (i32, i32) {
    %c0_i32 = arith.constant 0 : i32
    %c0_i32_0 = arith.constant 0 : i32
    %c0_i32_1 = arith.constant 0 : i32
    return %c0_i32, %c0_i32_0 : i32, i32
  }
  func.func @transform_4(%arg0: i32) -> (i32, i32) {
    %c0_i32 = arith.constant 0 : i32
    %c0_i32_0 = arith.constant 0 : i32
    %c0_i32_1 = arith.constant 0 : i32
    return %c0_i32, %c0_i32_0 : i32, i32
  }
  func.func @transform_5(%arg0: i32) -> (i32, i32) {
    %c0_i32 = arith.constant 0 : i32
    %c0_i32_0 = arith.constant 0 : i32
    %c0_i32_1 = arith.constant 0 : i32
    return %c0_i32, %c0_i32_0 : i32, i32
  }
}

</mosaic_0001>

<llo_original>
// kernel: tpu_custom_call.1
$region0: #{tpu_custom_call.1}
  #allocation0 [shape = 'u32[]', space=smem, size = 0x4, offset = 0x4, fixed_abs, tag = 'smem constant byte address 0x4 - core index']
  #allocation1 [shape = 'u32[144,128]{1,0:T(1,128)}', space=vmem, size = 0x12000, scoped, tag = 'internal scratch']
  #allocation2 [shape = 'f32[2,18,18,4]{3,2,1,0:T(8,128)}', space=vmem, size = 0x6c000, scoped, tag = 'scratch operand']
  #allocation3 [shape = 'f32[2,18,18,32]{3,2,1,0:T(8,128)}', space=vmem, size = 0x6c000, scoped, tag = 'scratch operand']
  %s0 = inlined_call_operand.vmem [shape: f32[2,16,16,4], index: 0, kind: input, shape index: {}]
  %s1 = inlined_call_operand.vmem [shape: bf16[36,32], index: 1, kind: input, shape index: {}]
  %s2 = inlined_call_operand.vmem [shape: f32[1,32], index: 2, kind: input, shape index: {}]
  %s3 = inlined_call_operand.vmem [shape: bf16[288,128], index: 3, kind: input, shape index: {}]
  %s4 = inlined_call_operand.vmem [shape: f32[1,128], index: 4, kind: input, shape index: {}]
  %s5 = inlined_call_operand.hbm [shape: f32[512,128], index: 5, kind: output, shape index: {}]
  %s6 = sld [smem:[#allocation0]]
  $region30: #{tpu_custom_call.1} parent=0
    _
  %s8 = ssub.s32 1, %s6
  %s9 = scalar_select 0, %s8, %s6
  $region1: #{tpu_custom_call.1} parent=0
    #allocation4 [shape = 'u8[262144]{0}', space=vmem, size = 0x40000, scoped, tag = 'output window, operand 0, single buffered']
    #allocation5 [shape = 's32[1]{0}', space=sflag, size = 0x4, scoped, tag = 'scoped memory for tpu_custom_call.1']
    %10 = vsyncpa [#allocation5], 0
    // Predicated region
    $region2: #{tpu_custom_call.1} parent=1 // pred_check
      _
    $region3: #{tpu_custom_call.1} parent=1 // pred_check_branch
      %12 = sbr.rel (0) target = $region5
    $region4: #{tpu_custom_call.1} parent=1 // pred_region
      _
    $region5: #{tpu_custom_call.1} parent=1 // pred_fallthru
      _
    // Predicated region
    $region6: #{tpu_custom_call.1} parent=1 // pred_check
      _
    $region7: #{tpu_custom_call.1} parent=1 // pred_check_branch
      %14 = sbr.rel (0) target = $region9
    $region8: #{tpu_custom_call.1} parent=1 // pred_region
      _
    $region9: #{tpu_custom_call.1} parent=1 // pred_fallthru
      _
    // Predicated region
    $region10: #{tpu_custom_call.1} parent=1 // pred_check
      _
    $region11: #{tpu_custom_call.1} parent=1 // pred_check_branch
      %16 = sbr.rel (0) target = $region13
    $region12: #{tpu_custom_call.1} parent=1 // pred_region
      _
    $region13: #{tpu_custom_call.1} parent=1 // pred_fallthru
      _
    // Predicated region
    $region14: #{tpu_custom_call.1} parent=1 // pred_check
      _
    $region15: #{tpu_custom_call.1} parent=1 // pred_check_branch
      %18 = sbr.rel (0) target = $region17
    $region16: #{tpu_custom_call.1} parent=1 // pred_region
      _
    $region17: #{tpu_custom_call.1} parent=1 // pred_fallthru
      _
    // Predicated region
    $region18: #{tpu_custom_call.1} parent=1 // pred_check
      _
    $region19: #{tpu_custom_call.1} parent=1 // pred_check_branch
      %20 = sbr.rel (0) target = $region21
    $region20: #{tpu_custom_call.1} parent=1 // pred_region
      _
    $region21: #{tpu_custom_call.1} parent=1 // pred_fallthru
      _
    %vm22 = vcmask 31744
    %23 = vst.msk [vmem:[#allocation2] sm:$0xff] %vm22, 0.0
    %24 = vst.msk [vmem:[#allocation2 + $0x8] sm:$0xff] %vm22, 0.0
    %vm25 = vcmask 25600
    %26 = vst.msk [vmem:[#allocation2 + $0x10] sm:$0x3] %vm25, 0.0
    %27 = vst.msk [vmem:[#allocation2 + $0x18] sm:$0xff] %vm22, 0.0
    %28 = vst.msk [vmem:[#allocation2 + $0x20] sm:$0xff] %vm22, 0.0
    %29 = vst.msk [vmem:[#allocation2 + $0x28] sm:$0x3] %vm25, 0.0
    %30 = vst.msk [vmem:[#allocation2 + $0x30] sm:$0xff] %vm22, 0.0
    %31 = vst.msk [vmem:[#allocation2 + $0x38] sm:$0xff] %vm22, 0.0
    %32 = vst.msk [vmem:[#allocation2 + $0x40] sm:$0x3] %vm25, 0.0
    %33 = vst.msk [vmem:[#allocation2 + $0x48] sm:$0xff] %vm22, 0.0
    %34 = vst.msk [vmem:[#allocation2 + $0x50] sm:$0xff] %vm22, 0.0
    %35 = vst.msk [vmem:[#allocation2 + $0x58] sm:$0x3] %vm25, 0.0
    %36 = vst.msk [vmem:[#allocation2 + $0x60] sm:$0xff] %vm22, 0.0
    %37 = vst.msk [vmem:[#allocation2 + $0x68] sm:$0xff] %vm22, 0.0
    %38 = vst.msk [vmem:[#allocation2 + $0x70] sm:$0x3] %vm25, 0.0
    %39 = vst.msk [vmem:[#allocation2 + $0x78] sm:$0xff] %vm22, 0.0
    %40 = vst.msk [vmem:[#allocation2 + $0x80] sm:$0xff] %vm22, 0.0
    %41 = vst.msk [vmem:[#allocation2 + $0x88] sm:$0x3] %vm25, 0.0
    %42 = vst.msk [vmem:[#allocation2 + $0x90] sm:$0xff] %vm22, 0.0
    %43 = vst.msk [vmem:[#allocation2 + $0x98] sm:$0xff] %vm22, 0.0
    %44 = vst.msk [vmem:[#allocation2 + $0xa0] sm:$0x3] %vm25, 0.0
    %45 = vst.msk [vmem:[#allocation2 + $0xa8] sm:$0xff] %vm22, 0.0
    %46 = vst.msk [vmem:[#allocation2 + $0xb0] sm:$0xff] %vm22, 0.0
    %47 = vst.msk [vmem:[#allocation2 + $0xb8] sm:$0x3] %vm25, 0.0
    %48 = vst.msk [vmem:[#allocation2 + $0xc0] sm:$0xff] %vm22, 0.0
    %49 = vst.msk [vmem:[#allocation2 + $0xc8] sm:$0xff] %vm22, 0.0
    %50 = vst.msk [vmem:[#allocation2 + $0xd0] sm:$0x3] %vm25, 0.0
    %51 = vst.msk [vmem:[#allocation2 + $0xd8] sm:$0xff] %vm22, 0.0
    %52 = vst.msk [vmem:[#allocation2 + $0xe0] sm:$0xff] %vm22, 0.0
    %53 = vst.msk [vmem:[#allocation2 + $0xe8] sm:$0x3] %vm25, 0.0
    %54 = vst.msk [vmem:[#allocation2 + $0xf0] sm:$0xff] %vm22, 0.0
    %55 = vst.msk [vmem:[#allocation2 + $0xf8] sm:$0xff] %vm22, 0.0
    %56 = vst.msk [vmem:[#allocation2 + $0x100] sm:$0x3] %vm25, 0.0
    %57 = vst.msk [vmem:[#allocation2 + $0x108] sm:$0xff] %vm22, 0.0
    %58 = vst.msk [vmem:[#allocation2 + $0x110] sm:$0xff] %vm22, 0.0
    %59 = vst.msk [vmem:[#allocation2 + $0x118] sm:$0x3] %vm25, 0.0
    %60 = vst.msk [vmem:[#allocation2 + $0x120] sm:$0xff] %vm22, 0.0
    %61 = vst.msk [vmem:[#allocation2 + $0x128] sm:$0xff] %vm22, 0.0
    %62 = vst.msk [vmem:[#allocation2 + $0x130] sm:$0x3] %vm25, 0.0
    %63 = vst.msk [vmem:[#allocation2 + $0x138] sm:$0xff] %vm22, 0.0
    %64 = vst.msk [vmem:[#allocation2 + $0x140] sm:$0xff] %vm22, 0.0
    %65 = vst.msk [vmem:[#allocation2 + $0x148] sm:$0x3] %vm25, 0.0
    %66 = vst.msk [vmem:[#allocation2 + $0x150] sm:$0xff] %vm22, 0.0
    %67 = vst.msk [vmem:[#allocation2 + $0x158] sm:$0xff] %vm22, 0.0
    %68 = vst.msk [vmem:[#allocation2 + $0x160] sm:$0x3] %vm25, 0.0
    %69 = vst.msk [vmem:[#allocation2 + $0x168] sm:$0xff] %vm22, 0.0
    %70 = vst.msk [vmem:[#allocation2 + $0x170] sm:$0xff] %vm22, 0.0
    %71 = vst.msk [vmem:[#allocation2 + $0x178] sm:$0x3] %vm25, 0.0
    %72 = vst.msk [vmem:[#allocation2 + $0x180] sm:$0xff] %vm22, 0.0
    %73 = vst.msk [vmem:[#allocation2 + $0x188] sm:$0xff] %vm22, 0.0
    %74 = vst.msk [vmem:[#allocation2 + $0x190] sm:$0x3] %vm25, 0.0
    %75 = vst.msk [vmem:[#allocation2 + $0x198] sm:$0xff] %vm22, 0.0
    %76 = vst.msk [vmem:[#allocation2 + $0x1a0] sm:$0xff] %vm22, 0.0
    %77 = vst.msk [vmem:[#allocation2 + $0x1a8] sm:$0x3] %vm25, 0.0
    %78 = vst.msk [vmem:[#allocation2 + $0x1b0] sm:$0xff] %vm22, 0.0
    %79 = vst.msk [vmem:[#allocation2 + $0x1b8] sm:$0xff] %vm22, 0.0
    %80 = vst.msk [vmem:[#allocation2 + $0x1c0] sm:$0x3] %vm25, 0.0
    %81 = vst.msk [vmem:[#allocation2 + $0x1c8] sm:$0xff] %vm22, 0.0
    %82 = vst.msk [vmem:[#allocation2 + $0x1d0] sm:$0xff] %vm22, 0.0
    %83 = vst.msk [vmem:[#allocation2 + $0x1d8] sm:$0x3] %vm25, 0.0
    %84 = vst.msk [vmem:[#allocation2 + $0x1e0] sm:$0xff] %vm22, 0.0
    %85 = vst.msk [vmem:[#allocation2 + $0x1e8] sm:$0xff] %vm22, 0.0
    %86 = vst.msk [vmem:[#allocation2 + $0x1f0] sm:$0x3] %vm25, 0.0
    %87 = vst.msk [vmem:[#allocation2 + $0x1f8] sm:$0xff] %vm22, 0.0
    %88 = vst.msk [vmem:[#allocation2 + $0x200] sm:$0xff] %vm22, 0.0
    %89 = vst.msk [vmem:[#allocation2 + $0x208] sm:$0x3] %vm25, 0.0
    %90 = vst.msk [vmem:[#allocation2 + $0x210] sm:$0xff] %vm22, 0.0
    %91 = vst.msk [vmem:[#allocation2 + $0x218] sm:$0xff] %vm22, 0.0
    %92 = vst.msk [vmem:[#allocation2 + $0x220] sm:$0x3] %vm25, 0.0
    %93 = vst.msk [vmem:[#allocation2 + $0x228] sm:$0xff] %vm22, 0.0
    %94 = vst.msk [vmem:[#allocation2 + $0x230] sm:$0xff] %vm22, 0.0
    %95 = vst.msk [vmem:[#allocation2 + $0x238] sm:$0x3] %vm25, 0.0
    %96 = vst.msk [vmem:[#allocation2 + $0x240] sm:$0xff] %vm22, 0.0
    %97 = vst.msk [vmem:[#allocation2 + $0x248] sm:$0xff] %vm22, 0.0
    %98 = vst.msk [vmem:[#allocation2 + $0x250] sm:$0x3] %vm25, 0.0
    %99 = vst.msk [vmem:[#allocation2 + $0x258] sm:$0xff] %vm22, 0.0
    %100 = vst.msk [vmem:[#allocation2 + $0x260] sm:$0xff] %vm22, 0.0
    %101 = vst.msk [vmem:[#allocation2 + $0x268] sm:$0x3] %vm25, 0.0
    %102 = vst.msk [vmem:[#allocation2 + $0x270] sm:$0xff] %vm22, 0.0
    %103 = vst.msk [vmem:[#allocation2 + $0x278] sm:$0xff] %vm22, 0.0
    %104 = vst.msk [vmem:[#allocation2 + $0x280] sm:$0x3] %vm25, 0.0
    %105 = vst.msk [vmem:[#allocation2 + $0x288] sm:$0xff] %vm22, 0.0
    %106 = vst.msk [vmem:[#allocation2 + $0x290] sm:$0xff] %vm22, 0.0
    %107 = vst.msk [vmem:[#allocation2 + $0x298] sm:$0x3] %vm25, 0.0
    %108 = vst.msk [vmem:[#allocation2 + $0x2a0] sm:$0xff] %vm22, 0.0
    %109 = vst.msk [vmem:[#allocation2 + $0x2a8] sm:$0xff] %vm22, 0.0
    %110 = vst.msk [vmem:[#allocation2 + $0x2b0] sm:$0x3] %vm25, 0.0
    %111 = vst.msk [vmem:[#allocation2 + $0x2b8] sm:$0xff] %vm22, 0.0
    %112 = vst.msk [vmem:[#allocation2 + $0x2c0] sm:$0xff] %vm22, 0.0
    %113 = vst.msk [vmem:[#allocation2 + $0x2c8] sm:$0x3] %vm25, 0.0
    %114 = vst.msk [vmem:[#allocation2 + $0x2d0] sm:$0xff] %vm22, 0.0
    %115 = vst.msk [vmem:[#allocation2 + $0x2d8] sm:$0xff] %vm22, 0.0
    %116 = vst.msk [vmem:[#allocation2 + $0x2e0] sm:$0x3] %vm25, 0.0
    %117 = vst.msk [vmem:[#allocation2 + $0x2e8] sm:$0xff] %vm22, 0.0
    %118 = vst.msk [vmem:[#allocation2 + $0x2f0] sm:$0xff] %vm22, 0.0
    %119 = vst.msk [vmem:[#allocation2 + $0x2f8] sm:$0x3] %vm25, 0.0
    %120 = vst.msk [vmem:[#allocation2 + $0x300] sm:$0xff] %vm22, 0.0
    %121 = vst.msk [vmem:[#allocation2 + $0x308] sm:$0xff] %vm22, 0.0
    %122 = vst.msk [vmem:[#allocation2 + $0x310] sm:$0x3] %vm25, 0.0
    %123 = vst.msk [vmem:[#allocation2 + $0x318] sm:$0xff] %vm22, 0.0
    %124 = vst.msk [vmem:[#allocation2 + $0x320] sm:$0xff] %vm22, 0.0
    %125 = vst.msk [vmem:[#allocation2 + $0x328] sm:$0x3] %vm25, 0.0
    %126 = vst.msk [vmem:[#allocation2 + $0x330] sm:$0xff] %vm22, 0.0
    %127 = vst.msk [vmem:[#allocation2 + $0x338] sm:$0xff] %vm22, 0.0
    %128 = vst.msk [vmem:[#allocation2 + $0x340] sm:$0x3] %vm25, 0.0
    %129 = vst.msk [vmem:[#allocation2 + $0x348] sm:$0xff] %vm22, 0.0
    %130 = vst.msk [vmem:[#allocation2 + $0x350] sm:$0xff] %vm22, 0.0
    %131 = vst.msk [vmem:[#allocation2 + $0x358] sm:$0x3] %vm25, 0.0
    %v132 = vld [vmem:[%s0] sm:$0xff]
    %v133 = vld [vmem:[%s0 + $0x8] sm:$0xff]
    %v134 = vld [vmem:[%s0 + $0x10] sm:$0xff]
    %v135 = vld [vmem:[%s0 + $0x18] sm:$0xff]
    %v136 = vld [vmem:[%s0 + $0x20] sm:$0xff]
    %v137 = vld [vmem:[%s0 + $0x28] sm:$0xff]
    %v138 = vld [vmem:[%s0 + $0x30] sm:$0xff]
    %v139 = vld [vmem:[%s0 + $0x38] sm:$0xff]
    %v140 = vld [vmem:[%s0 + $0x40] sm:$0xff]
    %v141 = vld [vmem:[%s0 + $0x48] sm:$0xff]
    %v142 = vld [vmem:[%s0 + $0x50] sm:$0xff]
    %v143 = vld [vmem:[%s0 + $0x58] sm:$0xff]
    %v144 = vld [vmem:[%s0 + $0x60] sm:$0xff]
    %v145 = vld [vmem:[%s0 + $0x68] sm:$0xff]
    %v146 = vld [vmem:[%s0 + $0x70] sm:$0xff]
    %v147 = vld [vmem:[%s0 + $0x78] sm:$0xff]
    %v148 = vld [vmem:[%s0 + $0x80] sm:$0xff]
    %v149 = vld [vmem:[%s0 + $0x88] sm:$0xff]
    %v150 = vld [vmem:[%s0 + $0x90] sm:$0xff]
    %v151 = vld [vmem:[%s0 + $0x98] sm:$0xff]
    %v152 = vld [vmem:[%s0 + $0xa0] sm:$0xff]
    %v153 = vld [vmem:[%s0 + $0xa8] sm:$0xff]
    %v154 = vld [vmem:[%s0 + $0xb0] sm:$0xff]
    %v155 = vld [vmem:[%s0 + $0xb8] sm:$0xff]
    %v156 = vld [vmem:[%s0 + $0xc0] sm:$0xff]
    %v157 = vld [vmem:[%s0 + $0xc8] sm:$0xff]
    %v158 = vld [vmem:[%s0 + $0xd0] sm:$0xff]
    %v159 = vld [vmem:[%s0 + $0xd8] sm:$0xff]
    %v160 = vld [vmem:[%s0 + $0xe0] sm:$0xff]
    %v161 = vld [vmem:[%s0 + $0xe8] sm:$0xff]
    %v162 = vld [vmem:[%s0 + $0xf0] sm:$0xff]
    %v163 = vld [vmem:[%s0 + $0xf8] sm:$0xff]
    %v164 = vld [vmem:[%s0 + $0x100] sm:$0xff]
    %v165 = vld [vmem:[%s0 + $0x108] sm:$0xff]
    %v166 = vld [vmem:[%s0 + $0x110] sm:$0xff]
    %v167 = vld [vmem:[%s0 + $0x118] sm:$0xff]
    %v168 = vld [vmem:[%s0 + $0x120] sm:$0xff]
    %v169 = vld [vmem:[%s0 + $0x128] sm:$0xff]
    %v170 = vld [vmem:[%s0 + $0x130] sm:$0xff]
    %v171 = vld [vmem:[%s0 + $0x138] sm:$0xff]
    %v172 = vld [vmem:[%s0 + $0x140] sm:$0xff]
    %v173 = vld [vmem:[%s0 + $0x148] sm:$0xff]
    %v174 = vld [vmem:[%s0 + $0x150] sm:$0xff]
    %v175 = vld [vmem:[%s0 + $0x158] sm:$0xff]
    %v176 = vld [vmem:[%s0 + $0x160] sm:$0xff]
    %v177 = vld [vmem:[%s0 + $0x168] sm:$0xff]
    %v178 = vld [vmem:[%s0 + $0x170] sm:$0xff]
    %v179 = vld [vmem:[%s0 + $0x178] sm:$0xff]
    %v180 = vld [vmem:[%s0 + $0x180] sm:$0xff]
    %v181 = vld [vmem:[%s0 + $0x188] sm:$0xff]
    %v182 = vld [vmem:[%s0 + $0x190] sm:$0xff]
    %v183 = vld [vmem:[%s0 + $0x198] sm:$0xff]
    %v184 = vld [vmem:[%s0 + $0x1a0] sm:$0xff]
    %v185 = vld [vmem:[%s0 + $0x1a8] sm:$0xff]
    %v186 = vld [vmem:[%s0 + $0x1b0] sm:$0xff]
    %v187 = vld [vmem:[%s0 + $0x1b8] sm:$0xff]
    %v188 = vld [vmem:[%s0 + $0x1c0] sm:$0xff]
    %v189 = vld [vmem:[%s0 + $0x1c8] sm:$0xff]
    %v190 = vld [vmem:[%s0 + $0x1d0] sm:$0xff]
    %v191 = vld [vmem:[%s0 + $0x1d8] sm:$0xff]
    %v192 = vld [vmem:[%s0 + $0x1e0] sm:$0xff]
    %v193 = vld [vmem:[%s0 + $0x1e8] sm:$0xff]
    %v194 = vld [vmem:[%s0 + $0x1f0] sm:$0xff]
    %v195 = vld [vmem:[%s0 + $0x1f8] sm:$0xff]
    %s196 = scalar_lea.vmem [#allocation2], 24
    %197 = vst.msk [vmem:[%s196 + $0x1] sm:$0xff] %vm22, %v132
    %198 = vst.msk [vmem:[%s196 + $0x9] sm:$0xff] %vm22, %v133
    %199 = vst.msk [vmem:[%s196 + $0x19] sm:$0xff] %vm22, %v134
    %200 = vst.msk [vmem:[%s196 + $0x21] sm:$0xff] %vm22, %v135
    %201 = vst.msk [vmem:[%s196 + $0x31] sm:$0xff] %vm22, %v136
    %202 = vst.msk [vmem:[%s196 + $0x39] sm:$0xff] %vm22, %v137
    %203 = vst.msk [vmem:[%s196 + $0x49] sm:$0xff] %vm22, %v138
    %204 = vst.msk [vmem:[%s196 + $0x51] sm:$0xff] %vm22, %v139
    %205 = vst.msk [vmem:[%s196 + $0x61] sm:$0xff] %vm22, %v140
    %206 = vst.msk [vmem:[%s196 + $0x69] sm:$0xff] %vm22, %v141
    %207 = vst.msk [vmem:[%s196 + $0x79] sm:$0xff] %vm22, %v142
    %208 = vst.msk [vmem:[%s196 + $0x81] sm:$0xff] %vm22, %v143
    %209 = vst.msk [vmem:[%s196 + $0x91] sm:$0xff] %vm22, %v144
    %210 = vst.msk [vmem:[%s196 + $0x99] sm:$0xff] %vm22, %v145
    %211 = vst.msk [vmem:[%s196 + $0xa9] sm:$0xff] %vm22, %v146
    %212 = vst.msk [vmem:[%s196 + $0xb1] sm:$0xff] %vm22, %v147
    %213 = vst.msk [vmem:[%s196 + $0xc1] sm:$0xff] %vm22, %v148
    %214 = vst.msk [vmem:[%s196 + $0xc9] sm:$0xff] %vm22, %v149
    %215 = vst.msk [vmem:[%s196 + $0xd9] sm:$0xff] %vm22, %v150
    %216 = vst.msk [vmem:[%s196 + $0xe1] sm:$0xff] %vm22, %v151
    %217 = vst.msk [vmem:[%s196 + $0xf1] sm:$0xff] %vm22, %v152
    %218 = vst.msk [vmem:[%s196 + $0xf9] sm:$0xff] %vm22, %v153
    %219 = vst.msk [vmem:[%s196 + $0x109] sm:$0xff] %vm22, %v154
    %220 = vst.msk [vmem:[%s196 + $0x111] sm:$0xff] %vm22, %v155
    %221 = vst.msk [vmem:[%s196 + $0x121] sm:$0xff] %vm22, %v156
    %222 = vst.msk [vmem:[%s196 + $0x129] sm:$0xff] %vm22, %v157
    %223 = vst.msk [vmem:[%s196 + $0x139] sm:$0xff] %vm22, %v158
    %224 = vst.msk [vmem:[%s196 + $0x141] sm:$0xff] %vm22, %v159
    %225 = vst.msk [vmem:[%s196 + $0x151] sm:$0xff] %vm22, %v160
    %226 = vst.msk [vmem:[%s196 + $0x159] sm:$0xff] %vm22, %v161
    %227 = vst.msk [vmem:[%s196 + $0x169] sm:$0xff] %vm22, %v162
    %228 = vst.msk [vmem:[%s196 + $0x171] sm:$0xff] %vm22, %v163
    %229 = vst.msk [vmem:[%s196 + $0x1b1] sm:$0xff] %vm22, %v164
    %230 = vst.msk [vmem:[%s196 + $0x1b9] sm:$0xff] %vm22, %v165
    %231 = vst.msk [vmem:[%s196 + $0x1c9] sm:$0xff] %vm22, %v166
    %232 = vst.msk [vmem:[%s196 + $0x1d1] sm:$0xff] %vm22, %v167
    %233 = vst.msk [vmem:[%s196 + $0x1e1] sm:$0xff] %vm22, %v168
    %234 = vst.msk [vmem:[%s196 + $0x1e9] sm:$0xff] %vm22, %v169
    %235 = vst.msk [vmem:[%s196 + $0x1f9] sm:$0xff] %vm22, %v170
    %236 = vst.msk [vmem:[%s196 + $0x201] sm:$0xff] %vm22, %v171
    %237 = vst.msk [vmem:[%s196 + $0x211] sm:$0xff] %vm22, %v172
    %238 = vst.msk [vmem:[%s196 + $0x219] sm:$0xff] %vm22, %v173
    %239 = vst.msk [vmem:[%s196 + $0x229] sm:$0xff] %vm22, %v174
    %240 = vst.msk [vmem:[%s196 + $0x231] sm:$0xff] %vm22, %v175
    %241 = vst.msk [vmem:[%s196 + $0x241] sm:$0xff] %vm22, %v176
    %242 = vst.msk [vmem:[%s196 + $0x249] sm:$0xff] %vm22, %v177
    %243 = vst.msk [vmem:[%s196 + $0x259] sm:$0xff] %vm22, %v178
    %244 = vst.msk [vmem:[%s196 + $0x261] sm:$0xff] %vm22, %v179
    %245 = vst.msk [vmem:[%s196 + $0x271] sm:$0xff] %vm22, %v180
    %246 = vst.msk [vmem:[%s196 + $0x279] sm:$0xff] %vm22, %v181
    %247 = vst.msk [vmem:[%s196 + $0x289] sm:$0xff] %vm22, %v182
    %248 = vst.msk [vmem:[%s196 + $0x291] sm:$0xff] %vm22, %v183
    %249 = vst.msk [vmem:[%s196 + $0x2a1] sm:$0xff] %vm22, %v184
    %250 = vst.msk [vmem:[%s196 + $0x2a9] sm:$0xff] %vm22, %v185
    %251 = vst.msk [vmem:[%s196 + $0x2b9] sm:$0xff] %vm22, %v186
    %252 = vst.msk [vmem:[%s196 + $0x2c1] sm:$0xff] %vm22, %v187
    %253 = vst.msk [vmem:[%s196 + $0x2d1] sm:$0xff] %vm22, %v188
    %254 = vst.msk [vmem:[%s196 + $0x2d9] sm:$0xff] %vm22, %v189
    %255 = vst.msk [vmem:[%s196 + $0x2e9] sm:$0xff] %vm22, %v190
    %256 = vst.msk [vmem:[%s196 + $0x2f1] sm:$0xff] %vm22, %v191
    %257 = vst.msk [vmem:[%s196 + $0x301] sm:$0xff] %vm22, %v192
    %258 = vst.msk [vmem:[%s196 + $0x309] sm:$0xff] %vm22, %v193
    %259 = vst.msk [vmem:[%s196 + $0x319] sm:$0xff] %vm22, %v194
    %260 = vst.msk [vmem:[%s196 + $0x321] sm:$0xff] %vm22, %v195
    %v261 = vld [vmem:[#allocation2] sm:$0xff]
    %v262 = vld [vmem:[#allocation2 + $0x8] sm:$0xff]
    %v263 = vld [vmem:[#allocation2 + $0x18] sm:$0xff]
    %v264 = vld [vmem:[#allocation2 + $0x20] sm:$0xff]
    %v265 = vld [vmem:[#allocation2 + $0x30] sm:$0xff]
    %v266 = vld [vmem:[#allocation2 + $0x38] sm:$0xff]
    %v267 = vld [vmem:[#allocation2 + $0x48] sm:$0xff]
    %v268 = vld [vmem:[#allocation2 + $0x50] sm:$0xff]
    %v269 = vld [vmem:[#allocation2 + $0x60] sm:$0xff]
    %v270 = vld [vmem:[#allocation2 + $0x68] sm:$0xff]
    %v271 = vld [vmem:[#allocation2 + $0x78] sm:$0xff]
    %v272 = vld [vmem:[#allocation2 + $0x80] sm:$0xff]
    %v273 = vld [vmem:[#allocation2 + $0x90] sm:$0xff]
    %v274 = vld [vmem:[#allocation2 + $0x98] sm:$0xff]
    %v275 = vld [vmem:[#allocation2 + $0xa8] sm:$0xff]
    %v276 = vld [vmem:[#allocation2 + $0xb0] sm:$0xff]
    %v277 = vld [vmem:[#allocation2 + $0xc0] sm:$0xff]
    %v278 = vld [vmem:[#allocation2 + $0xc8] sm:$0xff]
    %v279 = vld [vmem:[#allocation2 + $0xd8] sm:$0xff]
    %v280 = vld [vmem:[#allocation2 + $0xe0] sm:$0xff]
    %v281 = vld [vmem:[#allocation2 + $0xf0] sm:$0xff]
    %v282 = vld [vmem:[#allocation2 + $0xf8] sm:$0xff]
    %v283 = vld [vmem:[#allocation2 + $0x108] sm:$0xff]
    %v284 = vld [vmem:[#allocation2 + $0x110] sm:$0xff]
    %v285 = vld [vmem:[#allocation2 + $0x120] sm:$0xff]
    %v286 = vld [vmem:[#allocation2 + $0x128] sm:$0xff]
    %v287 = vld [vmem:[#allocation2 + $0x138] sm:$0xff]
    %v288 = vld [vmem:[#allocation2 + $0x140] sm:$0xff]
    %v289 = vld [vmem:[#allocation2 + $0x150] sm:$0xff]
    %v290 = vld [vmem:[#allocation2 + $0x158] sm:$0xff]
    %v291 = vld [vmem:[#allocation2 + $0x168] sm:$0xff]
    %v292 = vld [vmem:[#allocation2 + $0x170] sm:$0xff]
    %v293 = vld [vmem:[#allocation2 + $0x1b0] sm:$0xff]
    %v294 = vld [vmem:[#allocation2 + $0x1b8] sm:$0xff]
    %v295 = vld [vmem:[#allocation2 + $0x1c8] sm:$0xff]
    %v296 = vld [vmem:[#allocation2 + $0x1d0] sm:$0xff]
    %v297 = vld [vmem:[#allocation2 + $0x1e0] sm:$0xff]
    %v298 = vld [vmem:[#allocation2 + $0x1e8] sm:$0xff]
    %v299 = vld [vmem:[#allocation2 + $0x1f8] sm:$0xff]
    %v300 = vld [vmem:[#allocation2 + $0x200] sm:$0xff]
    %v301 = vld [vmem:[#allocation2 + $0x210] sm:$0xff]
    %v302 = vld [vmem:[#allocation2 + $0x218] sm:$0xff]
    %v303 = vld [vmem:[#allocation2 + $0x228] sm:$0xff]
    %v304 = vld [vmem:[#allocation2 + $0x230] sm:$0xff]
    %v305 = vld [vmem:[#allocation2 + $0x240] sm:$0xff]
    %v306 = vld [vmem:[#allocation2 + $0x248] sm:$0xff]
    %v307 = vld [vmem:[#allocation2 + $0x258] sm:$0xff]
    %v308 = vld [vmem:[#allocation2 + $0x260] sm:$0xff]
    %v309 = vld [vmem:[#allocation2 + $0x270] sm:$0xff]
    %v310 = vld [vmem:[#allocation2 + $0x278] sm:$0xff]
    %v311 = vld [vmem:[#allocation2 + $0x288] sm:$0xff]
    %v312 = vld [vmem:[#allocation2 + $0x290] sm:$0xff]
    %v313 = vld [vmem:[#allocation2 + $0x2a0] sm:$0xff]
    %v314 = vld [vmem:[#allocation2 + $0x2a8] sm:$0xff]
    %v315 = vld [vmem:[#allocation2 + $0x2b8] sm:$0xff]
    %v316 = vld [vmem:[#allocation2 + $0x2c0] sm:$0xff]
    %v317 = vld [vmem:[#allocation2 + $0x2d0] sm:$0xff]
    %v318 = vld [vmem:[#allocation2 + $0x2d8] sm:$0xff]
    %v319 = vld [vmem:[#allocation2 + $0x2e8] sm:$0xff]
    %v320 = vld [vmem:[#allocation2 + $0x2f0] sm:$0xff]
    %v321 = vld [vmem:[#allocation2 + $0x300] sm:$0xff]
    %v322 = vld [vmem:[#allocation2 + $0x308] sm:$0xff]
    %v323 = vld [vmem:[#allocation2 + $0x318] sm:$0xff]
    %v324 = vld [vmem:[#allocation2 + $0x320] sm:$0xff]
    %v325 = vld [vmem:[#allocation2 + $0x1] sm:$0xff]
    %v326 = vld [vmem:[#allocation2 + $0x9] sm:$0xff]
    %v327 = vld [vmem:[#allocation2 + $0x19] sm:$0xff]
    %v328 = vld [vmem:[#allocation2 + $0x21] sm:$0xff]
    %v329 = vld [vmem:[#allocation2 + $0x31] sm:$0xff]
    %v330 = vld [vmem:[#allocation2 + $0x39] sm:$0xff]
    %v331 = vld [vmem:[#allocation2 + $0x49] sm:$0xff]
    %v332 = vld [vmem:[#allocation2 + $0x51] sm:$0xff]
    %v333 = vld [vmem:[#allocation2 + $0x61] sm:$0xff]
    %v334 = vld [vmem:[#allocation2 + $0x69] sm:$0xff]
    %v335 = vld [vmem:[#allocation2 + $0x79] sm:$0xff]
    %v336 = vld [vmem:[#allocation2 + $0x81] sm:$0xff]
    %v337 = vld [vmem:[#allocation2 + $0x91] sm:$0xff]
    %v338 = vld [vmem:[#allocation2 + $0x99] sm:$0xff]
    %v339 = vld [vmem:[#allocation2 + $0xa9] sm:$0xff]
    %v340 = vld [vmem:[#allocation2 + $0xb1] sm:$0xff]
    %v341 = vld [vmem:[#allocation2 + $0xc1] sm:$0xff]
    %v342 = vld [vmem:[#allocation2 + $0xc9] sm:$0xff]
    %v343 = vld [vmem:[#allocation2 + $0xd9] sm:$0xff]
    %v344 = vld [vmem:[#allocation2 + $0xe1] sm:$0xff]
    %v345 = vld [vmem:[#allocation2 + $0xf1] sm:$0xff]
    %v346 = vld [vmem:[#allocation2 + $0xf9] sm:$0xff]
    %v347 = vld [vmem:[#allocation2 + $0x109] sm:$0xff]
    %v348 = vld [vmem:[#allocation2 + $0x111] sm:$0xff]
    %v349 = vld [vmem:[#allocation2 + $0x121] sm:$0xff]
    %v350 = vld [vmem:[#allocation2 + $0x129] sm:$0xff]
    %v351 = vld [vmem:[#allocation2 + $0x139] sm:$0xff]
    %v352 = vld [vmem:[#allocation2 + $0x141] sm:$0xff]
    %v353 = vld [vmem:[#allocation2 + $0x151] sm:$0xff]
    %v354 = vld [vmem:[#allocation2 + $0x159] sm:$0xff]
    %v355 = vld [vmem:[#allocation2 + $0x169] sm:$0xff]
    %v356 = vld [vmem:[#allocation2 + $0x171] sm:$0xff]
    %v357 = vld [vmem:[#allocation2 + $0x1b1] sm:$0xff]
    %v358 = vld [vmem:[#allocation2 + $0x1b9] sm:$0xff]
    %v359 = vld [vmem:[#allocation2 + $0x1c9] sm:$0xff]
    %v360 = vld [vmem:[#allocation2 + $0x1d1] sm:$0xff]
    %v361 = vld [vmem:[#allocation2 + $0x1e1] sm:$0xff]
    %v362 = vld [vmem:[#allocation2 + $0x1e9] sm:$0xff]
    %v363 = vld [vmem:[#allocation2 + $0x1f9] sm:$0xff]
    %v364 = vld [vmem:[#allocation2 + $0x201] sm:$0xff]
    %v365 = vld [vmem:[#allocation2 + $0x211] sm:$0xff]
    %v366 = vld [vmem:[#allocation2 + $0x219] sm:$0xff]
    %v367 = vld [vmem:[#allocation2 + $0x229] sm:$0xff]
    %v368 = vld [vmem:[#allocation2 + $0x231] sm:$0xff]
    %v369 = vld [vmem:[#allocation2 + $0x241] sm:$0xff]
    %v370 = vld [vmem:[#allocation2 + $0x249] sm:$0xff]
    %v371 = vld [vmem:[#allocation2 + $0x259] sm:$0xff]
    %v372 = vld [vmem:[#allocation2 + $0x261] sm:$0xff]
    %v373 = vld [vmem:[#allocation2 + $0x271] sm:$0xff]
    %v374 = vld [vmem:[#allocation2 + $0x279] sm:$0xff]
    %v375 = vld [vmem:[#allocation2 + $0x289] sm:$0xff]
    %v376 = vld [vmem:[#allocation2 + $0x291] sm:$0xff]
    %v377 = vld [vmem:[#allocation2 + $0x2a1] sm:$0xff]
    %v378 = vld [vmem:[#allocation2 + $0x2a9] sm:$0xff]
    %v379 = vld [vmem:[#allocation2 + $0x2b9] sm:$0xff]
    %v380 = vld [vmem:[#allocation2 + $0x2c1] sm:$0xff]
    %v381 = vld [vmem:[#allocation2 + $0x2d1] sm:$0xff]
    %v382 = vld [vmem:[#allocation2 + $0x2d9] sm:$0xff]
    %v383 = vld [vmem:[#allocation2 + $0x2e9] sm:$0xff]
    %v384 = vld [vmem:[#allocation2 + $0x2f1] sm:$0xff]
    %v385 = vld [vmem:[#allocation2 + $0x301] sm:$0xff]
    %v386 = vld [vmem:[#allocation2 + $0x309] sm:$0xff]
    %v387 = vld [vmem:[#allocation2 + $0x319] sm:$0xff]
    %v388 = vld [vmem:[#allocation2 + $0x321] sm:$0xff]
    %v389 = vld [vmem:[#allocation2 + $0x2] sm:$0xff]
    %v390 = vld [vmem:[#allocation2 + $0xa] sm:$0xff]
    %v391 = vld [vmem:[#allocation2 + $0x1a] sm:$0xff]
    %v392 = vld [vmem:[#allocation2 + $0x22] sm:$0xff]
    %v393 = vld [vmem:[#allocation2 + $0x32] sm:$0xff]
    %v394 = vld [vmem:[#allocation2 + $0x3a] sm:$0xff]
    %v395 = vld [vmem:[#allocation2 + $0x4a] sm:$0xff]
    %v396 = vld [vmem:[#allocation2 + $0x52] sm:$0xff]
    %v397 = vld [vmem:[#allocation2 + $0x62] sm:$0xff]
    %v398 = vld [vmem:[#allocation2 + $0x6a] sm:$0xff]
    %v399 = vld [vmem:[#allocation2 + $0x7a] sm:$0xff]
    %v400 = vld [vmem:[#allocation2 + $0x82] sm:$0xff]
    %v401 = vld [vmem:[#allocation2 + $0x92] sm:$0xff]
    %v402 = vld [vmem:[#allocation2 + $0x9a] sm:$0xff]
    %v403 = vld [vmem:[#allocation2 + $0xaa] sm:$0xff]
    %v404 = vld [vmem:[#allocation2 + $0xb2] sm:$0xff]
    %v405 = vld [vmem:[#allocation2 + $0xc2] sm:$0xff]
    %v406 = vld [vmem:[#allocation2 + $0xca] sm:$0xff]
    %v407 = vld [vmem:[#allocation2 + $0xda] sm:$0xff]
    %v408 = vld [vmem:[#allocation2 + $0xe2] sm:$0xff]
    %v409 = vld [vmem:[#allocation2 + $0xf2] sm:$0xff]
    %v410 = vld [vmem:[#allocation2 + $0xfa] sm:$0xff]
    %v411 = vld [vmem:[#allocation2 + $0x10a] sm:$0xff]
    %v412 = vld [vmem:[#allocation2 + $0x112] sm:$0xff]
    %v413 = vld [vmem:[#allocation2 + $0x122] sm:$0xff]
    %v414 = vld [vmem:[#allocation2 + $0x12a] sm:$0xff]
    %v415 = vld [vmem:[#allocation2 + $0x13a] sm:$0xff]
    %v416 = vld [vmem:[#allocation2 + $0x142] sm:$0xff]
    %v417 = vld [vmem:[#allocation2 + $0x152] sm:$0xff]
    %v418 = vld [vmem:[#allocation2 + $0x15a] sm:$0xff]
    %v419 = vld [vmem:[#allocation2 + $0x16a] sm:$0xff]
    %v420 = vld [vmem:[#allocation2 + $0x172] sm:$0xff]
    %v421 = vld [vmem:[#allocation2 + $0x1b2] sm:$0xff]
    %v422 = vld [vmem:[#allocation2 + $0x1ba] sm:$0xff]
    %v423 = vld [vmem:[#allocation2 + $0x1ca] sm:$0xff]
    %v424 = vld [vmem:[#allocation2 + $0x1d2] sm:$0xff]
    %v425 = vld [vmem:[#allocation2 + $0x1e2] sm:$0xff]
    %v426 = vld [vmem:[#allocation2 + $0x1ea] sm:$0xff]
    %v427 = vld [vmem:[#allocation2 + $0x1fa] sm:$0xff]
    %v428 = vld [vmem:[#allocation2 + $0x202] sm:$0xff]
    %v429 = vld [vmem:[#allocation2 + $0x212] sm:$0xff]
    %v430 = vld [vmem:[#allocation2 + $0x21a] sm:$0xff]
    %v431 = vld [vmem:[#allocation2 + $0x22a] sm:$0xff]
    %v432 = vld [vmem:[#allocation2 + $0x232] sm:$0xff]
    %v433 = vld [vmem:[#allocation2 + $0x242] sm:$0xff]
    %v434 = vld [vmem:[#allocation2 + $0x24a] sm:$0xff]
    %v435 = vld [vmem:[#allocation2 + $0x25a] sm:$0xff]
    %v436 = vld [vmem:[#allocation2 + $0x262] sm:$0xff]
    %v437 = vld [vmem:[#allocation2 + $0x272] sm:$0xff]
    %v438 = vld [vmem:[#allocation2 + $0x27a] sm:$0xff]
    %v439 = vld [vmem:[#allocation2 + $0x28a] sm:$0xff]
    %v440 = vld [vmem:[#allocation2 + $0x292] sm:$0xff]
    %v441 = vld [vmem:[#allocation2 + $0x2a2] sm:$0xff]
    %v442 = vld [vmem:[#allocation2 + $0x2aa] sm:$0xff]
    %v443 = vld [vmem:[#allocation2 + $0x2ba] sm:$0xff]
    %v444 = vld [vmem:[#allocation2 + $0x2c2] sm:$0xff]
    %v445 = vld [vmem:[#allocation2 + $0x2d2] sm:$0xff]
    %v446 = vld [vmem:[#allocation2 + $0x2da] sm:$0xff]
    %v447 = vld [vmem:[#allocation2 + $0x2ea] sm:$0xff]
    %v448 = vld [vmem:[#allocation2 + $0x2f2] sm:$0xff]
    %v449 = vld [vmem:[#allocation2 + $0x302] sm:$0xff]
    %v450 = vld [vmem:[#allocation2 + $0x30a] sm:$0xff]
    %v451 = vld [vmem:[#allocation2 + $0x31a] sm:$0xff]
    %v452 = vld [vmem:[#allocation2 + $0x322] sm:$0xff]
    %v453 = vld [vmem:[%s196] sm:$0xff]
    %v454 = vld [vmem:[%s196 + $0x8] sm:$0xff]
    %v455 = vld [vmem:[%s196 + $0x18] sm:$0xff]
    %v456 = vld [vmem:[%s196 + $0x20] sm:$0xff]
    %v457 = vld [vmem:[%s196 + $0x30] sm:$0xff]
    %v458 = vld [vmem:[%s196 + $0x38] sm:$0xff]
    %v459 = vld [vmem:[%s196 + $0x48] sm:$0xff]
    %v460 = vld [vmem:[%s196 + $0x50] sm:$0xff]
    %v461 = vld [vmem:[%s196 + $0x60] sm:$0xff]
    %v462 = vld [vmem:[%s196 + $0x68] sm:$0xff]
    %v463 = vld [vmem:[%s196 + $0x78] sm:$0xff]
    %v464 = vld [vmem:[%s196 + $0x80] sm:$0xff]
    %v465 = vld [vmem:[%s196 + $0x90] sm:$0xff]
    %v466 = vld [vmem:[%s196 + $0x98] sm:$0xff]
    %v467 = vld [vmem:[%s196 + $0xa8] sm:$0xff]
    %v468 = vld [vmem:[%s196 + $0xb0] sm:$0xff]
    %v469 = vld [vmem:[%s196 + $0xc0] sm:$0xff]
    %v470 = vld [vmem:[%s196 + $0xc8] sm:$0xff]
    %v471 = vld [vmem:[%s196 + $0xd8] sm:$0xff]
    %v472 = vld [vmem:[%s196 + $0xe0] sm:$0xff]
    %v473 = vld [vmem:[%s196 + $0xf0] sm:$0xff]
    %v474 = vld [vmem:[%s196 + $0xf8] sm:$0xff]
    %v475 = vld [vmem:[%s196 + $0x108] sm:$0xff]
    %v476 = vld [vmem:[%s196 + $0x110] sm:$0xff]
    %v477 = vld [vmem:[%s196 + $0x120] sm:$0xff]
    %v478 = vld [vmem:[%s196 + $0x128] sm:$0xff]
    %v479 = vld [vmem:[%s196 + $0x138] sm:$0xff]
    %v480 = vld [vmem:[%s196 + $0x140] sm:$0xff]
    %v481 = vld [vmem:[%s196 + $0x150] sm:$0xff]
    %v482 = vld [vmem:[%s196 + $0x158] sm:$0xff]
    %v483 = vld [vmem:[%s196 + $0x168] sm:$0xff]
    %v484 = vld [vmem:[%s196 + $0x170] sm:$0xff]
    %v485 = vld [vmem:[%s196 + $0x1b0] sm:$0xff]
    %v486 = vld [vmem:[%s196 + $0x1b8] sm:$0xff]
    %v487 = vld [vmem:[%s196 + $0x1c8] sm:$0xff]
    %v488 = vld [vmem:[%s196 + $0x1d0] sm:$0xff]
    %v489 = vld [vmem:[%s196 + $0x1e0] sm:$0xff]
    %v490 = vld [vmem:[%s196 + $0x1e8] sm:$0xff]
    %v491 = vld [vmem:[%s196 + $0x1f8] sm:$0xff]
    %v492 = vld [vmem:[%s196 + $0x200] sm:$0xff]
    %v493 = vld [vmem:[%s196 + $0x210] sm:$0xff]
    %v494 = vld [vmem:[%s196 + $0x218] sm:$0xff]
    %v495 = vld [vmem:[%s196 + $0x228] sm:$0xff]
    %v496 = vld [vmem:[%s196 + $0x230] sm:$0xff]
    %v497 = vld [vmem:[%s196 + $0x240] sm:$0xff]
    %v498 = vld [vmem:[%s196 + $0x248] sm:$0xff]
    %v499 = vld [vmem:[%s196 + $0x258] sm:$0xff]
    %v500 = vld [vmem:[%s196 + $0x260] sm:$0xff]
    %v501 = vld [vmem:[%s196 + $0x270] sm:$0xff]
    %v502 = vld [vmem:[%s196 + $0x278] sm:$0xff]
    %v503 = vld [vmem:[%s196 + $0x288] sm:$0xff]
    %v504 = vld [vmem:[%s196 + $0x290] sm:$0xff]
    %v505 = vld [vmem:[%s196 + $0x2a0] sm:$0xff]
    %v506 = vld [vmem:[%s196 + $0x2a8] sm:$0xff]
    %v507 = vld [vmem:[%s196 + $0x2b8] sm:$0xff]
    %v508 = vld [vmem:[%s196 + $0x2c0] sm:$0xff]
    %v509 = vld [vmem:[%s196 + $0x2d0] sm:$0xff]
    %v510 = vld [vmem:[%s196 + $0x2d8] sm:$0xff]
    %v511 = vld [vmem:[%s196 + $0x2e8] sm:$0xff]
    %v512 = vld [vmem:[%s196 + $0x2f0] sm:$0xff]
    %v513 = vld [vmem:[%s196 + $0x300] sm:$0xff]
    %v514 = vld [vmem:[%s196 + $0x308] sm:$0xff]
    %v515 = vld [vmem:[%s196 + $0x318] sm:$0xff]
    %v516 = vld [vmem:[%s196 + $0x320] sm:$0xff]
    %v517 = vld [vmem:[%s196 + $0x1] sm:$0xff]
    %v518 = vld [vmem:[%s196 + $0x9] sm:$0xff]
    %v519 = vld [vmem:[%s196 + $0x19] sm:$0xff]
    %v520 = vld [vmem:[%s196 + $0x21] sm:$0xff]
    %v521 = vld [vmem:[%s196 + $0x31] sm:$0xff]
    %v522 = vld [vmem:[%s196 + $0x39] sm:$0xff]
    %v523 = vld [vmem:[%s196 + $0x49] sm:$0xff]
    %v524 = vld [vmem:[%s196 + $0x51] sm:$0xff]
    %v525 = vld [vmem:[%s196 + $0x61] sm:$0xff]
    %v526 = vld [vmem:[%s196 + $0x69] sm:$0xff]
    %v527 = vld [vmem:[%s196 + $0x79] sm:$0xff]
    %v528 = vld [vmem:[%s196 + $0x81] sm:$0xff]
    %v529 = vld [vmem:[%s196 + $0x91] sm:$0xff]
    %v530 = vld [vmem:[%s196 + $0x99] sm:$0xff]
    %v531 = vld [vmem:[%s196 + $0xa9] sm:$0xff]
    %v532 = vld [vmem:[%s196 + $0xb1] sm:$0xff]
    %v533 = vld [vmem:[%s196 + $0xc1] sm:$0xff]
    %v534 = vld [vmem:[%s196 + $0xc9] sm:$0xff]
    %v535 = vld [vmem:[%s196 + $0xd9] sm:$0xff]
    %v536 = vld [vmem:[%s196 + $0xe1] sm:$0xff]
    %v537 = vld [vmem:[%s196 + $0xf1] sm:$0xff]
    %v538 = vld [vmem:[%s196 + $0xf9] sm:$0xff]
    %v539 = vld [vmem:[%s196 + $0x109] sm:$0xff]
    %v540 = vld [vmem:[%s196 + $0x111] sm:$0xff]
    %v541 = vld [vmem:[%s196 + $0x121] sm:$0xff]
    %v542 = vld [vmem:[%s196 + $0x129] sm:$0xff]
    %v543 = vld [vmem:[%s196 + $0x139] sm:$0xff]
    %v544 = vld [vmem:[%s196 + $0x141] sm:$0xff]
    %v545 = vld [vmem:[%s196 + $0x151] sm:$0xff]
    %v546 = vld [vmem:[%s196 + $0x159] sm:$0xff]
    %v547 = vld [vmem:[%s196 + $0x169] sm:$0xff]
    %v548 = vld [vmem:[%s196 + $0x171] sm:$0xff]
    %v549 = vld [vmem:[%s196 + $0x1b1] sm:$0xff]
    %v550 = vld [vmem:[%s196 + $0x1b9] sm:$0xff]
    %v551 = vld [vmem:[%s196 + $0x1c9] sm:$0xff]
    %v552 = vld [vmem:[%s196 + $0x1d1] sm:$0xff]
    %v553 = vld [vmem:[%s196 + $0x1e1] sm:$0xff]
    %v554 = vld [vmem:[%s196 + $0x1e9] sm:$0xff]
    %v555 = vld [vmem:[%s196 + $0x1f9] sm:$0xff]
    %v556 = vld [vmem:[%s196 + $0x201] sm:$0xff]
    %v557 = vld [vmem:[%s196 + $0x211] sm:$0xff]
    %v558 = vld [vmem:[%s196 + $0x219] sm:$0xff]
    %v559 = vld [vmem:[%s196 + $0x229] sm:$0xff]
    %v560 = vld [vmem:[%s196 + $0x231] sm:$0xff]
    %v561 = vld [vmem:[%s196 + $0x241] sm:$0xff]
    %v562 = vld [vmem:[%s196 + $0x249] sm:$0xff]
    %v563 = vld [vmem:[%s196 + $0x259] sm:$0xff]
    %v564 = vld [vmem:[%s196 + $0x261] sm:$0xff]
    %v565 = vld [vmem:[%s196 + $0x271] sm:$0xff]
    %v566 = vld [vmem:[%s196 + $0x279] sm:$0xff]
    %v567 = vld [vmem:[%s196 + $0x289] sm:$0xff]
    %v568 = vld [vmem:[%s196 + $0x291] sm:$0xff]
    %v569 = vld [vmem:[%s196 + $0x2a1] sm:$0xff]
    %v570 = vld [vmem:[%s196 + $0x2a9] sm:$0xff]
    %v571 = vld [vmem:[%s196 + $0x2b9] sm:$0xff]
    %v572 = vld [vmem:[%s196 + $0x2c1] sm:$0xff]
    %v573 = vld [vmem:[%s196 + $0x2d1] sm:$0xff]
    %v574 = vld [vmem:[%s196 + $0x2d9] sm:$0xff]
    %v575 = vld [vmem:[%s196 + $0x2e9] sm:$0xff]
    %v576 = vld [vmem:[%s196 + $0x2f1] sm:$0xff]
    %v577 = vld [vmem:[%s196 + $0x301] sm:$0xff]
    %v578 = vld [vmem:[%s196 + $0x309] sm:$0xff]
    %v579 = vld [vmem:[%s196 + $0x319] sm:$0xff]
    %v580 = vld [vmem:[%s196 + $0x321] sm:$0xff]
    %v581 = vld [vmem:[%s196 + $0x2] sm:$0xff]
    %v582 = vld [vmem:[%s196 + $0xa] sm:$0xff]
    %v583 = vld [vmem:[%s196 + $0x1a] sm:$0xff]
    %v584 = vld [vmem:[%s196 + $0x22] sm:$0xff]
    %v585 = vld [vmem:[%s196 + $0x32] sm:$0xff]
    %v586 = vld [vmem:[%s196 + $0x3a] sm:$0xff]
    %v587 = vld [vmem:[%s196 + $0x4a] sm:$0xff]
    %v588 = vld [vmem:[%s196 + $0x52] sm:$0xff]
    %v589 = vld [vmem:[%s196 + $0x62] sm:$0xff]
    %v590 = vld [vmem:[%s196 + $0x6a] sm:$0xff]
    %v591 = vld [vmem:[%s196 + $0x7a] sm:$0xff]
    %v592 = vld [vmem:[%s196 + $0x82] sm:$0xff]
    %v593 = vld [vmem:[%s196 + $0x92] sm:$0xff]
    %v594 = vld [vmem:[%s196 + $0x9a] sm:$0xff]
    %v595 = vld [vmem:[%s196 + $0xaa] sm:$0xff]
    %v596 = vld [vmem:[%s196 + $0xb2] sm:$0xff]
    %v597 = vld [vmem:[%s196 + $0xc2] sm:$0xff]
    %v598 = vld [vmem:[%s196 + $0xca] sm:$0xff]
    %v599 = vld [vmem:[%s196 + $0xda] sm:$0xff]
    %v600 = vld [vmem:[%s196 + $0xe2] sm:$0xff]
    %v601 = vld [vmem:[%s196 + $0xf2] sm:$0xff]
    %v602 = vld [vmem:[%s196 + $0xfa] sm:$0xff]
    %v603 = vld [vmem:[%s196 + $0x10a] sm:$0xff]
    %v604 = vld [vmem:[%s196 + $0x112] sm:$0xff]
    %v605 = vld [vmem:[%s196 + $0x122] sm:$0xff]
    %v606 = vld [vmem:[%s196 + $0x12a] sm:$0xff]
    %v607 = vld [vmem:[%s196 + $0x13a] sm:$0xff]
    %v608 = vld [vmem:[%s196 + $0x142] sm:$0xff]
    %v609 = vld [vmem:[%s196 + $0x152] sm:$0xff]
    %v610 = vld [vmem:[%s196 + $0x15a] sm:$0xff]
    %v611 = vld [vmem:[%s196 + $0x16a] sm:$0xff]
    %v612 = vld [vmem:[%s196 + $0x172] sm:$0xff]
    %v613 = vld [vmem:[%s196 + $0x1b2] sm:$0xff]
    %v614 = vld [vmem:[%s196 + $0x1ba] sm:$0xff]
    %v615 = vld [vmem:[%s196 + $0x1ca] sm:$0xff]
    %v616 = vld [vmem:[%s196 + $0x1d2] sm:$0xff]
    %v617 = vld [vmem:[%s196 + $0x1e2] sm:$0xff]
    %v618 = vld [vmem:[%s196 + $0x1ea] sm:$0xff]
    %v619 = vld [vmem:[%s196 + $0x1fa] sm:$0xff]
    %v620 = vld [vmem:[%s196 + $0x202] sm:$0xff]
    %v621 = vld [vmem:[%s196 + $0x212] sm:$0xff]
    %v622 = vld [vmem:[%s196 + $0x21a] sm:$0xff]
    %v623 = vld [vmem:[%s196 + $0x22a] sm:$0xff]
    %v624 = vld [vmem:[%s196 + $0x232] sm:$0xff]
    %v625 = vld [vmem:[%s196 + $0x242] sm:$0xff]
    %v626 = vld [vmem:[%s196 + $0x24a] sm:$0xff]
    %v627 = vld [vmem:[%s196 + $0x25a] sm:$0xff]
    %v628 = vld [vmem:[%s196 + $0x262] sm:$0xff]
    %v629 = vld [vmem:[%s196 + $0x272] sm:$0xff]
    %v630 = vld [vmem:[%s196 + $0x27a] sm:$0xff]
    %v631 = vld [vmem:[%s196 + $0x28a] sm:$0xff]
    %v632 = vld [vmem:[%s196 + $0x292] sm:$0xff]
    %v633 = vld [vmem:[%s196 + $0x2a2] sm:$0xff]
    %v634 = vld [vmem:[%s196 + $0x2aa] sm:$0xff]
    %v635 = vld [vmem:[%s196 + $0x2ba] sm:$0xff]
    %v636 = vld [vmem:[%s196 + $0x2c2] sm:$0xff]
    %v637 = vld [vmem:[%s196 + $0x2d2] sm:$0xff]
    %v638 = vld [vmem:[%s196 + $0x2da] sm:$0xff]
    %v639 = vld [vmem:[%s196 + $0x2ea] sm:$0xff]
    %v640 = vld [vmem:[%s196 + $0x2f2] sm:$0xff]
    %v641 = vld [vmem:[%s196 + $0x302] sm:$0xff]
    %v642 = vld [vmem:[%s196 + $0x30a] sm:$0xff]
    %v643 = vld [vmem:[%s196 + $0x31a] sm:$0xff]
    %v644 = vld [vmem:[%s196 + $0x322] sm:$0xff]
    %s645 = scalar_lea.vmem [#allocation2], 48
    %v646 = vld [vmem:[%s645] sm:$0xff]
    %v647 = vld [vmem:[%s645 + $0x8] sm:$0xff]
    %v648 = vld [vmem:[%s645 + $0x18] sm:$0xff]
    %v649 = vld [vmem:[%s645 + $0x20] sm:$0xff]
    %v650 = vld [vmem:[%s645 + $0x30] sm:$0xff]
    %v651 = vld [vmem:[%s645 + $0x38] sm:$0xff]
    %v652 = vld [vmem:[%s645 + $0x48] sm:$0xff]
    %v653 = vld [vmem:[%s645 + $0x50] sm:$0xff]
    %v654 = vld [vmem:[%s645 + $0x60] sm:$0xff]
    %v655 = vld [vmem:[%s645 + $0x68] sm:$0xff]
    %v656 = vld [vmem:[%s645 + $0x78] sm:$0xff]
    %v657 = vld [vmem:[%s645 + $0x80] sm:$0xff]
    %v658 = vld [vmem:[%s645 + $0x90] sm:$0xff]
    %v659 = vld [vmem:[%s645 + $0x98] sm:$0xff]
    %v660 = vld [vmem:[%s645 + $0xa8] sm:$0xff]
    %v661 = vld [vmem:[%s645 + $0xb0] sm:$0xff]
    %v662 = vld [vmem:[%s645 + $0xc0] sm:$0xff]
    %v663 = vld [vmem:[%s645 + $0xc8] sm:$0xff]
    %v664 = vld [vmem:[%s645 + $0xd8] sm:$0xff]
    %v665 = vld [vmem:[%s645 + $0xe0] sm:$0xff]
    %v666 = vld [vmem:[%s645 + $0xf0] sm:$0xff]
    %v667 = vld [vmem:[%s645 + $0xf8] sm:$0xff]
    %v668 = vld [vmem:[%s645 + $0x108] sm:$0xff]
    %v669 = vld [vmem:[%s645 + $0x110] sm:$0xff]
    %v670 = vld [vmem:[%s645 + $0x120] sm:$0xff]
    %v671 = vld [vmem:[%s645 + $0x128] sm:$0xff]
    %v672 = vld [vmem:[%s645 + $0x138] sm:$0xff]
    %v673 = vld [vmem:[%s645 + $0x140] sm:$0xff]
    %v674 = vld [vmem:[%s645 + $0x150] sm:$0xff]
    %v675 = vld [vmem:[%s645 + $0x158] sm:$0xff]
    %v676 = vld [vmem:[%s645 + $0x168] sm:$0xff]
    %v677 = vld [vmem:[%s645 + $0x170] sm:$0xff]
    %v678 = vld [vmem:[%s645 + $0x1b0] sm:$0xff]
    %v679 = vld [vmem:[%s645 + $0x1b8] sm:$0xff]
    %v680 = vld [vmem:[%s645 + $0x1c8] sm:$0xff]
    %v681 = vld [vmem:[%s645 + $0x1d0] sm:$0xff]
    %v682 = vld [vmem:[%s645 + $0x1e0] sm:$0xff]
    %v683 = vld [vmem:[%s645 + $0x1e8] sm:$0xff]
    %v684 = vld [vmem:[%s645 + $0x1f8] sm:$0xff]
    %v685 = vld [vmem:[%s645 + $0x200] sm:$0xff]
    %v686 = vld [vmem:[%s645 + $0x210] sm:$0xff]
    %v687 = vld [vmem:[%s645 + $0x218] sm:$0xff]
    %v688 = vld [vmem:[%s645 + $0x228] sm:$0xff]
    %v689 = vld [vmem:[%s645 + $0x230] sm:$0xff]
    %v690 = vld [vmem:[%s645 + $0x240] sm:$0xff]
    %v691 = vld [vmem:[%s645 + $0x248] sm:$0xff]
    %v692 = vld [vmem:[%s645 + $0x258] sm:$0xff]
    %v693 = vld [vmem:[%s645 + $0x260] sm:$0xff]
    %v694 = vld [vmem:[%s645 + $0x270] sm:$0xff]
    %v695 = vld [vmem:[%s645 + $0x278] sm:$0xff]
    %v696 = vld [vmem:[%s645 + $0x288] sm:$0xff]
    %v697 = vld [vmem:[%s645 + $0x290] sm:$0xff]
    %v698 = vld [vmem:[%s645 + $0x2a0] sm:$0xff]
    %v699 = vld [vmem:[%s645 + $0x2a8] sm:$0xff]
    %v700 = vld [vmem:[%s645 + $0x2b8] sm:$0xff]
    %v701 = vld [vmem:[%s645 + $0x2c0] sm:$0xff]
    %v702 = vld [vmem:[%s645 + $0x2d0] sm:$0xff]
    %v703 = vld [vmem:[%s645 + $0x2d8] sm:$0xff]
    %v704 = vld [vmem:[%s645 + $0x2e8] sm:$0xff]
    %v705 = vld [vmem:[%s645 + $0x2f0] sm:$0xff]
    %v706 = vld [vmem:[%s645 + $0x300] sm:$0xff]
    %v707 = vld [vmem:[%s645 + $0x308] sm:$0xff]
    %v708 = vld [vmem:[%s645 + $0x318] sm:$0xff]
    %v709 = vld [vmem:[%s645 + $0x320] sm:$0xff]
    %v710 = vld [vmem:[%s645 + $0x1] sm:$0xff]
    %v711 = vld [vmem:[%s645 + $0x9] sm:$0xff]
    %v712 = vld [vmem:[%s645 + $0x19] sm:$0xff]
    %v713 = vld [vmem:[%s645 + $0x21] sm:$0xff]
    %v714 = vld [vmem:[%s645 + $0x31] sm:$0xff]
    %v715 = vld [vmem:[%s645 + $0x39] sm:$0xff]
    %v716 = vld [vmem:[%s645 + $0x49] sm:$0xff]
    %v717 = vld [vmem:[%s645 + $0x51] sm:$0xff]
    %v718 = vld [vmem:[%s645 + $0x61] sm:$0xff]
    %v719 = vld [vmem:[%s645 + $0x69] sm:$0xff]
    %v720 = vld [vmem:[%s645 + $0x79] sm:$0xff]
    %v721 = vld [vmem:[%s645 + $0x81] sm:$0xff]
    %v722 = vld [vmem:[%s645 + $0x91] sm:$0xff]
    %v723 = vld [vmem:[%s645 + $0x99] sm:$0xff]
    %v724 = vld [vmem:[%s645 + $0xa9] sm:$0xff]
    %v725 = vld [vmem:[%s645 + $0xb1] sm:$0xff]
    %v726 = vld [vmem:[%s645 + $0xc1] sm:$0xff]
    %v727 = vld [vmem:[%s645 + $0xc9] sm:$0xff]
    %v728 = vld [vmem:[%s645 + $0xd9] sm:$0xff]
    %v729 = vld [vmem:[%s645 + $0xe1] sm:$0xff]
    %v730 = vld [vmem:[%s645 + $0xf1] sm:$0xff]
    %v731 = vld [vmem:[%s645 + $0xf9] sm:$0xff]
    %v732 = vld [vmem:[%s645 + $0x109] sm:$0xff]
    %v733 = vld [vmem:[%s645 + $0x111] sm:$0xff]
    %v734 = vld [vmem:[%s645 + $0x121] sm:$0xff]
    %v735 = vld [vmem:[%s645 + $0x129] sm:$0xff]
    %v736 = vld [vmem:[%s645 + $0x139] sm:$0xff]
    %v737 = vld [vmem:[%s645 + $0x141] sm:$0xff]
    %v738 = vld [vmem:[%s645 + $0x151] sm:$0xff]
    %v739 = vld [vmem:[%s645 + $0x159] sm:$0xff]
    %v740 = vld [vmem:[%s645 + $0x169] sm:$0xff]
    %v741 = vld [vmem:[%s645 + $0x171] sm:$0xff]
    %v742 = vld [vmem:[%s645 + $0x1b1] sm:$0xff]
    %v743 = vld [vmem:[%s645 + $0x1b9] sm:$0xff]
    %v744 = vld [vmem:[%s645 + $0x1c9] sm:$0xff]
    %v745 = vld [vmem:[%s645 + $0x1d1] sm:$0xff]
    %v746 = vld [vmem:[%s645 + $0x1e1] sm:$0xff]
    %v747 = vld [vmem:[%s645 + $0x1e9] sm:$0xff]
    %v748 = vld [vmem:[%s645 + $0x1f9] sm:$0xff]
    %v749 = vld [vmem:[%s645 + $0x201] sm:$0xff]
    %v750 = vld [vmem:[%s645 + $0x211] sm:$0xff]
    %v751 = vld [vmem:[%s645 + $0x219] sm:$0xff]
    %v752 = vld [vmem:[%s645 + $0x229] sm:$0xff]
    %v753 = vld [vmem:[%s645 + $0x231] sm:$0xff]
    %v754 = vld [vmem:[%s645 + $0x241] sm:$0xff]
    %v755 = vld [vmem:[%s645 + $0x249] sm:$0xff]
    %v756 = vld [vmem:[%s645 + $0x259] sm:$0xff]
    %v757 = vld [vmem:[%s645 + $0x261] sm:$0xff]
    %v758 = vld [vmem:[%s645 + $0x271] sm:$0xff]
    %v759 = vld [vmem:[%s645 + $0x279] sm:$0xff]
    %v760 = vld [vmem:[%s645 + $0x289] sm:$0xff]
    %v761 = vld [vmem:[%s645 + $0x291] sm:$0xff]
    %v762 = vld [vmem:[%s645 + $0x2a1] sm:$0xff]
    %v763 = vld [vmem:[%s645 + $0x2a9] sm:$0xff]
    %v764 = vld [vmem:[%s645 + $0x2b9] sm:$0xff]
    %v765 = vld [vmem:[%s645 + $0x2c1] sm:$0xff]
    %v766 = vld [vmem:[%s645 + $0x2d1] sm:$0xff]
    %v767 = vld [vmem:[%s645 + $0x2d9] sm:$0xff]
    %v768 = vld [vmem:[%s645 + $0x2e9] sm:$0xff]
    %v769 = vld [vmem:[%s645 + $0x2f1] sm:$0xff]
    %v770 = vld [vmem:[%s645 + $0x301] sm:$0xff]
    %v771 = vld [vmem:[%s645 + $0x309] sm:$0xff]
    %v772 = vld [vmem:[%s645 + $0x319] sm:$0xff]
    %v773 = vld [vmem:[%s645 + $0x321] sm:$0xff]
    %v774 = vld [vmem:[%s645 + $0x2] sm:$0xff]
    %v775 = vld [vmem:[%s645 + $0xa] sm:$0xff]
    %v776 = vld [vmem:[%s645 + $0x1a] sm:$0xff]
    %v777 = vld [vmem:[%s645 + $0x22] sm:$0xff]
    %v778 = vld [vmem:[%s645 + $0x32] sm:$0xff]
    %v779 = vld [vmem:[%s645 + $0x3a] sm:$0xff]
    %v780 = vld [vmem:[%s645 + $0x4a] sm:$0xff]
    %v781 = vld [vmem:[%s645 + $0x52] sm:$0xff]
    %v782 = vld [vmem:[%s645 + $0x62] sm:$0xff]
    %v783 = vld [vmem:[%s645 + $0x6a] sm:$0xff]
    %v784 = vld [vmem:[%s645 + $0x7a] sm:$0xff]
    %v785 = vld [vmem:[%s645 + $0x82] sm:$0xff]
    %v786 = vld [vmem:[%s645 + $0x92] sm:$0xff]
    %v787 = vld [vmem:[%s645 + $0x9a] sm:$0xff]
    %v788 = vld [vmem:[%s645 + $0xaa] sm:$0xff]
    %v789 = vld [vmem:[%s645 + $0xb2] sm:$0xff]
    %v790 = vld [vmem:[%s645 + $0xc2] sm:$0xff]
    %v791 = vld [vmem:[%s645 + $0xca] sm:$0xff]
    %v792 = vld [vmem:[%s645 + $0xda] sm:$0xff]
    %v793 = vld [vmem:[%s645 + $0xe2] sm:$0xff]
    %v794 = vld [vmem:[%s645 + $0xf2] sm:$0xff]
    %v795 = vld [vmem:[%s645 + $0xfa] sm:$0xff]
    %v796 = vld [vmem:[%s645 + $0x10a] sm:$0xff]
    %v797 = vld [vmem:[%s645 + $0x112] sm:$0xff]
    %v798 = vld [vmem:[%s645 + $0x122] sm:$0xff]
    %v799 = vld [vmem:[%s645 + $0x12a] sm:$0xff]
    %v800 = vld [vmem:[%s645 + $0x13a] sm:$0xff]
    %v801 = vld [vmem:[%s645 + $0x142] sm:$0xff]
    %v802 = vld [vmem:[%s645 + $0x152] sm:$0xff]
    %v803 = vld [vmem:[%s645 + $0x15a] sm:$0xff]
    %v804 = vld [vmem:[%s645 + $0x16a] sm:$0xff]
    %v805 = vld [vmem:[%s645 + $0x172] sm:$0xff]
    %v806 = vld [vmem:[%s645 + $0x1b2] sm:$0xff]
    %v807 = vld [vmem:[%s645 + $0x1ba] sm:$0xff]
    %v808 = vld [vmem:[%s645 + $0x1ca] sm:$0xff]
    %v809 = vld [vmem:[%s645 + $0x1d2] sm:$0xff]
    %v810 = vld [vmem:[%s645 + $0x1e2] sm:$0xff]
    %v811 = vld [vmem:[%s645 + $0x1ea] sm:$0xff]
    %v812 = vld [vmem:[%s645 + $0x1fa] sm:$0xff]
    %v813 = vld [vmem:[%s645 + $0x202] sm:$0xff]
    %v814 = vld [vmem:[%s645 + $0x212] sm:$0xff]
    %v815 = vld [vmem:[%s645 + $0x21a] sm:$0xff]
    %v816 = vld [vmem:[%s645 + $0x22a] sm:$0xff]
    %v817 = vld [vmem:[%s645 + $0x232] sm:$0xff]
    %v818 = vld [vmem:[%s645 + $0x242] sm:$0xff]
    %v819 = vld [vmem:[%s645 + $0x24a] sm:$0xff]
    %v820 = vld [vmem:[%s645 + $0x25a] sm:$0xff]
    %v821 = vld [vmem:[%s645 + $0x262] sm:$0xff]
    %v822 = vld [vmem:[%s645 + $0x272] sm:$0xff]
    %v823 = vld [vmem:[%s645 + $0x27a] sm:$0xff]
    %v824 = vld [vmem:[%s645 + $0x28a] sm:$0xff]
    %v825 = vld [vmem:[%s645 + $0x292] sm:$0xff]
    %v826 = vld [vmem:[%s645 + $0x2a2] sm:$0xff]
    %v827 = vld [vmem:[%s645 + $0x2aa] sm:$0xff]
    %v828 = vld [vmem:[%s645 + $0x2ba] sm:$0xff]
    %v829 = vld [vmem:[%s645 + $0x2c2] sm:$0xff]
    %v830 = vld [vmem:[%s645 + $0x2d2] sm:$0xff]
    %v831 = vld [vmem:[%s645 + $0x2da] sm:$0xff]
    %v832 = vld [vmem:[%s645 + $0x2ea] sm:$0xff]
    %v833 = vld [vmem:[%s645 + $0x2f2] sm:$0xff]
    %v834 = vld [vmem:[%s645 + $0x302] sm:$0xff]
    %v835 = vld [vmem:[%s645 + $0x30a] sm:$0xff]
    %v836 = vld [vmem:[%s645 + $0x31a] sm:$0xff]
    %v837 = vld [vmem:[%s645 + $0x322] sm:$0xff]
    %902 = vrot.lane.b32.xlu0 %v325, 4
    %v903 = vpop.permute.xlu0 %902
    %904 = vrot.lane.b32.xlu0 %v326, 4
    %v905 = vpop.permute.xlu0 %904
    %906 = vrot.lane.b32.xlu0 %v327, 4
    %v907 = vpop.permute.xlu0 %906
    %908 = vrot.lane.b32.xlu0 %v328, 4
    %v909 = vpop.permute.xlu0 %908
    %910 = vrot.lane.b32.xlu0 %v329, 4
    %v911 = vpop.permute.xlu0 %910
    %912 = vrot.lane.b32.xlu0 %v330, 4
    %v913 = vpop.permute.xlu0 %912
    %914 = vrot.lane.b32.xlu0 %v331, 4
    %v915 = vpop.permute.xlu0 %914
    %916 = vrot.lane.b32.xlu0 %v332, 4
    %v917 = vpop.permute.xlu0 %916
    %918 = vrot.lane.b32.xlu0 %v333, 4
    %v919 = vpop.permute.xlu0 %918
    %920 = vrot.lane.b32.xlu0 %v334, 4
    %v921 = vpop.permute.xlu0 %920
    %922 = vrot.lane.b32.xlu0 %v335, 4
    %v923 = vpop.permute.xlu0 %922
    %924 = vrot.lane.b32.xlu0 %v336, 4
    %v925 = vpop.permute.xlu0 %924
    %926 = vrot.lane.b32.xlu0 %v337, 4
    %v927 = vpop.permute.xlu0 %926
    %928 = vrot.lane.b32.xlu0 %v338, 4
    %v929 = vpop.permute.xlu0 %928
    %930 = vrot.lane.b32.xlu0 %v339, 4
    %v931 = vpop.permute.xlu0 %930
    %932 = vrot.lane.b32.xlu0 %v340, 4
    %v933 = vpop.permute.xlu0 %932
    %934 = vrot.lane.b32.xlu0 %v341, 4
    %v935 = vpop.permute.xlu0 %934
    %936 = vrot.lane.b32.xlu0 %v342, 4
    %v937 = vpop.permute.xlu0 %936
    %938 = vrot.lane.b32.xlu0 %v343, 4
    %v939 = vpop.permute.xlu0 %938
    %940 = vrot.lane.b32.xlu0 %v344, 4
    %v941 = vpop.permute.xlu0 %940
    %942 = vrot.lane.b32.xlu0 %v345, 4
    %v943 = vpop.permute.xlu0 %942
    %944 = vrot.lane.b32.xlu0 %v346, 4
    %v945 = vpop.permute.xlu0 %944
    %946 = vrot.lane.b32.xlu0 %v347, 4
    %v947 = vpop.permute.xlu0 %946
    %948 = vrot.lane.b32.xlu0 %v348, 4
    %v949 = vpop.permute.xlu0 %948
    %950 = vrot.lane.b32.xlu0 %v349, 4
    %v951 = vpop.permute.xlu0 %950
    %952 = vrot.lane.b32.xlu0 %v350, 4
    %v953 = vpop.permute.xlu0 %952
    %954 = vrot.lane.b32.xlu0 %v351, 4
    %v955 = vpop.permute.xlu0 %954
    %956 = vrot.lane.b32.xlu0 %v352, 4
    %v957 = vpop.permute.xlu0 %956
    %958 = vrot.lane.b32.xlu0 %v353, 4
    %v959 = vpop.permute.xlu0 %958
    %960 = vrot.lane.b32.xlu0 %v354, 4
    %v961 = vpop.permute.xlu0 %960
    %962 = vrot.lane.b32.xlu0 %v355, 4
    %v963 = vpop.permute.xlu0 %962
    %964 = vrot.lane.b32.xlu0 %v356, 4
    %v965 = vpop.permute.xlu0 %964
    %966 = vrot.lane.b32.xlu0 %v357, 4
    %v967 = vpop.permute.xlu0 %966
    %968 = vrot.lane.b32.xlu0 %v358, 4
    %v969 = vpop.permute.xlu0 %968
    %970 = vrot.lane.b32.xlu0 %v359, 4
    %v971 = vpop.permute.xlu0 %970
    %972 = vrot.lane.b32.xlu0 %v360, 4
    %v973 = vpop.permute.xlu0 %972
    %974 = vrot.lane.b32.xlu0 %v361, 4
    %v975 = vpop.permute.xlu0 %974
    %976 = vrot.lane.b32.xlu0 %v362, 4
    %v977 = vpop.permute.xlu0 %976
    %978 = vrot.lane.b32.xlu0 %v363, 4
    %v979 = vpop.permute.xlu0 %978
    %980 = vrot.lane.b32.xlu0 %v364, 4
    %v981 = vpop.permute.xlu0 %980
    %982 = vrot.lane.b32.xlu0 %v365, 4
    %v983 = vpop.permute.xlu0 %982
    %984 = vrot.lane.b32.xlu0 %v366, 4
    %v985 = vpop.permute.xlu0 %984
    %986 = vrot.lane.b32.xlu0 %v367, 4
    %v987 = vpop.permute.xlu0 %986
    %988 = vrot.lane.b32.xlu0 %v368, 4
    %v989 = vpop.permute.xlu0 %988
    %990 = vrot.lane.b32.xlu0 %v369, 4
    %v991 = vpop.permute.xlu0 %990
    %992 = vrot.lane.b32.xlu0 %v370, 4
    %v993 = vpop.permute.xlu0 %992
    %994 = vrot.lane.b32.xlu0 %v371, 4
    %v995 = vpop.permute.xlu0 %994
    %996 = vrot.lane.b32.xlu0 %v372, 4
    %v997 = vpop.permute.xlu0 %996
    %998 = vrot.lane.b32.xlu0 %v373, 4
    %v999 = vpop.permute.xlu0 %998
    %1000 = vrot.lane.b32.xlu0 %v374, 4
    %v1001 = vpop.permute.xlu0 %1000
    %1002 = vrot.lane.b32.xlu0 %v375, 4
    %v1003 = vpop.permute.xlu0 %1002
    %1004 = vrot.lane.b32.xlu0 %v376, 4
    %v1005 = vpop.permute.xlu0 %1004
    %1006 = vrot.lane.b32.xlu0 %v377, 4
    %v1007 = vpop.permute.xlu0 %1006
    %1008 = vrot.lane.b32.xlu0 %v378, 4
    %v1009 = vpop.permute.xlu0 %1008
    %1010 = vrot.lane.b32.xlu0 %v379, 4
    %v1011 = vpop.permute.xlu0 %1010
    %1012 = vrot.lane.b32.xlu0 %v380, 4
    %v1013 = vpop.permute.xlu0 %1012
    %1014 = vrot.lane.b32.xlu0 %v381, 4
    %v1015 = vpop.permute.xlu0 %1014
    %1016 = vrot.lane.b32.xlu0 %v382, 4
    %v1017 = vpop.permute.xlu0 %1016
    %1018 = vrot.lane.b32.xlu0 %v383, 4
    %v1019 = vpop.permute.xlu0 %1018
    %1020 = vrot.lane.b32.xlu0 %v384, 4
    %v1021 = vpop.permute.xlu0 %1020
    %1022 = vrot.lane.b32.xlu0 %v385, 4
    %v1023 = vpop.permute.xlu0 %1022
    %1024 = vrot.lane.b32.xlu0 %v386, 4
    %v1025 = vpop.permute.xlu0 %1024
    %1026 = vrot.lane.b32.xlu0 %v387, 4
    %v1027 = vpop.permute.xlu0 %1026
    %1028 = vrot.lane.b32.xlu0 %v388, 4
    %v1029 = vpop.permute.xlu0 %1028
    %1158 = vrot.lane.b32.xlu0 %v389, 8
    %v1159 = vpop.permute.xlu0 %1158
    %1160 = vrot.lane.b32.xlu0 %v390, 8
    %v1161 = vpop.permute.xlu0 %1160
    %1162 = vrot.lane.b32.xlu0 %v391, 8
    %v1163 = vpop.permute.xlu0 %1162
    %1164 = vrot.lane.b32.xlu0 %v392, 8
    %v1165 = vpop.permute.xlu0 %1164
    %1166 = vrot.lane.b32.xlu0 %v393, 8
    %v1167 = vpop.permute.xlu0 %1166
    %1168 = vrot.lane.b32.xlu0 %v394, 8
    %v1169 = vpop.permute.xlu0 %1168
    %1170 = vrot.lane.b32.xlu0 %v395, 8
    %v1171 = vpop.permute.xlu0 %1170
    %1172 = vrot.lane.b32.xlu0 %v396, 8
    %v1173 = vpop.permute.xlu0 %1172
    %1174 = vrot.lane.b32.xlu0 %v397, 8
    %v1175 = vpop.permute.xlu0 %1174
    %1176 = vrot.lane.b32.xlu0 %v398, 8
    %v1177 = vpop.permute.xlu0 %1176
    %1178 = vrot.lane.b32.xlu0 %v399, 8
    %v1179 = vpop.permute.xlu0 %1178
    %1180 = vrot.lane.b32.xlu0 %v400, 8
    %v1181 = vpop.permute.xlu0 %1180
    %1182 = vrot.lane.b32.xlu0 %v401, 8
    %v1183 = vpop.permute.xlu0 %1182
    %1184 = vrot.lane.b32.xlu0 %v402, 8
    %v1185 = vpop.permute.xlu0 %1184
    %1186 = vrot.lane.b32.xlu0 %v403, 8
    %v1187 = vpop.permute.xlu0 %1186
    %1188 = vrot.lane.b32.xlu0 %v404, 8
    %v1189 = vpop.permute.xlu0 %1188
    %1190 = vrot.lane.b32.xlu0 %v405, 8
    %v1191 = vpop.permute.xlu0 %1190
    %1192 = vrot.lane.b32.xlu0 %v406, 8
    %v1193 = vpop.permute.xlu0 %1192
    %1194 = vrot.lane.b32.xlu0 %v407, 8
    %v1195 = vpop.permute.xlu0 %1194
    %1196 = vrot.lane.b32.xlu0 %v408, 8
    %v1197 = vpop.permute.xlu0 %1196
    %1198 = vrot.lane.b32.xlu0 %v409, 8
    %v1199 = vpop.permute.xlu0 %1198
    %1200 = vrot.lane.b32.xlu0 %v410, 8
    %v1201 = vpop.permute.xlu0 %1200
    %1202 = vrot.lane.b32.xlu0 %v411, 8
    %v1203 = vpop.permute.xlu0 %1202
    %1204 = vrot.lane.b32.xlu0 %v412, 8
    %v1205 = vpop.permute.xlu0 %1204
    %1206 = vrot.lane.b32.xlu0 %v413, 8
    %v1207 = vpop.permute.xlu0 %1206
    %1208 = vrot.lane.b32.xlu0 %v414, 8
    %v1209 = vpop.permute.xlu0 %1208
    %1210 = vrot.lane.b32.xlu0 %v415, 8
    %v1211 = vpop.permute.xlu0 %1210
    %1212 = vrot.lane.b32.xlu0 %v416, 8
    %v1213 = vpop.permute.xlu0 %1212
    %1214 = vrot.lane.b32.xlu0 %v417, 8
    %v1215 = vpop.permute.xlu0 %1214
    %1216 = vrot.lane.b32.xlu0 %v418, 8
    %v1217 = vpop.permute.xlu0 %1216
    %1218 = vrot.lane.b32.xlu0 %v419, 8
    %v1219 = vpop.permute.xlu0 %1218
    %1220 = vrot.lane.b32.xlu0 %v420, 8
    %v1221 = vpop.permute.xlu0 %1220
    %1222 = vrot.lane.b32.xlu0 %v421, 8
    %v1223 = vpop.permute.xlu0 %1222
    %1224 = vrot.lane.b32.xlu0 %v422, 8
    %v1225 = vpop.permute.xlu0 %1224
    %1226 = vrot.lane.b32.xlu0 %v423, 8
    %v1227 = vpop.permute.xlu0 %1226
    %1228 = vrot.lane.b32.xlu0 %v424, 8
    %v1229 = vpop.permute.xlu0 %1228
    %1230 = vrot.lane.b32.xlu0 %v425, 8
    %v1231 = vpop.permute.xlu0 %1230
    %1232 = vrot.lane.b32.xlu0 %v426, 8
    %v1233 = vpop.permute.xlu0 %1232
    %1234 = vrot.lane.b32.xlu0 %v427, 8
    %v1235 = vpop.permute.xlu0 %1234
    %1236 = vrot.lane.b32.xlu0 %v428, 8
    %v1237 = vpop.permute.xlu0 %1236
    %1238 = vrot.lane.b32.xlu0 %v429, 8
    %v1239 = vpop.permute.xlu0 %1238
    %1240 = vrot.lane.b32.xlu0 %v430, 8
    %v1241 = vpop.permute.xlu0 %1240
    %1242 = vrot.lane.b32.xlu0 %v431, 8
    %v1243 = vpop.permute.xlu0 %1242
    %1244 = vrot.lane.b32.xlu0 %v432, 8
    %v1245 = vpop.permute.xlu0 %1244
    %1246 = vrot.lane.b32.xlu0 %v433, 8
    %v1247 = vpop.permute.xlu0 %1246
    %1248 = vrot.lane.b32.xlu0 %v434, 8
    %v1249 = vpop.permute.xlu0 %1248
    %1250 = vrot.lane.b32.xlu0 %v435, 8
    %v1251 = vpop.permute.xlu0 %1250
    %1252 = vrot.lane.b32.xlu0 %v436, 8
    %v1253 = vpop.permute.xlu0 %1252
    %1254 = vrot.lane.b32.xlu0 %v437, 8
    %v1255 = vpop.permute.xlu0 %1254
    %1256 = vrot.lane.b32.xlu0 %v438, 8
    %v1257 = vpop.permute.xlu0 %1256
    %1258 = vrot.lane.b32.xlu0 %v439, 8
    %v1259 = vpop.permute.xlu0 %1258
    %1260 = vrot.lane.b32.xlu0 %v440, 8
    %v1261 = vpop.permute.xlu0 %1260
    %1262 = vrot.lane.b32.xlu0 %v441, 8
    %v1263 = vpop.permute.xlu0 %1262
    %1264 = vrot.lane.b32.xlu0 %v442, 8
    %v1265 = vpop.permute.xlu0 %1264
    %1266 = vrot.lane.b32.xlu0 %v443, 8
    %v1267 = vpop.permute.xlu0 %1266
    %1268 = vrot.lane.b32.xlu0 %v444, 8
    %v1269 = vpop.permute.xlu0 %1268
    %1270 = vrot.lane.b32.xlu0 %v445, 8
    %v1271 = vpop.permute.xlu0 %1270
    %1272 = vrot.lane.b32.xlu0 %v446, 8
    %v1273 = vpop.permute.xlu0 %1272
    %1274 = vrot.lane.b32.xlu0 %v447, 8
    %v1275 = vpop.permute.xlu0 %1274
    %1276 = vrot.lane.b32.xlu0 %v448, 8
    %v1277 = vpop.permute.xlu0 %1276
    %1278 = vrot.lane.b32.xlu0 %v449, 8
    %v1279 = vpop.permute.xlu0 %1278
    %1280 = vrot.lane.b32.xlu0 %v450, 8
    %v1281 = vpop.permute.xlu0 %1280
    %1282 = vrot.lane.b32.xlu0 %v451, 8
    %v1283 = vpop.permute.xlu0 %1282
    %1284 = vrot.lane.b32.xlu0 %v452, 8
    %v1285 = vpop.permute.xlu0 %1284
    %1414 = vrot.lane.b32.xlu0 %v453, 12
    %v1415 = vpop.permute.xlu0 %1414
    %1416 = vrot.lane.b32.xlu0 %v454, 12
    %v1417 = vpop.permute.xlu0 %1416
    %1418 = vrot.lane.b32.xlu0 %v455, 12
    %v1419 = vpop.permute.xlu0 %1418
    %1420 = vrot.lane.b32.xlu0 %v456, 12
    %v1421 = vpop.permute.xlu0 %1420
    %1422 = vrot.lane.b32.xlu0 %v457, 12
    %v1423 = vpop.permute.xlu0 %1422
    %1424 = vrot.lane.b32.xlu0 %v458, 12
    %v1425 = vpop.permute.xlu0 %1424
    %1426 = vrot.lane.b32.xlu0 %v459, 12
    %v1427 = vpop.permute.xlu0 %1426
    %1428 = vrot.lane.b32.xlu0 %v460, 12
    %v1429 = vpop.permute.xlu0 %1428
    %1430 = vrot.lane.b32.xlu0 %v461, 12
    %v1431 = vpop.permute.xlu0 %1430
    %1432 = vrot.lane.b32.xlu0 %v462, 12
    %v1433 = vpop.permute.xlu0 %1432
    %1434 = vrot.lane.b32.xlu0 %v463, 12
    %v1435 = vpop.permute.xlu0 %1434
    %1436 = vrot.lane.b32.xlu0 %v464, 12
    %v1437 = vpop.permute.xlu0 %1436
    %1438 = vrot.lane.b32.xlu0 %v465, 12
    %v1439 = vpop.permute.xlu0 %1438
    %1440 = vrot.lane.b32.xlu0 %v466, 12
    %v1441 = vpop.permute.xlu0 %1440
    %1442 = vrot.lane.b32.xlu0 %v467, 12
    %v1443 = vpop.permute.xlu0 %1442
    %1444 = vrot.lane.b32.xlu0 %v468, 12
    %v1445 = vpop.permute.xlu0 %1444
    %1446 = vrot.lane.b32.xlu0 %v469, 12
    %v1447 = vpop.permute.xlu0 %1446
    %1448 = vrot.lane.b32.xlu0 %v470, 12
    %v1449 = vpop.permute.xlu0 %1448
    %1450 = vrot.lane.b32.xlu0 %v471, 12
    %v1451 = vpop.permute.xlu0 %1450
    %1452 = vrot.lane.b32.xlu0 %v472, 12
    %v1453 = vpop.permute.xlu0 %1452
    %1454 = vrot.lane.b32.xlu0 %v473, 12
    %v1455 = vpop.permute.xlu0 %1454
    %1456 = vrot.lane.b32.xlu0 %v474, 12
    %v1457 = vpop.permute.xlu0 %1456
    %1458 = vrot.lane.b32.xlu0 %v475, 12
    %v1459 = vpop.permute.xlu0 %1458
    %1460 = vrot.lane.b32.xlu0 %v476, 12
    %v1461 = vpop.permute.xlu0 %1460
    %1462 = vrot.lane.b32.xlu0 %v477, 12
    %v1463 = vpop.permute.xlu0 %1462
    %1464 = vrot.lane.b32.xlu0 %v478, 12
    %v1465 = vpop.permute.xlu0 %1464
    %1466 = vrot.lane.b32.xlu0 %v479, 12
    %v1467 = vpop.permute.xlu0 %1466
    %1468 = vrot.lane.b32.xlu0 %v480, 12
    %v1469 = vpop.permute.xlu0 %1468
    %1470 = vrot.lane.b32.xlu0 %v481, 12
    %v1471 = vpop.permute.xlu0 %1470
    %1472 = vrot.lane.b32.xlu0 %v482, 12
    %v1473 = vpop.permute.xlu0 %1472
    %1474 = vrot.lane.b32.xlu0 %v483, 12
    %v1475 = vpop.permute.xlu0 %1474
    %1476 = vrot.lane.b32.xlu0 %v484, 12
    %v1477 = vpop.permute.xlu0 %1476
    %1478 = vrot.lane.b32.xlu0 %v485, 12
    %v1479 = vpop.permute.xlu0 %1478
    %1480 = vrot.lane.b32.xlu0 %v486, 12
    %v1481 = vpop.permute.xlu0 %1480
    %1482 = vrot.lane.b32.xlu0 %v487, 12
    %v1483 = vpop.permute.xlu0 %1482
    %1484 = vrot.lane.b32.xlu0 %v488, 12
    %v1485 = vpop.permute.xlu0 %1484
    %1486 = vrot.lane.b32.xlu0 %v489, 12
    %v1487 = vpop.permute.xlu0 %1486
    %1488 = vrot.lane.b32.xlu0 %v490, 12
    %v1489 = vpop.permute.xlu0 %1488
    %1490 = vrot.lane.b32.xlu0 %v491, 12
    %v1491 = vpop.permute.xlu0 %1490
    %1492 = vrot.lane.b32.xlu0 %v492, 12
    %v1493 = vpop.permute.xlu0 %1492
    %1494 = vrot.lane.b32.xlu0 %v493, 12
    %v1495 = vpop.permute.xlu0 %1494
    %1496 = vrot.lane.b32.xlu0 %v494, 12
    %v1497 = vpop.permute.xlu0 %1496
    %1498 = vrot.lane.b32.xlu0 %v495, 12
    %v1499 = vpop.permute.xlu0 %1498
    %1500 = vrot.lane.b32.xlu0 %v496, 12
    %v1501 = vpop.permute.xlu0 %1500
    %1502 = vrot.lane.b32.xlu0 %v497, 12
    %v1503 = vpop.permute.xlu0 %1502
    %1504 = vrot.lane.b32.xlu0 %v498, 12
    %v1505 = vpop.permute.xlu0 %1504
    %1506 = vrot.lane.b32.xlu0 %v499, 12
    %v1507 = vpop.permute.xlu0 %1506
    %1508 = vrot.lane.b32.xlu0 %v500, 12
    %v1509 = vpop.permute.xlu0 %1508
    %1510 = vrot.lane.b32.xlu0 %v501, 12
    %v1511 = vpop.permute.xlu0 %1510
    %1512 = vrot.lane.b32.xlu0 %v502, 12
    %v1513 = vpop.permute.xlu0 %1512
    %1514 = vrot.lane.b32.xlu0 %v503, 12
    %v1515 = vpop.permute.xlu0 %1514
    %1516 = vrot.lane.b32.xlu0 %v504, 12
    %v1517 = vpop.permute.xlu0 %1516
    %1518 = vrot.lane.b32.xlu0 %v505, 12
    %v1519 = vpop.permute.xlu0 %1518
    %1520 = vrot.lane.b32.xlu0 %v506, 12
    %v1521 = vpop.permute.xlu0 %1520
    %1522 = vrot.lane.b32.xlu0 %v507, 12
    %v1523 = vpop.permute.xlu0 %1522
    %1524 = vrot.lane.b32.xlu0 %v508, 12
    %v1525 = vpop.permute.xlu0 %1524
    %1526 = vrot.lane.b32.xlu0 %v509, 12
    %v1527 = vpop.permute.xlu0 %1526
    %1528 = vrot.lane.b32.xlu0 %v510, 12
    %v1529 = vpop.permute.xlu0 %1528
    %1530 = vrot.lane.b32.xlu0 %v511, 12
    %v1531 = vpop.permute.xlu0 %1530
    %1532 = vrot.lane.b32.xlu0 %v512, 12
    %v1533 = vpop.permute.xlu0 %1532
    %1534 = vrot.lane.b32.xlu0 %v513, 12
    %v1535 = vpop.permute.xlu0 %1534
    %1536 = vrot.lane.b32.xlu0 %v514, 12
    %v1537 = vpop.permute.xlu0 %1536
    %1538 = vrot.lane.b32.xlu0 %v515, 12
    %v1539 = vpop.permute.xlu0 %1538
    %1540 = vrot.lane.b32.xlu0 %v516, 12
    %v1541 = vpop.permute.xlu0 %1540
    %1670 = vrot.lane.b32.xlu0 %v517, 16
    %v1671 = vpop.permute.xlu0 %1670
    %1672 = vrot.lane.b32.xlu0 %v518, 16
    %v1673 = vpop.permute.xlu0 %1672
    %1674 = vrot.lane.b32.xlu0 %v519, 16
    %v1675 = vpop.permute.xlu0 %1674
    %1676 = vrot.lane.b32.xlu0 %v520, 16
    %v1677 = vpop.permute.xlu0 %1676
    %1678 = vrot.lane.b32.xlu0 %v521, 16
    %v1679 = vpop.permute.xlu0 %1678
    %1680 = vrot.lane.b32.xlu0 %v522, 16
    %v1681 = vpop.permute.xlu0 %1680
    %1682 = vrot.lane.b32.xlu0 %v523, 16
    %v1683 = vpop.permute.xlu0 %1682
    %1684 = vrot.lane.b32.xlu0 %v524, 16
    %v1685 = vpop.permute.xlu0 %1684
    %1686 = vrot.lane.b32.xlu0 %v525, 16
    %v1687 = vpop.permute.xlu0 %1686
    %1688 = vrot.lane.b32.xlu0 %v526, 16
    %v1689 = vpop.permute.xlu0 %1688
    %1690 = vrot.lane.b32.xlu0 %v527, 16
    %v1691 = vpop.permute.xlu0 %1690
    %1692 = vrot.lane.b32.xlu0 %v528, 16
    %v1693 = vpop.permute.xlu0 %1692
    %1694 = vrot.lane.b32.xlu0 %v529, 16
    %v1695 = vpop.permute.xlu0 %1694
    %1696 = vrot.lane.b32.xlu0 %v530, 16
    %v1697 = vpop.permute.xlu0 %1696
    %1698 = vrot.lane.b32.xlu0 %v531, 16
    %v1699 = vpop.permute.xlu0 %1698
    %1700 = vrot.lane.b32.xlu0 %v532, 16
    %v1701 = vpop.permute.xlu0 %1700
    %1702 = vrot.lane.b32.xlu0 %v533, 16
    %v1703 = vpop.permute.xlu0 %1702
    %1704 = vrot.lane.b32.xlu0 %v534, 16
    %v1705 = vpop.permute.xlu0 %1704
    %1706 = vrot.lane.b32.xlu0 %v535, 16
    %v1707 = vpop.permute.xlu0 %1706
    %1708 = vrot.lane.b32.xlu0 %v536, 16
    %v1709 = vpop.permute.xlu0 %1708
    %1710 = vrot.lane.b32.xlu0 %v537, 16
    %v1711 = vpop.permute.xlu0 %1710
    %1712 = vrot.lane.b32.xlu0 %v538, 16
    %v1713 = vpop.permute.xlu0 %1712
    %1714 = vrot.lane.b32.xlu0 %v539, 16
    %v1715 = vpop.permute.xlu0 %1714
    %1716 = vrot.lane.b32.xlu0 %v540, 16
    %v1717 = vpop.permute.xlu0 %1716
    %1718 = vrot.lane.b32.xlu0 %v541, 16
    %v1719 = vpop.permute.xlu0 %1718
    %1720 = vrot.lane.b32.xlu0 %v542, 16
    %v1721 = vpop.permute.xlu0 %1720
    %1722 = vrot.lane.b32.xlu0 %v543, 16
    %v1723 = vpop.permute.xlu0 %1722
    %1724 = vrot.lane.b32.xlu0 %v544, 16
    %v1725 = vpop.permute.xlu0 %1724
    %1726 = vrot.lane.b32.xlu0 %v545, 16
    %v1727 = vpop.permute.xlu0 %1726
    %1728 = vrot.lane.b32.xlu0 %v546, 16
    %v1729 = vpop.permute.xlu0 %1728
    %1730 = vrot.lane.b32.xlu0 %v547, 16
    %v1731 = vpop.permute.xlu0 %1730
    %1732 = vrot.lane.b32.xlu0 %v548, 16
    %v1733 = vpop.permute.xlu0 %1732
    %1734 = vrot.lane.b32.xlu0 %v549, 16
    %v1735 = vpop.permute.xlu0 %1734
    %1736 = vrot.lane.b32.xlu0 %v550, 16
    %v1737 = vpop.permute.xlu0 %1736
    %1738 = vrot.lane.b32.xlu0 %v551, 16
    %v1739 = vpop.permute.xlu0 %1738
    %1740 = vrot.lane.b32.xlu0 %v552, 16
    %v1741 = vpop.permute.xlu0 %1740
    %1742 = vrot.lane.b32.xlu0 %v553, 16
    %v1743 = vpop.permute.xlu0 %1742
    %1744 = vrot.lane.b32.xlu0 %v554, 16
    %v1745 = vpop.permute.xlu0 %1744
    %1746 = vrot.lane.b32.xlu0 %v555, 16
    %v1747 = vpop.permute.xlu0 %1746
    %1748 = vrot.lane.b32.xlu0 %v556, 16
    %v1749 = vpop.permute.xlu0 %1748
    %1750 = vrot.lane.b32.xlu0 %v557, 16
    %v1751 = vpop.permute.xlu0 %1750
    %1752 = vrot.lane.b32.xlu0 %v558, 16
    %v1753 = vpop.permute.xlu0 %1752
    %1754 = vrot.lane.b32.xlu0 %v559, 16
    %v1755 = vpop.permute.xlu0 %1754
    %1756 = vrot.lane.b32.xlu0 %v560, 16
    %v1757 = vpop.permute.xlu0 %1756
    %1758 = vrot.lane.b32.xlu0 %v561, 16
    %v1759 = vpop.permute.xlu0 %1758
    %1760 = vrot.lane.b32.xlu0 %v562, 16
    %v1761 = vpop.permute.xlu0 %1760
    %1762 = vrot.lane.b32.xlu0 %v563, 16
    %v1763 = vpop.permute.xlu0 %1762
    %1764 = vrot.lane.b32.xlu0 %v564, 16
    %v1765 = vpop.permute.xlu0 %1764
    %1766 = vrot.lane.b32.xlu0 %v565, 16
    %v1767 = vpop.permute.xlu0 %1766
    %1768 = vrot.lane.b32.xlu0 %v566, 16
    %v1769 = vpop.permute.xlu0 %1768
    %1770 = vrot.lane.b32.xlu0 %v567, 16
    %v1771 = vpop.permute.xlu0 %1770
    %1772 = vrot.lane.b32.xlu0 %v568, 16
    %v1773 = vpop.permute.xlu0 %1772
    %1774 = vrot.lane.b32.xlu0 %v569, 16
    %v1775 = vpop.permute.xlu0 %1774
    %1776 = vrot.lane.b32.xlu0 %v570, 16
    %v1777 = vpop.permute.xlu0 %1776
    %1778 = vrot.lane.b32.xlu0 %v571, 16
    %v1779 = vpop.permute.xlu0 %1778
    %1780 = vrot.lane.b32.xlu0 %v572, 16
    %v1781 = vpop.permute.xlu0 %1780
    %1782 = vrot.lane.b32.xlu0 %v573, 16
    %v1783 = vpop.permute.xlu0 %1782
    %1784 = vrot.lane.b32.xlu0 %v574, 16
    %v1785 = vpop.permute.xlu0 %1784
    %1786 = vrot.lane.b32.xlu0 %v575, 16
    %v1787 = vpop.permute.xlu0 %1786
    %1788 = vrot.lane.b32.xlu0 %v576, 16
    %v1789 = vpop.permute.xlu0 %1788
    %1790 = vrot.lane.b32.xlu0 %v577, 16
    %v1791 = vpop.permute.xlu0 %1790
    %1792 = vrot.lane.b32.xlu0 %v578, 16
    %v1793 = vpop.permute.xlu0 %1792
    %1794 = vrot.lane.b32.xlu0 %v579, 16
    %v1795 = vpop.permute.xlu0 %1794
    %1796 = vrot.lane.b32.xlu0 %v580, 16
    %v1797 = vpop.permute.xlu0 %1796
    %1926 = vrot.lane.b32.xlu0 %v581, 20
    %v1927 = vpop.permute.xlu0 %1926
    %1928 = vrot.lane.b32.xlu0 %v582, 20
    %v1929 = vpop.permute.xlu0 %1928
    %1930 = vrot.lane.b32.xlu0 %v583, 20
    %v1931 = vpop.permute.xlu0 %1930
    %1932 = vrot.lane.b32.xlu0 %v584, 20
    %v1933 = vpop.permute.xlu0 %1932
    %1934 = vrot.lane.b32.xlu0 %v585, 20
    %v1935 = vpop.permute.xlu0 %1934
    %1936 = vrot.lane.b32.xlu0 %v586, 20
    %v1937 = vpop.permute.xlu0 %1936
    %1938 = vrot.lane.b32.xlu0 %v587, 20
    %v1939 = vpop.permute.xlu0 %1938
    %1940 = vrot.lane.b32.xlu0 %v588, 20
    %v1941 = vpop.permute.xlu0 %1940
    %1942 = vrot.lane.b32.xlu0 %v589, 20
    %v1943 = vpop.permute.xlu0 %1942
    %1944 = vrot.lane.b32.xlu0 %v590, 20
    %v1945 = vpop.permute.xlu0 %1944
    %1946 = vrot.lane.b32.xlu0 %v591, 20
    %v1947 = vpop.permute.xlu0 %1946
    %1948 = vrot.lane.b32.xlu0 %v592, 20
    %v1949 = vpop.permute.xlu0 %1948
    %1950 = vrot.lane.b32.xlu0 %v593, 20
    %v1951 = vpop.permute.xlu0 %1950
    %1952 = vrot.lane.b32.xlu0 %v594, 20
    %v1953 = vpop.permute.xlu0 %1952
    %1954 = vrot.lane.b32.xlu0 %v595, 20
    %v1955 = vpop.permute.xlu0 %1954
    %1956 = vrot.lane.b32.xlu0 %v596, 20
    %v1957 = vpop.permute.xlu0 %1956
    %1958 = vrot.lane.b32.xlu0 %v597, 20
    %v1959 = vpop.permute.xlu0 %1958
    %1960 = vrot.lane.b32.xlu0 %v598, 20
    %v1961 = vpop.permute.xlu0 %1960
    %1962 = vrot.lane.b32.xlu0 %v599, 20
    %v1963 = vpop.permute.xlu0 %1962
    %1964 = vrot.lane.b32.xlu0 %v600, 20
    %v1965 = vpop.permute.xlu0 %1964
    %1966 = vrot.lane.b32.xlu0 %v601, 20
    %v1967 = vpop.permute.xlu0 %1966
    %1968 = vrot.lane.b32.xlu0 %v602, 20
    %v1969 = vpop.permute.xlu0 %1968
    %1970 = vrot.lane.b32.xlu0 %v603, 20
    %v1971 = vpop.permute.xlu0 %1970
    %1972 = vrot.lane.b32.xlu0 %v604, 20
    %v1973 = vpop.permute.xlu0 %1972
    %1974 = vrot.lane.b32.xlu0 %v605, 20
    %v1975 = vpop.permute.xlu0 %1974
    %1976 = vrot.lane.b32.xlu0 %v606, 20
    %v1977 = vpop.permute.xlu0 %1976
    %1978 = vrot.lane.b32.xlu0 %v607, 20
    %v1979 = vpop.permute.xlu0 %1978
    %1980 = vrot.lane.b32.xlu0 %v608, 20
    %v1981 = vpop.permute.xlu0 %1980
    %1982 = vrot.lane.b32.xlu0 %v609, 20
    %v1983 = vpop.permute.xlu0 %1982
    %1984 = vrot.lane.b32.xlu0 %v610, 20
    %v1985 = vpop.permute.xlu0 %1984
    %1986 = vrot.lane.b32.xlu0 %v611, 20
    %v1987 = vpop.permute.xlu0 %1986
    %1988 = vrot.lane.b32.xlu0 %v612, 20
    %v1989 = vpop.permute.xlu0 %1988
    %1990 = vrot.lane.b32.xlu0 %v613, 20
    %v1991 = vpop.permute.xlu0 %1990
    %1992 = vrot.lane.b32.xlu0 %v614, 20
    %v1993 = vpop.permute.xlu0 %1992
    %1994 = vrot.lane.b32.xlu0 %v615, 20
    %v1995 = vpop.permute.xlu0 %1994
    %1996 = vrot.lane.b32.xlu0 %v616, 20
    %v1997 = vpop.permute.xlu0 %1996
    %1998 = vrot.lane.b32.xlu0 %v617, 20
    %v1999 = vpop.permute.xlu0 %1998
    %2000 = vrot.lane.b32.xlu0 %v618, 20
    %v2001 = vpop.permute.xlu0 %2000
    %2002 = vrot.lane.b32.xlu0 %v619, 20
    %v2003 = vpop.permute.xlu0 %2002
    %2004 = vrot.lane.b32.xlu0 %v620, 20
    %v2005 = vpop.permute.xlu0 %2004
    %2006 = vrot.lane.b32.xlu0 %v621, 20
    %v2007 = vpop.permute.xlu0 %2006
    %2008 = vrot.lane.b32.xlu0 %v622, 20
    %v2009 = vpop.permute.xlu0 %2008
    %2010 = vrot.lane.b32.xlu0 %v623, 20
    %v2011 = vpop.permute.xlu0 %2010
    %2012 = vrot.lane.b32.xlu0 %v624, 20
    %v2013 = vpop.permute.xlu0 %2012
    %2014 = vrot.lane.b32.xlu0 %v625, 20
    %v2015 = vpop.permute.xlu0 %2014
    %2016 = vrot.lane.b32.xlu0 %v626, 20
    %v2017 = vpop.permute.xlu0 %2016
    %2018 = vrot.lane.b32.xlu0 %v627, 20
    %v2019 = vpop.permute.xlu0 %2018
    %2020 = vrot.lane.b32.xlu0 %v628, 20
    %v2021 = vpop.permute.xlu0 %2020
    %2022 = vrot.lane.b32.xlu0 %v629, 20
    %v2023 = vpop.permute.xlu0 %2022
    %2024 = vrot.lane.b32.xlu0 %v630, 20
    %v2025 = vpop.permute.xlu0 %2024
    %2026 = vrot.lane.b32.xlu0 %v631, 20
    %v2027 = vpop.permute.xlu0 %2026
    %2028 = vrot.lane.b32.xlu0 %v632, 20
    %v2029 = vpop.permute.xlu0 %2028
    %2030 = vrot.lane.b32.xlu0 %v633, 20
    %v2031 = vpop.permute.xlu0 %2030
    %2032 = vrot.lane.b32.xlu0 %v634, 20
    %v2033 = vpop.permute.xlu0 %2032
    %2034 = vrot.lane.b32.xlu0 %v635, 20
    %v2035 = vpop.permute.xlu0 %2034
    %2036 = vrot.lane.b32.xlu0 %v636, 20
    %v2037 = vpop.permute.xlu0 %2036
    %2038 = vrot.lane.b32.xlu0 %v637, 20
    %v2039 = vpop.permute.xlu0 %2038
    %2040 = vrot.lane.b32.xlu0 %v638, 20
    %v2041 = vpop.permute.xlu0 %2040
    %2042 = vrot.lane.b32.xlu0 %v639, 20
    %v2043 = vpop.permute.xlu0 %2042
    %2044 = vrot.lane.b32.xlu0 %v640, 20
    %v2045 = vpop.permute.xlu0 %2044
    %2046 = vrot.lane.b32.xlu0 %v641, 20
    %v2047 = vpop.permute.xlu0 %2046
    %2048 = vrot.lane.b32.xlu0 %v642, 20
    %v2049 = vpop.permute.xlu0 %2048
    %2050 = vrot.lane.b32.xlu0 %v643, 20
    %v2051 = vpop.permute.xlu0 %2050
    %2052 = vrot.lane.b32.xlu0 %v644, 20
    %v2053 = vpop.permute.xlu0 %2052
    %2182 = vrot.lane.b32.xlu0 %v646, 24
    %v2183 = vpop.permute.xlu0 %2182
    %2184 = vrot.lane.b32.xlu0 %v647, 24
    %v2185 = vpop.permute.xlu0 %2184
    %2186 = vrot.lane.b32.xlu0 %v648, 24
    %v2187 = vpop.permute.xlu0 %2186
    %2188 = vrot.lane.b32.xlu0 %v649, 24
    %v2189 = vpop.permute.xlu0 %2188
    %2190 = vrot.lane.b32.xlu0 %v650, 24
    %v2191 = vpop.permute.xlu0 %2190
    %2192 = vrot.lane.b32.xlu0 %v651, 24
    %v2193 = vpop.permute.xlu0 %2192
    %2194 = vrot.lane.b32.xlu0 %v652, 24
    %v2195 = vpop.permute.xlu0 %2194
    %2196 = vrot.lane.b32.xlu0 %v653, 24
    %v2197 = vpop.permute.xlu0 %2196
    %2198 = vrot.lane.b32.xlu0 %v654, 24
    %v2199 = vpop.permute.xlu0 %2198
    %2200 = vrot.lane.b32.xlu0 %v655, 24
    %v2201 = vpop.permute.xlu0 %2200
    %2202 = vrot.lane.b32.xlu0 %v656, 24
    %v2203 = vpop.permute.xlu0 %2202
    %2204 = vrot.lane.b32.xlu0 %v657, 24
    %v2205 = vpop.permute.xlu0 %2204
    %2206 = vrot.lane.b32.xlu0 %v658, 24
    %v2207 = vpop.permute.xlu0 %2206
    %2208 = vrot.lane.b32.xlu0 %v659, 24
    %v2209 = vpop.permute.xlu0 %2208
    %2210 = vrot.lane.b32.xlu0 %v660, 24
    %v2211 = vpop.permute.xlu0 %2210
    %2212 = vrot.lane.b32.xlu0 %v661, 24
    %v2213 = vpop.permute.xlu0 %2212
    %2214 = vrot.lane.b32.xlu0 %v662, 24
    %v2215 = vpop.permute.xlu0 %2214
    %2216 = vrot.lane.b32.xlu0 %v663, 24
    %v2217 = vpop.permute.xlu0 %2216
    %2218 = vrot.lane.b32.xlu0 %v664, 24
    %v2219 = vpop.permute.xlu0 %2218
    %2220 = vrot.lane.b32.xlu0 %v665, 24
    %v2221 = vpop.permute.xlu0 %2220
    %2222 = vrot.lane.b32.xlu0 %v666, 24
    %v2223 = vpop.permute.xlu0 %2222
    %2224 = vrot.lane.b32.xlu0 %v667, 24
    %v2225 = vpop.permute.xlu0 %2224
    %2226 = vrot.lane.b32.xlu0 %v668, 24
    %v2227 = vpop.permute.xlu0 %2226
    %2228 = vrot.lane.b32.xlu0 %v669, 24
    %v2229 = vpop.permute.xlu0 %2228
    %2230 = vrot.lane.b32.xlu0 %v670, 24
    %v2231 = vpop.permute.xlu0 %2230
    %2232 = vrot.lane.b32.xlu0 %v671, 24
    %v2233 = vpop.permute.xlu0 %2232
    %2234 = vrot.lane.b32.xlu0 %v672, 24
    %v2235 = vpop.permute.xlu0 %2234
    %2236 = vrot.lane.b32.xlu0 %v673, 24
    %v2237 = vpop.permute.xlu0 %2236
    %2238 = vrot.lane.b32.xlu0 %v674, 24
    %v2239 = vpop.permute.xlu0 %2238
    %2240 = vrot.lane.b32.xlu0 %v675, 24
    %v2241 = vpop.permute.xlu0 %2240
    %2242 = vrot.lane.b32.xlu0 %v676, 24
    %v2243 = vpop.permute.xlu0 %2242
    %2244 = vrot.lane.b32.xlu0 %v677, 24
    %v2245 = vpop.permute.xlu0 %2244
    %2246 = vrot.lane.b32.xlu0 %v678, 24
    %v2247 = vpop.permute.xlu0 %2246
    %2248 = vrot.lane.b32.xlu0 %v679, 24
    %v2249 = vpop.permute.xlu0 %2248
    %2250 = vrot.lane.b32.xlu0 %v680, 24
    %v2251 = vpop.permute.xlu0 %2250
    %2252 = vrot.lane.b32.xlu0 %v681, 24
    %v2253 = vpop.permute.xlu0 %2252
    %2254 = vrot.lane.b32.xlu0 %v682, 24
    %v2255 = vpop.permute.xlu0 %2254
    %2256 = vrot.lane.b32.xlu0 %v683, 24
    %v2257 = vpop.permute.xlu0 %2256
    %2258 = vrot.lane.b32.xlu0 %v684, 24
    %v2259 = vpop.permute.xlu0 %2258
    %2260 = vrot.lane.b32.xlu0 %v685, 24
    %v2261 = vpop.permute.xlu0 %2260
    %2262 = vrot.lane.b32.xlu0 %v686, 24
    %v2263 = vpop.permute.xlu0 %2262
    %2264 = vrot.lane.b32.xlu0 %v687, 24
    %v2265 = vpop.permute.xlu0 %2264
    %2266 = vrot.lane.b32.xlu0 %v688, 24
    %v2267 = vpop.permute.xlu0 %2266
    %2268 = vrot.lane.b32.xlu0 %v689, 24
    %v2269 = vpop.permute.xlu0 %2268
    %2270 = vrot.lane.b32.xlu0 %v690, 24
    %v2271 = vpop.permute.xlu0 %2270
    %2272 = vrot.lane.b32.xlu0 %v691, 24
    %v2273 = vpop.permute.xlu0 %2272
    %2274 = vrot.lane.b32.xlu0 %v692, 24
    %v2275 = vpop.permute.xlu0 %2274
    %2276 = vrot.lane.b32.xlu0 %v693, 24
    %v2277 = vpop.permute.xlu0 %2276
    %2278 = vrot.lane.b32.xlu0 %v694, 24
    %v2279 = vpop.permute.xlu0 %2278
    %2280 = vrot.lane.b32.xlu0 %v695, 24
    %v2281 = vpop.permute.xlu0 %2280
    %2282 = vrot.lane.b32.xlu0 %v696, 24
    %v2283 = vpop.permute.xlu0 %2282
    %2284 = vrot.lane.b32.xlu0 %v697, 24
    %v2285 = vpop.permute.xlu0 %2284
    %2286 = vrot.lane.b32.xlu0 %v698, 24
    %v2287 = vpop.permute.xlu0 %2286
    %2288 = vrot.lane.b32.xlu0 %v699, 24
    %v2289 = vpop.permute.xlu0 %2288
    %2290 = vrot.lane.b32.xlu0 %v700, 24
    %v2291 = vpop.permute.xlu0 %2290
    %2292 = vrot.lane.b32.xlu0 %v701, 24
    %v2293 = vpop.permute.xlu0 %2292
    %2294 = vrot.lane.b32.xlu0 %v702, 24
    %v2295 = vpop.permute.xlu0 %2294
    %2296 = vrot.lane.b32.xlu0 %v703, 24
    %v2297 = vpop.permute.xlu0 %2296
    %2298 = vrot.lane.b32.xlu0 %v704, 24
    %v2299 = vpop.permute.xlu0 %2298
    %2300 = vrot.lane.b32.xlu0 %v705, 24
    %v2301 = vpop.permute.xlu0 %2300
    %2302 = vrot.lane.b32.xlu0 %v706, 24
    %v2303 = vpop.permute.xlu0 %2302
    %2304 = vrot.lane.b32.xlu0 %v707, 24
    %v2305 = vpop.permute.xlu0 %2304
    %2306 = vrot.lane.b32.xlu0 %v708, 24
    %v2307 = vpop.permute.xlu0 %2306
    %2308 = vrot.lane.b32.xlu0 %v709, 24
    %v2309 = vpop.permute.xlu0 %2308
    %2438 = vrot.lane.b32.xlu0 %v710, 28
    %v2439 = vpop.permute.xlu0 %2438
    %2440 = vrot.lane.b32.xlu0 %v711, 28
    %v2441 = vpop.permute.xlu0 %2440
    %2442 = vrot.lane.b32.xlu0 %v712, 28
    %v2443 = vpop.permute.xlu0 %2442
    %2444 = vrot.lane.b32.xlu0 %v713, 28
    %v2445 = vpop.permute.xlu0 %2444
    %2446 = vrot.lane.b32.xlu0 %v714, 28
    %v2447 = vpop.permute.xlu0 %2446
    %2448 = vrot.lane.b32.xlu0 %v715, 28
    %v2449 = vpop.permute.xlu0 %2448
    %2450 = vrot.lane.b32.xlu0 %v716, 28
    %v2451 = vpop.permute.xlu0 %2450
    %2452 = vrot.lane.b32.xlu0 %v717, 28
    %v2453 = vpop.permute.xlu0 %2452
    %2454 = vrot.lane.b32.xlu0 %v718, 28
    %v2455 = vpop.permute.xlu0 %2454
    %2456 = vrot.lane.b32.xlu0 %v719, 28
    %v2457 = vpop.permute.xlu0 %2456
    %2458 = vrot.lane.b32.xlu0 %v720, 28
    %v2459 = vpop.permute.xlu0 %2458
    %2460 = vrot.lane.b32.xlu0 %v721, 28
    %v2461 = vpop.permute.xlu0 %2460
    %2462 = vrot.lane.b32.xlu0 %v722, 28
    %v2463 = vpop.permute.xlu0 %2462
    %2464 = vrot.lane.b32.xlu0 %v723, 28
    %v2465 = vpop.permute.xlu0 %2464
    %2466 = vrot.lane.b32.xlu0 %v724, 28
    %v2467 = vpop.permute.xlu0 %2466
    %2468 = vrot.lane.b32.xlu0 %v725, 28
    %v2469 = vpop.permute.xlu0 %2468
    %2470 = vrot.lane.b32.xlu0 %v726, 28
    %v2471 = vpop.permute.xlu0 %2470
    %2472 = vrot.lane.b32.xlu0 %v727, 28
    %v2473 = vpop.permute.xlu0 %2472
    %2474 = vrot.lane.b32.xlu0 %v728, 28
    %v2475 = vpop.permute.xlu0 %2474
    %2476 = vrot.lane.b32.xlu0 %v729, 28
    %v2477 = vpop.permute.xlu0 %2476
    %2478 = vrot.lane.b32.xlu0 %v730, 28
    %v2479 = vpop.permute.xlu0 %2478
    %2480 = vrot.lane.b32.xlu0 %v731, 28
    %v2481 = vpop.permute.xlu0 %2480
    %2482 = vrot.lane.b32.xlu0 %v732, 28
    %v2483 = vpop.permute.xlu0 %2482
    %2484 = vrot.lane.b32.xlu0 %v733, 28
    %v2485 = vpop.permute.xlu0 %2484
    %2486 = vrot.lane.b32.xlu0 %v734, 28
    %v2487 = vpop.permute.xlu0 %2486
    %2488 = vrot.lane.b32.xlu0 %v735, 28
    %v2489 = vpop.permute.xlu0 %2488
    %2490 = vrot.lane.b32.xlu0 %v736, 28
    %v2491 = vpop.permute.xlu0 %2490
    %2492 = vrot.lane.b32.xlu0 %v737, 28
    %v2493 = vpop.permute.xlu0 %2492
    %2494 = vrot.lane.b32.xlu0 %v738, 28
    %v2495 = vpop.permute.xlu0 %2494
    %2496 = vrot.lane.b32.xlu0 %v739, 28
    %v2497 = vpop.permute.xlu0 %2496
    %2498 = vrot.lane.b32.xlu0 %v740, 28
    %v2499 = vpop.permute.xlu0 %2498
    %2500 = vrot.lane.b32.xlu0 %v741, 28
    %v2501 = vpop.permute.xlu0 %2500
    %2502 = vrot.lane.b32.xlu0 %v742, 28
    %v2503 = vpop.permute.xlu0 %2502
    %2504 = vrot.lane.b32.xlu0 %v743, 28
    %v2505 = vpop.permute.xlu0 %2504
    %2506 = vrot.lane.b32.xlu0 %v744, 28
    %v2507 = vpop.permute.xlu0 %2506
    %2508 = vrot.lane.b32.xlu0 %v745, 28
    %v2509 = vpop.permute.xlu0 %2508
    %2510 = vrot.lane.b32.xlu0 %v746, 28
    %v2511 = vpop.permute.xlu0 %2510
    %2512 = vrot.lane.b32.xlu0 %v747, 28
    %v2513 = vpop.permute.xlu0 %2512
    %2514 = vrot.lane.b32.xlu0 %v748, 28
    %v2515 = vpop.permute.xlu0 %2514
    %2516 = vrot.lane.b32.xlu0 %v749, 28
    %v2517 = vpop.permute.xlu0 %2516
    %2518 = vrot.lane.b32.xlu0 %v750, 28
    %v2519 = vpop.permute.xlu0 %2518
    %2520 = vrot.lane.b32.xlu0 %v751, 28
    %v2521 = vpop.permute.xlu0 %2520
    %2522 = vrot.lane.b32.xlu0 %v752, 28
    %v2523 = vpop.permute.xlu0 %2522
    %2524 = vrot.lane.b32.xlu0 %v753, 28
    %v2525 = vpop.permute.xlu0 %2524
    %2526 = vrot.lane.b32.xlu0 %v754, 28
    %v2527 = vpop.permute.xlu0 %2526
    %2528 = vrot.lane.b32.xlu0 %v755, 28
    %v2529 = vpop.permute.xlu0 %2528
    %2530 = vrot.lane.b32.xlu0 %v756, 28
    %v2531 = vpop.permute.xlu0 %2530
    %2532 = vrot.lane.b32.xlu0 %v757, 28
    %v2533 = vpop.permute.xlu0 %2532
    %2534 = vrot.lane.b32.xlu0 %v758, 28
    %v2535 = vpop.permute.xlu0 %2534
    %2536 = vrot.lane.b32.xlu0 %v759, 28
    %v2537 = vpop.permute.xlu0 %2536
    %2538 = vrot.lane.b32.xlu0 %v760, 28
    %v2539 = vpop.permute.xlu0 %2538
    %2540 = vrot.lane.b32.xlu0 %v761, 28
    %v2541 = vpop.permute.xlu0 %2540
    %2542 = vrot.lane.b32.xlu0 %v762, 28
    %v2543 = vpop.permute.xlu0 %2542
    %2544 = vrot.lane.b32.xlu0 %v763, 28
    %v2545 = vpop.permute.xlu0 %2544
    %2546 = vrot.lane.b32.xlu0 %v764, 28
    %v2547 = vpop.permute.xlu0 %2546
    %2548 = vrot.lane.b32.xlu0 %v765, 28
    %v2549 = vpop.permute.xlu0 %2548
    %2550 = vrot.lane.b32.xlu0 %v766, 28
    %v2551 = vpop.permute.xlu0 %2550
    %2552 = vrot.lane.b32.xlu0 %v767, 28
    %v2553 = vpop.permute.xlu0 %2552
    %2554 = vrot.lane.b32.xlu0 %v768, 28
    %v2555 = vpop.permute.xlu0 %2554
    %2556 = vrot.lane.b32.xlu0 %v769, 28
    %v2557 = vpop.permute.xlu0 %2556
    %2558 = vrot.lane.b32.xlu0 %v770, 28
    %v2559 = vpop.permute.xlu0 %2558
    %2560 = vrot.lane.b32.xlu0 %v771, 28
    %v2561 = vpop.permute.xlu0 %2560
    %2562 = vrot.lane.b32.xlu0 %v772, 28
    %v2563 = vpop.permute.xlu0 %2562
    %2564 = vrot.lane.b32.xlu0 %v773, 28
    %v2565 = vpop.permute.xlu0 %2564
    %2694 = vrot.lane.b32.xlu0 %v774, 32
    %v2695 = vpop.permute.xlu0 %2694
    %2696 = vrot.lane.b32.xlu0 %v775, 32
    %v2697 = vpop.permute.xlu0 %2696
    %2698 = vrot.lane.b32.xlu0 %v776, 32
    %v2699 = vpop.permute.xlu0 %2698
    %2700 = vrot.lane.b32.xlu0 %v777, 32
    %v2701 = vpop.permute.xlu0 %2700
    %2702 = vrot.lane.b32.xlu0 %v778, 32
    %v2703 = vpop.permute.xlu0 %2702
    %2704 = vrot.lane.b32.xlu0 %v779, 32
    %v2705 = vpop.permute.xlu0 %2704
    %2706 = vrot.lane.b32.xlu0 %v780, 32
    %v2707 = vpop.permute.xlu0 %2706
    %2708 = vrot.lane.b32.xlu0 %v781, 32
    %v2709 = vpop.permute.xlu0 %2708
    %2710 = vrot.lane.b32.xlu0 %v782, 32
    %v2711 = vpop.permute.xlu0 %2710
    %2712 = vrot.lane.b32.xlu0 %v783, 32
    %v2713 = vpop.permute.xlu0 %2712
    %2714 = vrot.lane.b32.xlu0 %v784, 32
    %v2715 = vpop.permute.xlu0 %2714
    %2716 = vrot.lane.b32.xlu0 %v785, 32
    %v2717 = vpop.permute.xlu0 %2716
    %2718 = vrot.lane.b32.xlu0 %v786, 32
    %v2719 = vpop.permute.xlu0 %2718
    %2720 = vrot.lane.b32.xlu0 %v787, 32
    %v2721 = vpop.permute.xlu0 %2720
    %2722 = vrot.lane.b32.xlu0 %v788, 32
    %v2723 = vpop.permute.xlu0 %2722
    %2724 = vrot.lane.b32.xlu0 %v789, 32
    %v2725 = vpop.permute.xlu0 %2724
    %2726 = vrot.lane.b32.xlu0 %v790, 32
    %v2727 = vpop.permute.xlu0 %2726
    %2728 = vrot.lane.b32.xlu0 %v791, 32
    %v2729 = vpop.permute.xlu0 %2728
    %2730 = vrot.lane.b32.xlu0 %v792, 32
    %v2731 = vpop.permute.xlu0 %2730
    %2732 = vrot.lane.b32.xlu0 %v793, 32
    %v2733 = vpop.permute.xlu0 %2732
    %2734 = vrot.lane.b32.xlu0 %v794, 32
    %v2735 = vpop.permute.xlu0 %2734
    %2736 = vrot.lane.b32.xlu0 %v795, 32
    %v2737 = vpop.permute.xlu0 %2736
    %2738 = vrot.lane.b32.xlu0 %v796, 32
    %v2739 = vpop.permute.xlu0 %2738
    %2740 = vrot.lane.b32.xlu0 %v797, 32
    %v2741 = vpop.permute.xlu0 %2740
    %2742 = vrot.lane.b32.xlu0 %v798, 32
    %v2743 = vpop.permute.xlu0 %2742
    %2744 = vrot.lane.b32.xlu0 %v799, 32
    %v2745 = vpop.permute.xlu0 %2744
    %2746 = vrot.lane.b32.xlu0 %v800, 32
    %v2747 = vpop.permute.xlu0 %2746
    %2748 = vrot.lane.b32.xlu0 %v801, 32
    %v2749 = vpop.permute.xlu0 %2748
    %2750 = vrot.lane.b32.xlu0 %v802, 32
    %v2751 = vpop.permute.xlu0 %2750
    %2752 = vrot.lane.b32.xlu0 %v803, 32
    %v2753 = vpop.permute.xlu0 %2752
    %2754 = vrot.lane.b32.xlu0 %v804, 32
    %v2755 = vpop.permute.xlu0 %2754
    %2756 = vrot.lane.b32.xlu0 %v805, 32
    %v2757 = vpop.permute.xlu0 %2756
    %2758 = vrot.lane.b32.xlu0 %v806, 32
    %v2759 = vpop.permute.xlu0 %2758
    %2760 = vrot.lane.b32.xlu0 %v807, 32
    %v2761 = vpop.permute.xlu0 %2760
    %2762 = vrot.lane.b32.xlu0 %v808, 32
    %v2763 = vpop.permute.xlu0 %2762
    %2764 = vrot.lane.b32.xlu0 %v809, 32
    %v2765 = vpop.permute.xlu0 %2764
    %2766 = vrot.lane.b32.xlu0 %v810, 32
    %v2767 = vpop.permute.xlu0 %2766
    %2768 = vrot.lane.b32.xlu0 %v811, 32
    %v2769 = vpop.permute.xlu0 %2768
    %2770 = vrot.lane.b32.xlu0 %v812, 32
    %v2771 = vpop.permute.xlu0 %2770
    %2772 = vrot.lane.b32.xlu0 %v813, 32
    %v2773 = vpop.permute.xlu0 %2772
    %2774 = vrot.lane.b32.xlu0 %v814, 32
    %v2775 = vpop.permute.xlu0 %2774
    %2776 = vrot.lane.b32.xlu0 %v815, 32
    %v2777 = vpop.permute.xlu0 %2776
    %2778 = vrot.lane.b32.xlu0 %v816, 32
    %v2779 = vpop.permute.xlu0 %2778
    %2780 = vrot.lane.b32.xlu0 %v817, 32
    %v2781 = vpop.permute.xlu0 %2780
    %2782 = vrot.lane.b32.xlu0 %v818, 32
    %v2783 = vpop.permute.xlu0 %2782
    %2784 = vrot.lane.b32.xlu0 %v819, 32
    %v2785 = vpop.permute.xlu0 %2784
    %2786 = vrot.lane.b32.xlu0 %v820, 32
    %v2787 = vpop.permute.xlu0 %2786
    %2788 = vrot.lane.b32.xlu0 %v821, 32
    %v2789 = vpop.permute.xlu0 %2788
    %2790 = vrot.lane.b32.xlu0 %v822, 32
    %v2791 = vpop.permute.xlu0 %2790
    %2792 = vrot.lane.b32.xlu0 %v823, 32
    %v2793 = vpop.permute.xlu0 %2792
    %2794 = vrot.lane.b32.xlu0 %v824, 32
    %v2795 = vpop.permute.xlu0 %2794
    %2796 = vrot.lane.b32.xlu0 %v825, 32
    %v2797 = vpop.permute.xlu0 %2796
    %2798 = vrot.lane.b32.xlu0 %v826, 32
    %v2799 = vpop.permute.xlu0 %2798
    %2800 = vrot.lane.b32.xlu0 %v827, 32
    %v2801 = vpop.permute.xlu0 %2800
    %2802 = vrot.lane.b32.xlu0 %v828, 32
    %v2803 = vpop.permute.xlu0 %2802
    %2804 = vrot.lane.b32.xlu0 %v829, 32
    %v2805 = vpop.permute.xlu0 %2804
    %2806 = vrot.lane.b32.xlu0 %v830, 32
    %v2807 = vpop.permute.xlu0 %2806
    %2808 = vrot.lane.b32.xlu0 %v831, 32
    %v2809 = vpop.permute.xlu0 %2808
    %2810 = vrot.lane.b32.xlu0 %v832, 32
    %v2811 = vpop.permute.xlu0 %2810
    %2812 = vrot.lane.b32.xlu0 %v833, 32
    %v2813 = vpop.permute.xlu0 %2812
    %2814 = vrot.lane.b32.xlu0 %v834, 32
    %v2815 = vpop.permute.xlu0 %2814
    %2816 = vrot.lane.b32.xlu0 %v835, 32
    %v2817 = vpop.permute.xlu0 %2816
    %2818 = vrot.lane.b32.xlu0 %v836, 32
    %v2819 = vpop.permute.xlu0 %2818
    %2820 = vrot.lane.b32.xlu0 %v837, 32
    %v2821 = vpop.permute.xlu0 %2820
    %v2886 = vsel %vm22, %v261, %v903
    %v2887 = vsel %vm22, %v262, %v905
    %v2888 = vsel %vm22, %v263, %v907
    %v2889 = vsel %vm22, %v264, %v909
    %v2890 = vsel %vm22, %v265, %v911
    %v2891 = vsel %vm22, %v266, %v913
    %v2892 = vsel %vm22, %v267, %v915
    %v2893 = vsel %vm22, %v268, %v917
    %v2894 = vsel %vm22, %v269, %v919
    %v2895 = vsel %vm22, %v270, %v921
    %v2896 = vsel %vm22, %v271, %v923
    %v2897 = vsel %vm22, %v272, %v925
    %v2898 = vsel %vm22, %v273, %v927
    %v2899 = vsel %vm22, %v274, %v929
    %v2900 = vsel %vm22, %v275, %v931
    %v2901 = vsel %vm22, %v276, %v933
    %v2902 = vsel %vm22, %v277, %v935
    %v2903 = vsel %vm22, %v278, %v937
    %v2904 = vsel %vm22, %v279, %v939
    %v2905 = vsel %vm22, %v280, %v941
    %v2906 = vsel %vm22, %v281, %v943
    %v2907 = vsel %vm22, %v282, %v945
    %v2908 = vsel %vm22, %v283, %v947
    %v2909 = vsel %vm22, %v284, %v949
    %v2910 = vsel %vm22, %v285, %v951
    %v2911 = vsel %vm22, %v286, %v953
    %v2912 = vsel %vm22, %v287, %v955
    %v2913 = vsel %vm22, %v288, %v957
    %v2914 = vsel %vm22, %v289, %v959
    %v2915 = vsel %vm22, %v290, %v961
    %v2916 = vsel %vm22, %v291, %v963
    %v2917 = vsel %vm22, %v292, %v965
    %v2918 = vsel %vm22, %v293, %v967
    %v2919 = vsel %vm22, %v294, %v969
    %v2920 = vsel %vm22, %v295, %v971
    %v2921 = vsel %vm22, %v296, %v973
    %v2922 = vsel %vm22, %v297, %v975
    %v2923 = vsel %vm22, %v298, %v977
    %v2924 = vsel %vm22, %v299, %v979
    %v2925 = vsel %vm22, %v300, %v981
    %v2926 = vsel %vm22, %v301, %v983
    %v2927 = vsel %vm22, %v302, %v985
    %v2928 = vsel %vm22, %v303, %v987
    %v2929 = vsel %vm22, %v304, %v989
    %v2930 = vsel %vm22, %v305, %v991
    %v2931 = vsel %vm22, %v306, %v993
    %v2932 = vsel %vm22, %v307, %v995
    %v2933 = vsel %vm22, %v308, %v997
    %v2934 = vsel %vm22, %v309, %v999
    %v2935 = vsel %vm22, %v310, %v1001
    %v2936 = vsel %vm22, %v311, %v1003
    %v2937 = vsel %vm22, %v312, %v1005
    %v2938 = vsel %vm22, %v313, %v1007
    %v2939 = vsel %vm22, %v314, %v1009
    %v2940 = vsel %vm22, %v315, %v1011
    %v2941 = vsel %vm22, %v316, %v1013
    %v2942 = vsel %vm22, %v317, %v1015
    %v2943 = vsel %vm22, %v318, %v1017
    %v2944 = vsel %vm22, %v319, %v1019
    %v2945 = vsel %vm22, %v320, %v1021
    %v2946 = vsel %vm22, %v321, %v1023
    %v2947 = vsel %vm22, %v322, %v1025
    %v2948 = vsel %vm22, %v323, %v1027
    %v2949 = vsel %vm22, %v324, %v1029
    %vm2950 = vcmask 64512
    %v2951 = vsel %vm2950, %v2886, %v1159
    %v2952 = vsel %vm2950, %v2887, %v1161
    %v2953 = vsel %vm2950, %v2888, %v1163
    %v2954 = vsel %vm2950, %v2889, %v1165
    %v2955 = vsel %vm2950, %v2890, %v1167
    %v2956 = vsel %vm2950, %v2891, %v1169
    %v2957 = vsel %vm2950, %v2892, %v1171
    %v2958 = vsel %vm2950, %v2893, %v1173
    %v2959 = vsel %vm2950, %v2894, %v1175
    %v2960 = vsel %vm2950, %v2895, %v1177
    %v2961 = vsel %vm2950, %v2896, %v1179
    %v2962 = vsel %vm2950, %v2897, %v1181
    %v2963 = vsel %vm2950, %v2898, %v1183
    %v2964 = vsel %vm2950, %v2899, %v1185
    %v2965 = vsel %vm2950, %v2900, %v1187
    %v2966 = vsel %vm2950, %v2901, %v1189
    %v2967 = vsel %vm2950, %v2902, %v1191
    %v2968 = vsel %vm2950, %v2903, %v1193
    %v2969 = vsel %vm2950, %v2904, %v1195
    %v2970 = vsel %vm2950, %v2905, %v1197
    %v2971 = vsel %vm2950, %v2906, %v1199
    %v2972 = vsel %vm2950, %v2907, %v1201
    %v2973 = vsel %vm2950, %v2908, %v1203
    %v2974 = vsel %vm2950, %v2909, %v1205
    %v2975 = vsel %vm2950, %v2910, %v1207
    %v2976 = vsel %vm2950, %v2911, %v1209
    %v2977 = vsel %vm2950, %v2912, %v1211
    %v2978 = vsel %vm2950, %v2913, %v1213
    %v2979 = vsel %vm2950, %v2914, %v1215
    %v2980 = vsel %vm2950, %v2915, %v1217
    %v2981 = vsel %vm2950, %v2916, %v1219
    %v2982 = vsel %vm2950, %v2917, %v1221
    %v2983 = vsel %vm2950, %v2918, %v1223
    %v2984 = vsel %vm2950, %v2919, %v1225
    %v2985 = vsel %vm2950, %v2920, %v1227
    %v2986 = vsel %vm2950, %v2921, %v1229
    %v2987 = vsel %vm2950, %v2922, %v1231
    %v2988 = vsel %vm2950, %v2923, %v1233
    %v2989 = vsel %vm2950, %v2924, %v1235
    %v2990 = vsel %vm2950, %v2925, %v1237
    %v2991 = vsel %vm2950, %v2926, %v1239
    %v2992 = vsel %vm2950, %v2927, %v1241
    %v2993 = vsel %vm2950, %v2928, %v1243
    %v2994 = vsel %vm2950, %v2929, %v1245
    %v2995 = vsel %vm2950, %v2930, %v1247
    %v2996 = vsel %vm2950, %v2931, %v1249
    %v2997 = vsel %vm2950, %v2932, %v1251
    %v2998 = vsel %vm2950, %v2933, %v1253
    %v2999 = vsel %vm2950, %v2934, %v1255
    %v3000 = vsel %vm2950, %v2935, %v1257
    %v3001 = vsel %vm2950, %v2936, %v1259
    %v3002 = vsel %vm2950, %v2937, %v1261
    %v3003 = vsel %vm2950, %v2938, %v1263
    %v3004 = vsel %vm2950, %v2939, %v1265
    %v3005 = vsel %vm2950, %v2940, %v1267
    %v3006 = vsel %vm2950, %v2941, %v1269
    %v3007 = vsel %vm2950, %v2942, %v1271
    %v3008 = vsel %vm2950, %v2943, %v1273
    %v3009 = vsel %vm2950, %v2944, %v1275
    %v3010 = vsel %vm2950, %v2945, %v1277
    %v3011 = vsel %vm2950, %v2946, %v1279
    %v3012 = vsel %vm2950, %v2947, %v1281
    %v3013 = vsel %vm2950, %v2948, %v1283
    %v3014 = vsel %vm2950, %v2949, %v1285
    %vm3015 = vcmask 97280
    %v3016 = vsel %vm3015, %v2951, %v1415
    %v3017 = vsel %vm3015, %v2952, %v1417
    %v3018 = vsel %vm3015, %v2953, %v1419
    %v3019 = vsel %vm3015, %v2954, %v1421
    %v3020 = vsel %vm3015, %v2955, %v1423
    %v3021 = vsel %vm3015, %v2956, %v1425
    %v3022 = vsel %vm3015, %v2957, %v1427
    %v3023 = vsel %vm3015, %v2958, %v1429
    %v3024 = vsel %vm3015, %v2959, %v1431
    %v3025 = vsel %vm3015, %v2960, %v1433
    %v3026 = vsel %vm3015, %v2961, %v1435
    %v3027 = vsel %vm3015, %v2962, %v1437
    %v3028 = vsel %vm3015, %v2963, %v1439
    %v3029 = vsel %vm3015, %v2964, %v1441
    %v3030 = vsel %vm3015, %v2965, %v1443
    %v3031 = vsel %vm3015, %v2966, %v1445
    %v3032 = vsel %vm3015, %v2967, %v1447
    %v3033 = vsel %vm3015, %v2968, %v1449
    %v3034 = vsel %vm3015, %v2969, %v1451
    %v3035 = vsel %vm3015, %v2970, %v1453
    %v3036 = vsel %vm3015, %v2971, %v1455
    %v3037 = vsel %vm3015, %v2972, %v1457
    %v3038 = vsel %vm3015, %v2973, %v1459
    %v3039 = vsel %vm3015, %v2974, %v1461
    %v3040 = vsel %vm3015, %v2975, %v1463
    %v3041 = vsel %vm3015, %v2976, %v1465
    %v3042 = vsel %vm3015, %v2977, %v1467
    %v3043 = vsel %vm3015, %v2978, %v1469
    %v3044 = vsel %vm3015, %v2979, %v1471
    %v3045 = vsel %vm3015, %v2980, %v1473
    %v3046 = vsel %vm3015, %v2981, %v1475
    %v3047 = vsel %vm3015, %v2982, %v1477
    %v3048 = vsel %vm3015, %v2983, %v1479
    %v3049 = vsel %vm3015, %v2984, %v1481
    %v3050 = vsel %vm3015, %v2985, %v1483
    %v3051 = vsel %vm3015, %v2986, %v1485
    %v3052 = vsel %vm3015, %v2987, %v1487
    %v3053 = vsel %vm3015, %v2988, %v1489
    %v3054 = vsel %vm3015, %v2989, %v1491
    %v3055 = vsel %vm3015, %v2990, %v1493
    %v3056 = vsel %vm3015, %v2991, %v1495
    %v3057 = vsel %vm3015, %v2992, %v1497
    %v3058 = vsel %vm3015, %v2993, %v1499
    %v3059 = vsel %vm3015, %v2994, %v1501
    %v3060 = vsel %vm3015, %v2995, %v1503
    %v3061 = vsel %vm3015, %v2996, %v1505
    %v3062 = vsel %vm3015, %v2997, %v1507
    %v3063 = vsel %vm3015, %v2998, %v1509
    %v3064 = vsel %vm3015, %v2999, %v1511
    %v3065 = vsel %vm3015, %v3000, %v1513
    %v3066 = vsel %vm3015, %v3001, %v1515
    %v3067 = vsel %vm3015, %v3002, %v1517
    %v3068 = vsel %vm3015, %v3003, %v1519
    %v3069 = vsel %vm3015, %v3004, %v1521
    %v3070 = vsel %vm3015, %v3005, %v1523
    %v3071 = vsel %vm3015, %v3006, %v1525
    %v3072 = vsel %vm3015, %v3007, %v1527
    %v3073 = vsel %vm3015, %v3008, %v1529
    %v3074 = vsel %vm3015, %v3009, %v1531
    %v3075 = vsel %vm3015, %v3010, %v1533
    %v3076 = vsel %vm3015, %v3011, %v1535
    %v3077 = vsel %vm3015, %v3012, %v1537
    %v3078 = vsel %vm3015, %v3013, %v1539
    %v3079 = vsel %vm3015, %v3014, %v1541
    %vm3080 = vcmask 130048
    %v3081 = vsel %vm3080, %v3016, %v1671
    %v3082 = vsel %vm3080, %v3017, %v1673
    %v3083 = vsel %vm3080, %v3018, %v1675
    %v3084 = vsel %vm3080, %v3019, %v1677
    %v3085 = vsel %vm3080, %v3020, %v1679
    %v3086 = vsel %vm3080, %v3021, %v1681
    %v3087 = vsel %vm3080, %v3022, %v1683
    %v3088 = vsel %vm3080, %v3023, %v1685
    %v3089 = vsel %vm3080, %v3024, %v1687
    %v3090 = vsel %vm3080, %v3025, %v1689
    %v3091 = vsel %vm3080, %v3026, %v1691
    %v3092 = vsel %vm3080, %v3027, %v1693
    %v3093 = vsel %vm3080, %v3028, %v1695
    %v3094 = vsel %vm3080, %v3029, %v1697
    %v3095 = vsel %vm3080, %v3030, %v1699
    %v3096 = vsel %vm3080, %v3031, %v1701
    %v3097 = vsel %vm3080, %v3032, %v1703
    %v3098 = vsel %vm3080, %v3033, %v1705
    %v3099 = vsel %vm3080, %v3034, %v1707
    %v3100 = vsel %vm3080, %v3035, %v1709
    %v3101 = vsel %vm3080, %v3036, %v1711
    %v3102 = vsel %vm3080, %v3037, %v1713
    %v3103 = vsel %vm3080, %v3038, %v1715
    %v3104 = vsel %vm3080, %v3039, %v1717
    %v3105 = vsel %vm3080, %v3040, %v1719
    %v3106 = vsel %vm3080, %v3041, %v1721
    %v3107 = vsel %vm3080, %v3042, %v1723
    %v3108 = vsel %vm3080, %v3043, %v1725
    %v3109 = vsel %vm3080, %v3044, %v1727
    %v3110 = vsel %vm3080, %v3045, %v1729
    %v3111 = vsel %vm3080, %v3046, %v1731
    %v3112 = vsel %vm3080, %v3047, %v1733
    %v3113 = vsel %vm3080, %v3048, %v1735
    %v3114 = vsel %vm3080, %v3049, %v1737
    %v3115 = vsel %vm3080, %v3050, %v1739
    %v3116 = vsel %vm3080, %v3051, %v1741
    %v3117 = vsel %vm3080, %v3052, %v1743
    %v3118 = vsel %vm3080, %v3053, %v1745
    %v3119 = vsel %vm3080, %v3054, %v1747
    %v3120 = vsel %vm3080, %v3055, %v1749
    %v3121 = vsel %vm3080, %v3056, %v1751
    %v3122 = vsel %vm3080, %v3057, %v1753
    %v3123 = vsel %vm3080, %v3058, %v1755
    %v3124 = vsel %vm3080, %v3059, %v1757
    %v3125 = vsel %vm3080, %v3060, %v1759
    %v3126 = vsel %vm3080, %v3061, %v1761
    %v3127 = vsel %vm3080, %v3062, %v1763
    %v3128 = vsel %vm3080, %v3063, %v1765
    %v3129 = vsel %vm3080, %v3064, %v1767
    %v3130 = vsel %vm3080, %v3065, %v1769
    %v3131 = vsel %vm3080, %v3066, %v1771
    %v3132 = vsel %vm3080, %v3067, %v1773
    %v3133 = vsel %vm3080, %v3068, %v1775
    %v3134 = vsel %vm3080, %v3069, %v1777
    %v3135 = vsel %vm3080, %v3070, %v1779
    %v3136 = vsel %vm3080, %v3071, %v1781
    %v3137 = vsel %vm3080, %v3072, %v1783
    %v3138 = vsel %vm3080, %v3073, %v1785
    %v3139 = vsel %vm3080, %v3074, %v1787
    %v3140 = vsel %vm3080, %v3075, %v1789
    %v3141 = vsel %vm3080, %v3076, %v1791
    %v3142 = vsel %vm3080, %v3077, %v1793
    %v3143 = vsel %vm3080, %v3078, %v1795
    %v3144 = vsel %vm3080, %v3079, %v1797
    %vm3145 = vcmask 162816
    %v3146 = vsel %vm3145, %v3081, %v1927
    %v3147 = vsel %vm3145, %v3082, %v1929
    %v3148 = vsel %vm3145, %v3083, %v1931
    %v3149 = vsel %vm3145, %v3084, %v1933
    %v3150 = vsel %vm3145, %v3085, %v1935
    %v3151 = vsel %vm3145, %v3086, %v1937
    %v3152 = vsel %vm3145, %v3087, %v1939
    %v3153 = vsel %vm3145, %v3088, %v1941
    %v3154 = vsel %vm3145, %v3089, %v1943
    %v3155 = vsel %vm3145, %v3090, %v1945
    %v3156 = vsel %vm3145, %v3091, %v1947
    %v3157 = vsel %vm3145, %v3092, %v1949
    %v3158 = vsel %vm3145, %v3093, %v1951
    %v3159 = vsel %vm3145, %v3094, %v1953
    %v3160 = vsel %vm3145, %v3095, %v1955
    %v3161 = vsel %vm3145, %v3096, %v1957
    %v3162 = vsel %vm3145, %v3097, %v1959
    %v3163 = vsel %vm3145, %v3098, %v1961
    %v3164 = vsel %vm3145, %v3099, %v1963
    %v3165 = vsel %vm3145, %v3100, %v1965
    %v3166 = vsel %vm3145, %v3101, %v1967
    %v3167 = vsel %vm3145, %v3102, %v1969
    %v3168 = vsel %vm3145, %v3103, %v1971
    %v3169 = vsel %vm3145, %v3104, %v1973
    %v3170 = vsel %vm3145, %v3105, %v1975
    %v3171 = vsel %vm3145, %v3106, %v1977
    %v3172 = vsel %vm3145, %v3107, %v1979
    %v3173 = vsel %vm3145, %v3108, %v1981
    %v3174 = vsel %vm3145, %v3109, %v1983
    %v3175 = vsel %vm3145, %v3110, %v1985
    %v3176 = vsel %vm3145, %v3111, %v1987
    %v3177 = vsel %vm3145, %v3112, %v1989
    %v3178 = vsel %vm3145, %v3113, %v1991
    %v3179 = vsel %vm3145, %v3114, %v1993
    %v3180 = vsel %vm3145, %v3115, %v1995
    %v3181 = vsel %vm3145, %v3116, %v1997
    %v3182 = vsel %vm3145, %v3117, %v1999
    %v3183 = vsel %vm3145, %v3118, %v2001
    %v3184 = vsel %vm3145, %v3119, %v2003
    %v3185 = vsel %vm3145, %v3120, %v2005
    %v3186 = vsel %vm3145, %v3121, %v2007
    %v3187 = vsel %vm3145, %v3122, %v2009
    %v3188 = vsel %vm3145, %v3123, %v2011
    %v3189 = vsel %vm3145, %v3124, %v2013
    %v3190 = vsel %vm3145, %v3125, %v2015
    %v3191 = vsel %vm3145, %v3126, %v2017
    %v3192 = vsel %vm3145, %v3127, %v2019
    %v3193 = vsel %vm3145, %v3128, %v2021
    %v3194 = vsel %vm3145, %v3129, %v2023
    %v3195 = vsel %vm3145, %v3130, %v2025
    %v3196 = vsel %vm3145, %v3131, %v2027
    %v3197 = vsel %vm3145, %v3132, %v2029
    %v3198 = vsel %vm3145, %v3133, %v2031
    %v3199 = vsel %vm3145, %v3134, %v2033
    %v3200 = vsel %vm3145, %v3135, %v2035
    %v3201 = vsel %vm3145, %v3136, %v2037
    %v3202 = vsel %vm3145, %v3137, %v2039
    %v3203 = vsel %vm3145, %v3138, %v2041
    %v3204 = vsel %vm3145, %v3139, %v2043
    %v3205 = vsel %vm3145, %v3140, %v2045
    %v3206 = vsel %vm3145, %v3141, %v2047
    %v3207 = vsel %vm3145, %v3142, %v2049
    %v3208 = vsel %vm3145, %v3143, %v2051
    %v3209 = vsel %vm3145, %v3144, %v2053
    %vm3210 = vcmask 195584
    %v3211 = vsel %vm3210, %v3146, %v2183
    %v3212 = vsel %vm3210, %v3147, %v2185
    %v3213 = vsel %vm3210, %v3148, %v2187
    %v3214 = vsel %vm3210, %v3149, %v2189
    %v3215 = vsel %vm3210, %v3150, %v2191
    %v3216 = vsel %vm3210, %v3151, %v2193
    %v3217 = vsel %vm3210, %v3152, %v2195
    %v3218 = vsel %vm3210, %v3153, %v2197
    %v3219 = vsel %vm3210, %v3154, %v2199
    %v3220 = vsel %vm3210, %v3155, %v2201
    %v3221 = vsel %vm3210, %v3156, %v2203
    %v3222 = vsel %vm3210, %v3157, %v2205
    %v3223 = vsel %vm3210, %v3158, %v2207
    %v3224 = vsel %vm3210, %v3159, %v2209
    %v3225 = vsel %vm3210, %v3160, %v2211
    %v3226 = vsel %vm3210, %v3161, %v2213
    %v3227 = vsel %vm3210, %v3162, %v2215
    %v3228 = vsel %vm3210, %v3163, %v2217
    %v3229 = vsel %vm3210, %v3164, %v2219
    %v3230 = vsel %vm3210, %v3165, %v2221
    %v3231 = vsel %vm3210, %v3166, %v2223
    %v3232 = vsel %vm3210, %v3167, %v2225
    %v3233 = vsel %vm3210, %v3168, %v2227
    %v3234 = vsel %vm3210, %v3169, %v2229
    %v3235 = vsel %vm3210, %v3170, %v2231
    %v3236 = vsel %vm3210, %v3171, %v2233
    %v3237 = vsel %vm3210, %v3172, %v2235
    %v3238 = vsel %vm3210, %v3173, %v2237
    %v3239 = vsel %vm3210, %v3174, %v2239
    %v3240 = vsel %vm3210, %v3175, %v2241
    %v3241 = vsel %vm3210, %v3176, %v2243
    %v3242 = vsel %vm3210, %v3177, %v2245
    %v3243 = vsel %vm3210, %v3178, %v2247
    %v3244 = vsel %vm3210, %v3179, %v2249
    %v3245 = vsel %vm3210, %v3180, %v2251
    %v3246 = vsel %vm3210, %v3181, %v2253
    %v3247 = vsel %vm3210, %v3182, %v2255
    %v3248 = vsel %vm3210, %v3183, %v2257
    %v3249 = vsel %vm3210, %v3184, %v2259
    %v3250 = vsel %vm3210, %v3185, %v2261
    %v3251 = vsel %vm3210, %v3186, %v2263
    %v3252 = vsel %vm3210, %v3187, %v2265
    %v3253 = vsel %vm3210, %v3188, %v2267
    %v3254 = vsel %vm3210, %v3189, %v2269
    %v3255 = vsel %vm3210, %v3190, %v2271
    %v3256 = vsel %vm3210, %v3191, %v2273
    %v3257 = vsel %vm3210, %v3192, %v2275
    %v3258 = vsel %vm3210, %v3193, %v2277
    %v3259 = vsel %vm3210, %v3194, %v2279
    %v3260 = vsel %vm3210, %v3195, %v2281
    %v3261 = vsel %vm3210, %v3196, %v2283
    %v3262 = vsel %vm3210, %v3197, %v2285
    %v3263 = vsel %vm3210, %v3198, %v2287
    %v3264 = vsel %vm3210, %v3199, %v2289
    %v3265 = vsel %vm3210, %v3200, %v2291
    %v3266 = vsel %vm3210, %v3201, %v2293
    %v3267 = vsel %vm3210, %v3202, %v2295
    %v3268 = vsel %vm3210, %v3203, %v2297
    %v3269 = vsel %vm3210, %v3204, %v2299
    %v3270 = vsel %vm3210, %v3205, %v2301
    %v3271 = vsel %vm3210, %v3206, %v2303
    %v3272 = vsel %vm3210, %v3207, %v2305
    %v3273 = vsel %vm3210, %v3208, %v2307
    %v3274 = vsel %vm3210, %v3209, %v2309
    %vm3275 = vcmask 228352
    %v3276 = vsel %vm3275, %v3211, %v2439
    %v3277 = vsel %vm3275, %v3212, %v2441
    %v3278 = vsel %vm3275, %v3213, %v2443
    %v3279 = vsel %vm3275, %v3214, %v2445
    %v3280 = vsel %vm3275, %v3215, %v2447
    %v3281 = vsel %vm3275, %v3216, %v2449
    %v3282 = vsel %vm3275, %v3217, %v2451
    %v3283 = vsel %vm3275, %v3218, %v2453
    %v3284 = vsel %vm3275, %v3219, %v2455
    %v3285 = vsel %vm3275, %v3220, %v2457
    %v3286 = vsel %vm3275, %v3221, %v2459
    %v3287 = vsel %vm3275, %v3222, %v2461
    %v3288 = vsel %vm3275, %v3223, %v2463
    %v3289 = vsel %vm3275, %v3224, %v2465
    %v3290 = vsel %vm3275, %v3225, %v2467
    %v3291 = vsel %vm3275, %v3226, %v2469
    %v3292 = vsel %vm3275, %v3227, %v2471
    %v3293 = vsel %vm3275, %v3228, %v2473
    %v3294 = vsel %vm3275, %v3229, %v2475
    %v3295 = vsel %vm3275, %v3230, %v2477
    %v3296 = vsel %vm3275, %v3231, %v2479
    %v3297 = vsel %vm3275, %v3232, %v2481
    %v3298 = vsel %vm3275, %v3233, %v2483
    %v3299 = vsel %vm3275, %v3234, %v2485
    %v3300 = vsel %vm3275, %v3235, %v2487
    %v3301 = vsel %vm3275, %v3236, %v2489
    %v3302 = vsel %vm3275, %v3237, %v2491
    %v3303 = vsel %vm3275, %v3238, %v2493
    %v3304 = vsel %vm3275, %v3239, %v2495
    %v3305 = vsel %vm3275, %v3240, %v2497
    %v3306 = vsel %vm3275, %v3241, %v2499
    %v3307 = vsel %vm3275, %v3242, %v2501
    %v3308 = vsel %vm3275, %v3243, %v2503
    %v3309 = vsel %vm3275, %v3244, %v2505
    %v3310 = vsel %vm3275, %v3245, %v2507
    %v3311 = vsel %vm3275, %v3246, %v2509
    %v3312 = vsel %vm3275, %v3247, %v2511
    %v3313 = vsel %vm3275, %v3248, %v2513
    %v3314 = vsel %vm3275, %v3249, %v2515
    %v3315 = vsel %vm3275, %v3250, %v2517
    %v3316 = vsel %vm3275, %v3251, %v2519
    %v3317 = vsel %vm3275, %v3252, %v2521
    %v3318 = vsel %vm3275, %v3253, %v2523
    %v3319 = vsel %vm3275, %v3254, %v2525
    %v3320 = vsel %vm3275, %v3255, %v2527
    %v3321 = vsel %vm3275, %v3256, %v2529
    %v3322 = vsel %vm3275, %v3257, %v2531
    %v3323 = vsel %vm3275, %v3258, %v2533
    %v3324 = vsel %vm3275, %v3259, %v2535
    %v3325 = vsel %vm3275, %v3260, %v2537
    %v3326 = vsel %vm3275, %v3261, %v2539
    %v3327 = vsel %vm3275, %v3262, %v2541
    %v3328 = vsel %vm3275, %v3263, %v2543
    %v3329 = vsel %vm3275, %v3264, %v2545
    %v3330 = vsel %vm3275, %v3265, %v2547
    %v3331 = vsel %vm3275, %v3266, %v2549
    %v3332 = vsel %vm3275, %v3267, %v2551
    %v3333 = vsel %vm3275, %v3268, %v2553
    %v3334 = vsel %vm3275, %v3269, %v2555
    %v3335 = vsel %vm3275, %v3270, %v2557
    %v3336 = vsel %vm3275, %v3271, %v2559
    %v3337 = vsel %vm3275, %v3272, %v2561
    %v3338 = vsel %vm3275, %v3273, %v2563
    %v3339 = vsel %vm3275, %v3274, %v2565
    %vm3340 = vcmask 261120
    %v3341 = vsel %vm3340, %v3276, %v2695
    %v3342 = vsel %vm3340, %v3277, %v2697
    %v3343 = vsel %vm3340, %v3278, %v2699
    %v3344 = vsel %vm3340, %v3279, %v2701
    %v3345 = vsel %vm3340, %v3280, %v2703
    %v3346 = vsel %vm3340, %v3281, %v2705
    %v3347 = vsel %vm3340, %v3282, %v2707
    %v3348 = vsel %vm3340, %v3283, %v2709
    %v3349 = vsel %vm3340, %v3284, %v2711
    %v3350 = vsel %vm3340, %v3285, %v2713
    %v3351 = vsel %vm3340, %v3286, %v2715
    %v3352 = vsel %vm3340, %v3287, %v2717
    %v3353 = vsel %vm3340, %v3288, %v2719
    %v3354 = vsel %vm3340, %v3289, %v2721
    %v3355 = vsel %vm3340, %v3290, %v2723
    %v3356 = vsel %vm3340, %v3291, %v2725
    %v3357 = vsel %vm3340, %v3292, %v2727
    %v3358 = vsel %vm3340, %v3293, %v2729
    %v3359 = vsel %vm3340, %v3294, %v2731
    %v3360 = vsel %vm3340, %v3295, %v2733
    %v3361 = vsel %vm3340, %v3296, %v2735
    %v3362 = vsel %vm3340, %v3297, %v2737
    %v3363 = vsel %vm3340, %v3298, %v2739
    %v3364 = vsel %vm3340, %v3299, %v2741
    %v3365 = vsel %vm3340, %v3300, %v2743
    %v3366 = vsel %vm3340, %v3301, %v2745
    %v3367 = vsel %vm3340, %v3302, %v2747
    %v3368 = vsel %vm3340, %v3303, %v2749
    %v3369 = vsel %vm3340, %v3304, %v2751
    %v3370 = vsel %vm3340, %v3305, %v2753
    %v3371 = vsel %vm3340, %v3306, %v2755
    %v3372 = vsel %vm3340, %v3307, %v2757
    %v3373 = vsel %vm3340, %v3308, %v2759
    %v3374 = vsel %vm3340, %v3309, %v2761
    %v3375 = vsel %vm3340, %v3310, %v2763
    %v3376 = vsel %vm3340, %v3311, %v2765
    %v3377 = vsel %vm3340, %v3312, %v2767
    %v3378 = vsel %vm3340, %v3313, %v2769
    %v3379 = vsel %vm3340, %v3314, %v2771
    %v3380 = vsel %vm3340, %v3315, %v2773
    %v3381 = vsel %vm3340, %v3316, %v2775
    %v3382 = vsel %vm3340, %v3317, %v2777
    %v3383 = vsel %vm3340, %v3318, %v2779
    %v3384 = vsel %vm3340, %v3319, %v2781
    %v3385 = vsel %vm3340, %v3320, %v2783
    %v3386 = vsel %vm3340, %v3321, %v2785
    %v3387 = vsel %vm3340, %v3322, %v2787
    %v3388 = vsel %vm3340, %v3323, %v2789
    %v3389 = vsel %vm3340, %v3324, %v2791
    %v3390 = vsel %vm3340, %v3325, %v2793
    %v3391 = vsel %vm3340, %v3326, %v2795
    %v3392 = vsel %vm3340, %v3327, %v2797
    %v3393 = vsel %vm3340, %v3328, %v2799
    %v3394 = vsel %vm3340, %v3329, %v2801
    %v3395 = vsel %vm3340, %v3330, %v2803
    %v3396 = vsel %vm3340, %v3331, %v2805
    %v3397 = vsel %vm3340, %v3332, %v2807
    %v3398 = vsel %vm3340, %v3333, %v2809
    %v3399 = vsel %vm3340, %v3334, %v2811
    %v3400 = vsel %vm3340, %v3335, %v2813
    %v3401 = vsel %vm3340, %v3336, %v2815
    %v3402 = vsel %vm3340, %v3337, %v2817
    %v3403 = vsel %vm3340, %v3338, %v2819
    %v3404 = vsel %vm3340, %v3339, %v2821
    %v3405 = vpack.c.bf16 %v3342, %v3341
    %v3406 = vpack.c.bf16 %v3344, %v3343
    %v3407 = vpack.c.bf16 %v3346, %v3345
    %v3408 = vpack.c.bf16 %v3348, %v3347
    %v3409 = vpack.c.bf16 %v3350, %v3349
    %v3410 = vpack.c.bf16 %v3352, %v3351
    %v3411 = vpack.c.bf16 %v3354, %v3353
    %v3412 = vpack.c.bf16 %v3356, %v3355
    %v3413 = vpack.c.bf16 %v3358, %v3357
    %v3414 = vpack.c.bf16 %v3360, %v3359
    %v3415 = vpack.c.bf16 %v3362, %v3361
    %v3416 = vpack.c.bf16 %v3364, %v3363
    %v3417 = vpack.c.bf16 %v3366, %v3365
    %v3418 = vpack.c.bf16 %v3368, %v3367
    %v3419 = vpack.c.bf16 %v3370, %v3369
    %v3420 = vpack.c.bf16 %v3372, %v3371
    %v3421 = vpack.c.bf16 %v3374, %v3373
    %v3422 = vpack.c.bf16 %v3376, %v3375
    %v3423 = vpack.c.bf16 %v3378, %v3377
    %v3424 = vpack.c.bf16 %v3380, %v3379
    %v3425 = vpack.c.bf16 %v3382, %v3381
    %v3426 = vpack.c.bf16 %v3384, %v3383
    %v3427 = vpack.c.bf16 %v3386, %v3385
    %v3428 = vpack.c.bf16 %v3388, %v3387
    %v3429 = vpack.c.bf16 %v3390, %v3389
    %v3430 = vpack.c.bf16 %v3392, %v3391
    %v3431 = vpack.c.bf16 %v3394, %v3393
    %v3432 = vpack.c.bf16 %v3396, %v3395
    %v3433 = vpack.c.bf16 %v3398, %v3397
    %v3434 = vpack.c.bf16 %v3400, %v3399
    %v3435 = vpack.c.bf16 %v3402, %v3401
    %v3436 = vpack.c.bf16 %v3404, %v3403
    %v3437 = vld [vmem:[%s1] sm:$0xf]
    %v3438 = vld [vmem:[%s1 + $0x4] sm:$0xf]
    %v3439 = vld [vmem:[%s1 + $0x8] sm:$0xf]
    %v3440 = vld [vmem:[%s1 + $0xc] sm:$0xf]
    %v3441 = vld [vmem:[%s1 + $0x10] sm:$0x3]
    %v3442 = vld [vmem:[%s2] sm:$0x1]
    %v3444 = vlaneseq
    %v3445 = vshrl.u32 %v3444, 7
    %v3446 = vsub.s32 0, %v3445
    %v3447 = vrot.slane %v3442, %v3446
    %v3454 = vunpack.c.l.b16 %v3437
    %v3455 = vunpack.c.l.b16 %v3438
    %v3456 = vunpack.c.l.b16 %v3439
    %v3457 = vunpack.c.l.b16 %v3440
    %v3458 = vunpack.c.l.b16 %v3441
    %v3459 = vpack.c.b16 %v3455, %v3454
    %v3460 = vpack.c.b16 %v3457, %v3456
    %v3461 = vpack.c.b16 %v3458, %v3458
    %vm3464 = vcmask 293888
    %v3466 = vsel %vm3464, %v3405, 0
    %v3469 = vsel %vm3464, %v3406, 0
    %v3472 = vsel %vm3464, %v3407, 0
    %v3475 = vsel %vm3464, %v3408, 0
    %v3478 = vsel %vm3464, %v3409, 0
    %v3481 = vsel %vm3464, %v3410, 0
    %v3484 = vsel %vm3464, %v3411, 0
    %v3487 = vsel %vm3464, %v3412, 0
    %v3490 = vsel %vm3464, %v3413, 0
    %v3493 = vsel %vm3464, %v3414, 0
    %v3496 = vsel %vm3464, %v3415, 0
    %v3499 = vsel %vm3464, %v3416, 0
    %v3502 = vsel %vm3464, %v3417, 0
    %v3505 = vsel %vm3464, %v3418, 0
    %v3508 = vsel %vm3464, %v3419, 0
    %v3511 = vsel %vm3464, %v3420, 0
    %v3514 = vsel %vm3464, %v3421, 0
    %v3517 = vsel %vm3464, %v3422, 0
    %v3520 = vsel %vm3464, %v3423, 0
    %v3523 = vsel %vm3464, %v3424, 0
    %v3526 = vsel %vm3464, %v3425, 0
    %v3529 = vsel %vm3464, %v3426, 0
    %v3532 = vsel %vm3464, %v3427, 0
    %v3535 = vsel %vm3464, %v3428, 0
    %v3538 = vsel %vm3464, %v3429, 0
    %v3541 = vsel %vm3464, %v3430, 0
    %v3544 = vsel %vm3464, %v3431, 0
    %v3547 = vsel %vm3464, %v3432, 0
    %v3550 = vsel %vm3464, %v3433, 0
    %v3553 = vsel %vm3464, %v3434, 0
    %v3556 = vsel %vm3464, %v3435, 0
    %v3559 = vsel %vm3464, %v3436, 0
    %vm3561 = vcmask 1041408
    %v3563 = vsel %vm3561, %v3461, 0
    %3565 = vmatprep.subr.bf16.mxu0 0
    %3566 = vmatpush1.bf16.msra.mxu0 0
    %3567 = vmatprep.subr.bf16.mxu0 0
    %3568 = vmatpush1.bf16.msra.mxu0 0
    %3569 = vmatprep.subr.bf16.mxu0 0
    %3570 = vmatpush1.bf16.msra.mxu0 0
    %3571 = vmatprep.subr.bf16.mxu0 0
    %3572 = vmatpush1.bf16.msra.mxu0 0
    %3573 = vmatprep.subr.bf16.mxu0 0
    %3574 = vmatpush1.bf16.msra.mxu0 0
    %3575 = vmatprep.subr.bf16.mxu0 0
    %3576 = vmatpush1.bf16.msra.mxu0 %v3563
    %3577 = vmatprep.subr.bf16.mxu0 0
    %3578 = vmatpush1.bf16.msra.mxu0 %v3460
    %3579 = vmatprep.subr.bf16.mxu0 0
    %3580 = vmatpush1.bf16.msra.mxu0 %v3459
    %3581 = vmatprep.subr.bf16.mxu0 0
    %3582 = vmatpush2.bf16.msra.mxu0 0
    %3583 = vmatprep.subr.bf16.mxu0 0
    %3584 = vmatpush2.bf16.msra.mxu0 0
    %3585 = vmatprep.subr.bf16.mxu0 0
    %3586 = vmatpush2.bf16.msra.mxu0 0
    %3587 = vmatprep.subr.bf16.mxu0 0
    %3588 = vmatpush2.bf16.msra.mxu0 0
    %3589 = vmatprep.subr.bf16.mxu0 0
    %3590 = vmatpush2.bf16.msra.mxu0 0
    %3591 = vmatprep.subr.bf16.mxu0 0
    %3592 = vmatpush2.bf16.msra.mxu0 0
    %3593 = vmatprep.subr.bf16.mxu0 0
    %3594 = vmatpush2.bf16.msra.mxu0 0
    %3595 = vmatprep.subr.bf16.mxu0 0
    %3596 = vmatpush2.bf16.msra.mxu0 0
    %3597 = vmatprep.mubr.bf16.mxu0 0
    %3598 = vmatmul.mubr.bf16.gmra.mxu0 %v3466
    %v3599 = vpop.f32.mrf.mxu0
    %v3600 = vadd.f32 %v3447, %v3599
    %v3601 = vpop.f32.mrf.mxu0
    %v3602 = vpop.f32.mrf.mxu0
    %v3603 = vadd.f32 %v3447, %v3602
    %v3604 = vpop.f32.mrf.mxu0
    %3605 = vmatprep.mubr.bf16.mxu0 0
    %3606 = vmatmul.mubr.bf16.gmra.mxu0 %v3469
    %v3607 = vpop.f32.mrf.mxu0
    %v3608 = vadd.f32 %v3447, %v3607
    %v3609 = vpop.f32.mrf.mxu0
    %v3610 = vpop.f32.mrf.mxu0
    %v3611 = vadd.f32 %v3447, %v3610
    %v3612 = vpop.f32.mrf.mxu0
    %3613 = vmatprep.mubr.bf16.mxu0 0
    %3614 = vmatmul.mubr.bf16.gmra.mxu0 %v3472
    %v3615 = vpop.f32.mrf.mxu0
    %v3616 = vadd.f32 %v3447, %v3615
    %v3617 = vpop.f32.mrf.mxu0
    %v3618 = vpop.f32.mrf.mxu0
    %v3619 = vadd.f32 %v3447, %v3618
    %v3620 = vpop.f32.mrf.mxu0
    %3621 = vmatprep.mubr.bf16.mxu0 0
    %3622 = vmatmul.mubr.bf16.gmra.mxu0 %v3475
    %v3623 = vpop.f32.mrf.mxu0
    %v3624 = vadd.f32 %v3447, %v3623
    %v3625 = vpop.f32.mrf.mxu0
    %v3626 = vpop.f32.mrf.mxu0
    %v3627 = vadd.f32 %v3447, %v3626
    %v3628 = vpop.f32.mrf.mxu0
    %3629 = vmatprep.mubr.bf16.mxu0 0
    %3630 = vmatmul.mubr.bf16.gmra.mxu0 %v3478
    %v3631 = vpop.f32.mrf.mxu0
    %v3632 = vadd.f32 %v3447, %v3631
    %v3633 = vpop.f32.mrf.mxu0
    %v3634 = vpop.f32.mrf.mxu0
    %v3635 = vadd.f32 %v3447, %v3634
    %v3636 = vpop.f32.mrf.mxu0
    %3637 = vmatprep.mubr.bf16.mxu0 0
    %3638 = vmatmul.mubr.bf16.gmra.mxu0 %v3481
    %v3639 = vpop.f32.mrf.mxu0
    %v3640 = vadd.f32 %v3447, %v3639
    %v3641 = vpop.f32.mrf.mxu0
    %v3642 = vpop.f32.mrf.mxu0
    %v3643 = vadd.f32 %v3447, %v3642
    %v3644 = vpop.f32.mrf.mxu0
    %3645 = vmatprep.mubr.bf16.mxu0 0
    %3646 = vmatmul.mubr.bf16.gmra.mxu0 %v3484
    %v3647 = vpop.f32.mrf.mxu0
    %v3648 = vadd.f32 %v3447, %v3647
    %v3649 = vpop.f32.mrf.mxu0
    %v3650 = vpop.f32.mrf.mxu0
    %v3651 = vadd.f32 %v3447, %v3650
    %v3652 = vpop.f32.mrf.mxu0
    %3653 = vmatprep.mubr.bf16.mxu0 0
    %3654 = vmatmul.mubr.bf16.gmra.mxu0 %v3487
    %v3655 = vpop.f32.mrf.mxu0
    %v3656 = vadd.f32 %v3447, %v3655
    %v3657 = vpop.f32.mrf.mxu0
    %v3658 = vpop.f32.mrf.mxu0
    %v3659 = vadd.f32 %v3447, %v3658
    %v3660 = vpop.f32.mrf.mxu0
    %3661 = vmatprep.mubr.bf16.mxu0 0
    %3662 = vmatmul.mubr.bf16.gmra.mxu0 %v3490
    %v3663 = vpop.f32.mrf.mxu0
    %v3664 = vadd.f32 %v3447, %v3663
    %v3665 = vpop.f32.mrf.mxu0
    %v3666 = vpop.f32.mrf.mxu0
    %v3667 = vadd.f32 %v3447, %v3666
    %v3668 = vpop.f32.mrf.mxu0
    %3669 = vmatprep.mubr.bf16.mxu0 0
    %3670 = vmatmul.mubr.bf16.gmra.mxu0 %v3493
    %v3671 = vpop.f32.mrf.mxu0
    %v3672 = vadd.f32 %v3447, %v3671
    %v3673 = vpop.f32.mrf.mxu0
    %v3674 = vpop.f32.mrf.mxu0
    %v3675 = vadd.f32 %v3447, %v3674
    %v3676 = vpop.f32.mrf.mxu0
    %3677 = vmatprep.mubr.bf16.mxu0 0
    %3678 = vmatmul.mubr.bf16.gmra.mxu0 %v3496
    %v3679 = vpop.f32.mrf.mxu0
    %v3680 = vadd.f32 %v3447, %v3679
    %v3681 = vpop.f32.mrf.mxu0
    %v3682 = vpop.f32.mrf.mxu0
    %v3683 = vadd.f32 %v3447, %v3682
    %v3684 = vpop.f32.mrf.mxu0
    %3685 = vmatprep.mubr.bf16.mxu0 0
    %3686 = vmatmul.mubr.bf16.gmra.mxu0 %v3499
    %v3687 = vpop.f32.mrf.mxu0
    %v3688 = vadd.f32 %v3447, %v3687
    %v3689 = vpop.f32.mrf.mxu0
    %v3690 = vpop.f32.mrf.mxu0
    %v3691 = vadd.f32 %v3447, %v3690
    %v3692 = vpop.f32.mrf.mxu0
    %3693 = vmatprep.mubr.bf16.mxu0 0
    %3694 = vmatmul.mubr.bf16.gmra.mxu0 %v3502
    %v3695 = vpop.f32.mrf.mxu0
    %v3696 = vadd.f32 %v3447, %v3695
    %v3697 = vpop.f32.mrf.mxu0
    %v3698 = vpop.f32.mrf.mxu0
    %v3699 = vadd.f32 %v3447, %v3698
    %v3700 = vpop.f32.mrf.mxu0
    %3701 = vmatprep.mubr.bf16.mxu0 0
    %3702 = vmatmul.mubr.bf16.gmra.mxu0 %v3505
    %v3703 = vpop.f32.mrf.mxu0
    %v3704 = vadd.f32 %v3447, %v3703
    %v3705 = vpop.f32.mrf.mxu0
    %v3706 = vpop.f32.mrf.mxu0
    %v3707 = vadd.f32 %v3447, %v3706
    %v3708 = vpop.f32.mrf.mxu0
    %3709 = vmatprep.mubr.bf16.mxu0 0
    %3710 = vmatmul.mubr.bf16.gmra.mxu0 %v3508
    %v3711 = vpop.f32.mrf.mxu0
    %v3712 = vadd.f32 %v3447, %v3711
    %v3713 = vpop.f32.mrf.mxu0
    %v3714 = vpop.f32.mrf.mxu0
    %v3715 = vadd.f32 %v3447, %v3714
    %v3716 = vpop.f32.mrf.mxu0
    %3717 = vmatprep.mubr.bf16.mxu0 0
    %3718 = vmatmul.mubr.bf16.gmra.mxu0 %v3511
    %v3719 = vpop.f32.mrf.mxu0
    %v3720 = vadd.f32 %v3447, %v3719
    %v3721 = vpop.f32.mrf.mxu0
    %v3722 = vpop.f32.mrf.mxu0
    %v3723 = vadd.f32 %v3447, %v3722
    %v3724 = vpop.f32.mrf.mxu0
    %3725 = vmatprep.mubr.bf16.mxu0 0
    %3726 = vmatmul.mubr.bf16.gmra.mxu0 %v3514
    %v3727 = vpop.f32.mrf.mxu0
    %v3728 = vadd.f32 %v3447, %v3727
    %v3729 = vpop.f32.mrf.mxu0
    %v3730 = vpop.f32.mrf.mxu0
    %v3731 = vadd.f32 %v3447, %v3730
    %v3732 = vpop.f32.mrf.mxu0
    %3733 = vmatprep.mubr.bf16.mxu0 0
    %3734 = vmatmul.mubr.bf16.gmra.mxu0 %v3517
    %v3735 = vpop.f32.mrf.mxu0
    %v3736 = vadd.f32 %v3447, %v3735
    %v3737 = vpop.f32.mrf.mxu0
    %v3738 = vpop.f32.mrf.mxu0
    %v3739 = vadd.f32 %v3447, %v3738
    %v3740 = vpop.f32.mrf.mxu0
    %3741 = vmatprep.mubr.bf16.mxu0 0
    %3742 = vmatmul.mubr.bf16.gmra.mxu0 %v3520
    %v3743 = vpop.f32.mrf.mxu0
    %v3744 = vadd.f32 %v3447, %v3743
    %v3745 = vpop.f32.mrf.mxu0
    %v3746 = vpop.f32.mrf.mxu0
    %v3747 = vadd.f32 %v3447, %v3746
    %v3748 = vpop.f32.mrf.mxu0
    %3749 = vmatprep.mubr.bf16.mxu0 0
    %3750 = vmatmul.mubr.bf16.gmra.mxu0 %v3523
    %v3751 = vpop.f32.mrf.mxu0
    %v3752 = vadd.f32 %v3447, %v3751
    %v3753 = vpop.f32.mrf.mxu0
    %v3754 = vpop.f32.mrf.mxu0
    %v3755 = vadd.f32 %v3447, %v3754
    %v3756 = vpop.f32.mrf.mxu0
    %3757 = vmatprep.mubr.bf16.mxu0 0
    %3758 = vmatmul.mubr.bf16.gmra.mxu0 %v3526
    %v3759 = vpop.f32.mrf.mxu0
    %v3760 = vadd.f32 %v3447, %v3759
    %v3761 = vpop.f32.mrf.mxu0
    %v3762 = vpop.f32.mrf.mxu0
    %v3763 = vadd.f32 %v3447, %v3762
    %v3764 = vpop.f32.mrf.mxu0
    %3765 = vmatprep.mubr.bf16.mxu0 0
    %3766 = vmatmul.mubr.bf16.gmra.mxu0 %v3529
    %v3767 = vpop.f32.mrf.mxu0
    %v3768 = vadd.f32 %v3447, %v3767
    %v3769 = vpop.f32.mrf.mxu0
    %v3770 = vpop.f32.mrf.mxu0
    %v3771 = vadd.f32 %v3447, %v3770
    %v3772 = vpop.f32.mrf.mxu0
    %3773 = vmatprep.mubr.bf16.mxu0 0
    %3774 = vmatmul.mubr.bf16.gmra.mxu0 %v3532
    %v3775 = vpop.f32.mrf.mxu0
    %v3776 = vadd.f32 %v3447, %v3775
    %v3777 = vpop.f32.mrf.mxu0
    %v3778 = vpop.f32.mrf.mxu0
    %v3779 = vadd.f32 %v3447, %v3778
    %v3780 = vpop.f32.mrf.mxu0
    %3781 = vmatprep.mubr.bf16.mxu0 0
    %3782 = vmatmul.mubr.bf16.gmra.mxu0 %v3535
    %v3783 = vpop.f32.mrf.mxu0
    %v3784 = vadd.f32 %v3447, %v3783
    %v3785 = vpop.f32.mrf.mxu0
    %v3786 = vpop.f32.mrf.mxu0
    %v3787 = vadd.f32 %v3447, %v3786
    %v3788 = vpop.f32.mrf.mxu0
    %3789 = vmatprep.mubr.bf16.mxu0 0
    %3790 = vmatmul.mubr.bf16.gmra.mxu0 %v3538
    %v3791 = vpop.f32.mrf.mxu0
    %v3792 = vadd.f32 %v3447, %v3791
    %v3793 = vpop.f32.mrf.mxu0
    %v3794 = vpop.f32.mrf.mxu0
    %v3795 = vadd.f32 %v3447, %v3794
    %v3796 = vpop.f32.mrf.mxu0
    %3797 = vmatprep.mubr.bf16.mxu0 0
    %3798 = vmatmul.mubr.bf16.gmra.mxu0 %v3541
    %v3799 = vpop.f32.mrf.mxu0
    %v3800 = vadd.f32 %v3447, %v3799
    %v3801 = vpop.f32.mrf.mxu0
    %v3802 = vpop.f32.mrf.mxu0
    %v3803 = vadd.f32 %v3447, %v3802
    %v3804 = vpop.f32.mrf.mxu0
    %3805 = vmatprep.mubr.bf16.mxu0 0
    %3806 = vmatmul.mubr.bf16.gmra.mxu0 %v3544
    %v3807 = vpop.f32.mrf.mxu0
    %v3808 = vadd.f32 %v3447, %v3807
    %v3809 = vpop.f32.mrf.mxu0
    %v3810 = vpop.f32.mrf.mxu0
    %v3811 = vadd.f32 %v3447, %v3810
    %v3812 = vpop.f32.mrf.mxu0
    %3813 = vmatprep.mubr.bf16.mxu0 0
    %3814 = vmatmul.mubr.bf16.gmra.mxu0 %v3547
    %v3815 = vpop.f32.mrf.mxu0
    %v3816 = vadd.f32 %v3447, %v3815
    %v3817 = vpop.f32.mrf.mxu0
    %v3818 = vpop.f32.mrf.mxu0
    %v3819 = vadd.f32 %v3447, %v3818
    %v3820 = vpop.f32.mrf.mxu0
    %3821 = vmatprep.mubr.bf16.mxu0 0
    %3822 = vmatmul.mubr.bf16.gmra.mxu0 %v3550
    %v3823 = vpop.f32.mrf.mxu0
    %v3824 = vadd.f32 %v3447, %v3823
    %v3825 = vpop.f32.mrf.mxu0
    %v3826 = vpop.f32.mrf.mxu0
    %v3827 = vadd.f32 %v3447, %v3826
    %v3828 = vpop.f32.mrf.mxu0
    %3829 = vmatprep.mubr.bf16.mxu0 0
    %3830 = vmatmul.mubr.bf16.gmra.mxu0 %v3553
    %v3831 = vpop.f32.mrf.mxu0
    %v3832 = vadd.f32 %v3447, %v3831
    %v3833 = vpop.f32.mrf.mxu0
    %v3834 = vpop.f32.mrf.mxu0
    %v3835 = vadd.f32 %v3447, %v3834
    %v3836 = vpop.f32.mrf.mxu0
    %3837 = vmatprep.mubr.bf16.mxu0 0
    %3838 = vmatmul.mubr.bf16.gmra.mxu0 %v3556
    %v3839 = vpop.f32.mrf.mxu0
    %v3840 = vadd.f32 %v3447, %v3839
    %v3841 = vpop.f32.mrf.mxu0
    %v3842 = vpop.f32.mrf.mxu0
    %v3843 = vadd.f32 %v3447, %v3842
    %v3844 = vpop.f32.mrf.mxu0
    %3845 = vmatprep.mubr.bf16.mxu0 0
    %3846 = vmatmul.mubr.bf16.gmra.mxu0 %v3559
    %v3847 = vpop.f32.mrf.mxu0
    %v3848 = vadd.f32 %v3447, %v3847
    %v3849 = vpop.f32.mrf.mxu0
    %v3850 = vpop.f32.mrf.mxu0
    %v3851 = vadd.f32 %v3447, %v3850
    %v3852 = vpop.f32.mrf.mxu0
    %3853 = vdwg.mxu0
    %vm3854 = vcmp.gt.f32.partialorder %v3600, 0.0
    %vm3855 = vcmp.gt.f32.partialorder %v3603, 0.0
    %vm3856 = vcmp.gt.f32.partialorder %v3608, 0.0
    %vm3857 = vcmp.gt.f32.partialorder %v3611, 0.0
    %vm3858 = vcmp.gt.f32.partialorder %v3616, 0.0
    %vm3859 = vcmp.gt.f32.partialorder %v3619, 0.0
    %vm3860 = vcmp.gt.f32.partialorder %v3624, 0.0
    %vm3861 = vcmp.gt.f32.partialorder %v3627, 0.0
    %vm3862 = vcmp.gt.f32.partialorder %v3632, 0.0
    %vm3863 = vcmp.gt.f32.partialorder %v3635, 0.0
    %vm3864 = vcmp.gt.f32.partialorder %v3640, 0.0
    %vm3865 = vcmp.gt.f32.partialorder %v3643, 0.0
    %vm3866 = vcmp.gt.f32.partialorder %v3648, 0.0
    %vm3867 = vcmp.gt.f32.partialorder %v3651, 0.0
    %vm3868 = vcmp.gt.f32.partialorder %v3656, 0.0
    %vm3869 = vcmp.gt.f32.partialorder %v3659, 0.0
    %vm3870 = vcmp.gt.f32.partialorder %v3664, 0.0
    %vm3871 = vcmp.gt.f32.partialorder %v3667, 0.0
    %vm3872 = vcmp.gt.f32.partialorder %v3672, 0.0
    %vm3873 = vcmp.gt.f32.partialorder %v3675, 0.0
    %vm3874 = vcmp.gt.f32.partialorder %v3680, 0.0
    %vm3875 = vcmp.gt.f32.partialorder %v3683, 0.0
    %vm3876 = vcmp.gt.f32.partialorder %v3688, 0.0
    %vm3877 = vcmp.gt.f32.partialorder %v3691, 0.0
    %vm3878 = vcmp.gt.f32.partialorder %v3696, 0.0
    %vm3879 = vcmp.gt.f32.partialorder %v3699, 0.0
    %vm3880 = vcmp.gt.f32.partialorder %v3704, 0.0
    %vm3881 = vcmp.gt.f32.partialorder %v3707, 0.0
    %vm3882 = vcmp.gt.f32.partialorder %v3712, 0.0
    %vm3883 = vcmp.gt.f32.partialorder %v3715, 0.0
    %vm3884 = vcmp.gt.f32.partialorder %v3720, 0.0
    %vm3885 = vcmp.gt.f32.partialorder %v3723, 0.0
    %vm3886 = vcmp.gt.f32.partialorder %v3728, 0.0
    %vm3887 = vcmp.gt.f32.partialorder %v3731, 0.0
    %vm3888 = vcmp.gt.f32.partialorder %v3736, 0.0
    %vm3889 = vcmp.gt.f32.partialorder %v3739, 0.0
    %vm3890 = vcmp.gt.f32.partialorder %v3744, 0.0
    %vm3891 = vcmp.gt.f32.partialorder %v3747, 0.0
    %vm3892 = vcmp.gt.f32.partialorder %v3752, 0.0
    %vm3893 = vcmp.gt.f32.partialorder %v3755, 0.0
    %vm3894 = vcmp.gt.f32.partialorder %v3760, 0.0
    %vm3895 = vcmp.gt.f32.partialorder %v3763, 0.0
    %vm3896 = vcmp.gt.f32.partialorder %v3768, 0.0
    %vm3897 = vcmp.gt.f32.partialorder %v3771, 0.0
    %vm3898 = vcmp.gt.f32.partialorder %v3776, 0.0
    %vm3899 = vcmp.gt.f32.partialorder %v3779, 0.0
    %vm3900 = vcmp.gt.f32.partialorder %v3784, 0.0
    %vm3901 = vcmp.gt.f32.partialorder %v3787, 0.0
    %vm3902 = vcmp.gt.f32.partialorder %v3792, 0.0
    %vm3903 = vcmp.gt.f32.partialorder %v3795, 0.0
    %vm3904 = vcmp.gt.f32.partialorder %v3800, 0.0
    %vm3905 = vcmp.gt.f32.partialorder %v3803, 0.0
    %vm3906 = vcmp.gt.f32.partialorder %v3808, 0.0
    %vm3907 = vcmp.gt.f32.partialorder %v3811, 0.0
    %vm3908 = vcmp.gt.f32.partialorder %v3816, 0.0
    %vm3909 = vcmp.gt.f32.partialorder %v3819, 0.0
    %vm3910 = vcmp.gt.f32.partialorder %v3824, 0.0
    %vm3911 = vcmp.gt.f32.partialorder %v3827, 0.0
    %vm3912 = vcmp.gt.f32.partialorder %v3832, 0.0
    %vm3913 = vcmp.gt.f32.partialorder %v3835, 0.0
    %vm3914 = vcmp.gt.f32.partialorder %v3840, 0.0
    %vm3915 = vcmp.gt.f32.partialorder %v3843, 0.0
    %vm3916 = vcmp.gt.f32.partialorder %v3848, 0.0
    %vm3917 = vcmp.gt.f32.partialorder %v3851, 0.0
    %v3918 = vmul.f32 %v3600, 0.2
    %v3919 = vmul.f32 %v3603, 0.2
    %v3920 = vmul.f32 %v3608, 0.2
    %v3921 = vmul.f32 %v3611, 0.2
    %v3922 = vmul.f32 %v3616, 0.2
    %v3923 = vmul.f32 %v3619, 0.2
    %v3924 = vmul.f32 %v3624, 0.2
    %v3925 = vmul.f32 %v3627, 0.2
    %v3926 = vmul.f32 %v3632, 0.2
    %v3927 = vmul.f32 %v3635, 0.2
    %v3928 = vmul.f32 %v3640, 0.2
    %v3929 = vmul.f32 %v3643, 0.2
    %v3930 = vmul.f32 %v3648, 0.2
    %v3931 = vmul.f32 %v3651, 0.2
    %v3932 = vmul.f32 %v3656, 0.2
    %v3933 = vmul.f32 %v3659, 0.2
    %v3934 = vmul.f32 %v3664, 0.2
    %v3935 = vmul.f32 %v3667, 0.2
    %v3936 = vmul.f32 %v3672, 0.2
    %v3937 = vmul.f32 %v3675, 0.2
    %v3938 = vmul.f32 %v3680, 0.2
    %v3939 = vmul.f32 %v3683, 0.2
    %v3940 = vmul.f32 %v3688, 0.2
    %v3941 = vmul.f32 %v3691, 0.2
    %v3942 = vmul.f32 %v3696, 0.2
    %v3943 = vmul.f32 %v3699, 0.2
    %v3944 = vmul.f32 %v3704, 0.2
    %v3945 = vmul.f32 %v3707, 0.2
    %v3946 = vmul.f32 %v3712, 0.2
    %v3947 = vmul.f32 %v3715, 0.2
    %v3948 = vmul.f32 %v3720, 0.2
    %v3949 = vmul.f32 %v3723, 0.2
    %v3950 = vmul.f32 %v3728, 0.2
    %v3951 = vmul.f32 %v3731, 0.2
    %v3952 = vmul.f32 %v3736, 0.2
    %v3953 = vmul.f32 %v3739, 0.2
    %v3954 = vmul.f32 %v3744, 0.2
    %v3955 = vmul.f32 %v3747, 0.2
    %v3956 = vmul.f32 %v3752, 0.2
    %v3957 = vmul.f32 %v3755, 0.2
    %v3958 = vmul.f32 %v3760, 0.2
    %v3959 = vmul.f32 %v3763, 0.2
    %v3960 = vmul.f32 %v3768, 0.2
    %v3961 = vmul.f32 %v3771, 0.2
    %v3962 = vmul.f32 %v3776, 0.2
    %v3963 = vmul.f32 %v3779, 0.2
    %v3964 = vmul.f32 %v3784, 0.2
    %v3965 = vmul.f32 %v3787, 0.2
    %v3966 = vmul.f32 %v3792, 0.2
    %v3967 = vmul.f32 %v3795, 0.2
    %v3968 = vmul.f32 %v3800, 0.2
    %v3969 = vmul.f32 %v3803, 0.2
    %v3970 = vmul.f32 %v3808, 0.2
    %v3971 = vmul.f32 %v3811, 0.2
    %v3972 = vmul.f32 %v3816, 0.2
    %v3973 = vmul.f32 %v3819, 0.2
    %v3974 = vmul.f32 %v3824, 0.2
    %v3975 = vmul.f32 %v3827, 0.2
    %v3976 = vmul.f32 %v3832, 0.2
    %v3977 = vmul.f32 %v3835, 0.2
    %v3978 = vmul.f32 %v3840, 0.2
    %v3979 = vmul.f32 %v3843, 0.2
    %v3980 = vmul.f32 %v3848, 0.2
    %v3981 = vmul.f32 %v3851, 0.2
    %v3982 = vsel %vm3854, %v3600, %v3918
    %v3983 = vsel %vm3855, %v3603, %v3919
    %v3984 = vsel %vm3856, %v3608, %v3920
    %v3985 = vsel %vm3857, %v3611, %v3921
    %v3986 = vsel %vm3858, %v3616, %v3922
    %v3987 = vsel %vm3859, %v3619, %v3923
    %v3988 = vsel %vm3860, %v3624, %v3924
    %v3989 = vsel %vm3861, %v3627, %v3925
    %v3990 = vsel %vm3862, %v3632, %v3926
    %v3991 = vsel %vm3863, %v3635, %v3927
    %v3992 = vsel %vm3864, %v3640, %v3928
    %v3993 = vsel %vm3865, %v3643, %v3929
    %v3994 = vsel %vm3866, %v3648, %v3930
    %v3995 = vsel %vm3867, %v3651, %v3931
    %v3996 = vsel %vm3868, %v3656, %v3932
    %v3997 = vsel %vm3869, %v3659, %v3933
    %v3998 = vsel %vm3870, %v3664, %v3934
    %v3999 = vsel %vm3871, %v3667, %v3935
    %v4000 = vsel %vm3872, %v3672, %v3936
    %v4001 = vsel %vm3873, %v3675, %v3937
    %v4002 = vsel %vm3874, %v3680, %v3938
    %v4003 = vsel %vm3875, %v3683, %v3939
    %v4004 = vsel %vm3876, %v3688, %v3940
    %v4005 = vsel %vm3877, %v3691, %v3941
    %v4006 = vsel %vm3878, %v3696, %v3942
    %v4007 = vsel %vm3879, %v3699, %v3943
    %v4008 = vsel %vm3880, %v3704, %v3944
    %v4009 = vsel %vm3881, %v3707, %v3945
    %v4010 = vsel %vm3882, %v3712, %v3946
    %v4011 = vsel %vm3883, %v3715, %v3947
    %v4012 = vsel %vm3884, %v3720, %v3948
    %v4013 = vsel %vm3885, %v3723, %v3949
    %v4014 = vsel %vm3886, %v3728, %v3950
    %v4015 = vsel %vm3887, %v3731, %v3951
    %v4016 = vsel %vm3888, %v3736, %v3952
    %v4017 = vsel %vm3889, %v3739, %v3953
    %v4018 = vsel %vm3890, %v3744, %v3954
    %v4019 = vsel %vm3891, %v3747, %v3955
    %v4020 = vsel %vm3892, %v3752, %v3956
    %v4021 = vsel %vm3893, %v3755, %v3957
    %v4022 = vsel %vm3894, %v3760, %v3958
    %v4023 = vsel %vm3895, %v3763, %v3959
    %v4024 = vsel %vm3896, %v3768, %v3960
    %v4025 = vsel %vm3897, %v3771, %v3961
    %v4026 = vsel %vm3898, %v3776, %v3962
    %v4027 = vsel %vm3899, %v3779, %v3963
    %v4028 = vsel %vm3900, %v3784, %v3964
    %v4029 = vsel %vm3901, %v3787, %v3965
    %v4030 = vsel %vm3902, %v3792, %v3966
    %v4031 = vsel %vm3903, %v3795, %v3967
    %v4032 = vsel %vm3904, %v3800, %v3968
    %v4033 = vsel %vm3905, %v3803, %v3969
    %v4034 = vsel %vm3906, %v3808, %v3970
    %v4035 = vsel %vm3907, %v3811, %v3971
    %v4036 = vsel %vm3908, %v3816, %v3972
    %v4037 = vsel %vm3909, %v3819, %v3973
    %v4038 = vsel %vm3910, %v3824, %v3974
    %v4039 = vsel %vm3911, %v3827, %v3975
    %v4040 = vsel %vm3912, %v3832, %v3976
    %v4041 = vsel %vm3913, %v3835, %v3977
    %v4042 = vsel %vm3914, %v3840, %v3978
    %v4043 = vsel %vm3915, %v3843, %v3979
    %v4044 = vsel %vm3916, %v3848, %v3980
    %v4045 = vsel %vm3917, %v3851, %v3981
    %4046 = vst.msk [vmem:[#allocation3] sm:$0xff] %vm3340, 0.0
    %4047 = vst.msk [vmem:[#allocation3 + $0x8] sm:$0xff] %vm3340, 0.0
    %vm4048 = vcmask 254976
    %4049 = vst.msk [vmem:[#allocation3 + $0x10] sm:$0x3] %vm4048, 0.0
    %4050 = vst.msk [vmem:[#allocation3 + $0x18] sm:$0xff] %vm3340, 0.0
    %4051 = vst.msk [vmem:[#allocation3 + $0x20] sm:$0xff] %vm3340, 0.0
    %4052 = vst.msk [vmem:[#allocation3 + $0x28] sm:$0x3] %vm4048, 0.0
    %4053 = vst.msk [vmem:[#allocation3 + $0x30] sm:$0xff] %vm3340, 0.0
    %4054 = vst.msk [vmem:[#allocation3 + $0x38] sm:$0xff] %vm3340, 0.0
    %4055 = vst.msk [vmem:[#allocation3 + $0x40] sm:$0x3] %vm4048, 0.0
    %4056 = vst.msk [vmem:[#allocation3 + $0x48] sm:$0xff] %vm3340, 0.0
    %4057 = vst.msk [vmem:[#allocation3 + $0x50] sm:$0xff] %vm3340, 0.0
    %4058 = vst.msk [vmem:[#allocation3 + $0x58] sm:$0x3] %vm4048, 0.0
    %4059 = vst.msk [vmem:[#allocation3 + $0x60] sm:$0xff] %vm3340, 0.0
    %4060 = vst.msk [vmem:[#allocation3 + $0x68] sm:$0xff] %vm3340, 0.0
    %4061 = vst.msk [vmem:[#allocation3 + $0x70] sm:$0x3] %vm4048, 0.0
    %4062 = vst.msk [vmem:[#allocation3 + $0x78] sm:$0xff] %vm3340, 0.0
    %4063 = vst.msk [vmem:[#allocation3 + $0x80] sm:$0xff] %vm3340, 0.0
    %4064 = vst.msk [vmem:[#allocation3 + $0x88] sm:$0x3] %vm4048, 0.0
    %4065 = vst.msk [vmem:[#allocation3 + $0x90] sm:$0xff] %vm3340, 0.0
    %4066 = vst.msk [vmem:[#allocation3 + $0x98] sm:$0xff] %vm3340, 0.0
    %4067 = vst.msk [vmem:[#allocation3 + $0xa0] sm:$0x3] %vm4048, 0.0
    %4068 = vst.msk [vmem:[#allocation3 + $0xa8] sm:$0xff] %vm3340, 0.0
    %4069 = vst.msk [vmem:[#allocation3 + $0xb0] sm:$0xff] %vm3340, 0.0
    %4070 = vst.msk [vmem:[#allocation3 + $0xb8] sm:$0x3] %vm4048, 0.0
    %4071 = vst.msk [vmem:[#allocation3 + $0xc0] sm:$0xff] %vm3340, 0.0
    %4072 = vst.msk [vmem:[#allocation3 + $0xc8] sm:$0xff] %vm3340, 0.0
    %4073 = vst.msk [vmem:[#allocation3 + $0xd0] sm:$0x3] %vm4048, 0.0
    %4074 = vst.msk [vmem:[#allocation3 + $0xd8] sm:$0xff] %vm3340, 0.0
    %4075 = vst.msk [vmem:[#allocation3 + $0xe0] sm:$0xff] %vm3340, 0.0
    %4076 = vst.msk [vmem:[#allocation3 + $0xe8] sm:$0x3] %vm4048, 0.0
    %4077 = vst.msk [vmem:[#allocation3 + $0xf0] sm:$0xff] %vm3340, 0.0
    %4078 = vst.msk [vmem:[#allocation3 + $0xf8] sm:$0xff] %vm3340, 0.0
    %4079 = vst.msk [vmem:[#allocation3 + $0x100] sm:$0x3] %vm4048, 0.0
    %4080 = vst.msk [vmem:[#allocation3 + $0x108] sm:$0xff] %vm3340, 0.0
    %4081 = vst.msk [vmem:[#allocation3 + $0x110] sm:$0xff] %vm3340, 0.0
    %4082 = vst.msk [vmem:[#allocation3 + $0x118] sm:$0x3] %vm4048, 0.0
    %4083 = vst.msk [vmem:[#allocation3 + $0x120] sm:$0xff] %vm3340, 0.0
    %4084 = vst.msk [vmem:[#allocation3 + $0x128] sm:$0xff] %vm3340, 0.0
    %4085 = vst.msk [vmem:[#allocation3 + $0x130] sm:$0x3] %vm4048, 0.0
    %4086 = vst.msk [vmem:[#allocation3 + $0x138] sm:$0xff] %vm3340, 0.0
    %4087 = vst.msk [vmem:[#allocation3 + $0x140] sm:$0xff] %vm3340, 0.0
    %4088 = vst.msk [vmem:[#allocation3 + $0x148] sm:$0x3] %vm4048, 0.0
    %4089 = vst.msk [vmem:[#allocation3 + $0x150] sm:$0xff] %vm3340, 0.0
    %4090 = vst.msk [vmem:[#allocation3 + $0x158] sm:$0xff] %vm3340, 0.0
    %4091 = vst.msk [vmem:[#allocation3 + $0x160] sm:$0x3] %vm4048, 0.0
    %4092 = vst.msk [vmem:[#allocation3 + $0x168] sm:$0xff] %vm3340, 0.0
    %4093 = vst.msk [vmem:[#allocation3 + $0x170] sm:$0xff] %vm3340, 0.0
    %4094 = vst.msk [vmem:[#allocation3 + $0x178] sm:$0x3] %vm4048, 0.0
    %4095 = vst.msk [vmem:[#allocation3 + $0x180] sm:$0xff] %vm3340, 0.0
    %4096 = vst.msk [vmem:[#allocation3 + $0x188] sm:$0xff] %vm3340, 0.0
    %4097 = vst.msk [vmem:[#allocation3 + $0x190] sm:$0x3] %vm4048, 0.0
    %4098 = vst.msk [vmem:[#allocation3 + $0x198] sm:$0xff] %vm3340, 0.0
    %4099 = vst.msk [vmem:[#allocation3 + $0x1a0] sm:$0xff] %vm3340, 0.0
    %4100 = vst.msk [vmem:[#allocation3 + $0x1a8] sm:$0x3] %vm4048, 0.0
    %4101 = vst.msk [vmem:[#allocation3 + $0x1b0] sm:$0xff] %vm3340, 0.0
    %4102 = vst.msk [vmem:[#allocation3 + $0x1b8] sm:$0xff] %vm3340, 0.0
    %4103 = vst.msk [vmem:[#allocation3 + $0x1c0] sm:$0x3] %vm4048, 0.0
    %4104 = vst.msk [vmem:[#allocation3 + $0x1c8] sm:$0xff] %vm3340, 0.0
    %4105 = vst.msk [vmem:[#allocation3 + $0x1d0] sm:$0xff] %vm3340, 0.0
    %4106 = vst.msk [vmem:[#allocation3 + $0x1d8] sm:$0x3] %vm4048, 0.0
    %4107 = vst.msk [vmem:[#allocation3 + $0x1e0] sm:$0xff] %vm3340, 0.0
    %4108 = vst.msk [vmem:[#allocation3 + $0x1e8] sm:$0xff] %vm3340, 0.0
    %4109 = vst.msk [vmem:[#allocation3 + $0x1f0] sm:$0x3] %vm4048, 0.0
    %4110 = vst.msk [vmem:[#allocation3 + $0x1f8] sm:$0xff] %vm3340, 0.0
    %4111 = vst.msk [vmem:[#allocation3 + $0x200] sm:$0xff] %vm3340, 0.0
    %4112 = vst.msk [vmem:[#allocation3 + $0x208] sm:$0x3] %vm4048, 0.0
    %4113 = vst.msk [vmem:[#allocation3 + $0x210] sm:$0xff] %vm3340, 0.0
    %4114 = vst.msk [vmem:[#allocation3 + $0x218] sm:$0xff] %vm3340, 0.0
    %4115 = vst.msk [vmem:[#allocation3 + $0x220] sm:$0x3] %vm4048, 0.0
    %4116 = vst.msk [vmem:[#allocation3 + $0x228] sm:$0xff] %vm3340, 0.0
    %4117 = vst.msk [vmem:[#allocation3 + $0x230] sm:$0xff] %vm3340, 0.0
    %4118 = vst.msk [vmem:[#allocation3 + $0x238] sm:$0x3] %vm4048, 0.0
    %4119 = vst.msk [vmem:[#allocation3 + $0x240] sm:$0xff] %vm3340, 0.0
    %4120 = vst.msk [vmem:[#allocation3 + $0x248] sm:$0xff] %vm3340, 0.0
    %4121 = vst.msk [vmem:[#allocation3 + $0x250] sm:$0x3] %vm4048, 0.0
    %4122 = vst.msk [vmem:[#allocation3 + $0x258] sm:$0xff] %vm3340, 0.0
    %4123 = vst.msk [vmem:[#allocation3 + $0x260] sm:$0xff] %vm3340, 0.0
    %4124 = vst.msk [vmem:[#allocation3 + $0x268] sm:$0x3] %vm4048, 0.0
    %4125 = vst.msk [vmem:[#allocation3 + $0x270] sm:$0xff] %vm3340, 0.0
    %4126 = vst.msk [vmem:[#allocation3 + $0x278] sm:$0xff] %vm3340, 0.0
    %4127 = vst.msk [vmem:[#allocation3 + $0x280] sm:$0x3] %vm4048, 0.0
    %4128 = vst.msk [vmem:[#allocation3 + $0x288] sm:$0xff] %vm3340, 0.0
    %4129 = vst.msk [vmem:[#allocation3 + $0x290] sm:$0xff] %vm3340, 0.0
    %4130 = vst.msk [vmem:[#allocation3 + $0x298] sm:$0x3] %vm4048, 0.0
    %4131 = vst.msk [vmem:[#allocation3 + $0x2a0] sm:$0xff] %vm3340, 0.0
    %4132 = vst.msk [vmem:[#allocation3 + $0x2a8] sm:$0xff] %vm3340, 0.0
    %4133 = vst.msk [vmem:[#allocation3 + $0x2b0] sm:$0x3] %vm4048, 0.0
    %4134 = vst.msk [vmem:[#allocation3 + $0x2b8] sm:$0xff] %vm3340, 0.0
    %4135 = vst.msk [vmem:[#allocation3 + $0x2c0] sm:$0xff] %vm3340, 0.0
    %4136 = vst.msk [vmem:[#allocation3 + $0x2c8] sm:$0x3] %vm4048, 0.0
    %4137 = vst.msk [vmem:[#allocation3 + $0x2d0] sm:$0xff] %vm3340, 0.0
    %4138 = vst.msk [vmem:[#allocation3 + $0x2d8] sm:$0xff] %vm3340, 0.0
    %4139 = vst.msk [vmem:[#allocation3 + $0x2e0] sm:$0x3] %vm4048, 0.0
    %4140 = vst.msk [vmem:[#allocation3 + $0x2e8] sm:$0xff] %vm3340, 0.0
    %4141 = vst.msk [vmem:[#allocation3 + $0x2f0] sm:$0xff] %vm3340, 0.0
    %4142 = vst.msk [vmem:[#allocation3 + $0x2f8] sm:$0x3] %vm4048, 0.0
    %4143 = vst.msk [vmem:[#allocation3 + $0x300] sm:$0xff] %vm3340, 0.0
    %4144 = vst.msk [vmem:[#allocation3 + $0x308] sm:$0xff] %vm3340, 0.0
    %4145 = vst.msk [vmem:[#allocation3 + $0x310] sm:$0x3] %vm4048, 0.0
    %4146 = vst.msk [vmem:[#allocation3 + $0x318] sm:$0xff] %vm3340, 0.0
    %4147 = vst.msk [vmem:[#allocation3 + $0x320] sm:$0xff] %vm3340, 0.0
    %4148 = vst.msk [vmem:[#allocation3 + $0x328] sm:$0x3] %vm4048, 0.0
    %4149 = vst.msk [vmem:[#allocation3 + $0x330] sm:$0xff] %vm3340, 0.0
    %4150 = vst.msk [vmem:[#allocation3 + $0x338] sm:$0xff] %vm3340, 0.0
    %4151 = vst.msk [vmem:[#allocation3 + $0x340] sm:$0x3] %vm4048, 0.0
    %4152 = vst.msk [vmem:[#allocation3 + $0x348] sm:$0xff] %vm3340, 0.0
    %4153 = vst.msk [vmem:[#allocation3 + $0x350] sm:$0xff] %vm3340, 0.0
    %4154 = vst.msk [vmem:[#allocation3 + $0x358] sm:$0x3] %vm4048, 0.0
    %s4155 = scalar_lea.vmem [#allocation3], 24
    %4156 = vst.msk [vmem:[%s4155 + $0x1] sm:$0xff] %vm3340, %v3982
    %4157 = vst.msk [vmem:[%s4155 + $0x9] sm:$0xff] %vm3340, %v3983
    %4158 = vst.msk [vmem:[%s4155 + $0x19] sm:$0xff] %vm3340, %v3984
    %4159 = vst.msk [vmem:[%s4155 + $0x21] sm:$0xff] %vm3340, %v3985
    %4160 = vst.msk [vmem:[%s4155 + $0x31] sm:$0xff] %vm3340, %v3986
    %4161 = vst.msk [vmem:[%s4155 + $0x39] sm:$0xff] %vm3340, %v3987
    %4162 = vst.msk [vmem:[%s4155 + $0x49] sm:$0xff] %vm3340, %v3988
    %4163 = vst.msk [vmem:[%s4155 + $0x51] sm:$0xff] %vm3340, %v3989
    %4164 = vst.msk [vmem:[%s4155 + $0x61] sm:$0xff] %vm3340, %v3990
    %4165 = vst.msk [vmem:[%s4155 + $0x69] sm:$0xff] %vm3340, %v3991
    %4166 = vst.msk [vmem:[%s4155 + $0x79] sm:$0xff] %vm3340, %v3992
    %4167 = vst.msk [vmem:[%s4155 + $0x81] sm:$0xff] %vm3340, %v3993
    %4168 = vst.msk [vmem:[%s4155 + $0x91] sm:$0xff] %vm3340, %v3994
    %4169 = vst.msk [vmem:[%s4155 + $0x99] sm:$0xff] %vm3340, %v3995
    %4170 = vst.msk [vmem:[%s4155 + $0xa9] sm:$0xff] %vm3340, %v3996
    %4171 = vst.msk [vmem:[%s4155 + $0xb1] sm:$0xff] %vm3340, %v3997
    %4172 = vst.msk [vmem:[%s4155 + $0xc1] sm:$0xff] %vm3340, %v3998
    %4173 = vst.msk [vmem:[%s4155 + $0xc9] sm:$0xff] %vm3340, %v3999
    %4174 = vst.msk [vmem:[%s4155 + $0xd9] sm:$0xff] %vm3340, %v4000
    %4175 = vst.msk [vmem:[%s4155 + $0xe1] sm:$0xff] %vm3340, %v4001
    %4176 = vst.msk [vmem:[%s4155 + $0xf1] sm:$0xff] %vm3340, %v4002
    %4177 = vst.msk [vmem:[%s4155 + $0xf9] sm:$0xff] %vm3340, %v4003
    %4178 = vst.msk [vmem:[%s4155 + $0x109] sm:$0xff] %vm3340, %v4004
    %4179 = vst.msk [vmem:[%s4155 + $0x111] sm:$0xff] %vm3340, %v4005
    %4180 = vst.msk [vmem:[%s4155 + $0x121] sm:$0xff] %vm3340, %v4006
    %4181 = vst.msk [vmem:[%s4155 + $0x129] sm:$0xff] %vm3340, %v4007
    %4182 = vst.msk [vmem:[%s4155 + $0x139] sm:$0xff] %vm3340, %v4008
    %4183 = vst.msk [vmem:[%s4155 + $0x141] sm:$0xff] %vm3340, %v4009
    %4184 = vst.msk [vmem:[%s4155 + $0x151] sm:$0xff] %vm3340, %v4010
    %4185 = vst.msk [vmem:[%s4155 + $0x159] sm:$0xff] %vm3340, %v4011
    %4186 = vst.msk [vmem:[%s4155 + $0x169] sm:$0xff] %vm3340, %v4012
    %4187 = vst.msk [vmem:[%s4155 + $0x171] sm:$0xff] %vm3340, %v4013
    %4188 = vst.msk [vmem:[%s4155 + $0x1b1] sm:$0xff] %vm3340, %v4014
    %4189 = vst.msk [vmem:[%s4155 + $0x1b9] sm:$0xff] %vm3340, %v4015
    %4190 = vst.msk [vmem:[%s4155 + $0x1c9] sm:$0xff] %vm3340, %v4016
    %4191 = vst.msk [vmem:[%s4155 + $0x1d1] sm:$0xff] %vm3340, %v4017
    %4192 = vst.msk [vmem:[%s4155 + $0x1e1] sm:$0xff] %vm3340, %v4018
    %4193 = vst.msk [vmem:[%s4155 + $0x1e9] sm:$0xff] %vm3340, %v4019
    %4194 = vst.msk [vmem:[%s4155 + $0x1f9] sm:$0xff] %vm3340, %v4020
    %4195 = vst.msk [vmem:[%s4155 + $0x201] sm:$0xff] %vm3340, %v4021
    %4196 = vst.msk [vmem:[%s4155 + $0x211] sm:$0xff] %vm3340, %v4022
    %4197 = vst.msk [vmem:[%s4155 + $0x219] sm:$0xff] %vm3340, %v4023
    %4198 = vst.msk [vmem:[%s4155 + $0x229] sm:$0xff] %vm3340, %v4024
    %4199 = vst.msk [vmem:[%s4155 + $0x231] sm:$0xff] %vm3340, %v4025
    %4200 = vst.msk [vmem:[%s4155 + $0x241] sm:$0xff] %vm3340, %v4026
    %4201 = vst.msk [vmem:[%s4155 + $0x249] sm:$0xff] %vm3340, %v4027
    %4202 = vst.msk [vmem:[%s4155 + $0x259] sm:$0xff] %vm3340, %v4028
    %4203 = vst.msk [vmem:[%s4155 + $0x261] sm:$0xff] %vm3340, %v4029
    %4204 = vst.msk [vmem:[%s4155 + $0x271] sm:$0xff] %vm3340, %v4030
    %4205 = vst.msk [vmem:[%s4155 + $0x279] sm:$0xff] %vm3340, %v4031
    %4206 = vst.msk [vmem:[%s4155 + $0x289] sm:$0xff] %vm3340, %v4032
    %4207 = vst.msk [vmem:[%s4155 + $0x291] sm:$0xff] %vm3340, %v4033
    %4208 = vst.msk [vmem:[%s4155 + $0x2a1] sm:$0xff] %vm3340, %v4034
    %4209 = vst.msk [vmem:[%s4155 + $0x2a9] sm:$0xff] %vm3340, %v4035
    %4210 = vst.msk [vmem:[%s4155 + $0x2b9] sm:$0xff] %vm3340, %v4036
    %4211 = vst.msk [vmem:[%s4155 + $0x2c1] sm:$0xff] %vm3340, %v4037
    %4212 = vst.msk [vmem:[%s4155 + $0x2d1] sm:$0xff] %vm3340, %v4038
    %4213 = vst.msk [vmem:[%s4155 + $0x2d9] sm:$0xff] %vm3340, %v4039
    %4214 = vst.msk [vmem:[%s4155 + $0x2e9] sm:$0xff] %vm3340, %v4040
    %4215 = vst.msk [vmem:[%s4155 + $0x2f1] sm:$0xff] %vm3340, %v4041
    %4216 = vst.msk [vmem:[%s4155 + $0x301] sm:$0xff] %vm3340, %v4042
    %4217 = vst.msk [vmem:[%s4155 + $0x309] sm:$0xff] %vm3340, %v4043
    %4218 = vst.msk [vmem:[%s4155 + $0x319] sm:$0xff] %vm3340, %v4044
    %4219 = vst.msk [vmem:[%s4155 + $0x321] sm:$0xff] %vm3340, %v4045
    %v4220 = vld [vmem:[#allocation3] sm:$0xff]
    %v4221 = vld [vmem:[#allocation3 + $0x8] sm:$0xff]
    %v4222 = vld [vmem:[#allocation3 + $0x18] sm:$0xff]
    %v4223 = vld [vmem:[#allocation3 + $0x20] sm:$0xff]
    %v4224 = vld [vmem:[#allocation3 + $0x30] sm:$0xff]
    %v4225 = vld [vmem:[#allocation3 + $0x38] sm:$0xff]
    %v4226 = vld [vmem:[#allocation3 + $0x48] sm:$0xff]
    %v4227 = vld [vmem:[#allocation3 + $0x50] sm:$0xff]
    %v4228 = vld [vmem:[#allocation3 + $0x60] sm:$0xff]
    %v4229 = vld [vmem:[#allocation3 + $0x68] sm:$0xff]
    %v4230 = vld [vmem:[#allocation3 + $0x78] sm:$0xff]
    %v4231 = vld [vmem:[#allocation3 + $0x80] sm:$0xff]
    %v4232 = vld [vmem:[#allocation3 + $0x90] sm:$0xff]
    %v4233 = vld [vmem:[#allocation3 + $0x98] sm:$0xff]
    %v4234 = vld [vmem:[#allocation3 + $0xa8] sm:$0xff]
    %v4235 = vld [vmem:[#allocation3 + $0xb0] sm:$0xff]
    %v4236 = vld [vmem:[#allocation3 + $0xc0] sm:$0xff]
    %v4237 = vld [vmem:[#allocation3 + $0xc8] sm:$0xff]
    %v4238 = vld [vmem:[#allocation3 + $0xd8] sm:$0xff]
    %v4239 = vld [vmem:[#allocation3 + $0xe0] sm:$0xff]
    %v4240 = vld [vmem:[#allocation3 + $0xf0] sm:$0xff]
    %v4241 = vld [vmem:[#allocation3 + $0xf8] sm:$0xff]
    %v4242 = vld [vmem:[#allocation3 + $0x108] sm:$0xff]
    %v4243 = vld [vmem:[#allocation3 + $0x110] sm:$0xff]
    %v4244 = vld [vmem:[#allocation3 + $0x120] sm:$0xff]
    %v4245 = vld [vmem:[#allocation3 + $0x128] sm:$0xff]
    %v4246 = vld [vmem:[#allocation3 + $0x138] sm:$0xff]
    %v4247 = vld [vmem:[#allocation3 + $0x140] sm:$0xff]
    %v4248 = vld [vmem:[#allocation3 + $0x150] sm:$0xff]
    %v4249 = vld [vmem:[#allocation3 + $0x158] sm:$0xff]
    %v4250 = vld [vmem:[#allocation3 + $0x168] sm:$0xff]
    %v4251 = vld [vmem:[#allocation3 + $0x170] sm:$0xff]
    %v4252 = vld [vmem:[#allocation3 + $0x1b0] sm:$0xff]
    %v4253 = vld [vmem:[#allocation3 + $0x1b8] sm:$0xff]
    %v4254 = vld [vmem:[#allocation3 + $0x1c8] sm:$0xff]
    %v4255 = vld [vmem:[#allocation3 + $0x1d0] sm:$0xff]
    %v4256 = vld [vmem:[#allocation3 + $0x1e0] sm:$0xff]
    %v4257 = vld [vmem:[#allocation3 + $0x1e8] sm:$0xff]
    %v4258 = vld [vmem:[#allocation3 + $0x1f8] sm:$0xff]
    %v4259 = vld [vmem:[#allocation3 + $0x200] sm:$0xff]
    %v4260 = vld [vmem:[#allocation3 + $0x210] sm:$0xff]
    %v4261 = vld [vmem:[#allocation3 + $0x218] sm:$0xff]
    %v4262 = vld [vmem:[#allocation3 + $0x228] sm:$0xff]
    %v4263 = vld [vmem:[#allocation3 + $0x230] sm:$0xff]
    %v4264 = vld [vmem:[#allocation3 + $0x240] sm:$0xff]
    %v4265 = vld [vmem:[#allocation3 + $0x248] sm:$0xff]
    %v4266 = vld [vmem:[#allocation3 + $0x258] sm:$0xff]
    %v4267 = vld [vmem:[#allocation3 + $0x260] sm:$0xff]
    %v4268 = vld [vmem:[#allocation3 + $0x270] sm:$0xff]
    %v4269 = vld [vmem:[#allocation3 + $0x278] sm:$0xff]
    %v4270 = vld [vmem:[#allocation3 + $0x288] sm:$0xff]
    %v4271 = vld [vmem:[#allocation3 + $0x290] sm:$0xff]
    %v4272 = vld [vmem:[#allocation3 + $0x2a0] sm:$0xff]
    %v4273 = vld [vmem:[#allocation3 + $0x2a8] sm:$0xff]
    %v4274 = vld [vmem:[#allocation3 + $0x2b8] sm:$0xff]
    %v4275 = vld [vmem:[#allocation3 + $0x2c0] sm:$0xff]
    %v4276 = vld [vmem:[#allocation3 + $0x2d0] sm:$0xff]
    %v4277 = vld [vmem:[#allocation3 + $0x2d8] sm:$0xff]
    %v4278 = vld [vmem:[#allocation3 + $0x2e8] sm:$0xff]
    %v4279 = vld [vmem:[#allocation3 + $0x2f0] sm:$0xff]
    %v4280 = vld [vmem:[#allocation3 + $0x300] sm:$0xff]
    %v4281 = vld [vmem:[#allocation3 + $0x308] sm:$0xff]
    %v4282 = vld [vmem:[#allocation3 + $0x318] sm:$0xff]
    %v4283 = vld [vmem:[#allocation3 + $0x320] sm:$0xff]
    %v4284 = vld [vmem:[#allocation3 + $0x1] sm:$0xff]
    %v4285 = vld [vmem:[#allocation3 + $0x9] sm:$0xff]
    %v4286 = vld [vmem:[#allocation3 + $0x19] sm:$0xff]
    %v4287 = vld [vmem:[#allocation3 + $0x21] sm:$0xff]
    %v4288 = vld [vmem:[#allocation3 + $0x31] sm:$0xff]
    %v4289 = vld [vmem:[#allocation3 + $0x39] sm:$0xff]
    %v4290 = vld [vmem:[#allocation3 + $0x49] sm:$0xff]
    %v4291 = vld [vmem:[#allocation3 + $0x51] sm:$0xff]
    %v4292 = vld [vmem:[#allocation3 + $0x61] sm:$0xff]
    %v4293 = vld [vmem:[#allocation3 + $0x69] sm:$0xff]
    %v4294 = vld [vmem:[#allocation3 + $0x79] sm:$0xff]
    %v4295 = vld [vmem:[#allocation3 + $0x81] sm:$0xff]
    %v4296 = vld [vmem:[#allocation3 + $0x91] sm:$0xff]
    %v4297 = vld [vmem:[#allocation3 + $0x99] sm:$0xff]
    %v4298 = vld [vmem:[#allocation3 + $0xa9] sm:$0xff]
    %v4299 = vld [vmem:[#allocation3 + $0xb1] sm:$0xff]
    %v4300 = vld [vmem:[#allocation3 + $0xc1] sm:$0xff]
    %v4301 = vld [vmem:[#allocation3 + $0xc9] sm:$0xff]
    %v4302 = vld [vmem:[#allocation3 + $0xd9] sm:$0xff]
    %v4303 = vld [vmem:[#allocation3 + $0xe1] sm:$0xff]
    %v4304 = vld [vmem:[#allocation3 + $0xf1] sm:$0xff]
    %v4305 = vld [vmem:[#allocation3 + $0xf9] sm:$0xff]
    %v4306 = vld [vmem:[#allocation3 + $0x109] sm:$0xff]
    %v4307 = vld [vmem:[#allocation3 + $0x111] sm:$0xff]
    %v4308 = vld [vmem:[#allocation3 + $0x121] sm:$0xff]
    %v4309 = vld [vmem:[#allocation3 + $0x129] sm:$0xff]
    %v4310 = vld [vmem:[#allocation3 + $0x139] sm:$0xff]
    %v4311 = vld [vmem:[#allocation3 + $0x141] sm:$0xff]
    %v4312 = vld [vmem:[#allocation3 + $0x151] sm:$0xff]
    %v4313 = vld [vmem:[#allocation3 + $0x159] sm:$0xff]
    %v4314 = vld [vmem:[#allocation3 + $0x169] sm:$0xff]
    %v4315 = vld [vmem:[#allocation3 + $0x171] sm:$0xff]
    %v4316 = vld [vmem:[#allocation3 + $0x1b1] sm:$0xff]
    %v4317 = vld [vmem:[#allocation3 + $0x1b9] sm:$0xff]
    %v4318 = vld [vmem:[#allocation3 + $0x1c9] sm:$0xff]
    %v4319 = vld [vmem:[#allocation3 + $0x1d1] sm:$0xff]
    %v4320 = vld [vmem:[#allocation3 + $0x1e1] sm:$0xff]
    %v4321 = vld [vmem:[#allocation3 + $0x1e9] sm:$0xff]
    %v4322 = vld [vmem:[#allocation3 + $0x1f9] sm:$0xff]
    %v4323 = vld [vmem:[#allocation3 + $0x201] sm:$0xff]
    %v4324 = vld [vmem:[#allocation3 + $0x211] sm:$0xff]
    %v4325 = vld [vmem:[#allocation3 + $0x219] sm:$0xff]
    %v4326 = vld [vmem:[#allocation3 + $0x229] sm:$0xff]
    %v4327 = vld [vmem:[#allocation3 + $0x231] sm:$0xff]
    %v4328 = vld [vmem:[#allocation3 + $0x241] sm:$0xff]
    %v4329 = vld [vmem:[#allocation3 + $0x249] sm:$0xff]
    %v4330 = vld [vmem:[#allocation3 + $0x259] sm:$0xff]
    %v4331 = vld [vmem:[#allocation3 + $0x261] sm:$0xff]
    %v4332 = vld [vmem:[#allocation3 + $0x271] sm:$0xff]
    %v4333 = vld [vmem:[#allocation3 + $0x279] sm:$0xff]
    %v4334 = vld [vmem:[#allocation3 + $0x289] sm:$0xff]
    %v4335 = vld [vmem:[#allocation3 + $0x291] sm:$0xff]
    %v4336 = vld [vmem:[#allocation3 + $0x2a1] sm:$0xff]
    %v4337 = vld [vmem:[#allocation3 + $0x2a9] sm:$0xff]
    %v4338 = vld [vmem:[#allocation3 + $0x2b9] sm:$0xff]
    %v4339 = vld [vmem:[#allocation3 + $0x2c1] sm:$0xff]
    %v4340 = vld [vmem:[#allocation3 + $0x2d1] sm:$0xff]
    %v4341 = vld [vmem:[#allocation3 + $0x2d9] sm:$0xff]
    %v4342 = vld [vmem:[#allocation3 + $0x2e9] sm:$0xff]
    %v4343 = vld [vmem:[#allocation3 + $0x2f1] sm:$0xff]
    %v4344 = vld [vmem:[#allocation3 + $0x301] sm:$0xff]
    %v4345 = vld [vmem:[#allocation3 + $0x309] sm:$0xff]
    %v4346 = vld [vmem:[#allocation3 + $0x319] sm:$0xff]
    %v4347 = vld [vmem:[#allocation3 + $0x321] sm:$0xff]
    %v4348 = vld [vmem:[#allocation3 + $0x2] sm:$0xff]
    %v4349 = vld [vmem:[#allocation3 + $0xa] sm:$0xff]
    %v4350 = vld [vmem:[#allocation3 + $0x1a] sm:$0xff]
    %v4351 = vld [vmem:[#allocation3 + $0x22] sm:$0xff]
    %v4352 = vld [vmem:[#allocation3 + $0x32] sm:$0xff]
    %v4353 = vld [vmem:[#allocation3 + $0x3a] sm:$0xff]
    %v4354 = vld [vmem:[#allocation3 + $0x4a] sm:$0xff]
    %v4355 = vld [vmem:[#allocation3 + $0x52] sm:$0xff]
    %v4356 = vld [vmem:[#allocation3 + $0x62] sm:$0xff]
    %v4357 = vld [vmem:[#allocation3 + $0x6a] sm:$0xff]
    %v4358 = vld [vmem:[#allocation3 + $0x7a] sm:$0xff]
    %v4359 = vld [vmem:[#allocation3 + $0x82] sm:$0xff]
    %v4360 = vld [vmem:[#allocation3 + $0x92] sm:$0xff]
    %v4361 = vld [vmem:[#allocation3 + $0x9a] sm:$0xff]
    %v4362 = vld [vmem:[#allocation3 + $0xaa] sm:$0xff]
    %v4363 = vld [vmem:[#allocation3 + $0xb2] sm:$0xff]
    %v4364 = vld [vmem:[#allocation3 + $0xc2] sm:$0xff]
    %v4365 = vld [vmem:[#allocation3 + $0xca] sm:$0xff]
    %v4366 = vld [vmem:[#allocation3 + $0xda] sm:$0xff]
    %v4367 = vld [vmem:[#allocation3 + $0xe2] sm:$0xff]
    %v4368 = vld [vmem:[#allocation3 + $0xf2] sm:$0xff]
    %v4369 = vld [vmem:[#allocation3 + $0xfa] sm:$0xff]
    %v4370 = vld [vmem:[#allocation3 + $0x10a] sm:$0xff]
    %v4371 = vld [vmem:[#allocation3 + $0x112] sm:$0xff]
    %v4372 = vld [vmem:[#allocation3 + $0x122] sm:$0xff]
    %v4373 = vld [vmem:[#allocation3 + $0x12a] sm:$0xff]
    %v4374 = vld [vmem:[#allocation3 + $0x13a] sm:$0xff]
    %v4375 = vld [vmem:[#allocation3 + $0x142] sm:$0xff]
    %v4376 = vld [vmem:[#allocation3 + $0x152] sm:$0xff]
    %v4377 = vld [vmem:[#allocation3 + $0x15a] sm:$0xff]
    %v4378 = vld [vmem:[#allocation3 + $0x16a] sm:$0xff]
    %v4379 = vld [vmem:[#allocation3 + $0x172] sm:$0xff]
    %v4380 = vld [vmem:[#allocation3 + $0x1b2] sm:$0xff]
    %v4381 = vld [vmem:[#allocation3 + $0x1ba] sm:$0xff]
    %v4382 = vld [vmem:[#allocation3 + $0x1ca] sm:$0xff]
    %v4383 = vld [vmem:[#allocation3 + $0x1d2] sm:$0xff]
    %v4384 = vld [vmem:[#allocation3 + $0x1e2] sm:$0xff]
    %v4385 = vld [vmem:[#allocation3 + $0x1ea] sm:$0xff]
    %v4386 = vld [vmem:[#allocation3 + $0x1fa] sm:$0xff]
    %v4387 = vld [vmem:[#allocation3 + $0x202] sm:$0xff]
    %v4388 = vld [vmem:[#allocation3 + $0x212] sm:$0xff]
    %v4389 = vld [vmem:[#allocation3 + $0x21a] sm:$0xff]
    %v4390 = vld [vmem:[#allocation3 + $0x22a] sm:$0xff]
    %v4391 = vld [vmem:[#allocation3 + $0x232] sm:$0xff]
    %v4392 = vld [vmem:[#allocation3 + $0x242] sm:$0xff]
    %v4393 = vld [vmem:[#allocation3 + $0x24a] sm:$0xff]
    %v4394 = vld [vmem:[#allocation3 + $0x25a] sm:$0xff]
    %v4395 = vld [vmem:[#allocation3 + $0x262] sm:$0xff]
    %v4396 = vld [vmem:[#allocation3 + $0x272] sm:$0xff]
    %v4397 = vld [vmem:[#allocation3 + $0x27a] sm:$0xff]
    %v4398 = vld [vmem:[#allocation3 + $0x28a] sm:$0xff]
    %v4399 = vld [vmem:[#allocation3 + $0x292] sm:$0xff]
    %v4400 = vld [vmem:[#allocation3 + $0x2a2] sm:$0xff]
    %v4401 = vld [vmem:[#allocation3 + $0x2aa] sm:$0xff]
    %v4402 = vld [vmem:[#allocation3 + $0x2ba] sm:$0xff]
    %v4403 = vld [vmem:[#allocation3 + $0x2c2] sm:$0xff]
    %v4404 = vld [vmem:[#allocation3 + $0x2d2] sm:$0xff]
    %v4405 = vld [vmem:[#allocation3 + $0x2da] sm:$0xff]
    %v4406 = vld [vmem:[#allocation3 + $0x2ea] sm:$0xff]
    %v4407 = vld [vmem:[#allocation3 + $0x2f2] sm:$0xff]
    %v4408 = vld [vmem:[#allocation3 + $0x302] sm:$0xff]
    %v4409 = vld [vmem:[#allocation3 + $0x30a] sm:$0xff]
    %v4410 = vld [vmem:[#allocation3 + $0x31a] sm:$0xff]
    %v4411 = vld [vmem:[#allocation3 + $0x322] sm:$0xff]
    %v4412 = vld [vmem:[%s4155] sm:$0xff]
    %v4413 = vld [vmem:[%s4155 + $0x8] sm:$0xff]
    %v4414 = vld [vmem:[%s4155 + $0x18] sm:$0xff]
    %v4415 = vld [vmem:[%s4155 + $0x20] sm:$0xff]
    %v4416 = vld [vmem:[%s4155 + $0x30] sm:$0xff]
    %v4417 = vld [vmem:[%s4155 + $0x38] sm:$0xff]
    %v4418 = vld [vmem:[%s4155 + $0x48] sm:$0xff]
    %v4419 = vld [vmem:[%s4155 + $0x50] sm:$0xff]
    %v4420 = vld [vmem:[%s4155 + $0x60] sm:$0xff]
    %v4421 = vld [vmem:[%s4155 + $0x68] sm:$0xff]
    %v4422 = vld [vmem:[%s4155 + $0x78] sm:$0xff]
    %v4423 = vld [vmem:[%s4155 + $0x80] sm:$0xff]
    %v4424 = vld [vmem:[%s4155 + $0x90] sm:$0xff]
    %v4425 = vld [vmem:[%s4155 + $0x98] sm:$0xff]
    %v4426 = vld [vmem:[%s4155 + $0xa8] sm:$0xff]
    %v4427 = vld [vmem:[%s4155 + $0xb0] sm:$0xff]
    %v4428 = vld [vmem:[%s4155 + $0xc0] sm:$0xff]
    %v4429 = vld [vmem:[%s4155 + $0xc8] sm:$0xff]
    %v4430 = vld [vmem:[%s4155 + $0xd8] sm:$0xff]
    %v4431 = vld [vmem:[%s4155 + $0xe0] sm:$0xff]
    %v4432 = vld [vmem:[%s4155 + $0xf0] sm:$0xff]
    %v4433 = vld [vmem:[%s4155 + $0xf8] sm:$0xff]
    %v4434 = vld [vmem:[%s4155 + $0x108] sm:$0xff]
    %v4435 = vld [vmem:[%s4155 + $0x110] sm:$0xff]
    %v4436 = vld [vmem:[%s4155 + $0x120] sm:$0xff]
    %v4437 = vld [vmem:[%s4155 + $0x128] sm:$0xff]
    %v4438 = vld [vmem:[%s4155 + $0x138] sm:$0xff]
    %v4439 = vld [vmem:[%s4155 + $0x140] sm:$0xff]
    %v4440 = vld [vmem:[%s4155 + $0x150] sm:$0xff]
    %v4441 = vld [vmem:[%s4155 + $0x158] sm:$0xff]
    %v4442 = vld [vmem:[%s4155 + $0x168] sm:$0xff]
    %v4443 = vld [vmem:[%s4155 + $0x170] sm:$0xff]
    %v4444 = vld [vmem:[%s4155 + $0x1b0] sm:$0xff]
    %v4445 = vld [vmem:[%s4155 + $0x1b8] sm:$0xff]
    %v4446 = vld [vmem:[%s4155 + $0x1c8] sm:$0xff]
    %v4447 = vld [vmem:[%s4155 + $0x1d0] sm:$0xff]
    %v4448 = vld [vmem:[%s4155 + $0x1e0] sm:$0xff]
    %v4449 = vld [vmem:[%s4155 + $0x1e8] sm:$0xff]
    %v4450 = vld [vmem:[%s4155 + $0x1f8] sm:$0xff]
    %v4451 = vld [vmem:[%s4155 + $0x200] sm:$0xff]
    %v4452 = vld [vmem:[%s4155 + $0x210] sm:$0xff]
    %v4453 = vld [vmem:[%s4155 + $0x218] sm:$0xff]
    %v4454 = vld [vmem:[%s4155 + $0x228] sm:$0xff]
    %v4455 = vld [vmem:[%s4155 + $0x230] sm:$0xff]
    %v4456 = vld [vmem:[%s4155 + $0x240] sm:$0xff]
    %v4457 = vld [vmem:[%s4155 + $0x248] sm:$0xff]
    %v4458 = vld [vmem:[%s4155 + $0x258] sm:$0xff]
    %v4459 = vld [vmem:[%s4155 + $0x260] sm:$0xff]
    %v4460 = vld [vmem:[%s4155 + $0x270] sm:$0xff]
    %v4461 = vld [vmem:[%s4155 + $0x278] sm:$0xff]
    %v4462 = vld [vmem:[%s4155 + $0x288] sm:$0xff]
    %v4463 = vld [vmem:[%s4155 + $0x290] sm:$0xff]
    %v4464 = vld [vmem:[%s4155 + $0x2a0] sm:$0xff]
    %v4465 = vld [vmem:[%s4155 + $0x2a8] sm:$0xff]
    %v4466 = vld [vmem:[%s4155 + $0x2b8] sm:$0xff]
    %v4467 = vld [vmem:[%s4155 + $0x2c0] sm:$0xff]
    %v4468 = vld [vmem:[%s4155 + $0x2d0] sm:$0xff]
    %v4469 = vld [vmem:[%s4155 + $0x2d8] sm:$0xff]
    %v4470 = vld [vmem:[%s4155 + $0x2e8] sm:$0xff]
    %v4471 = vld [vmem:[%s4155 + $0x2f0] sm:$0xff]
    %v4472 = vld [vmem:[%s4155 + $0x300] sm:$0xff]
    %v4473 = vld [vmem:[%s4155 + $0x308] sm:$0xff]
    %v4474 = vld [vmem:[%s4155 + $0x318] sm:$0xff]
    %v4475 = vld [vmem:[%s4155 + $0x320] sm:$0xff]
    %v4476 = vld [vmem:[%s4155 + $0x1] sm:$0xff]
    %v4477 = vld [vmem:[%s4155 + $0x9] sm:$0xff]
    %v4478 = vld [vmem:[%s4155 + $0x19] sm:$0xff]
    %v4479 = vld [vmem:[%s4155 + $0x21] sm:$0xff]
    %v4480 = vld [vmem:[%s4155 + $0x31] sm:$0xff]
    %v4481 = vld [vmem:[%s4155 + $0x39] sm:$0xff]
    %v4482 = vld [vmem:[%s4155 + $0x49] sm:$0xff]
    %v4483 = vld [vmem:[%s4155 + $0x51] sm:$0xff]
    %v4484 = vld [vmem:[%s4155 + $0x61] sm:$0xff]
    %v4485 = vld [vmem:[%s4155 + $0x69] sm:$0xff]
    %v4486 = vld [vmem:[%s4155 + $0x79] sm:$0xff]
    %v4487 = vld [vmem:[%s4155 + $0x81] sm:$0xff]
    %v4488 = vld [vmem:[%s4155 + $0x91] sm:$0xff]
    %v4489 = vld [vmem:[%s4155 + $0x99] sm:$0xff]
    %v4490 = vld [vmem:[%s4155 + $0xa9] sm:$0xff]
    %v4491 = vld [vmem:[%s4155 + $0xb1] sm:$0xff]
    %v4492 = vld [vmem:[%s4155 + $0xc1] sm:$0xff]
    %v4493 = vld [vmem:[%s4155 + $0xc9] sm:$0xff]
    %v4494 = vld [vmem:[%s4155 + $0xd9] sm:$0xff]
    %v4495 = vld [vmem:[%s4155 + $0xe1] sm:$0xff]
    %v4496 = vld [vmem:[%s4155 + $0xf1] sm:$0xff]
    %v4497 = vld [vmem:[%s4155 + $0xf9] sm:$0xff]
    %v4498 = vld [vmem:[%s4155 + $0x109] sm:$0xff]
    %v4499 = vld [vmem:[%s4155 + $0x111] sm:$0xff]
    %v4500 = vld [vmem:[%s4155 + $0x121] sm:$0xff]
    %v4501 = vld [vmem:[%s4155 + $0x129] sm:$0xff]
    %v4502 = vld [vmem:[%s4155 + $0x139] sm:$0xff]
    %v4503 = vld [vmem:[%s4155 + $0x141] sm:$0xff]
    %v4504 = vld [vmem:[%s4155 + $0x151] sm:$0xff]
    %v4505 = vld [vmem:[%s4155 + $0x159] sm:$0xff]
    %v4506 = vld [vmem:[%s4155 + $0x169] sm:$0xff]
    %v4507 = vld [vmem:[%s4155 + $0x171] sm:$0xff]
    %v4508 = vld [vmem:[%s4155 + $0x1b1] sm:$0xff]
    %v4509 = vld [vmem:[%s4155 + $0x1b9] sm:$0xff]
    %v4510 = vld [vmem:[%s4155 + $0x1c9] sm:$0xff]
    %v4511 = vld [vmem:[%s4155 + $0x1d1] sm:$0xff]
    %v4512 = vld [vmem:[%s4155 + $0x1e1] sm:$0xff]
    %v4513 = vld [vmem:[%s4155 + $0x1e9] sm:$0xff]
    %v4514 = vld [vmem:[%s4155 + $0x1f9] sm:$0xff]
    %v4515 = vld [vmem:[%s4155 + $0x201] sm:$0xff]
    %v4516 = vld [vmem:[%s4155 + $0x211] sm:$0xff]
    %v4517 = vld [vmem:[%s4155 + $0x219] sm:$0xff]
    %v4518 = vld [vmem:[%s4155 + $0x229] sm:$0xff]
    %v4519 = vld [vmem:[%s4155 + $0x231] sm:$0xff]
    %v4520 = vld [vmem:[%s4155 + $0x241] sm:$0xff]
    %v4521 = vld [vmem:[%s4155 + $0x249] sm:$0xff]
    %v4522 = vld [vmem:[%s4155 + $0x259] sm:$0xff]
    %v4523 = vld [vmem:[%s4155 + $0x261] sm:$0xff]
    %v4524 = vld [vmem:[%s4155 + $0x271] sm:$0xff]
    %v4525 = vld [vmem:[%s4155 + $0x279] sm:$0xff]
    %v4526 = vld [vmem:[%s4155 + $0x289] sm:$0xff]
    %v4527 = vld [vmem:[%s4155 + $0x291] sm:$0xff]
    %v4528 = vld [vmem:[%s4155 + $0x2a1] sm:$0xff]
    %v4529 = vld [vmem:[%s4155 + $0x2a9] sm:$0xff]
    %v4530 = vld [vmem:[%s4155 + $0x2b9] sm:$0xff]
    %v4531 = vld [vmem:[%s4155 + $0x2c1] sm:$0xff]
    %v4532 = vld [vmem:[%s4155 + $0x2d1] sm:$0xff]
    %v4533 = vld [vmem:[%s4155 + $0x2d9] sm:$0xff]
    %v4534 = vld [vmem:[%s4155 + $0x2e9] sm:$0xff]
    %v4535 = vld [vmem:[%s4155 + $0x2f1] sm:$0xff]
    %v4536 = vld [vmem:[%s4155 + $0x301] sm:$0xff]
    %v4537 = vld [vmem:[%s4155 + $0x309] sm:$0xff]
    %v4538 = vld [vmem:[%s4155 + $0x319] sm:$0xff]
    %v4539 = vld [vmem:[%s4155 + $0x321] sm:$0xff]
    %v4540 = vld [vmem:[%s4155 + $0x2] sm:$0xff]
    %v4541 = vld [vmem:[%s4155 + $0xa] sm:$0xff]
    %v4542 = vld [vmem:[%s4155 + $0x1a] sm:$0xff]
    %v4543 = vld [vmem:[%s4155 + $0x22] sm:$0xff]
    %v4544 = vld [vmem:[%s4155 + $0x32] sm:$0xff]
    %v4545 = vld [vmem:[%s4155 + $0x3a] sm:$0xff]
    %v4546 = vld [vmem:[%s4155 + $0x4a] sm:$0xff]
    %v4547 = vld [vmem:[%s4155 + $0x52] sm:$0xff]
    %v4548 = vld [vmem:[%s4155 + $0x62] sm:$0xff]
    %v4549 = vld [vmem:[%s4155 + $0x6a] sm:$0xff]
    %v4550 = vld [vmem:[%s4155 + $0x7a] sm:$0xff]
    %v4551 = vld [vmem:[%s4155 + $0x82] sm:$0xff]
    %v4552 = vld [vmem:[%s4155 + $0x92] sm:$0xff]
    %v4553 = vld [vmem:[%s4155 + $0x9a] sm:$0xff]
    %v4554 = vld [vmem:[%s4155 + $0xaa] sm:$0xff]
    %v4555 = vld [vmem:[%s4155 + $0xb2] sm:$0xff]
    %v4556 = vld [vmem:[%s4155 + $0xc2] sm:$0xff]
    %v4557 = vld [vmem:[%s4155 + $0xca] sm:$0xff]
    %v4558 = vld [vmem:[%s4155 + $0xda] sm:$0xff]
    %v4559 = vld [vmem:[%s4155 + $0xe2] sm:$0xff]
    %v4560 = vld [vmem:[%s4155 + $0xf2] sm:$0xff]
    %v4561 = vld [vmem:[%s4155 + $0xfa] sm:$0xff]
    %v4562 = vld [vmem:[%s4155 + $0x10a] sm:$0xff]
    %v4563 = vld [vmem:[%s4155 + $0x112] sm:$0xff]
    %v4564 = vld [vmem:[%s4155 + $0x122] sm:$0xff]
    %v4565 = vld [vmem:[%s4155 + $0x12a] sm:$0xff]
    %v4566 = vld [vmem:[%s4155 + $0x13a] sm:$0xff]
    %v4567 = vld [vmem:[%s4155 + $0x142] sm:$0xff]
    %v4568 = vld [vmem:[%s4155 + $0x152] sm:$0xff]
    %v4569 = vld [vmem:[%s4155 + $0x15a] sm:$0xff]
    %v4570 = vld [vmem:[%s4155 + $0x16a] sm:$0xff]
    %v4571 = vld [vmem:[%s4155 + $0x172] sm:$0xff]
    %v4572 = vld [vmem:[%s4155 + $0x1b2] sm:$0xff]
    %v4573 = vld [vmem:[%s4155 + $0x1ba] sm:$0xff]
    %v4574 = vld [vmem:[%s4155 + $0x1ca] sm:$0xff]
    %v4575 = vld [vmem:[%s4155 + $0x1d2] sm:$0xff]
    %v4576 = vld [vmem:[%s4155 + $0x1e2] sm:$0xff]
    %v4577 = vld [vmem:[%s4155 + $0x1ea] sm:$0xff]
    %v4578 = vld [vmem:[%s4155 + $0x1fa] sm:$0xff]
    %v4579 = vld [vmem:[%s4155 + $0x202] sm:$0xff]
    %v4580 = vld [vmem:[%s4155 + $0x212] sm:$0xff]
    %v4581 = vld [vmem:[%s4155 + $0x21a] sm:$0xff]
    %v4582 = vld [vmem:[%s4155 + $0x22a] sm:$0xff]
    %v4583 = vld [vmem:[%s4155 + $0x232] sm:$0xff]
    %v4584 = vld [vmem:[%s4155 + $0x242] sm:$0xff]
    %v4585 = vld [vmem:[%s4155 + $0x24a] sm:$0xff]
    %v4586 = vld [vmem:[%s4155 + $0x25a] sm:$0xff]
    %v4587 = vld [vmem:[%s4155 + $0x262] sm:$0xff]
    %v4588 = vld [vmem:[%s4155 + $0x272] sm:$0xff]
    %v4589 = vld [vmem:[%s4155 + $0x27a] sm:$0xff]
    %v4590 = vld [vmem:[%s4155 + $0x28a] sm:$0xff]
    %v4591 = vld [vmem:[%s4155 + $0x292] sm:$0xff]
    %v4592 = vld [vmem:[%s4155 + $0x2a2] sm:$0xff]
    %v4593 = vld [vmem:[%s4155 + $0x2aa] sm:$0xff]
    %v4594 = vld [vmem:[%s4155 + $0x2ba] sm:$0xff]
    %v4595 = vld [vmem:[%s4155 + $0x2c2] sm:$0xff]
    %v4596 = vld [vmem:[%s4155 + $0x2d2] sm:$0xff]
    %v4597 = vld [vmem:[%s4155 + $0x2da] sm:$0xff]
    %v4598 = vld [vmem:[%s4155 + $0x2ea] sm:$0xff]
    %v4599 = vld [vmem:[%s4155 + $0x2f2] sm:$0xff]
    %v4600 = vld [vmem:[%s4155 + $0x302] sm:$0xff]
    %v4601 = vld [vmem:[%s4155 + $0x30a] sm:$0xff]
    %v4602 = vld [vmem:[%s4155 + $0x31a] sm:$0xff]
    %v4603 = vld [vmem:[%s4155 + $0x322] sm:$0xff]
    %s4604 = scalar_lea.vmem [#allocation3], 48
    %v4605 = vld [vmem:[%s4604] sm:$0xff]
    %v4606 = vld [vmem:[%s4604 + $0x8] sm:$0xff]
    %v4607 = vld [vmem:[%s4604 + $0x18] sm:$0xff]
    %v4608 = vld [vmem:[%s4604 + $0x20] sm:$0xff]
    %v4609 = vld [vmem:[%s4604 + $0x30] sm:$0xff]
    %v4610 = vld [vmem:[%s4604 + $0x38] sm:$0xff]
    %v4611 = vld [vmem:[%s4604 + $0x48] sm:$0xff]
    %v4612 = vld [vmem:[%s4604 + $0x50] sm:$0xff]
    %v4613 = vld [vmem:[%s4604 + $0x60] sm:$0xff]
    %v4614 = vld [vmem:[%s4604 + $0x68] sm:$0xff]
    %v4615 = vld [vmem:[%s4604 + $0x78] sm:$0xff]
    %v4616 = vld [vmem:[%s4604 + $0x80] sm:$0xff]
    %v4617 = vld [vmem:[%s4604 + $0x90] sm:$0xff]
    %v4618 = vld [vmem:[%s4604 + $0x98] sm:$0xff]
    %v4619 = vld [vmem:[%s4604 + $0xa8] sm:$0xff]
    %v4620 = vld [vmem:[%s4604 + $0xb0] sm:$0xff]
    %v4621 = vld [vmem:[%s4604 + $0xc0] sm:$0xff]
    %v4622 = vld [vmem:[%s4604 + $0xc8] sm:$0xff]
    %v4623 = vld [vmem:[%s4604 + $0xd8] sm:$0xff]
    %v4624 = vld [vmem:[%s4604 + $0xe0] sm:$0xff]
    %v4625 = vld [vmem:[%s4604 + $0xf0] sm:$0xff]
    %v4626 = vld [vmem:[%s4604 + $0xf8] sm:$0xff]
    %v4627 = vld [vmem:[%s4604 + $0x108] sm:$0xff]
    %v4628 = vld [vmem:[%s4604 + $0x110] sm:$0xff]
    %v4629 = vld [vmem:[%s4604 + $0x120] sm:$0xff]
    %v4630 = vld [vmem:[%s4604 + $0x128] sm:$0xff]
    %v4631 = vld [vmem:[%s4604 + $0x138] sm:$0xff]
    %v4632 = vld [vmem:[%s4604 + $0x140] sm:$0xff]
    %v4633 = vld [vmem:[%s4604 + $0x150] sm:$0xff]
    %v4634 = vld [vmem:[%s4604 + $0x158] sm:$0xff]
    %v4635 = vld [vmem:[%s4604 + $0x168] sm:$0xff]
    %v4636 = vld [vmem:[%s4604 + $0x170] sm:$0xff]
    %v4637 = vld [vmem:[%s4604 + $0x1b0] sm:$0xff]
    %v4638 = vld [vmem:[%s4604 + $0x1b8] sm:$0xff]
    %v4639 = vld [vmem:[%s4604 + $0x1c8] sm:$0xff]
    %v4640 = vld [vmem:[%s4604 + $0x1d0] sm:$0xff]
    %v4641 = vld [vmem:[%s4604 + $0x1e0] sm:$0xff]
    %v4642 = vld [vmem:[%s4604 + $0x1e8] sm:$0xff]
    %v4643 = vld [vmem:[%s4604 + $0x1f8] sm:$0xff]
    %v4644 = vld [vmem:[%s4604 + $0x200] sm:$0xff]
    %v4645 = vld [vmem:[%s4604 + $0x210] sm:$0xff]
    %v4646 = vld [vmem:[%s4604 + $0x218] sm:$0xff]
    %v4647 = vld [vmem:[%s4604 + $0x228] sm:$0xff]
    %v4648 = vld [vmem:[%s4604 + $0x230] sm:$0xff]
    %v4649 = vld [vmem:[%s4604 + $0x240] sm:$0xff]
    %v4650 = vld [vmem:[%s4604 + $0x248] sm:$0xff]
    %v4651 = vld [vmem:[%s4604 + $0x258] sm:$0xff]
    %v4652 = vld [vmem:[%s4604 + $0x260] sm:$0xff]
    %v4653 = vld [vmem:[%s4604 + $0x270] sm:$0xff]
    %v4654 = vld [vmem:[%s4604 + $0x278] sm:$0xff]
    %v4655 = vld [vmem:[%s4604 + $0x288] sm:$0xff]
    %v4656 = vld [vmem:[%s4604 + $0x290] sm:$0xff]
    %v4657 = vld [vmem:[%s4604 + $0x2a0] sm:$0xff]
    %v4658 = vld [vmem:[%s4604 + $0x2a8] sm:$0xff]
    %v4659 = vld [vmem:[%s4604 + $0x2b8] sm:$0xff]
    %v4660 = vld [vmem:[%s4604 + $0x2c0] sm:$0xff]
    %v4661 = vld [vmem:[%s4604 + $0x2d0] sm:$0xff]
    %v4662 = vld [vmem:[%s4604 + $0x2d8] sm:$0xff]
    %v4663 = vld [vmem:[%s4604 + $0x2e8] sm:$0xff]
    %v4664 = vld [vmem:[%s4604 + $0x2f0] sm:$0xff]
    %v4665 = vld [vmem:[%s4604 + $0x300] sm:$0xff]
    %v4666 = vld [vmem:[%s4604 + $0x308] sm:$0xff]
    %v4667 = vld [vmem:[%s4604 + $0x318] sm:$0xff]
    %v4668 = vld [vmem:[%s4604 + $0x320] sm:$0xff]
    %v4669 = vld [vmem:[%s4604 + $0x1] sm:$0xff]
    %v4670 = vld [vmem:[%s4604 + $0x9] sm:$0xff]
    %v4671 = vld [vmem:[%s4604 + $0x19] sm:$0xff]
    %v4672 = vld [vmem:[%s4604 + $0x21] sm:$0xff]
    %v4673 = vld [vmem:[%s4604 + $0x31] sm:$0xff]
    %v4674 = vld [vmem:[%s4604 + $0x39] sm:$0xff]
    %v4675 = vld [vmem:[%s4604 + $0x49] sm:$0xff]
    %v4676 = vld [vmem:[%s4604 + $0x51] sm:$0xff]
    %v4677 = vld [vmem:[%s4604 + $0x61] sm:$0xff]
    %v4678 = vld [vmem:[%s4604 + $0x69] sm:$0xff]
    %v4679 = vld [vmem:[%s4604 + $0x79] sm:$0xff]
    %v4680 = vld [vmem:[%s4604 + $0x81] sm:$0xff]
    %v4681 = vld [vmem:[%s4604 + $0x91] sm:$0xff]
    %v4682 = vld [vmem:[%s4604 + $0x99] sm:$0xff]
    %v4683 = vld [vmem:[%s4604 + $0xa9] sm:$0xff]
    %v4684 = vld [vmem:[%s4604 + $0xb1] sm:$0xff]
    %v4685 = vld [vmem:[%s4604 + $0xc1] sm:$0xff]
    %v4686 = vld [vmem:[%s4604 + $0xc9] sm:$0xff]
    %v4687 = vld [vmem:[%s4604 + $0xd9] sm:$0xff]
    %v4688 = vld [vmem:[%s4604 + $0xe1] sm:$0xff]
    %v4689 = vld [vmem:[%s4604 + $0xf1] sm:$0xff]
    %v4690 = vld [vmem:[%s4604 + $0xf9] sm:$0xff]
    %v4691 = vld [vmem:[%s4604 + $0x109] sm:$0xff]
    %v4692 = vld [vmem:[%s4604 + $0x111] sm:$0xff]
    %v4693 = vld [vmem:[%s4604 + $0x121] sm:$0xff]
    %v4694 = vld [vmem:[%s4604 + $0x129] sm:$0xff]
    %v4695 = vld [vmem:[%s4604 + $0x139] sm:$0xff]
    %v4696 = vld [vmem:[%s4604 + $0x141] sm:$0xff]
    %v4697 = vld [vmem:[%s4604 + $0x151] sm:$0xff]
    %v4698 = vld [vmem:[%s4604 + $0x159] sm:$0xff]
    %v4699 = vld [vmem:[%s4604 + $0x169] sm:$0xff]
    %v4700 = vld [vmem:[%s4604 + $0x171] sm:$0xff]
    %v4701 = vld [vmem:[%s4604 + $0x1b1] sm:$0xff]
    %v4702 = vld [vmem:[%s4604 + $0x1b9] sm:$0xff]
    %v4703 = vld [vmem:[%s4604 + $0x1c9] sm:$0xff]
    %v4704 = vld [vmem:[%s4604 + $0x1d1] sm:$0xff]
    %v4705 = vld [vmem:[%s4604 + $0x1e1] sm:$0xff]
    %v4706 = vld [vmem:[%s4604 + $0x1e9] sm:$0xff]
    %v4707 = vld [vmem:[%s4604 + $0x1f9] sm:$0xff]
    %v4708 = vld [vmem:[%s4604 + $0x201] sm:$0xff]
    %v4709 = vld [vmem:[%s4604 + $0x211] sm:$0xff]
    %v4710 = vld [vmem:[%s4604 + $0x219] sm:$0xff]
    %v4711 = vld [vmem:[%s4604 + $0x229] sm:$0xff]
    %v4712 = vld [vmem:[%s4604 + $0x231] sm:$0xff]
    %v4713 = vld [vmem:[%s4604 + $0x241] sm:$0xff]
    %v4714 = vld [vmem:[%s4604 + $0x249] sm:$0xff]
    %v4715 = vld [vmem:[%s4604 + $0x259] sm:$0xff]
    %v4716 = vld [vmem:[%s4604 + $0x261] sm:$0xff]
    %v4717 = vld [vmem:[%s4604 + $0x271] sm:$0xff]
    %v4718 = vld [vmem:[%s4604 + $0x279] sm:$0xff]
    %v4719 = vld [vmem:[%s4604 + $0x289] sm:$0xff]
    %v4720 = vld [vmem:[%s4604 + $0x291] sm:$0xff]
    %v4721 = vld [vmem:[%s4604 + $0x2a1] sm:$0xff]
    %v4722 = vld [vmem:[%s4604 + $0x2a9] sm:$0xff]
    %v4723 = vld [vmem:[%s4604 + $0x2b9] sm:$0xff]
    %v4724 = vld [vmem:[%s4604 + $0x2c1] sm:$0xff]
    %v4725 = vld [vmem:[%s4604 + $0x2d1] sm:$0xff]
    %v4726 = vld [vmem:[%s4604 + $0x2d9] sm:$0xff]
    %v4727 = vld [vmem:[%s4604 + $0x2e9] sm:$0xff]
    %v4728 = vld [vmem:[%s4604 + $0x2f1] sm:$0xff]
    %v4729 = vld [vmem:[%s4604 + $0x301] sm:$0xff]
    %v4730 = vld [vmem:[%s4604 + $0x309] sm:$0xff]
    %v4731 = vld [vmem:[%s4604 + $0x319] sm:$0xff]
    %v4732 = vld [vmem:[%s4604 + $0x321] sm:$0xff]
    %v4733 = vld [vmem:[%s4604 + $0x2] sm:$0xff]
    %v4734 = vld [vmem:[%s4604 + $0xa] sm:$0xff]
    %v4735 = vld [vmem:[%s4604 + $0x1a] sm:$0xff]
    %v4736 = vld [vmem:[%s4604 + $0x22] sm:$0xff]
    %v4737 = vld [vmem:[%s4604 + $0x32] sm:$0xff]
    %v4738 = vld [vmem:[%s4604 + $0x3a] sm:$0xff]
    %v4739 = vld [vmem:[%s4604 + $0x4a] sm:$0xff]
    %v4740 = vld [vmem:[%s4604 + $0x52] sm:$0xff]
    %v4741 = vld [vmem:[%s4604 + $0x62] sm:$0xff]
    %v4742 = vld [vmem:[%s4604 + $0x6a] sm:$0xff]
    %v4743 = vld [vmem:[%s4604 + $0x7a] sm:$0xff]
    %v4744 = vld [vmem:[%s4604 + $0x82] sm:$0xff]
    %v4745 = vld [vmem:[%s4604 + $0x92] sm:$0xff]
    %v4746 = vld [vmem:[%s4604 + $0x9a] sm:$0xff]
    %v4747 = vld [vmem:[%s4604 + $0xaa] sm:$0xff]
    %v4748 = vld [vmem:[%s4604 + $0xb2] sm:$0xff]
    %v4749 = vld [vmem:[%s4604 + $0xc2] sm:$0xff]
    %v4750 = vld [vmem:[%s4604 + $0xca] sm:$0xff]
    %v4751 = vld [vmem:[%s4604 + $0xda] sm:$0xff]
    %v4752 = vld [vmem:[%s4604 + $0xe2] sm:$0xff]
    %v4753 = vld [vmem:[%s4604 + $0xf2] sm:$0xff]
    %v4754 = vld [vmem:[%s4604 + $0xfa] sm:$0xff]
    %v4755 = vld [vmem:[%s4604 + $0x10a] sm:$0xff]
    %v4756 = vld [vmem:[%s4604 + $0x112] sm:$0xff]
    %v4757 = vld [vmem:[%s4604 + $0x122] sm:$0xff]
    %v4758 = vld [vmem:[%s4604 + $0x12a] sm:$0xff]
    %v4759 = vld [vmem:[%s4604 + $0x13a] sm:$0xff]
    %v4760 = vld [vmem:[%s4604 + $0x142] sm:$0xff]
    %v4761 = vld [vmem:[%s4604 + $0x152] sm:$0xff]
    %v4762 = vld [vmem:[%s4604 + $0x15a] sm:$0xff]
    %v4763 = vld [vmem:[%s4604 + $0x16a] sm:$0xff]
    %v4764 = vld [vmem:[%s4604 + $0x172] sm:$0xff]
    %v4765 = vld [vmem:[%s4604 + $0x1b2] sm:$0xff]
    %v4766 = vld [vmem:[%s4604 + $0x1ba] sm:$0xff]
    %v4767 = vld [vmem:[%s4604 + $0x1ca] sm:$0xff]
    %v4768 = vld [vmem:[%s4604 + $0x1d2] sm:$0xff]
    %v4769 = vld [vmem:[%s4604 + $0x1e2] sm:$0xff]
    %v4770 = vld [vmem:[%s4604 + $0x1ea] sm:$0xff]
    %v4771 = vld [vmem:[%s4604 + $0x1fa] sm:$0xff]
    %v4772 = vld [vmem:[%s4604 + $0x202] sm:$0xff]
    %v4773 = vld [vmem:[%s4604 + $0x212] sm:$0xff]
    %v4774 = vld [vmem:[%s4604 + $0x21a] sm:$0xff]
    %v4775 = vld [vmem:[%s4604 + $0x22a] sm:$0xff]
    %v4776 = vld [vmem:[%s4604 + $0x232] sm:$0xff]
    %v4777 = vld [vmem:[%s4604 + $0x242] sm:$0xff]
    %v4778 = vld [vmem:[%s4604 + $0x24a] sm:$0xff]
    %v4779 = vld [vmem:[%s4604 + $0x25a] sm:$0xff]
    %v4780 = vld [vmem:[%s4604 + $0x262] sm:$0xff]
    %v4781 = vld [vmem:[%s4604 + $0x272] sm:$0xff]
    %v4782 = vld [vmem:[%s4604 + $0x27a] sm:$0xff]
    %v4783 = vld [vmem:[%s4604 + $0x28a] sm:$0xff]
    %v4784 = vld [vmem:[%s4604 + $0x292] sm:$0xff]
    %v4785 = vld [vmem:[%s4604 + $0x2a2] sm:$0xff]
    %v4786 = vld [vmem:[%s4604 + $0x2aa] sm:$0xff]
    %v4787 = vld [vmem:[%s4604 + $0x2ba] sm:$0xff]
    %v4788 = vld [vmem:[%s4604 + $0x2c2] sm:$0xff]
    %v4789 = vld [vmem:[%s4604 + $0x2d2] sm:$0xff]
    %v4790 = vld [vmem:[%s4604 + $0x2da] sm:$0xff]
    %v4791 = vld [vmem:[%s4604 + $0x2ea] sm:$0xff]
    %v4792 = vld [vmem:[%s4604 + $0x2f2] sm:$0xff]
    %v4793 = vld [vmem:[%s4604 + $0x302] sm:$0xff]
    %v4794 = vld [vmem:[%s4604 + $0x30a] sm:$0xff]
    %v4795 = vld [vmem:[%s4604 + $0x31a] sm:$0xff]
    %v4796 = vld [vmem:[%s4604 + $0x322] sm:$0xff]
    %4861 = vrot.lane.b32.xlu0 %v4284, 32
    %v4862 = vpop.permute.xlu0 %4861
    %4863 = vrot.lane.b32.xlu0 %v4285, 32
    %v4864 = vpop.permute.xlu0 %4863
    %4865 = vrot.lane.b32.xlu0 %v4286, 32
    %v4866 = vpop.permute.xlu0 %4865
    %4867 = vrot.lane.b32.xlu0 %v4287, 32
    %v4868 = vpop.permute.xlu0 %4867
    %4869 = vrot.lane.b32.xlu0 %v4288, 32
    %v4870 = vpop.permute.xlu0 %4869
    %4871 = vrot.lane.b32.xlu0 %v4289, 32
    %v4872 = vpop.permute.xlu0 %4871
    %4873 = vrot.lane.b32.xlu0 %v4290, 32
    %v4874 = vpop.permute.xlu0 %4873
    %4875 = vrot.lane.b32.xlu0 %v4291, 32
    %v4876 = vpop.permute.xlu0 %4875
    %4877 = vrot.lane.b32.xlu0 %v4292, 32
    %v4878 = vpop.permute.xlu0 %4877
    %4879 = vrot.lane.b32.xlu0 %v4293, 32
    %v4880 = vpop.permute.xlu0 %4879
    %4881 = vrot.lane.b32.xlu0 %v4294, 32
    %v4882 = vpop.permute.xlu0 %4881
    %4883 = vrot.lane.b32.xlu0 %v4295, 32
    %v4884 = vpop.permute.xlu0 %4883
    %4885 = vrot.lane.b32.xlu0 %v4296, 32
    %v4886 = vpop.permute.xlu0 %4885
    %4887 = vrot.lane.b32.xlu0 %v4297, 32
    %v4888 = vpop.permute.xlu0 %4887
    %4889 = vrot.lane.b32.xlu0 %v4298, 32
    %v4890 = vpop.permute.xlu0 %4889
    %4891 = vrot.lane.b32.xlu0 %v4299, 32
    %v4892 = vpop.permute.xlu0 %4891
    %4893 = vrot.lane.b32.xlu0 %v4300, 32
    %v4894 = vpop.permute.xlu0 %4893
    %4895 = vrot.lane.b32.xlu0 %v4301, 32
    %v4896 = vpop.permute.xlu0 %4895
    %4897 = vrot.lane.b32.xlu0 %v4302, 32
    %v4898 = vpop.permute.xlu0 %4897
    %4899 = vrot.lane.b32.xlu0 %v4303, 32
    %v4900 = vpop.permute.xlu0 %4899
    %4901 = vrot.lane.b32.xlu0 %v4304, 32
    %v4902 = vpop.permute.xlu0 %4901
    %4903 = vrot.lane.b32.xlu0 %v4305, 32
    %v4904 = vpop.permute.xlu0 %4903
    %4905 = vrot.lane.b32.xlu0 %v4306, 32
    %v4906 = vpop.permute.xlu0 %4905
    %4907 = vrot.lane.b32.xlu0 %v4307, 32
    %v4908 = vpop.permute.xlu0 %4907
    %4909 = vrot.lane.b32.xlu0 %v4308, 32
    %v4910 = vpop.permute.xlu0 %4909
    %4911 = vrot.lane.b32.xlu0 %v4309, 32
    %v4912 = vpop.permute.xlu0 %4911
    %4913 = vrot.lane.b32.xlu0 %v4310, 32
    %v4914 = vpop.permute.xlu0 %4913
    %4915 = vrot.lane.b32.xlu0 %v4311, 32
    %v4916 = vpop.permute.xlu0 %4915
    %4917 = vrot.lane.b32.xlu0 %v4312, 32
    %v4918 = vpop.permute.xlu0 %4917
    %4919 = vrot.lane.b32.xlu0 %v4313, 32
    %v4920 = vpop.permute.xlu0 %4919
    %4921 = vrot.lane.b32.xlu0 %v4314, 32
    %v4922 = vpop.permute.xlu0 %4921
    %4923 = vrot.lane.b32.xlu0 %v4315, 32
    %v4924 = vpop.permute.xlu0 %4923
    %4925 = vrot.lane.b32.xlu0 %v4316, 32
    %v4926 = vpop.permute.xlu0 %4925
    %4927 = vrot.lane.b32.xlu0 %v4317, 32
    %v4928 = vpop.permute.xlu0 %4927
    %4929 = vrot.lane.b32.xlu0 %v4318, 32
    %v4930 = vpop.permute.xlu0 %4929
    %4931 = vrot.lane.b32.xlu0 %v4319, 32
    %v4932 = vpop.permute.xlu0 %4931
    %4933 = vrot.lane.b32.xlu0 %v4320, 32
    %v4934 = vpop.permute.xlu0 %4933
    %4935 = vrot.lane.b32.xlu0 %v4321, 32
    %v4936 = vpop.permute.xlu0 %4935
    %4937 = vrot.lane.b32.xlu0 %v4322, 32
    %v4938 = vpop.permute.xlu0 %4937
    %4939 = vrot.lane.b32.xlu0 %v4323, 32
    %v4940 = vpop.permute.xlu0 %4939
    %4941 = vrot.lane.b32.xlu0 %v4324, 32
    %v4942 = vpop.permute.xlu0 %4941
    %4943 = vrot.lane.b32.xlu0 %v4325, 32
    %v4944 = vpop.permute.xlu0 %4943
    %4945 = vrot.lane.b32.xlu0 %v4326, 32
    %v4946 = vpop.permute.xlu0 %4945
    %4947 = vrot.lane.b32.xlu0 %v4327, 32
    %v4948 = vpop.permute.xlu0 %4947
    %4949 = vrot.lane.b32.xlu0 %v4328, 32
    %v4950 = vpop.permute.xlu0 %4949
    %4951 = vrot.lane.b32.xlu0 %v4329, 32
    %v4952 = vpop.permute.xlu0 %4951
    %4953 = vrot.lane.b32.xlu0 %v4330, 32
    %v4954 = vpop.permute.xlu0 %4953
    %4955 = vrot.lane.b32.xlu0 %v4331, 32
    %v4956 = vpop.permute.xlu0 %4955
    %4957 = vrot.lane.b32.xlu0 %v4332, 32
    %v4958 = vpop.permute.xlu0 %4957
    %4959 = vrot.lane.b32.xlu0 %v4333, 32
    %v4960 = vpop.permute.xlu0 %4959
    %4961 = vrot.lane.b32.xlu0 %v4334, 32
    %v4962 = vpop.permute.xlu0 %4961
    %4963 = vrot.lane.b32.xlu0 %v4335, 32
    %v4964 = vpop.permute.xlu0 %4963
    %4965 = vrot.lane.b32.xlu0 %v4336, 32
    %v4966 = vpop.permute.xlu0 %4965
    %4967 = vrot.lane.b32.xlu0 %v4337, 32
    %v4968 = vpop.permute.xlu0 %4967
    %4969 = vrot.lane.b32.xlu0 %v4338, 32
    %v4970 = vpop.permute.xlu0 %4969
    %4971 = vrot.lane.b32.xlu0 %v4339, 32
    %v4972 = vpop.permute.xlu0 %4971
    %4973 = vrot.lane.b32.xlu0 %v4340, 32
    %v4974 = vpop.permute.xlu0 %4973
    %4975 = vrot.lane.b32.xlu0 %v4341, 32
    %v4976 = vpop.permute.xlu0 %4975
    %4977 = vrot.lane.b32.xlu0 %v4342, 32
    %v4978 = vpop.permute.xlu0 %4977
    %4979 = vrot.lane.b32.xlu0 %v4343, 32
    %v4980 = vpop.permute.xlu0 %4979
    %4981 = vrot.lane.b32.xlu0 %v4344, 32
    %v4982 = vpop.permute.xlu0 %4981
    %4983 = vrot.lane.b32.xlu0 %v4345, 32
    %v4984 = vpop.permute.xlu0 %4983
    %4985 = vrot.lane.b32.xlu0 %v4346, 32
    %v4986 = vpop.permute.xlu0 %4985
    %4987 = vrot.lane.b32.xlu0 %v4347, 32
    %v4988 = vpop.permute.xlu0 %4987
    %5117 = vrot.lane.b32.xlu0 %v4348, 64
    %v5118 = vpop.permute.xlu0 %5117
    %5119 = vrot.lane.b32.xlu0 %v4349, 64
    %v5120 = vpop.permute.xlu0 %5119
    %5121 = vrot.lane.b32.xlu0 %v4350, 64
    %v5122 = vpop.permute.xlu0 %5121
    %5123 = vrot.lane.b32.xlu0 %v4351, 64
    %v5124 = vpop.permute.xlu0 %5123
    %5125 = vrot.lane.b32.xlu0 %v4352, 64
    %v5126 = vpop.permute.xlu0 %5125
    %5127 = vrot.lane.b32.xlu0 %v4353, 64
    %v5128 = vpop.permute.xlu0 %5127
    %5129 = vrot.lane.b32.xlu0 %v4354, 64
    %v5130 = vpop.permute.xlu0 %5129
    %5131 = vrot.lane.b32.xlu0 %v4355, 64
    %v5132 = vpop.permute.xlu0 %5131
    %5133 = vrot.lane.b32.xlu0 %v4356, 64
    %v5134 = vpop.permute.xlu0 %5133
    %5135 = vrot.lane.b32.xlu0 %v4357, 64
    %v5136 = vpop.permute.xlu0 %5135
    %5137 = vrot.lane.b32.xlu0 %v4358, 64
    %v5138 = vpop.permute.xlu0 %5137
    %5139 = vrot.lane.b32.xlu0 %v4359, 64
    %v5140 = vpop.permute.xlu0 %5139
    %5141 = vrot.lane.b32.xlu0 %v4360, 64
    %v5142 = vpop.permute.xlu0 %5141
    %5143 = vrot.lane.b32.xlu0 %v4361, 64
    %v5144 = vpop.permute.xlu0 %5143
    %5145 = vrot.lane.b32.xlu0 %v4362, 64
    %v5146 = vpop.permute.xlu0 %5145
    %5147 = vrot.lane.b32.xlu0 %v4363, 64
    %v5148 = vpop.permute.xlu0 %5147
    %5149 = vrot.lane.b32.xlu0 %v4364, 64
    %v5150 = vpop.permute.xlu0 %5149
    %5151 = vrot.lane.b32.xlu0 %v4365, 64
    %v5152 = vpop.permute.xlu0 %5151
    %5153 = vrot.lane.b32.xlu0 %v4366, 64
    %v5154 = vpop.permute.xlu0 %5153
    %5155 = vrot.lane.b32.xlu0 %v4367, 64
    %v5156 = vpop.permute.xlu0 %5155
    %5157 = vrot.lane.b32.xlu0 %v4368, 64
    %v5158 = vpop.permute.xlu0 %5157
    %5159 = vrot.lane.b32.xlu0 %v4369, 64
    %v5160 = vpop.permute.xlu0 %5159
    %5161 = vrot.lane.b32.xlu0 %v4370, 64
    %v5162 = vpop.permute.xlu0 %5161
    %5163 = vrot.lane.b32.xlu0 %v4371, 64
    %v5164 = vpop.permute.xlu0 %5163
    %5165 = vrot.lane.b32.xlu0 %v4372, 64
    %v5166 = vpop.permute.xlu0 %5165
    %5167 = vrot.lane.b32.xlu0 %v4373, 64
    %v5168 = vpop.permute.xlu0 %5167
    %5169 = vrot.lane.b32.xlu0 %v4374, 64
    %v5170 = vpop.permute.xlu0 %5169
    %5171 = vrot.lane.b32.xlu0 %v4375, 64
    %v5172 = vpop.permute.xlu0 %5171
    %5173 = vrot.lane.b32.xlu0 %v4376, 64
    %v5174 = vpop.permute.xlu0 %5173
    %5175 = vrot.lane.b32.xlu0 %v4377, 64
    %v5176 = vpop.permute.xlu0 %5175
    %5177 = vrot.lane.b32.xlu0 %v4378, 64
    %v5178 = vpop.permute.xlu0 %5177
    %5179 = vrot.lane.b32.xlu0 %v4379, 64
    %v5180 = vpop.permute.xlu0 %5179
    %5181 = vrot.lane.b32.xlu0 %v4380, 64
    %v5182 = vpop.permute.xlu0 %5181
    %5183 = vrot.lane.b32.xlu0 %v4381, 64
    %v5184 = vpop.permute.xlu0 %5183
    %5185 = vrot.lane.b32.xlu0 %v4382, 64
    %v5186 = vpop.permute.xlu0 %5185
    %5187 = vrot.lane.b32.xlu0 %v4383, 64
    %v5188 = vpop.permute.xlu0 %5187
    %5189 = vrot.lane.b32.xlu0 %v4384, 64
    %v5190 = vpop.permute.xlu0 %5189
    %5191 = vrot.lane.b32.xlu0 %v4385, 64
    %v5192 = vpop.permute.xlu0 %5191
    %5193 = vrot.lane.b32.xlu0 %v4386, 64
    %v5194 = vpop.permute.xlu0 %5193
    %5195 = vrot.lane.b32.xlu0 %v4387, 64
    %v5196 = vpop.permute.xlu0 %5195
    %5197 = vrot.lane.b32.xlu0 %v4388, 64
    %v5198 = vpop.permute.xlu0 %5197
    %5199 = vrot.lane.b32.xlu0 %v4389, 64
    %v5200 = vpop.permute.xlu0 %5199
    %5201 = vrot.lane.b32.xlu0 %v4390, 64
    %v5202 = vpop.permute.xlu0 %5201
    %5203 = vrot.lane.b32.xlu0 %v4391, 64
    %v5204 = vpop.permute.xlu0 %5203
    %5205 = vrot.lane.b32.xlu0 %v4392, 64
    %v5206 = vpop.permute.xlu0 %5205
    %5207 = vrot.lane.b32.xlu0 %v4393, 64
    %v5208 = vpop.permute.xlu0 %5207
    %5209 = vrot.lane.b32.xlu0 %v4394, 64
    %v5210 = vpop.permute.xlu0 %5209
    %5211 = vrot.lane.b32.xlu0 %v4395, 64
    %v5212 = vpop.permute.xlu0 %5211
    %5213 = vrot.lane.b32.xlu0 %v4396, 64
    %v5214 = vpop.permute.xlu0 %5213
    %5215 = vrot.lane.b32.xlu0 %v4397, 64
    %v5216 = vpop.permute.xlu0 %5215
    %5217 = vrot.lane.b32.xlu0 %v4398, 64
    %v5218 = vpop.permute.xlu0 %5217
    %5219 = vrot.lane.b32.xlu0 %v4399, 64
    %v5220 = vpop.permute.xlu0 %5219
    %5221 = vrot.lane.b32.xlu0 %v4400, 64
    %v5222 = vpop.permute.xlu0 %5221
    %5223 = vrot.lane.b32.xlu0 %v4401, 64
    %v5224 = vpop.permute.xlu0 %5223
    %5225 = vrot.lane.b32.xlu0 %v4402, 64
    %v5226 = vpop.permute.xlu0 %5225
    %5227 = vrot.lane.b32.xlu0 %v4403, 64
    %v5228 = vpop.permute.xlu0 %5227
    %5229 = vrot.lane.b32.xlu0 %v4404, 64
    %v5230 = vpop.permute.xlu0 %5229
    %5231 = vrot.lane.b32.xlu0 %v4405, 64
    %v5232 = vpop.permute.xlu0 %5231
    %5233 = vrot.lane.b32.xlu0 %v4406, 64
    %v5234 = vpop.permute.xlu0 %5233
    %5235 = vrot.lane.b32.xlu0 %v4407, 64
    %v5236 = vpop.permute.xlu0 %5235
    %5237 = vrot.lane.b32.xlu0 %v4408, 64
    %v5238 = vpop.permute.xlu0 %5237
    %5239 = vrot.lane.b32.xlu0 %v4409, 64
    %v5240 = vpop.permute.xlu0 %5239
    %5241 = vrot.lane.b32.xlu0 %v4410, 64
    %v5242 = vpop.permute.xlu0 %5241
    %5243 = vrot.lane.b32.xlu0 %v4411, 64
    %v5244 = vpop.permute.xlu0 %5243
    %5373 = vrot.lane.b32.xlu0 %v4412, 96
    %v5374 = vpop.permute.xlu0 %5373
    %5375 = vrot.lane.b32.xlu0 %v4413, 96
    %v5376 = vpop.permute.xlu0 %5375
    %5377 = vrot.lane.b32.xlu0 %v4414, 96
    %v5378 = vpop.permute.xlu0 %5377
    %5379 = vrot.lane.b32.xlu0 %v4415, 96
    %v5380 = vpop.permute.xlu0 %5379
    %5381 = vrot.lane.b32.xlu0 %v4416, 96
    %v5382 = vpop.permute.xlu0 %5381
    %5383 = vrot.lane.b32.xlu0 %v4417, 96
    %v5384 = vpop.permute.xlu0 %5383
    %5385 = vrot.lane.b32.xlu0 %v4418, 96
    %v5386 = vpop.permute.xlu0 %5385
    %5387 = vrot.lane.b32.xlu0 %v4419, 96
    %v5388 = vpop.permute.xlu0 %5387
    %5389 = vrot.lane.b32.xlu0 %v4420, 96
    %v5390 = vpop.permute.xlu0 %5389
    %5391 = vrot.lane.b32.xlu0 %v4421, 96
    %v5392 = vpop.permute.xlu0 %5391
    %5393 = vrot.lane.b32.xlu0 %v4422, 96
    %v5394 = vpop.permute.xlu0 %5393
    %5395 = vrot.lane.b32.xlu0 %v4423, 96
    %v5396 = vpop.permute.xlu0 %5395
    %5397 = vrot.lane.b32.xlu0 %v4424, 96
    %v5398 = vpop.permute.xlu0 %5397
    %5399 = vrot.lane.b32.xlu0 %v4425, 96
    %v5400 = vpop.permute.xlu0 %5399
    %5401 = vrot.lane.b32.xlu0 %v4426, 96
    %v5402 = vpop.permute.xlu0 %5401
    %5403 = vrot.lane.b32.xlu0 %v4427, 96
    %v5404 = vpop.permute.xlu0 %5403
    %5405 = vrot.lane.b32.xlu0 %v4428, 96
    %v5406 = vpop.permute.xlu0 %5405
    %5407 = vrot.lane.b32.xlu0 %v4429, 96
    %v5408 = vpop.permute.xlu0 %5407
    %5409 = vrot.lane.b32.xlu0 %v4430, 96
    %v5410 = vpop.permute.xlu0 %5409
    %5411 = vrot.lane.b32.xlu0 %v4431, 96
    %v5412 = vpop.permute.xlu0 %5411
    %5413 = vrot.lane.b32.xlu0 %v4432, 96
    %v5414 = vpop.permute.xlu0 %5413
    %5415 = vrot.lane.b32.xlu0 %v4433, 96
    %v5416 = vpop.permute.xlu0 %5415
    %5417 = vrot.lane.b32.xlu0 %v4434, 96
    %v5418 = vpop.permute.xlu0 %5417
    %5419 = vrot.lane.b32.xlu0 %v4435, 96
    %v5420 = vpop.permute.xlu0 %5419
    %5421 = vrot.lane.b32.xlu0 %v4436, 96
    %v5422 = vpop.permute.xlu0 %5421
    %5423 = vrot.lane.b32.xlu0 %v4437, 96
    %v5424 = vpop.permute.xlu0 %5423
    %5425 = vrot.lane.b32.xlu0 %v4438, 96
    %v5426 = vpop.permute.xlu0 %5425
    %5427 = vrot.lane.b32.xlu0 %v4439, 96
    %v5428 = vpop.permute.xlu0 %5427
    %5429 = vrot.lane.b32.xlu0 %v4440, 96
    %v5430 = vpop.permute.xlu0 %5429
    %5431 = vrot.lane.b32.xlu0 %v4441, 96
    %v5432 = vpop.permute.xlu0 %5431
    %5433 = vrot.lane.b32.xlu0 %v4442, 96
    %v5434 = vpop.permute.xlu0 %5433
    %5435 = vrot.lane.b32.xlu0 %v4443, 96
    %v5436 = vpop.permute.xlu0 %5435
    %5437 = vrot.lane.b32.xlu0 %v4444, 96
    %v5438 = vpop.permute.xlu0 %5437
    %5439 = vrot.lane.b32.xlu0 %v4445, 96
    %v5440 = vpop.permute.xlu0 %5439
    %5441 = vrot.lane.b32.xlu0 %v4446, 96
    %v5442 = vpop.permute.xlu0 %5441
    %5443 = vrot.lane.b32.xlu0 %v4447, 96
    %v5444 = vpop.permute.xlu0 %5443
    %5445 = vrot.lane.b32.xlu0 %v4448, 96
    %v5446 = vpop.permute.xlu0 %5445
    %5447 = vrot.lane.b32.xlu0 %v4449, 96
    %v5448 = vpop.permute.xlu0 %5447
    %5449 = vrot.lane.b32.xlu0 %v4450, 96
    %v5450 = vpop.permute.xlu0 %5449
    %5451 = vrot.lane.b32.xlu0 %v4451, 96
    %v5452 = vpop.permute.xlu0 %5451
    %5453 = vrot.lane.b32.xlu0 %v4452, 96
    %v5454 = vpop.permute.xlu0 %5453
    %5455 = vrot.lane.b32.xlu0 %v4453, 96
    %v5456 = vpop.permute.xlu0 %5455
    %5457 = vrot.lane.b32.xlu0 %v4454, 96
    %v5458 = vpop.permute.xlu0 %5457
    %5459 = vrot.lane.b32.xlu0 %v4455, 96
    %v5460 = vpop.permute.xlu0 %5459
    %5461 = vrot.lane.b32.xlu0 %v4456, 96
    %v5462 = vpop.permute.xlu0 %5461
    %5463 = vrot.lane.b32.xlu0 %v4457, 96
    %v5464 = vpop.permute.xlu0 %5463
    %5465 = vrot.lane.b32.xlu0 %v4458, 96
    %v5466 = vpop.permute.xlu0 %5465
    %5467 = vrot.lane.b32.xlu0 %v4459, 96
    %v5468 = vpop.permute.xlu0 %5467
    %5469 = vrot.lane.b32.xlu0 %v4460, 96
    %v5470 = vpop.permute.xlu0 %5469
    %5471 = vrot.lane.b32.xlu0 %v4461, 96
    %v5472 = vpop.permute.xlu0 %5471
    %5473 = vrot.lane.b32.xlu0 %v4462, 96
    %v5474 = vpop.permute.xlu0 %5473
    %5475 = vrot.lane.b32.xlu0 %v4463, 96
    %v5476 = vpop.permute.xlu0 %5475
    %5477 = vrot.lane.b32.xlu0 %v4464, 96
    %v5478 = vpop.permute.xlu0 %5477
    %5479 = vrot.lane.b32.xlu0 %v4465, 96
    %v5480 = vpop.permute.xlu0 %5479
    %5481 = vrot.lane.b32.xlu0 %v4466, 96
    %v5482 = vpop.permute.xlu0 %5481
    %5483 = vrot.lane.b32.xlu0 %v4467, 96
    %v5484 = vpop.permute.xlu0 %5483
    %5485 = vrot.lane.b32.xlu0 %v4468, 96
    %v5486 = vpop.permute.xlu0 %5485
    %5487 = vrot.lane.b32.xlu0 %v4469, 96
    %v5488 = vpop.permute.xlu0 %5487
    %5489 = vrot.lane.b32.xlu0 %v4470, 96
    %v5490 = vpop.permute.xlu0 %5489
    %5491 = vrot.lane.b32.xlu0 %v4471, 96
    %v5492 = vpop.permute.xlu0 %5491
    %5493 = vrot.lane.b32.xlu0 %v4472, 96
    %v5494 = vpop.permute.xlu0 %5493
    %5495 = vrot.lane.b32.xlu0 %v4473, 96
    %v5496 = vpop.permute.xlu0 %5495
    %5497 = vrot.lane.b32.xlu0 %v4474, 96
    %v5498 = vpop.permute.xlu0 %5497
    %5499 = vrot.lane.b32.xlu0 %v4475, 96
    %v5500 = vpop.permute.xlu0 %5499
    %5629 = vrot.lane.b32.xlu0 %v4540, 32
    %v5630 = vpop.permute.xlu0 %5629
    %5631 = vrot.lane.b32.xlu0 %v4541, 32
    %v5632 = vpop.permute.xlu0 %5631
    %5633 = vrot.lane.b32.xlu0 %v4542, 32
    %v5634 = vpop.permute.xlu0 %5633
    %5635 = vrot.lane.b32.xlu0 %v4543, 32
    %v5636 = vpop.permute.xlu0 %5635
    %5637 = vrot.lane.b32.xlu0 %v4544, 32
    %v5638 = vpop.permute.xlu0 %5637
    %5639 = vrot.lane.b32.xlu0 %v4545, 32
    %v5640 = vpop.permute.xlu0 %5639
    %5641 = vrot.lane.b32.xlu0 %v4546, 32
    %v5642 = vpop.permute.xlu0 %5641
    %5643 = vrot.lane.b32.xlu0 %v4547, 32
    %v5644 = vpop.permute.xlu0 %5643
    %5645 = vrot.lane.b32.xlu0 %v4548, 32
    %v5646 = vpop.permute.xlu0 %5645
    %5647 = vrot.lane.b32.xlu0 %v4549, 32
    %v5648 = vpop.permute.xlu0 %5647
    %5649 = vrot.lane.b32.xlu0 %v4550, 32
    %v5650 = vpop.permute.xlu0 %5649
    %5651 = vrot.lane.b32.xlu0 %v4551, 32
    %v5652 = vpop.permute.xlu0 %5651
    %5653 = vrot.lane.b32.xlu0 %v4552, 32
    %v5654 = vpop.permute.xlu0 %5653
    %5655 = vrot.lane.b32.xlu0 %v4553, 32
    %v5656 = vpop.permute.xlu0 %5655
    %5657 = vrot.lane.b32.xlu0 %v4554, 32
    %v5658 = vpop.permute.xlu0 %5657
    %5659 = vrot.lane.b32.xlu0 %v4555, 32
    %v5660 = vpop.permute.xlu0 %5659
    %5661 = vrot.lane.b32.xlu0 %v4556, 32
    %v5662 = vpop.permute.xlu0 %5661
    %5663 = vrot.lane.b32.xlu0 %v4557, 32
    %v5664 = vpop.permute.xlu0 %5663
    %5665 = vrot.lane.b32.xlu0 %v4558, 32
    %v5666 = vpop.permute.xlu0 %5665
    %5667 = vrot.lane.b32.xlu0 %v4559, 32
    %v5668 = vpop.permute.xlu0 %5667
    %5669 = vrot.lane.b32.xlu0 %v4560, 32
    %v5670 = vpop.permute.xlu0 %5669
    %5671 = vrot.lane.b32.xlu0 %v4561, 32
    %v5672 = vpop.permute.xlu0 %5671
    %5673 = vrot.lane.b32.xlu0 %v4562, 32
    %v5674 = vpop.permute.xlu0 %5673
    %5675 = vrot.lane.b32.xlu0 %v4563, 32
    %v5676 = vpop.permute.xlu0 %5675
    %5677 = vrot.lane.b32.xlu0 %v4564, 32
    %v5678 = vpop.permute.xlu0 %5677
    %5679 = vrot.lane.b32.xlu0 %v4565, 32
    %v5680 = vpop.permute.xlu0 %5679
    %5681 = vrot.lane.b32.xlu0 %v4566, 32
    %v5682 = vpop.permute.xlu0 %5681
    %5683 = vrot.lane.b32.xlu0 %v4567, 32
    %v5684 = vpop.permute.xlu0 %5683
    %5685 = vrot.lane.b32.xlu0 %v4568, 32
    %v5686 = vpop.permute.xlu0 %5685
    %5687 = vrot.lane.b32.xlu0 %v4569, 32
    %v5688 = vpop.permute.xlu0 %5687
    %5689 = vrot.lane.b32.xlu0 %v4570, 32
    %v5690 = vpop.permute.xlu0 %5689
    %5691 = vrot.lane.b32.xlu0 %v4571, 32
    %v5692 = vpop.permute.xlu0 %5691
    %5693 = vrot.lane.b32.xlu0 %v4572, 32
    %v5694 = vpop.permute.xlu0 %5693
    %5695 = vrot.lane.b32.xlu0 %v4573, 32
    %v5696 = vpop.permute.xlu0 %5695
    %5697 = vrot.lane.b32.xlu0 %v4574, 32
    %v5698 = vpop.permute.xlu0 %5697
    %5699 = vrot.lane.b32.xlu0 %v4575, 32
    %v5700 = vpop.permute.xlu0 %5699
    %5701 = vrot.lane.b32.xlu0 %v4576, 32
    %v5702 = vpop.permute.xlu0 %5701
    %5703 = vrot.lane.b32.xlu0 %v4577, 32
    %v5704 = vpop.permute.xlu0 %5703
    %5705 = vrot.lane.b32.xlu0 %v4578, 32
    %v5706 = vpop.permute.xlu0 %5705
    %5707 = vrot.lane.b32.xlu0 %v4579, 32
    %v5708 = vpop.permute.xlu0 %5707
    %5709 = vrot.lane.b32.xlu0 %v4580, 32
    %v5710 = vpop.permute.xlu0 %5709
    %5711 = vrot.lane.b32.xlu0 %v4581, 32
    %v5712 = vpop.permute.xlu0 %5711
    %5713 = vrot.lane.b32.xlu0 %v4582, 32
    %v5714 = vpop.permute.xlu0 %5713
    %5715 = vrot.lane.b32.xlu0 %v4583, 32
    %v5716 = vpop.permute.xlu0 %5715
    %5717 = vrot.lane.b32.xlu0 %v4584, 32
    %v5718 = vpop.permute.xlu0 %5717
    %5719 = vrot.lane.b32.xlu0 %v4585, 32
    %v5720 = vpop.permute.xlu0 %5719
    %5721 = vrot.lane.b32.xlu0 %v4586, 32
    %v5722 = vpop.permute.xlu0 %5721
    %5723 = vrot.lane.b32.xlu0 %v4587, 32
    %v5724 = vpop.permute.xlu0 %5723
    %5725 = vrot.lane.b32.xlu0 %v4588, 32
    %v5726 = vpop.permute.xlu0 %5725
    %5727 = vrot.lane.b32.xlu0 %v4589, 32
    %v5728 = vpop.permute.xlu0 %5727
    %5729 = vrot.lane.b32.xlu0 %v4590, 32
    %v5730 = vpop.permute.xlu0 %5729
    %5731 = vrot.lane.b32.xlu0 %v4591, 32
    %v5732 = vpop.permute.xlu0 %5731
    %5733 = vrot.lane.b32.xlu0 %v4592, 32
    %v5734 = vpop.permute.xlu0 %5733
    %5735 = vrot.lane.b32.xlu0 %v4593, 32
    %v5736 = vpop.permute.xlu0 %5735
    %5737 = vrot.lane.b32.xlu0 %v4594, 32
    %v5738 = vpop.permute.xlu0 %5737
    %5739 = vrot.lane.b32.xlu0 %v4595, 32
    %v5740 = vpop.permute.xlu0 %5739
    %5741 = vrot.lane.b32.xlu0 %v4596, 32
    %v5742 = vpop.permute.xlu0 %5741
    %5743 = vrot.lane.b32.xlu0 %v4597, 32
    %v5744 = vpop.permute.xlu0 %5743
    %5745 = vrot.lane.b32.xlu0 %v4598, 32
    %v5746 = vpop.permute.xlu0 %5745
    %5747 = vrot.lane.b32.xlu0 %v4599, 32
    %v5748 = vpop.permute.xlu0 %5747
    %5749 = vrot.lane.b32.xlu0 %v4600, 32
    %v5750 = vpop.permute.xlu0 %5749
    %5751 = vrot.lane.b32.xlu0 %v4601, 32
    %v5752 = vpop.permute.xlu0 %5751
    %5753 = vrot.lane.b32.xlu0 %v4602, 32
    %v5754 = vpop.permute.xlu0 %5753
    %5755 = vrot.lane.b32.xlu0 %v4603, 32
    %v5756 = vpop.permute.xlu0 %5755
    %5885 = vrot.lane.b32.xlu0 %v4605, 64
    %v5886 = vpop.permute.xlu0 %5885
    %5887 = vrot.lane.b32.xlu0 %v4606, 64
    %v5888 = vpop.permute.xlu0 %5887
    %5889 = vrot.lane.b32.xlu0 %v4607, 64
    %v5890 = vpop.permute.xlu0 %5889
    %5891 = vrot.lane.b32.xlu0 %v4608, 64
    %v5892 = vpop.permute.xlu0 %5891
    %5893 = vrot.lane.b32.xlu0 %v4609, 64
    %v5894 = vpop.permute.xlu0 %5893
    %5895 = vrot.lane.b32.xlu0 %v4610, 64
    %v5896 = vpop.permute.xlu0 %5895
    %5897 = vrot.lane.b32.xlu0 %v4611, 64
    %v5898 = vpop.permute.xlu0 %5897
    %5899 = vrot.lane.b32.xlu0 %v4612, 64
    %v5900 = vpop.permute.xlu0 %5899
    %5901 = vrot.lane.b32.xlu0 %v4613, 64
    %v5902 = vpop.permute.xlu0 %5901
    %5903 = vrot.lane.b32.xlu0 %v4614, 64
    %v5904 = vpop.permute.xlu0 %5903
    %5905 = vrot.lane.b32.xlu0 %v4615, 64
    %v5906 = vpop.permute.xlu0 %5905
    %5907 = vrot.lane.b32.xlu0 %v4616, 64
    %v5908 = vpop.permute.xlu0 %5907
    %5909 = vrot.lane.b32.xlu0 %v4617, 64
    %v5910 = vpop.permute.xlu0 %5909
    %5911 = vrot.lane.b32.xlu0 %v4618, 64
    %v5912 = vpop.permute.xlu0 %5911
    %5913 = vrot.lane.b32.xlu0 %v4619, 64
    %v5914 = vpop.permute.xlu0 %5913
    %5915 = vrot.lane.b32.xlu0 %v4620, 64
    %v5916 = vpop.permute.xlu0 %5915
    %5917 = vrot.lane.b32.xlu0 %v4621, 64
    %v5918 = vpop.permute.xlu0 %5917
    %5919 = vrot.lane.b32.xlu0 %v4622, 64
    %v5920 = vpop.permute.xlu0 %5919
    %5921 = vrot.lane.b32.xlu0 %v4623, 64
    %v5922 = vpop.permute.xlu0 %5921
    %5923 = vrot.lane.b32.xlu0 %v4624, 64
    %v5924 = vpop.permute.xlu0 %5923
    %5925 = vrot.lane.b32.xlu0 %v4625, 64
    %v5926 = vpop.permute.xlu0 %5925
    %5927 = vrot.lane.b32.xlu0 %v4626, 64
    %v5928 = vpop.permute.xlu0 %5927
    %5929 = vrot.lane.b32.xlu0 %v4627, 64
    %v5930 = vpop.permute.xlu0 %5929
    %5931 = vrot.lane.b32.xlu0 %v4628, 64
    %v5932 = vpop.permute.xlu0 %5931
    %5933 = vrot.lane.b32.xlu0 %v4629, 64
    %v5934 = vpop.permute.xlu0 %5933
    %5935 = vrot.lane.b32.xlu0 %v4630, 64
    %v5936 = vpop.permute.xlu0 %5935
    %5937 = vrot.lane.b32.xlu0 %v4631, 64
    %v5938 = vpop.permute.xlu0 %5937
    %5939 = vrot.lane.b32.xlu0 %v4632, 64
    %v5940 = vpop.permute.xlu0 %5939
    %5941 = vrot.lane.b32.xlu0 %v4633, 64
    %v5942 = vpop.permute.xlu0 %5941
    %5943 = vrot.lane.b32.xlu0 %v4634, 64
    %v5944 = vpop.permute.xlu0 %5943
    %5945 = vrot.lane.b32.xlu0 %v4635, 64
    %v5946 = vpop.permute.xlu0 %5945
    %5947 = vrot.lane.b32.xlu0 %v4636, 64
    %v5948 = vpop.permute.xlu0 %5947
    %5949 = vrot.lane.b32.xlu0 %v4637, 64
    %v5950 = vpop.permute.xlu0 %5949
    %5951 = vrot.lane.b32.xlu0 %v4638, 64
    %v5952 = vpop.permute.xlu0 %5951
    %5953 = vrot.lane.b32.xlu0 %v4639, 64
    %v5954 = vpop.permute.xlu0 %5953
    %5955 = vrot.lane.b32.xlu0 %v4640, 64
    %v5956 = vpop.permute.xlu0 %5955
    %5957 = vrot.lane.b32.xlu0 %v4641, 64
    %v5958 = vpop.permute.xlu0 %5957
    %5959 = vrot.lane.b32.xlu0 %v4642, 64
    %v5960 = vpop.permute.xlu0 %5959
    %5961 = vrot.lane.b32.xlu0 %v4643, 64
    %v5962 = vpop.permute.xlu0 %5961
    %5963 = vrot.lane.b32.xlu0 %v4644, 64
    %v5964 = vpop.permute.xlu0 %5963
    %5965 = vrot.lane.b32.xlu0 %v4645, 64
    %v5966 = vpop.permute.xlu0 %5965
    %5967 = vrot.lane.b32.xlu0 %v4646, 64
    %v5968 = vpop.permute.xlu0 %5967
    %5969 = vrot.lane.b32.xlu0 %v4647, 64
    %v5970 = vpop.permute.xlu0 %5969
    %5971 = vrot.lane.b32.xlu0 %v4648, 64
    %v5972 = vpop.permute.xlu0 %5971
    %5973 = vrot.lane.b32.xlu0 %v4649, 64
    %v5974 = vpop.permute.xlu0 %5973
    %5975 = vrot.lane.b32.xlu0 %v4650, 64
    %v5976 = vpop.permute.xlu0 %5975
    %5977 = vrot.lane.b32.xlu0 %v4651, 64
    %v5978 = vpop.permute.xlu0 %5977
    %5979 = vrot.lane.b32.xlu0 %v4652, 64
    %v5980 = vpop.permute.xlu0 %5979
    %5981 = vrot.lane.b32.xlu0 %v4653, 64
    %v5982 = vpop.permute.xlu0 %5981
    %5983 = vrot.lane.b32.xlu0 %v4654, 64
    %v5984 = vpop.permute.xlu0 %5983
    %5985 = vrot.lane.b32.xlu0 %v4655, 64
    %v5986 = vpop.permute.xlu0 %5985
    %5987 = vrot.lane.b32.xlu0 %v4656, 64
    %v5988 = vpop.permute.xlu0 %5987
    %5989 = vrot.lane.b32.xlu0 %v4657, 64
    %v5990 = vpop.permute.xlu0 %5989
    %5991 = vrot.lane.b32.xlu0 %v4658, 64
    %v5992 = vpop.permute.xlu0 %5991
    %5993 = vrot.lane.b32.xlu0 %v4659, 64
    %v5994 = vpop.permute.xlu0 %5993
    %5995 = vrot.lane.b32.xlu0 %v4660, 64
    %v5996 = vpop.permute.xlu0 %5995
    %5997 = vrot.lane.b32.xlu0 %v4661, 64
    %v5998 = vpop.permute.xlu0 %5997
    %5999 = vrot.lane.b32.xlu0 %v4662, 64
    %v6000 = vpop.permute.xlu0 %5999
    %6001 = vrot.lane.b32.xlu0 %v4663, 64
    %v6002 = vpop.permute.xlu0 %6001
    %6003 = vrot.lane.b32.xlu0 %v4664, 64
    %v6004 = vpop.permute.xlu0 %6003
    %6005 = vrot.lane.b32.xlu0 %v4665, 64
    %v6006 = vpop.permute.xlu0 %6005
    %6007 = vrot.lane.b32.xlu0 %v4666, 64
    %v6008 = vpop.permute.xlu0 %6007
    %6009 = vrot.lane.b32.xlu0 %v4667, 64
    %v6010 = vpop.permute.xlu0 %6009
    %6011 = vrot.lane.b32.xlu0 %v4668, 64
    %v6012 = vpop.permute.xlu0 %6011
    %6141 = vrot.lane.b32.xlu0 %v4669, 96
    %v6142 = vpop.permute.xlu0 %6141
    %6143 = vrot.lane.b32.xlu0 %v4670, 96
    %v6144 = vpop.permute.xlu0 %6143
    %6145 = vrot.lane.b32.xlu0 %v4671, 96
    %v6146 = vpop.permute.xlu0 %6145
    %6147 = vrot.lane.b32.xlu0 %v4672, 96
    %v6148 = vpop.permute.xlu0 %6147
    %6149 = vrot.lane.b32.xlu0 %v4673, 96
    %v6150 = vpop.permute.xlu0 %6149
    %6151 = vrot.lane.b32.xlu0 %v4674, 96
    %v6152 = vpop.permute.xlu0 %6151
    %6153 = vrot.lane.b32.xlu0 %v4675, 96
    %v6154 = vpop.permute.xlu0 %6153
    %6155 = vrot.lane.b32.xlu0 %v4676, 96
    %v6156 = vpop.permute.xlu0 %6155
    %6157 = vrot.lane.b32.xlu0 %v4677, 96
    %v6158 = vpop.permute.xlu0 %6157
    %6159 = vrot.lane.b32.xlu0 %v4678, 96
    %v6160 = vpop.permute.xlu0 %6159
    %6161 = vrot.lane.b32.xlu0 %v4679, 96
    %v6162 = vpop.permute.xlu0 %6161
    %6163 = vrot.lane.b32.xlu0 %v4680, 96
    %v6164 = vpop.permute.xlu0 %6163
    %6165 = vrot.lane.b32.xlu0 %v4681, 96
    %v6166 = vpop.permute.xlu0 %6165
    %6167 = vrot.lane.b32.xlu0 %v4682, 96
    %v6168 = vpop.permute.xlu0 %6167
    %6169 = vrot.lane.b32.xlu0 %v4683, 96
    %v6170 = vpop.permute.xlu0 %6169
    %6171 = vrot.lane.b32.xlu0 %v4684, 96
    %v6172 = vpop.permute.xlu0 %6171
    %6173 = vrot.lane.b32.xlu0 %v4685, 96
    %v6174 = vpop.permute.xlu0 %6173
    %6175 = vrot.lane.b32.xlu0 %v4686, 96
    %v6176 = vpop.permute.xlu0 %6175
    %6177 = vrot.lane.b32.xlu0 %v4687, 96
    %v6178 = vpop.permute.xlu0 %6177
    %6179 = vrot.lane.b32.xlu0 %v4688, 96
    %v6180 = vpop.permute.xlu0 %6179
    %6181 = vrot.lane.b32.xlu0 %v4689, 96
    %v6182 = vpop.permute.xlu0 %6181
    %6183 = vrot.lane.b32.xlu0 %v4690, 96
    %v6184 = vpop.permute.xlu0 %6183
    %6185 = vrot.lane.b32.xlu0 %v4691, 96
    %v6186 = vpop.permute.xlu0 %6185
    %6187 = vrot.lane.b32.xlu0 %v4692, 96
    %v6188 = vpop.permute.xlu0 %6187
    %6189 = vrot.lane.b32.xlu0 %v4693, 96
    %v6190 = vpop.permute.xlu0 %6189
    %6191 = vrot.lane.b32.xlu0 %v4694, 96
    %v6192 = vpop.permute.xlu0 %6191
    %6193 = vrot.lane.b32.xlu0 %v4695, 96
    %v6194 = vpop.permute.xlu0 %6193
    %6195 = vrot.lane.b32.xlu0 %v4696, 96
    %v6196 = vpop.permute.xlu0 %6195
    %6197 = vrot.lane.b32.xlu0 %v4697, 96
    %v6198 = vpop.permute.xlu0 %6197
    %6199 = vrot.lane.b32.xlu0 %v4698, 96
    %v6200 = vpop.permute.xlu0 %6199
    %6201 = vrot.lane.b32.xlu0 %v4699, 96
    %v6202 = vpop.permute.xlu0 %6201
    %6203 = vrot.lane.b32.xlu0 %v4700, 96
    %v6204 = vpop.permute.xlu0 %6203
    %6205 = vrot.lane.b32.xlu0 %v4701, 96
    %v6206 = vpop.permute.xlu0 %6205
    %6207 = vrot.lane.b32.xlu0 %v4702, 96
    %v6208 = vpop.permute.xlu0 %6207
    %6209 = vrot.lane.b32.xlu0 %v4703, 96
    %v6210 = vpop.permute.xlu0 %6209
    %6211 = vrot.lane.b32.xlu0 %v4704, 96
    %v6212 = vpop.permute.xlu0 %6211
    %6213 = vrot.lane.b32.xlu0 %v4705, 96
    %v6214 = vpop.permute.xlu0 %6213
    %6215 = vrot.lane.b32.xlu0 %v4706, 96
    %v6216 = vpop.permute.xlu0 %6215
    %6217 = vrot.lane.b32.xlu0 %v4707, 96
    %v6218 = vpop.permute.xlu0 %6217
    %6219 = vrot.lane.b32.xlu0 %v4708, 96
    %v6220 = vpop.permute.xlu0 %6219
    %6221 = vrot.lane.b32.xlu0 %v4709, 96
    %v6222 = vpop.permute.xlu0 %6221
    %6223 = vrot.lane.b32.xlu0 %v4710, 96
    %v6224 = vpop.permute.xlu0 %6223
    %6225 = vrot.lane.b32.xlu0 %v4711, 96
    %v6226 = vpop.permute.xlu0 %6225
    %6227 = vrot.lane.b32.xlu0 %v4712, 96
    %v6228 = vpop.permute.xlu0 %6227
    %6229 = vrot.lane.b32.xlu0 %v4713, 96
    %v6230 = vpop.permute.xlu0 %6229
    %6231 = vrot.lane.b32.xlu0 %v4714, 96
    %v6232 = vpop.permute.xlu0 %6231
    %6233 = vrot.lane.b32.xlu0 %v4715, 96
    %v6234 = vpop.permute.xlu0 %6233
    %6235 = vrot.lane.b32.xlu0 %v4716, 96
    %v6236 = vpop.permute.xlu0 %6235
    %6237 = vrot.lane.b32.xlu0 %v4717, 96
    %v6238 = vpop.permute.xlu0 %6237
    %6239 = vrot.lane.b32.xlu0 %v4718, 96
    %v6240 = vpop.permute.xlu0 %6239
    %6241 = vrot.lane.b32.xlu0 %v4719, 96
    %v6242 = vpop.permute.xlu0 %6241
    %6243 = vrot.lane.b32.xlu0 %v4720, 96
    %v6244 = vpop.permute.xlu0 %6243
    %6245 = vrot.lane.b32.xlu0 %v4721, 96
    %v6246 = vpop.permute.xlu0 %6245
    %6247 = vrot.lane.b32.xlu0 %v4722, 96
    %v6248 = vpop.permute.xlu0 %6247
    %6249 = vrot.lane.b32.xlu0 %v4723, 96
    %v6250 = vpop.permute.xlu0 %6249
    %6251 = vrot.lane.b32.xlu0 %v4724, 96
    %v6252 = vpop.permute.xlu0 %6251
    %6253 = vrot.lane.b32.xlu0 %v4725, 96
    %v6254 = vpop.permute.xlu0 %6253
    %6255 = vrot.lane.b32.xlu0 %v4726, 96
    %v6256 = vpop.permute.xlu0 %6255
    %6257 = vrot.lane.b32.xlu0 %v4727, 96
    %v6258 = vpop.permute.xlu0 %6257
    %6259 = vrot.lane.b32.xlu0 %v4728, 96
    %v6260 = vpop.permute.xlu0 %6259
    %6261 = vrot.lane.b32.xlu0 %v4729, 96
    %v6262 = vpop.permute.xlu0 %6261
    %6263 = vrot.lane.b32.xlu0 %v4730, 96
    %v6264 = vpop.permute.xlu0 %6263
    %6265 = vrot.lane.b32.xlu0 %v4731, 96
    %v6266 = vpop.permute.xlu0 %6265
    %6267 = vrot.lane.b32.xlu0 %v4732, 96
    %v6268 = vpop.permute.xlu0 %6267
    %v6333 = vsel %vm3340, %v4220, %v4862
    %v6334 = vsel %vm3340, %v4221, %v4864
    %v6335 = vsel %vm3340, %v4222, %v4866
    %v6336 = vsel %vm3340, %v4223, %v4868
    %v6337 = vsel %vm3340, %v4224, %v4870
    %v6338 = vsel %vm3340, %v4225, %v4872
    %v6339 = vsel %vm3340, %v4226, %v4874
    %v6340 = vsel %vm3340, %v4227, %v4876
    %v6341 = vsel %vm3340, %v4228, %v4878
    %v6342 = vsel %vm3340, %v4229, %v4880
    %v6343 = vsel %vm3340, %v4230, %v4882
    %v6344 = vsel %vm3340, %v4231, %v4884
    %v6345 = vsel %vm3340, %v4232, %v4886
    %v6346 = vsel %vm3340, %v4233, %v4888
    %v6347 = vsel %vm3340, %v4234, %v4890
    %v6348 = vsel %vm3340, %v4235, %v4892
    %v6349 = vsel %vm3340, %v4236, %v4894
    %v6350 = vsel %vm3340, %v4237, %v4896
    %v6351 = vsel %vm3340, %v4238, %v4898
    %v6352 = vsel %vm3340, %v4239, %v4900
    %v6353 = vsel %vm3340, %v4240, %v4902
    %v6354 = vsel %vm3340, %v4241, %v4904
    %v6355 = vsel %vm3340, %v4242, %v4906
    %v6356 = vsel %vm3340, %v4243, %v4908
    %v6357 = vsel %vm3340, %v4244, %v4910
    %v6358 = vsel %vm3340, %v4245, %v4912
    %v6359 = vsel %vm3340, %v4246, %v4914
    %v6360 = vsel %vm3340, %v4247, %v4916
    %v6361 = vsel %vm3340, %v4248, %v4918
    %v6362 = vsel %vm3340, %v4249, %v4920
    %v6363 = vsel %vm3340, %v4250, %v4922
    %v6364 = vsel %vm3340, %v4251, %v4924
    %v6365 = vsel %vm3340, %v4252, %v4926
    %v6366 = vsel %vm3340, %v4253, %v4928
    %v6367 = vsel %vm3340, %v4254, %v4930
    %v6368 = vsel %vm3340, %v4255, %v4932
    %v6369 = vsel %vm3340, %v4256, %v4934
    %v6370 = vsel %vm3340, %v4257, %v4936
    %v6371 = vsel %vm3340, %v4258, %v4938
    %v6372 = vsel %vm3340, %v4259, %v4940
    %v6373 = vsel %vm3340, %v4260, %v4942
    %v6374 = vsel %vm3340, %v4261, %v4944
    %v6375 = vsel %vm3340, %v4262, %v4946
    %v6376 = vsel %vm3340, %v4263, %v4948
    %v6377 = vsel %vm3340, %v4264, %v4950
    %v6378 = vsel %vm3340, %v4265, %v4952
    %v6379 = vsel %vm3340, %v4266, %v4954
    %v6380 = vsel %vm3340, %v4267, %v4956
    %v6381 = vsel %vm3340, %v4268, %v4958
    %v6382 = vsel %vm3340, %v4269, %v4960
    %v6383 = vsel %vm3340, %v4270, %v4962
    %v6384 = vsel %vm3340, %v4271, %v4964
    %v6385 = vsel %vm3340, %v4272, %v4966
    %v6386 = vsel %vm3340, %v4273, %v4968
    %v6387 = vsel %vm3340, %v4274, %v4970
    %v6388 = vsel %vm3340, %v4275, %v4972
    %v6389 = vsel %vm3340, %v4276, %v4974
    %v6390 = vsel %vm3340, %v4277, %v4976
    %v6391 = vsel %vm3340, %v4278, %v4978
    %v6392 = vsel %vm3340, %v4279, %v4980
    %v6393 = vsel %vm3340, %v4280, %v4982
    %v6394 = vsel %vm3340, %v4281, %v4984
    %v6395 = vsel %vm3340, %v4282, %v4986
    %v6396 = vsel %vm3340, %v4283, %v4988
    %vm6397 = vcmask 523264
    %v6398 = vsel %vm6397, %v6333, %v5118
    %v6399 = vsel %vm6397, %v6334, %v5120
    %v6400 = vsel %vm6397, %v6335, %v5122
    %v6401 = vsel %vm6397, %v6336, %v5124
    %v6402 = vsel %vm6397, %v6337, %v5126
    %v6403 = vsel %vm6397, %v6338, %v5128
    %v6404 = vsel %vm6397, %v6339, %v5130
    %v6405 = vsel %vm6397, %v6340, %v5132
    %v6406 = vsel %vm6397, %v6341, %v5134
    %v6407 = vsel %vm6397, %v6342, %v5136
    %v6408 = vsel %vm6397, %v6343, %v5138
    %v6409 = vsel %vm6397, %v6344, %v5140
    %v6410 = vsel %vm6397, %v6345, %v5142
    %v6411 = vsel %vm6397, %v6346, %v5144
    %v6412 = vsel %vm6397, %v6347, %v5146
    %v6413 = vsel %vm6397, %v6348, %v5148
    %v6414 = vsel %vm6397, %v6349, %v5150
    %v6415 = vsel %vm6397, %v6350, %v5152
    %v6416 = vsel %vm6397, %v6351, %v5154
    %v6417 = vsel %vm6397, %v6352, %v5156
    %v6418 = vsel %vm6397, %v6353, %v5158
    %v6419 = vsel %vm6397, %v6354, %v5160
    %v6420 = vsel %vm6397, %v6355, %v5162
    %v6421 = vsel %vm6397, %v6356, %v5164
    %v6422 = vsel %vm6397, %v6357, %v5166
    %v6423 = vsel %vm6397, %v6358, %v5168
    %v6424 = vsel %vm6397, %v6359, %v5170
    %v6425 = vsel %vm6397, %v6360, %v5172
    %v6426 = vsel %vm6397, %v6361, %v5174
    %v6427 = vsel %vm6397, %v6362, %v5176
    %v6428 = vsel %vm6397, %v6363, %v5178
    %v6429 = vsel %vm6397, %v6364, %v5180
    %v6430 = vsel %vm6397, %v6365, %v5182
    %v6431 = vsel %vm6397, %v6366, %v5184
    %v6432 = vsel %vm6397, %v6367, %v5186
    %v6433 = vsel %vm6397, %v6368, %v5188
    %v6434 = vsel %vm6397, %v6369, %v5190
    %v6435 = vsel %vm6397, %v6370, %v5192
    %v6436 = vsel %vm6397, %v6371, %v5194
    %v6437 = vsel %vm6397, %v6372, %v5196
    %v6438 = vsel %vm6397, %v6373, %v5198
    %v6439 = vsel %vm6397, %v6374, %v5200
    %v6440 = vsel %vm6397, %v6375, %v5202
    %v6441 = vsel %vm6397, %v6376, %v5204
    %v6442 = vsel %vm6397, %v6377, %v5206
    %v6443 = vsel %vm6397, %v6378, %v5208
    %v6444 = vsel %vm6397, %v6379, %v5210
    %v6445 = vsel %vm6397, %v6380, %v5212
    %v6446 = vsel %vm6397, %v6381, %v5214
    %v6447 = vsel %vm6397, %v6382, %v5216
    %v6448 = vsel %vm6397, %v6383, %v5218
    %v6449 = vsel %vm6397, %v6384, %v5220
    %v6450 = vsel %vm6397, %v6385, %v5222
    %v6451 = vsel %vm6397, %v6386, %v5224
    %v6452 = vsel %vm6397, %v6387, %v5226
    %v6453 = vsel %vm6397, %v6388, %v5228
    %v6454 = vsel %vm6397, %v6389, %v5230
    %v6455 = vsel %vm6397, %v6390, %v5232
    %v6456 = vsel %vm6397, %v6391, %v5234
    %v6457 = vsel %vm6397, %v6392, %v5236
    %v6458 = vsel %vm6397, %v6393, %v5238
    %v6459 = vsel %vm6397, %v6394, %v5240
    %v6460 = vsel %vm6397, %v6395, %v5242
    %v6461 = vsel %vm6397, %v6396, %v5244
    %vm6462 = vcmask 785408
    %v6463 = vsel %vm6462, %v6398, %v5374
    %v6464 = vsel %vm6462, %v6399, %v5376
    %v6465 = vsel %vm6462, %v6400, %v5378
    %v6466 = vsel %vm6462, %v6401, %v5380
    %v6467 = vsel %vm6462, %v6402, %v5382
    %v6468 = vsel %vm6462, %v6403, %v5384
    %v6469 = vsel %vm6462, %v6404, %v5386
    %v6470 = vsel %vm6462, %v6405, %v5388
    %v6471 = vsel %vm6462, %v6406, %v5390
    %v6472 = vsel %vm6462, %v6407, %v5392
    %v6473 = vsel %vm6462, %v6408, %v5394
    %v6474 = vsel %vm6462, %v6409, %v5396
    %v6475 = vsel %vm6462, %v6410, %v5398
    %v6476 = vsel %vm6462, %v6411, %v5400
    %v6477 = vsel %vm6462, %v6412, %v5402
    %v6478 = vsel %vm6462, %v6413, %v5404
    %v6479 = vsel %vm6462, %v6414, %v5406
    %v6480 = vsel %vm6462, %v6415, %v5408
    %v6481 = vsel %vm6462, %v6416, %v5410
    %v6482 = vsel %vm6462, %v6417, %v5412
    %v6483 = vsel %vm6462, %v6418, %v5414
    %v6484 = vsel %vm6462, %v6419, %v5416
    %v6485 = vsel %vm6462, %v6420, %v5418
    %v6486 = vsel %vm6462, %v6421, %v5420
    %v6487 = vsel %vm6462, %v6422, %v5422
    %v6488 = vsel %vm6462, %v6423, %v5424
    %v6489 = vsel %vm6462, %v6424, %v5426
    %v6490 = vsel %vm6462, %v6425, %v5428
    %v6491 = vsel %vm6462, %v6426, %v5430
    %v6492 = vsel %vm6462, %v6427, %v5432
    %v6493 = vsel %vm6462, %v6428, %v5434
    %v6494 = vsel %vm6462, %v6429, %v5436
    %v6495 = vsel %vm6462, %v6430, %v5438
    %v6496 = vsel %vm6462, %v6431, %v5440
    %v6497 = vsel %vm6462, %v6432, %v5442
    %v6498 = vsel %vm6462, %v6433, %v5444
    %v6499 = vsel %vm6462, %v6434, %v5446
    %v6500 = vsel %vm6462, %v6435, %v5448
    %v6501 = vsel %vm6462, %v6436, %v5450
    %v6502 = vsel %vm6462, %v6437, %v5452
    %v6503 = vsel %vm6462, %v6438, %v5454
    %v6504 = vsel %vm6462, %v6439, %v5456
    %v6505 = vsel %vm6462, %v6440, %v5458
    %v6506 = vsel %vm6462, %v6441, %v5460
    %v6507 = vsel %vm6462, %v6442, %v5462
    %v6508 = vsel %vm6462, %v6443, %v5464
    %v6509 = vsel %vm6462, %v6444, %v5466
    %v6510 = vsel %vm6462, %v6445, %v5468
    %v6511 = vsel %vm6462, %v6446, %v5470
    %v6512 = vsel %vm6462, %v6447, %v5472
    %v6513 = vsel %vm6462, %v6448, %v5474
    %v6514 = vsel %vm6462, %v6449, %v5476
    %v6515 = vsel %vm6462, %v6450, %v5478
    %v6516 = vsel %vm6462, %v6451, %v5480
    %v6517 = vsel %vm6462, %v6452, %v5482
    %v6518 = vsel %vm6462, %v6453, %v5484
    %v6519 = vsel %vm6462, %v6454, %v5486
    %v6520 = vsel %vm6462, %v6455, %v5488
    %v6521 = vsel %vm6462, %v6456, %v5490
    %v6522 = vsel %vm6462, %v6457, %v5492
    %v6523 = vsel %vm6462, %v6458, %v5494
    %v6524 = vsel %vm6462, %v6459, %v5496
    %v6525 = vsel %vm6462, %v6460, %v5498
    %v6526 = vsel %vm6462, %v6461, %v5500
    %v6527 = vsel %vm3340, %v4476, %v5630
    %v6528 = vsel %vm3340, %v4477, %v5632
    %v6529 = vsel %vm3340, %v4478, %v5634
    %v6530 = vsel %vm3340, %v4479, %v5636
    %v6531 = vsel %vm3340, %v4480, %v5638
    %v6532 = vsel %vm3340, %v4481, %v5640
    %v6533 = vsel %vm3340, %v4482, %v5642
    %v6534 = vsel %vm3340, %v4483, %v5644
    %v6535 = vsel %vm3340, %v4484, %v5646
    %v6536 = vsel %vm3340, %v4485, %v5648
    %v6537 = vsel %vm3340, %v4486, %v5650
    %v6538 = vsel %vm3340, %v4487, %v5652
    %v6539 = vsel %vm3340, %v4488, %v5654
    %v6540 = vsel %vm3340, %v4489, %v5656
    %v6541 = vsel %vm3340, %v4490, %v5658
    %v6542 = vsel %vm3340, %v4491, %v5660
    %v6543 = vsel %vm3340, %v4492, %v5662
    %v6544 = vsel %vm3340, %v4493, %v5664
    %v6545 = vsel %vm3340, %v4494, %v5666
    %v6546 = vsel %vm3340, %v4495, %v5668
    %v6547 = vsel %vm3340, %v4496, %v5670
    %v6548 = vsel %vm3340, %v4497, %v5672
    %v6549 = vsel %vm3340, %v4498, %v5674
    %v6550 = vsel %vm3340, %v4499, %v5676
    %v6551 = vsel %vm3340, %v4500, %v5678
    %v6552 = vsel %vm3340, %v4501, %v5680
    %v6553 = vsel %vm3340, %v4502, %v5682
    %v6554 = vsel %vm3340, %v4503, %v5684
    %v6555 = vsel %vm3340, %v4504, %v5686
    %v6556 = vsel %vm3340, %v4505, %v5688
    %v6557 = vsel %vm3340, %v4506, %v5690
    %v6558 = vsel %vm3340, %v4507, %v5692
    %v6559 = vsel %vm3340, %v4508, %v5694
    %v6560 = vsel %vm3340, %v4509, %v5696
    %v6561 = vsel %vm3340, %v4510, %v5698
    %v6562 = vsel %vm3340, %v4511, %v5700
    %v6563 = vsel %vm3340, %v4512, %v5702
    %v6564 = vsel %vm3340, %v4513, %v5704
    %v6565 = vsel %vm3340, %v4514, %v5706
    %v6566 = vsel %vm3340, %v4515, %v5708
    %v6567 = vsel %vm3340, %v4516, %v5710
    %v6568 = vsel %vm3340, %v4517, %v5712
    %v6569 = vsel %vm3340, %v4518, %v5714
    %v6570 = vsel %vm3340, %v4519, %v5716
    %v6571 = vsel %vm3340, %v4520, %v5718
    %v6572 = vsel %vm3340, %v4521, %v5720
    %v6573 = vsel %vm3340, %v4522, %v5722
    %v6574 = vsel %vm3340, %v4523, %v5724
    %v6575 = vsel %vm3340, %v4524, %v5726
    %v6576 = vsel %vm3340, %v4525, %v5728
    %v6577 = vsel %vm3340, %v4526, %v5730
    %v6578 = vsel %vm3340, %v4527, %v5732
    %v6579 = vsel %vm3340, %v4528, %v5734
    %v6580 = vsel %vm3340, %v4529, %v5736
    %v6581 = vsel %vm3340, %v4530, %v5738
    %v6582 = vsel %vm3340, %v4531, %v5740
    %v6583 = vsel %vm3340, %v4532, %v5742
    %v6584 = vsel %vm3340, %v4533, %v5744
    %v6585 = vsel %vm3340, %v4534, %v5746
    %v6586 = vsel %vm3340, %v4535, %v5748
    %v6587 = vsel %vm3340, %v4536, %v5750
    %v6588 = vsel %vm3340, %v4537, %v5752
    %v6589 = vsel %vm3340, %v4538, %v5754
    %v6590 = vsel %vm3340, %v4539, %v5756
    %v6591 = vsel %vm6397, %v6527, %v5886
    %v6592 = vsel %vm6397, %v6528, %v5888
    %v6593 = vsel %vm6397, %v6529, %v5890
    %v6594 = vsel %vm6397, %v6530, %v5892
    %v6595 = vsel %vm6397, %v6531, %v5894
    %v6596 = vsel %vm6397, %v6532, %v5896
    %v6597 = vsel %vm6397, %v6533, %v5898
    %v6598 = vsel %vm6397, %v6534, %v5900
    %v6599 = vsel %vm6397, %v6535, %v5902
    %v6600 = vsel %vm6397, %v6536, %v5904
    %v6601 = vsel %vm6397, %v6537, %v5906
    %v6602 = vsel %vm6397, %v6538, %v5908
    %v6603 = vsel %vm6397, %v6539, %v5910
    %v6604 = vsel %vm6397, %v6540, %v5912
    %v6605 = vsel %vm6397, %v6541, %v5914
    %v6606 = vsel %vm6397, %v6542, %v5916
    %v6607 = vsel %vm6397, %v6543, %v5918
    %v6608 = vsel %vm6397, %v6544, %v5920
    %v6609 = vsel %vm6397, %v6545, %v5922
    %v6610 = vsel %vm6397, %v6546, %v5924
    %v6611 = vsel %vm6397, %v6547, %v5926
    %v6612 = vsel %vm6397, %v6548, %v5928
    %v6613 = vsel %vm6397, %v6549, %v5930
    %v6614 = vsel %vm6397, %v6550, %v5932
    %v6615 = vsel %vm6397, %v6551, %v5934
    %v6616 = vsel %vm6397, %v6552, %v5936
    %v6617 = vsel %vm6397, %v6553, %v5938
    %v6618 = vsel %vm6397, %v6554, %v5940
    %v6619 = vsel %vm6397, %v6555, %v5942
    %v6620 = vsel %vm6397, %v6556, %v5944
    %v6621 = vsel %vm6397, %v6557, %v5946
    %v6622 = vsel %vm6397, %v6558, %v5948
    %v6623 = vsel %vm6397, %v6559, %v5950
    %v6624 = vsel %vm6397, %v6560, %v5952
    %v6625 = vsel %vm6397, %v6561, %v5954
    %v6626 = vsel %vm6397, %v6562, %v5956
    %v6627 = vsel %vm6397, %v6563, %v5958
    %v6628 = vsel %vm6397, %v6564, %v5960
    %v6629 = vsel %vm6397, %v6565, %v5962
    %v6630 = vsel %vm6397, %v6566, %v5964
    %v6631 = vsel %vm6397, %v6567, %v5966
    %v6632 = vsel %vm6397, %v6568, %v5968
    %v6633 = vsel %vm6397, %v6569, %v5970
    %v6634 = vsel %vm6397, %v6570, %v5972
    %v6635 = vsel %vm6397, %v6571, %v5974
    %v6636 = vsel %vm6397, %v6572, %v5976
    %v6637 = vsel %vm6397, %v6573, %v5978
    %v6638 = vsel %vm6397, %v6574, %v5980
    %v6639 = vsel %vm6397, %v6575, %v5982
    %v6640 = vsel %vm6397, %v6576, %v5984
    %v6641 = vsel %vm6397, %v6577, %v5986
    %v6642 = vsel %vm6397, %v6578, %v5988
    %v6643 = vsel %vm6397, %v6579, %v5990
    %v6644 = vsel %vm6397, %v6580, %v5992
    %v6645 = vsel %vm6397, %v6581, %v5994
    %v6646 = vsel %vm6397, %v6582, %v5996
    %v6647 = vsel %vm6397, %v6583, %v5998
    %v6648 = vsel %vm6397, %v6584, %v6000
    %v6649 = vsel %vm6397, %v6585, %v6002
    %v6650 = vsel %vm6397, %v6586, %v6004
    %v6651 = vsel %vm6397, %v6587, %v6006
    %v6652 = vsel %vm6397, %v6588, %v6008
    %v6653 = vsel %vm6397, %v6589, %v6010
    %v6654 = vsel %vm6397, %v6590, %v6012
    %v6655 = vsel %vm6462, %v6591, %v6142
    %v6656 = vsel %vm6462, %v6592, %v6144
    %v6657 = vsel %vm6462, %v6593, %v6146
    %v6658 = vsel %vm6462, %v6594, %v6148
    %v6659 = vsel %vm6462, %v6595, %v6150
    %v6660 = vsel %vm6462, %v6596, %v6152
    %v6661 = vsel %vm6462, %v6597, %v6154
    %v6662 = vsel %vm6462, %v6598, %v6156
    %v6663 = vsel %vm6462, %v6599, %v6158
    %v6664 = vsel %vm6462, %v6600, %v6160
    %v6665 = vsel %vm6462, %v6601, %v6162
    %v6666 = vsel %vm6462, %v6602, %v6164
    %v6667 = vsel %vm6462, %v6603, %v6166
    %v6668 = vsel %vm6462, %v6604, %v6168
    %v6669 = vsel %vm6462, %v6605, %v6170
    %v6670 = vsel %vm6462, %v6606, %v6172
    %v6671 = vsel %vm6462, %v6607, %v6174
    %v6672 = vsel %vm6462, %v6608, %v6176
    %v6673 = vsel %vm6462, %v6609, %v6178
    %v6674 = vsel %vm6462, %v6610, %v6180
    %v6675 = vsel %vm6462, %v6611, %v6182
    %v6676 = vsel %vm6462, %v6612, %v6184
    %v6677 = vsel %vm6462, %v6613, %v6186
    %v6678 = vsel %vm6462, %v6614, %v6188
    %v6679 = vsel %vm6462, %v6615, %v6190
    %v6680 = vsel %vm6462, %v6616, %v6192
    %v6681 = vsel %vm6462, %v6617, %v6194
    %v6682 = vsel %vm6462, %v6618, %v6196
    %v6683 = vsel %vm6462, %v6619, %v6198
    %v6684 = vsel %vm6462, %v6620, %v6200
    %v6685 = vsel %vm6462, %v6621, %v6202
    %v6686 = vsel %vm6462, %v6622, %v6204
    %v6687 = vsel %vm6462, %v6623, %v6206
    %v6688 = vsel %vm6462, %v6624, %v6208
    %v6689 = vsel %vm6462, %v6625, %v6210
    %v6690 = vsel %vm6462, %v6626, %v6212
    %v6691 = vsel %vm6462, %v6627, %v6214
    %v6692 = vsel %vm6462, %v6628, %v6216
    %v6693 = vsel %vm6462, %v6629, %v6218
    %v6694 = vsel %vm6462, %v6630, %v6220
    %v6695 = vsel %vm6462, %v6631, %v6222
    %v6696 = vsel %vm6462, %v6632, %v6224
    %v6697 = vsel %vm6462, %v6633, %v6226
    %v6698 = vsel %vm6462, %v6634, %v6228
    %v6699 = vsel %vm6462, %v6635, %v6230
    %v6700 = vsel %vm6462, %v6636, %v6232
    %v6701 = vsel %vm6462, %v6637, %v6234
    %v6702 = vsel %vm6462, %v6638, %v6236
    %v6703 = vsel %vm6462, %v6639, %v6238
    %v6704 = vsel %vm6462, %v6640, %v6240
    %v6705 = vsel %vm6462, %v6641, %v6242
    %v6706 = vsel %vm6462, %v6642, %v6244
    %v6707 = vsel %vm6462, %v6643, %v6246
    %v6708 = vsel %vm6462, %v6644, %v6248
    %v6709 = vsel %vm6462, %v6645, %v6250
    %v6710 = vsel %vm6462, %v6646, %v6252
    %v6711 = vsel %vm6462, %v6647, %v6254
    %v6712 = vsel %vm6462, %v6648, %v6256
    %v6713 = vsel %vm6462, %v6649, %v6258
    %v6714 = vsel %vm6462, %v6650, %v6260
    %v6715 = vsel %vm6462, %v6651, %v6262
    %v6716 = vsel %vm6462, %v6652, %v6264
    %v6717 = vsel %vm6462, %v6653, %v6266
    %v6718 = vsel %vm6462, %v6654, %v6268
    %v6719 = vpack.c.bf16 %v6464, %v6463
    %v6720 = vpack.c.bf16 %v6656, %v6655
    %v6721 = vpack.c.bf16 %v4734, %v4733
    %v6722 = vpack.c.bf16 %v6466, %v6465
    %v6723 = vpack.c.bf16 %v6658, %v6657
    %v6724 = vpack.c.bf16 %v4736, %v4735
    %v6725 = vpack.c.bf16 %v6468, %v6467
    %v6726 = vpack.c.bf16 %v6660, %v6659
    %v6727 = vpack.c.bf16 %v4738, %v4737
    %v6728 = vpack.c.bf16 %v6470, %v6469
    %v6729 = vpack.c.bf16 %v6662, %v6661
    %v6730 = vpack.c.bf16 %v4740, %v4739
    %v6731 = vpack.c.bf16 %v6472, %v6471
    %v6732 = vpack.c.bf16 %v6664, %v6663
    %v6733 = vpack.c.bf16 %v4742, %v4741
    %v6734 = vpack.c.bf16 %v6474, %v6473
    %v6735 = vpack.c.bf16 %v6666, %v6665
    %v6736 = vpack.c.bf16 %v4744, %v4743
    %v6737 = vpack.c.bf16 %v6476, %v6475
    %v6738 = vpack.c.bf16 %v6668, %v6667
    %v6739 = vpack.c.bf16 %v4746, %v4745
    %v6740 = vpack.c.bf16 %v6478, %v6477
    %v6741 = vpack.c.bf16 %v6670, %v6669
    %v6742 = vpack.c.bf16 %v4748, %v4747
    %v6743 = vpack.c.bf16 %v6480, %v6479
    %v6744 = vpack.c.bf16 %v6672, %v6671
    %v6745 = vpack.c.bf16 %v4750, %v4749
    %v6746 = vpack.c.bf16 %v6482, %v6481
    %v6747 = vpack.c.bf16 %v6674, %v6673
    %v6748 = vpack.c.bf16 %v4752, %v4751
    %v6749 = vpack.c.bf16 %v6484, %v6483
    %v6750 = vpack.c.bf16 %v6676, %v6675
    %v6751 = vpack.c.bf16 %v4754, %v4753
    %v6752 = vpack.c.bf16 %v6486, %v6485
    %v6753 = vpack.c.bf16 %v6678, %v6677
    %v6754 = vpack.c.bf16 %v4756, %v4755
    %v6755 = vpack.c.bf16 %v6488, %v6487
    %v6756 = vpack.c.bf16 %v6680, %v6679
    %v6757 = vpack.c.bf16 %v4758, %v4757
    %v6758 = vpack.c.bf16 %v6490, %v6489
    %v6759 = vpack.c.bf16 %v6682, %v6681
    %v6760 = vpack.c.bf16 %v4760, %v4759
    %v6761 = vpack.c.bf16 %v6492, %v6491
    %v6762 = vpack.c.bf16 %v6684, %v6683
    %v6763 = vpack.c.bf16 %v4762, %v4761
    %v6764 = vpack.c.bf16 %v6494, %v6493
    %v6765 = vpack.c.bf16 %v6686, %v6685
    %v6766 = vpack.c.bf16 %v4764, %v4763
    %v6767 = vpack.c.bf16 %v6496, %v6495
    %v6768 = vpack.c.bf16 %v6688, %v6687
    %v6769 = vpack.c.bf16 %v4766, %v4765
    %v6770 = vpack.c.bf16 %v6498, %v6497
    %v6771 = vpack.c.bf16 %v6690, %v6689
    %v6772 = vpack.c.bf16 %v4768, %v4767
    %v6773 = vpack.c.bf16 %v6500, %v6499
    %v6774 = vpack.c.bf16 %v6692, %v6691
    %v6775 = vpack.c.bf16 %v4770, %v4769
    %v6776 = vpack.c.bf16 %v6502, %v6501
    %v6777 = vpack.c.bf16 %v6694, %v6693
    %v6778 = vpack.c.bf16 %v4772, %v4771
    %v6779 = vpack.c.bf16 %v6504, %v6503
    %v6780 = vpack.c.bf16 %v6696, %v6695
    %v6781 = vpack.c.bf16 %v4774, %v4773
    %v6782 = vpack.c.bf16 %v6506, %v6505
    %v6783 = vpack.c.bf16 %v6698, %v6697
    %v6784 = vpack.c.bf16 %v4776, %v4775
    %v6785 = vpack.c.bf16 %v6508, %v6507
    %v6786 = vpack.c.bf16 %v6700, %v6699
    %v6787 = vpack.c.bf16 %v4778, %v4777
    %v6788 = vpack.c.bf16 %v6510, %v6509
    %v6789 = vpack.c.bf16 %v6702, %v6701
    %v6790 = vpack.c.bf16 %v4780, %v4779
    %v6791 = vpack.c.bf16 %v6512, %v6511
    %v6792 = vpack.c.bf16 %v6704, %v6703
    %v6793 = vpack.c.bf16 %v4782, %v4781
    %v6794 = vpack.c.bf16 %v6514, %v6513
    %v6795 = vpack.c.bf16 %v6706, %v6705
    %v6796 = vpack.c.bf16 %v4784, %v4783
    %v6797 = vpack.c.bf16 %v6516, %v6515
    %v6798 = vpack.c.bf16 %v6708, %v6707
    %v6799 = vpack.c.bf16 %v4786, %v4785
    %v6800 = vpack.c.bf16 %v6518, %v6517
    %v6801 = vpack.c.bf16 %v6710, %v6709
    %v6802 = vpack.c.bf16 %v4788, %v4787
    %v6803 = vpack.c.bf16 %v6520, %v6519
    %v6804 = vpack.c.bf16 %v6712, %v6711
    %v6805 = vpack.c.bf16 %v4790, %v4789
    %v6806 = vpack.c.bf16 %v6522, %v6521
    %v6807 = vpack.c.bf16 %v6714, %v6713
    %v6808 = vpack.c.bf16 %v4792, %v4791
    %v6809 = vpack.c.bf16 %v6524, %v6523
    %v6810 = vpack.c.bf16 %v6716, %v6715
    %v6811 = vpack.c.bf16 %v4794, %v4793
    %v6812 = vpack.c.bf16 %v6526, %v6525
    %v6813 = vpack.c.bf16 %v6718, %v6717
    %v6814 = vpack.c.bf16 %v4796, %v4795
    %v6815 = vld [vmem:[%s3] sm:$0xf]
    %v6816 = vld [vmem:[%s3 + $0x4] sm:$0xf]
    %v6817 = vld [vmem:[%s3 + $0x8] sm:$0xf]
    %v6818 = vld [vmem:[%s3 + $0xc] sm:$0xf]
    %v6819 = vld [vmem:[%s3 + $0x10] sm:$0xf]
    %v6820 = vld [vmem:[%s3 + $0x14] sm:$0xf]
    %v6821 = vld [vmem:[%s3 + $0x18] sm:$0xf]
    %v6822 = vld [vmem:[%s3 + $0x1c] sm:$0xf]
    %v6823 = vld [vmem:[%s3 + $0x20] sm:$0xf]
    %v6824 = vld [vmem:[%s3 + $0x24] sm:$0xf]
    %v6825 = vld [vmem:[%s3 + $0x28] sm:$0xf]
    %v6826 = vld [vmem:[%s3 + $0x2c] sm:$0xf]
    %v6827 = vld [vmem:[%s3 + $0x30] sm:$0xf]
    %v6828 = vld [vmem:[%s3 + $0x34] sm:$0xf]
    %v6829 = vld [vmem:[%s3 + $0x38] sm:$0xf]
    %v6830 = vld [vmem:[%s3 + $0x3c] sm:$0xf]
    %v6831 = vld [vmem:[%s3 + $0x40] sm:$0xf]
    %v6832 = vld [vmem:[%s3 + $0x44] sm:$0xf]
    %v6833 = vld [vmem:[%s3 + $0x48] sm:$0xf]
    %v6834 = vld [vmem:[%s3 + $0x4c] sm:$0xf]
    %v6835 = vld [vmem:[%s3 + $0x50] sm:$0xf]
    %v6836 = vld [vmem:[%s3 + $0x54] sm:$0xf]
    %v6837 = vld [vmem:[%s3 + $0x58] sm:$0xf]
    %v6838 = vld [vmem:[%s3 + $0x5c] sm:$0xf]
    %v6839 = vld [vmem:[%s3 + $0x60] sm:$0xf]
    %v6840 = vld [vmem:[%s3 + $0x64] sm:$0xf]
    %v6841 = vld [vmem:[%s3 + $0x68] sm:$0xf]
    %v6842 = vld [vmem:[%s3 + $0x6c] sm:$0xf]
    %v6843 = vld [vmem:[%s3 + $0x70] sm:$0xf]
    %v6844 = vld [vmem:[%s3 + $0x74] sm:$0xf]
    %v6845 = vld [vmem:[%s3 + $0x78] sm:$0xf]
    %v6846 = vld [vmem:[%s3 + $0x7c] sm:$0xf]
    %v6847 = vld [vmem:[%s3 + $0x80] sm:$0xf]
    %v6848 = vld [vmem:[%s3 + $0x84] sm:$0xf]
    %v6849 = vld [vmem:[%s3 + $0x88] sm:$0xf]
    %v6850 = vld [vmem:[%s3 + $0x8c] sm:$0xf]
    %v6851 = vld [vmem:[%s4] sm:$0x1]
    %v6853 = vlaneseq
    %v6854 = vshrl.u32 %v6853, 7
    %v6855 = vsub.s32 0, %v6854
    %v6856 = vrot.slane %v6851, %v6855
    %v6894 = vunpack.c.l.b16 %v6815
    %v6895 = vunpack.c.l.b16 %v6816
    %v6896 = vunpack.c.l.b16 %v6817
    %v6897 = vunpack.c.l.b16 %v6818
    %v6898 = vunpack.c.l.b16 %v6819
    %v6899 = vunpack.c.l.b16 %v6820
    %v6900 = vunpack.c.l.b16 %v6821
    %v6901 = vunpack.c.l.b16 %v6822
    %v6902 = vunpack.c.l.b16 %v6823
    %v6903 = vunpack.c.l.b16 %v6824
    %v6904 = vunpack.c.l.b16 %v6825
    %v6905 = vunpack.c.l.b16 %v6826
    %v6906 = vunpack.c.l.b16 %v6827
    %v6907 = vunpack.c.l.b16 %v6828
    %v6908 = vunpack.c.l.b16 %v6829
    %v6909 = vunpack.c.l.b16 %v6830
    %v6910 = vunpack.c.l.b16 %v6831
    %v6911 = vunpack.c.l.b16 %v6832
    %v6912 = vunpack.c.l.b16 %v6833
    %v6913 = vunpack.c.l.b16 %v6834
    %v6914 = vunpack.c.l.b16 %v6835
    %v6915 = vunpack.c.l.b16 %v6836
    %v6916 = vunpack.c.l.b16 %v6837
    %v6917 = vunpack.c.l.b16 %v6838
    %v6918 = vunpack.c.l.b16 %v6839
    %v6919 = vunpack.c.l.b16 %v6840
    %v6920 = vunpack.c.l.b16 %v6841
    %v6921 = vunpack.c.l.b16 %v6842
    %v6922 = vunpack.c.l.b16 %v6843
    %v6923 = vunpack.c.l.b16 %v6844
    %v6924 = vunpack.c.l.b16 %v6845
    %v6925 = vunpack.c.l.b16 %v6846
    %v6926 = vunpack.c.l.b16 %v6847
    %v6927 = vunpack.c.l.b16 %v6848
    %v6928 = vunpack.c.l.b16 %v6849
    %v6929 = vunpack.c.l.b16 %v6850
    %v6930 = vpack.c.b16 %v6895, %v6894
    %v6931 = vpack.c.b16 %v6897, %v6896
    %v6932 = vpack.c.b16 %v6899, %v6898
    %v6933 = vpack.c.b16 %v6901, %v6900
    %v6934 = vpack.c.b16 %v6903, %v6902
    %v6935 = vpack.c.b16 %v6905, %v6904
    %v6936 = vpack.c.b16 %v6907, %v6906
    %v6937 = vpack.c.b16 %v6909, %v6908
    %v6938 = vpack.c.b16 %v6911, %v6910
    %v6939 = vpack.c.b16 %v6913, %v6912
    %v6940 = vpack.c.b16 %v6915, %v6914
    %v6941 = vpack.c.b16 %v6917, %v6916
    %v6942 = vpack.c.b16 %v6919, %v6918
    %v6943 = vpack.c.b16 %v6921, %v6920
    %v6944 = vpack.c.b16 %v6923, %v6922
    %v6945 = vpack.c.b16 %v6925, %v6924
    %v6946 = vpack.c.b16 %v6927, %v6926
    %v6947 = vpack.c.b16 %v6929, %v6928
    %v6967 = vsel %vm3340, %v6721, 0
    %v6970 = vsel %vm3340, %v6724, 0
    %v6973 = vsel %vm3340, %v6727, 0
    %v6976 = vsel %vm3340, %v6730, 0
    %v6979 = vsel %vm3340, %v6733, 0
    %v6982 = vsel %vm3340, %v6736, 0
    %v6985 = vsel %vm3340, %v6739, 0
    %v6988 = vsel %vm3340, %v6742, 0
    %v6991 = vsel %vm3340, %v6745, 0
    %v6994 = vsel %vm3340, %v6748, 0
    %v6997 = vsel %vm3340, %v6751, 0
    %v7000 = vsel %vm3340, %v6754, 0
    %v7003 = vsel %vm3340, %v6757, 0
    %v7006 = vsel %vm3340, %v6760, 0
    %v7009 = vsel %vm3340, %v6763, 0
    %v7012 = vsel %vm3340, %v6766, 0
    %v7015 = vsel %vm3340, %v6769, 0
    %v7018 = vsel %vm3340, %v6772, 0
    %v7021 = vsel %vm3340, %v6775, 0
    %v7024 = vsel %vm3340, %v6778, 0
    %v7027 = vsel %vm3340, %v6781, 0
    %v7030 = vsel %vm3340, %v6784, 0
    %v7033 = vsel %vm3340, %v6787, 0
    %v7036 = vsel %vm3340, %v6790, 0
    %v7039 = vsel %vm3340, %v6793, 0
    %v7042 = vsel %vm3340, %v6796, 0
    %v7045 = vsel %vm3340, %v6799, 0
    %v7048 = vsel %vm3340, %v6802, 0
    %v7051 = vsel %vm3340, %v6805, 0
    %v7054 = vsel %vm3340, %v6808, 0
    %v7057 = vsel %vm3340, %v6811, 0
    %v7060 = vsel %vm3340, %v6814, 0
    %7062 = vmatprep.subr.bf16.mxu0 0
    %7063 = vmatpush1.bf16.msra.mxu0 %v6937
    %7064 = vmatprep.subr.bf16.mxu0 0
    %7065 = vmatpush1.bf16.msra.mxu0 %v6936
    %7066 = vmatprep.subr.bf16.mxu0 0
    %7067 = vmatpush1.bf16.msra.mxu0 %v6935
    %7068 = vmatprep.subr.bf16.mxu0 0
    %7069 = vmatpush1.bf16.msra.mxu0 %v6934
    %7070 = vmatprep.subr.bf16.mxu0 0
    %7071 = vmatpush1.bf16.msra.mxu0 %v6933
    %7072 = vmatprep.subr.bf16.mxu0 0
    %7073 = vmatpush1.bf16.msra.mxu0 %v6932
    %7074 = vmatprep.subr.bf16.mxu0 0
    %7075 = vmatpush1.bf16.msra.mxu0 %v6931
    %7076 = vmatprep.subr.bf16.mxu0 0
    %7077 = vmatpush1.bf16.msra.mxu0 %v6930
    %7078 = vmatprep.subr.bf16.mxu0 0
    %7079 = vmatpush2.bf16.msra.mxu0 %v6945
    %7080 = vmatprep.subr.bf16.mxu0 0
    %7081 = vmatpush2.bf16.msra.mxu0 %v6944
    %7082 = vmatprep.subr.bf16.mxu0 0
    %7083 = vmatpush2.bf16.msra.mxu0 %v6943
    %7084 = vmatprep.subr.bf16.mxu0 0
    %7085 = vmatpush2.bf16.msra.mxu0 %v6942
    %7086 = vmatprep.subr.bf16.mxu0 0
    %7087 = vmatpush2.bf16.msra.mxu0 %v6941
    %7088 = vmatprep.subr.bf16.mxu0 0
    %7089 = vmatpush2.bf16.msra.mxu0 %v6940
    %7090 = vmatprep.subr.bf16.mxu0 0
    %7091 = vmatpush2.bf16.msra.mxu0 %v6939
    %7092 = vmatprep.subr.bf16.mxu0 0
    %7093 = vmatpush2.bf16.msra.mxu0 %v6938
    %7094 = vmatprep.mubr.bf16.mxu0 %v6720
    %7095 = vmatmul.mubr.bf16.gmra.mxu0 %v6719
    %v7096 = vpop.f32.mrf.mxu0
    %v7097 = vadd.f32 %v6856, %v7096
    %v7098 = vpop.f32.mrf.mxu0
    %v7099 = vpop.f32.mrf.mxu0
    %v7100 = vadd.f32 %v6856, %v7099
    %v7101 = vpop.f32.mrf.mxu0
    %7102 = vmatprep.mubr.bf16.mxu0 %v6723
    %7103 = vmatmul.mubr.bf16.gmra.mxu0 %v6722
    %v7104 = vpop.f32.mrf.mxu0
    %v7105 = vadd.f32 %v6856, %v7104
    %v7106 = vpop.f32.mrf.mxu0
    %v7107 = vpop.f32.mrf.mxu0
    %v7108 = vadd.f32 %v6856, %v7107
    %v7109 = vpop.f32.mrf.mxu0
    %7110 = vmatprep.mubr.bf16.mxu0 %v6726
    %7111 = vmatmul.mubr.bf16.gmra.mxu0 %v6725
    %v7112 = vpop.f32.mrf.mxu0
    %v7113 = vadd.f32 %v6856, %v7112
    %v7114 = vpop.f32.mrf.mxu0
    %v7115 = vpop.f32.mrf.mxu0
    %v7116 = vadd.f32 %v6856, %v7115
    %v7117 = vpop.f32.mrf.mxu0
    %7118 = vmatprep.mubr.bf16.mxu0 %v6729
    %7119 = vmatmul.mubr.bf16.gmra.mxu0 %v6728
    %v7120 = vpop.f32.mrf.mxu0
    %v7121 = vadd.f32 %v6856, %v7120
    %v7122 = vpop.f32.mrf.mxu0
    %v7123 = vpop.f32.mrf.mxu0
    %v7124 = vadd.f32 %v6856, %v7123
    %v7125 = vpop.f32.mrf.mxu0
    %7126 = vmatprep.mubr.bf16.mxu0 %v6732
    %7127 = vmatmul.mubr.bf16.gmra.mxu0 %v6731
    %v7128 = vpop.f32.mrf.mxu0
    %v7129 = vadd.f32 %v6856, %v7128
    %v7130 = vpop.f32.mrf.mxu0
    %v7131 = vpop.f32.mrf.mxu0
    %v7132 = vadd.f32 %v6856, %v7131
    %v7133 = vpop.f32.mrf.mxu0
    %7134 = vmatprep.mubr.bf16.mxu0 %v6735
    %7135 = vmatmul.mubr.bf16.gmra.mxu0 %v6734
    %v7136 = vpop.f32.mrf.mxu0
    %v7137 = vadd.f32 %v6856, %v7136
    %v7138 = vpop.f32.mrf.mxu0
    %v7139 = vpop.f32.mrf.mxu0
    %v7140 = vadd.f32 %v6856, %v7139
    %v7141 = vpop.f32.mrf.mxu0
    %7142 = vmatprep.mubr.bf16.mxu0 %v6738
    %7143 = vmatmul.mubr.bf16.gmra.mxu0 %v6737
    %v7144 = vpop.f32.mrf.mxu0
    %v7145 = vadd.f32 %v6856, %v7144
    %v7146 = vpop.f32.mrf.mxu0
    %v7147 = vpop.f32.mrf.mxu0
    %v7148 = vadd.f32 %v6856, %v7147
    %v7149 = vpop.f32.mrf.mxu0
    %7150 = vmatprep.mubr.bf16.mxu0 %v6741
    %7151 = vmatmul.mubr.bf16.gmra.mxu0 %v6740
    %v7152 = vpop.f32.mrf.mxu0
    %v7153 = vadd.f32 %v6856, %v7152
    %v7154 = vpop.f32.mrf.mxu0
    %v7155 = vpop.f32.mrf.mxu0
    %v7156 = vadd.f32 %v6856, %v7155
    %v7157 = vpop.f32.mrf.mxu0
    %7158 = vmatprep.mubr.bf16.mxu0 %v6744
    %7159 = vmatmul.mubr.bf16.gmra.mxu0 %v6743
    %v7160 = vpop.f32.mrf.mxu0
    %v7161 = vadd.f32 %v6856, %v7160
    %v7162 = vpop.f32.mrf.mxu0
    %v7163 = vpop.f32.mrf.mxu0
    %v7164 = vadd.f32 %v6856, %v7163
    %v7165 = vpop.f32.mrf.mxu0
    %7166 = vmatprep.mubr.bf16.mxu0 %v6747
    %7167 = vmatmul.mubr.bf16.gmra.mxu0 %v6746
    %v7168 = vpop.f32.mrf.mxu0
    %v7169 = vadd.f32 %v6856, %v7168
    %v7170 = vpop.f32.mrf.mxu0
    %v7171 = vpop.f32.mrf.mxu0
    %v7172 = vadd.f32 %v6856, %v7171
    %v7173 = vpop.f32.mrf.mxu0
    %7174 = vmatprep.mubr.bf16.mxu0 %v6750
    %7175 = vmatmul.mubr.bf16.gmra.mxu0 %v6749
    %v7176 = vpop.f32.mrf.mxu0
    %v7177 = vadd.f32 %v6856, %v7176
    %v7178 = vpop.f32.mrf.mxu0
    %v7179 = vpop.f32.mrf.mxu0
    %v7180 = vadd.f32 %v6856, %v7179
    %v7181 = vpop.f32.mrf.mxu0
    %7182 = vmatprep.mubr.bf16.mxu0 %v6753
    %7183 = vmatmul.mubr.bf16.gmra.mxu0 %v6752
    %v7184 = vpop.f32.mrf.mxu0
    %v7185 = vadd.f32 %v6856, %v7184
    %v7186 = vpop.f32.mrf.mxu0
    %v7187 = vpop.f32.mrf.mxu0
    %v7188 = vadd.f32 %v6856, %v7187
    %v7189 = vpop.f32.mrf.mxu0
    %7190 = vmatprep.mubr.bf16.mxu0 %v6756
    %7191 = vmatmul.mubr.bf16.gmra.mxu0 %v6755
    %v7192 = vpop.f32.mrf.mxu0
    %v7193 = vadd.f32 %v6856, %v7192
    %v7194 = vpop.f32.mrf.mxu0
    %v7195 = vpop.f32.mrf.mxu0
    %v7196 = vadd.f32 %v6856, %v7195
    %v7197 = vpop.f32.mrf.mxu0
    %7198 = vmatprep.mubr.bf16.mxu0 %v6759
    %7199 = vmatmul.mubr.bf16.gmra.mxu0 %v6758
    %v7200 = vpop.f32.mrf.mxu0
    %v7201 = vadd.f32 %v6856, %v7200
    %v7202 = vpop.f32.mrf.mxu0
    %v7203 = vpop.f32.mrf.mxu0
    %v7204 = vadd.f32 %v6856, %v7203
    %v7205 = vpop.f32.mrf.mxu0
    %7206 = vmatprep.mubr.bf16.mxu0 %v6762
    %7207 = vmatmul.mubr.bf16.gmra.mxu0 %v6761
    %v7208 = vpop.f32.mrf.mxu0
    %v7209 = vadd.f32 %v6856, %v7208
    %v7210 = vpop.f32.mrf.mxu0
    %v7211 = vpop.f32.mrf.mxu0
    %v7212 = vadd.f32 %v6856, %v7211
    %v7213 = vpop.f32.mrf.mxu0
    %7214 = vmatprep.mubr.bf16.mxu0 %v6765
    %7215 = vmatmul.mubr.bf16.gmra.mxu0 %v6764
    %v7216 = vpop.f32.mrf.mxu0
    %v7217 = vadd.f32 %v6856, %v7216
    %v7218 = vpop.f32.mrf.mxu0
    %v7219 = vpop.f32.mrf.mxu0
    %v7220 = vadd.f32 %v6856, %v7219
    %v7221 = vpop.f32.mrf.mxu0
    %7222 = vmatprep.mubr.bf16.mxu0 %v6768
    %7223 = vmatmul.mubr.bf16.gmra.mxu0 %v6767
    %v7224 = vpop.f32.mrf.mxu0
    %v7225 = vadd.f32 %v6856, %v7224
    %v7226 = vpop.f32.mrf.mxu0
    %v7227 = vpop.f32.mrf.mxu0
    %v7228 = vadd.f32 %v6856, %v7227
    %v7229 = vpop.f32.mrf.mxu0
    %7230 = vmatprep.mubr.bf16.mxu0 %v6771
    %7231 = vmatmul.mubr.bf16.gmra.mxu0 %v6770
    %v7232 = vpop.f32.mrf.mxu0
    %v7233 = vadd.f32 %v6856, %v7232
    %v7234 = vpop.f32.mrf.mxu0
    %v7235 = vpop.f32.mrf.mxu0
    %v7236 = vadd.f32 %v6856, %v7235
    %v7237 = vpop.f32.mrf.mxu0
    %7238 = vmatprep.mubr.bf16.mxu0 %v6774
    %7239 = vmatmul.mubr.bf16.gmra.mxu0 %v6773
    %v7240 = vpop.f32.mrf.mxu0
    %v7241 = vadd.f32 %v6856, %v7240
    %v7242 = vpop.f32.mrf.mxu0
    %v7243 = vpop.f32.mrf.mxu0
    %v7244 = vadd.f32 %v6856, %v7243
    %v7245 = vpop.f32.mrf.mxu0
    %7246 = vmatprep.mubr.bf16.mxu0 %v6777
    %7247 = vmatmul.mubr.bf16.gmra.mxu0 %v6776
    %v7248 = vpop.f32.mrf.mxu0
    %v7249 = vadd.f32 %v6856, %v7248
    %v7250 = vpop.f32.mrf.mxu0
    %v7251 = vpop.f32.mrf.mxu0
    %v7252 = vadd.f32 %v6856, %v7251
    %v7253 = vpop.f32.mrf.mxu0
    %7254 = vmatprep.mubr.bf16.mxu0 %v6780
    %7255 = vmatmul.mubr.bf16.gmra.mxu0 %v6779
    %v7256 = vpop.f32.mrf.mxu0
    %v7257 = vadd.f32 %v6856, %v7256
    %v7258 = vpop.f32.mrf.mxu0
    %v7259 = vpop.f32.mrf.mxu0
    %v7260 = vadd.f32 %v6856, %v7259
    %v7261 = vpop.f32.mrf.mxu0
    %7262 = vmatprep.mubr.bf16.mxu0 %v6783
    %7263 = vmatmul.mubr.bf16.gmra.mxu0 %v6782
    %v7264 = vpop.f32.mrf.mxu0
    %v7265 = vadd.f32 %v6856, %v7264
    %v7266 = vpop.f32.mrf.mxu0
    %v7267 = vpop.f32.mrf.mxu0
    %v7268 = vadd.f32 %v6856, %v7267
    %v7269 = vpop.f32.mrf.mxu0
    %7270 = vmatprep.mubr.bf16.mxu0 %v6786
    %7271 = vmatmul.mubr.bf16.gmra.mxu0 %v6785
    %v7272 = vpop.f32.mrf.mxu0
    %v7273 = vadd.f32 %v6856, %v7272
    %v7274 = vpop.f32.mrf.mxu0
    %v7275 = vpop.f32.mrf.mxu0
    %v7276 = vadd.f32 %v6856, %v7275
    %v7277 = vpop.f32.mrf.mxu0
    %7278 = vmatprep.mubr.bf16.mxu0 %v6789
    %7279 = vmatmul.mubr.bf16.gmra.mxu0 %v6788
    %v7280 = vpop.f32.mrf.mxu0
    %v7281 = vadd.f32 %v6856, %v7280
    %v7282 = vpop.f32.mrf.mxu0
    %v7283 = vpop.f32.mrf.mxu0
    %v7284 = vadd.f32 %v6856, %v7283
    %v7285 = vpop.f32.mrf.mxu0
    %7286 = vmatprep.mubr.bf16.mxu0 %v6792
    %7287 = vmatmul.mubr.bf16.gmra.mxu0 %v6791
    %v7288 = vpop.f32.mrf.mxu0
    %v7289 = vadd.f32 %v6856, %v7288
    %v7290 = vpop.f32.mrf.mxu0
    %v7291 = vpop.f32.mrf.mxu0
    %v7292 = vadd.f32 %v6856, %v7291
    %v7293 = vpop.f32.mrf.mxu0
    %7294 = vmatprep.mubr.bf16.mxu0 %v6795
    %7295 = vmatmul.mubr.bf16.gmra.mxu0 %v6794
    %v7296 = vpop.f32.mrf.mxu0
    %v7297 = vadd.f32 %v6856, %v7296
    %v7298 = vpop.f32.mrf.mxu0
    %v7299 = vpop.f32.mrf.mxu0
    %v7300 = vadd.f32 %v6856, %v7299
    %v7301 = vpop.f32.mrf.mxu0
    %7302 = vmatprep.mubr.bf16.mxu0 %v6798
    %7303 = vmatmul.mubr.bf16.gmra.mxu0 %v6797
    %v7304 = vpop.f32.mrf.mxu0
    %v7305 = vadd.f32 %v6856, %v7304
    %v7306 = vpop.f32.mrf.mxu0
    %v7307 = vpop.f32.mrf.mxu0
    %v7308 = vadd.f32 %v6856, %v7307
    %v7309 = vpop.f32.mrf.mxu0
    %7310 = vmatprep.mubr.bf16.mxu0 %v6801
    %7311 = vmatmul.mubr.bf16.gmra.mxu0 %v6800
    %v7312 = vpop.f32.mrf.mxu0
    %v7313 = vadd.f32 %v6856, %v7312
    %v7314 = vpop.f32.mrf.mxu0
    %v7315 = vpop.f32.mrf.mxu0
    %v7316 = vadd.f32 %v6856, %v7315
    %v7317 = vpop.f32.mrf.mxu0
    %7318 = vmatprep.mubr.bf16.mxu0 %v6804
    %7319 = vmatmul.mubr.bf16.gmra.mxu0 %v6803
    %v7320 = vpop.f32.mrf.mxu0
    %v7321 = vadd.f32 %v6856, %v7320
    %v7322 = vpop.f32.mrf.mxu0
    %v7323 = vpop.f32.mrf.mxu0
    %v7324 = vadd.f32 %v6856, %v7323
    %v7325 = vpop.f32.mrf.mxu0
    %7326 = vmatprep.mubr.bf16.mxu0 %v6807
    %7327 = vmatmul.mubr.bf16.gmra.mxu0 %v6806
    %v7328 = vpop.f32.mrf.mxu0
    %v7329 = vadd.f32 %v6856, %v7328
    %v7330 = vpop.f32.mrf.mxu0
    %v7331 = vpop.f32.mrf.mxu0
    %v7332 = vadd.f32 %v6856, %v7331
    %v7333 = vpop.f32.mrf.mxu0
    %7334 = vmatprep.mubr.bf16.mxu0 %v6810
    %7335 = vmatmul.mubr.bf16.gmra.mxu0 %v6809
    %v7336 = vpop.f32.mrf.mxu0
    %v7337 = vadd.f32 %v6856, %v7336
    %v7338 = vpop.f32.mrf.mxu0
    %v7339 = vpop.f32.mrf.mxu0
    %v7340 = vadd.f32 %v6856, %v7339
    %v7341 = vpop.f32.mrf.mxu0
    %7342 = vmatprep.mubr.bf16.mxu0 %v6813
    %7343 = vmatmul.mubr.bf16.gmra.mxu0 %v6812
    %v7344 = vpop.f32.mrf.mxu0
    %v7345 = vadd.f32 %v6856, %v7344
    %v7346 = vpop.f32.mrf.mxu0
    %v7347 = vpop.f32.mrf.mxu0
    %v7348 = vadd.f32 %v6856, %v7347
    %v7349 = vpop.f32.mrf.mxu0
    %7350 = vdwg.mxu0
    %7351 = vmatprep.subr.bf16.mxu0 0
    %7352 = vmatpush1.bf16.msra.mxu0 0
    %7353 = vmatprep.subr.bf16.mxu0 0
    %7354 = vmatpush1.bf16.msra.mxu0 0
    %7355 = vmatprep.subr.bf16.mxu0 0
    %7356 = vmatpush1.bf16.msra.mxu0 0
    %7357 = vmatprep.subr.bf16.mxu0 0
    %7358 = vmatpush1.bf16.msra.mxu0 0
    %7359 = vmatprep.subr.bf16.mxu0 0
    %7360 = vmatpush1.bf16.msra.mxu0 0
    %7361 = vmatprep.subr.bf16.mxu0 0
    %7362 = vmatpush1.bf16.msra.mxu0 0
    %7363 = vmatprep.subr.bf16.mxu0 0
    %7364 = vmatpush1.bf16.msra.mxu0 %v6947
    %7365 = vmatprep.subr.bf16.mxu0 0
    %7366 = vmatpush1.bf16.msra.mxu0 %v6946
    %7367 = vmatprep.subr.bf16.mxu0 0
    %7368 = vmatpush2.bf16.msra.mxu0 0
    %7369 = vmatprep.subr.bf16.mxu0 0
    %7370 = vmatpush2.bf16.msra.mxu0 0
    %7371 = vmatprep.subr.bf16.mxu0 0
    %7372 = vmatpush2.bf16.msra.mxu0 0
    %7373 = vmatprep.subr.bf16.mxu0 0
    %7374 = vmatpush2.bf16.msra.mxu0 0
    %7375 = vmatprep.subr.bf16.mxu0 0
    %7376 = vmatpush2.bf16.msra.mxu0 0
    %7377 = vmatprep.subr.bf16.mxu0 0
    %7378 = vmatpush2.bf16.msra.mxu0 0
    %7379 = vmatprep.subr.bf16.mxu0 0
    %7380 = vmatpush2.bf16.msra.mxu0 0
    %7381 = vmatprep.subr.bf16.mxu0 0
    %7382 = vmatpush2.bf16.msra.mxu0 0
    %7383 = vmatprep.mubr.bf16.mxu0 0
    %7384 = vmatmul.mubr.bf16.gmra.mxu0 %v6967
    %v7385 = vpop.f32.mrf.mxu0
    %v7386 = vadd.f32 %v7097, %v7385
    %v7387 = vpop.f32.mrf.mxu0
    %v7388 = vpop.f32.mrf.mxu0
    %v7389 = vadd.f32 %v7100, %v7388
    %v7390 = vpop.f32.mrf.mxu0
    %7391 = vmatprep.mubr.bf16.mxu0 0
    %7392 = vmatmul.mubr.bf16.gmra.mxu0 %v6970
    %v7393 = vpop.f32.mrf.mxu0
    %v7394 = vadd.f32 %v7105, %v7393
    %v7395 = vpop.f32.mrf.mxu0
    %v7396 = vpop.f32.mrf.mxu0
    %v7397 = vadd.f32 %v7108, %v7396
    %v7398 = vpop.f32.mrf.mxu0
    %7399 = vmatprep.mubr.bf16.mxu0 0
    %7400 = vmatmul.mubr.bf16.gmra.mxu0 %v6973
    %v7401 = vpop.f32.mrf.mxu0
    %v7402 = vadd.f32 %v7113, %v7401
    %v7403 = vpop.f32.mrf.mxu0
    %v7404 = vpop.f32.mrf.mxu0
    %v7405 = vadd.f32 %v7116, %v7404
    %v7406 = vpop.f32.mrf.mxu0
    %7407 = vmatprep.mubr.bf16.mxu0 0
    %7408 = vmatmul.mubr.bf16.gmra.mxu0 %v6976
    %v7409 = vpop.f32.mrf.mxu0
    %v7410 = vadd.f32 %v7121, %v7409
    %v7411 = vpop.f32.mrf.mxu0
    %v7412 = vpop.f32.mrf.mxu0
    %v7413 = vadd.f32 %v7124, %v7412
    %v7414 = vpop.f32.mrf.mxu0
    %7415 = vmatprep.mubr.bf16.mxu0 0
    %7416 = vmatmul.mubr.bf16.gmra.mxu0 %v6979
    %v7417 = vpop.f32.mrf.mxu0
    %v7418 = vadd.f32 %v7129, %v7417
    %v7419 = vpop.f32.mrf.mxu0
    %v7420 = vpop.f32.mrf.mxu0
    %v7421 = vadd.f32 %v7132, %v7420
    %v7422 = vpop.f32.mrf.mxu0
    %7423 = vmatprep.mubr.bf16.mxu0 0
    %7424 = vmatmul.mubr.bf16.gmra.mxu0 %v6982
    %v7425 = vpop.f32.mrf.mxu0
    %v7426 = vadd.f32 %v7137, %v7425
    %v7427 = vpop.f32.mrf.mxu0
    %v7428 = vpop.f32.mrf.mxu0
    %v7429 = vadd.f32 %v7140, %v7428
    %v7430 = vpop.f32.mrf.mxu0
    %7431 = vmatprep.mubr.bf16.mxu0 0
    %7432 = vmatmul.mubr.bf16.gmra.mxu0 %v6985
    %v7433 = vpop.f32.mrf.mxu0
    %v7434 = vadd.f32 %v7145, %v7433
    %v7435 = vpop.f32.mrf.mxu0
    %v7436 = vpop.f32.mrf.mxu0
    %v7437 = vadd.f32 %v7148, %v7436
    %v7438 = vpop.f32.mrf.mxu0
    %7439 = vmatprep.mubr.bf16.mxu0 0
    %7440 = vmatmul.mubr.bf16.gmra.mxu0 %v6988
    %v7441 = vpop.f32.mrf.mxu0
    %v7442 = vadd.f32 %v7153, %v7441
    %v7443 = vpop.f32.mrf.mxu0
    %v7444 = vpop.f32.mrf.mxu0
    %v7445 = vadd.f32 %v7156, %v7444
    %v7446 = vpop.f32.mrf.mxu0
    %7447 = vmatprep.mubr.bf16.mxu0 0
    %7448 = vmatmul.mubr.bf16.gmra.mxu0 %v6991
    %v7449 = vpop.f32.mrf.mxu0
    %v7450 = vadd.f32 %v7161, %v7449
    %v7451 = vpop.f32.mrf.mxu0
    %v7452 = vpop.f32.mrf.mxu0
    %v7453 = vadd.f32 %v7164, %v7452
    %v7454 = vpop.f32.mrf.mxu0
    %7455 = vmatprep.mubr.bf16.mxu0 0
    %7456 = vmatmul.mubr.bf16.gmra.mxu0 %v6994
    %v7457 = vpop.f32.mrf.mxu0
    %v7458 = vadd.f32 %v7169, %v7457
    %v7459 = vpop.f32.mrf.mxu0
    %v7460 = vpop.f32.mrf.mxu0
    %v7461 = vadd.f32 %v7172, %v7460
    %v7462 = vpop.f32.mrf.mxu0
    %7463 = vmatprep.mubr.bf16.mxu0 0
    %7464 = vmatmul.mubr.bf16.gmra.mxu0 %v6997
    %v7465 = vpop.f32.mrf.mxu0
    %v7466 = vadd.f32 %v7177, %v7465
    %v7467 = vpop.f32.mrf.mxu0
    %v7468 = vpop.f32.mrf.mxu0
    %v7469 = vadd.f32 %v7180, %v7468
    %v7470 = vpop.f32.mrf.mxu0
    %7471 = vmatprep.mubr.bf16.mxu0 0
    %7472 = vmatmul.mubr.bf16.gmra.mxu0 %v7000
    %v7473 = vpop.f32.mrf.mxu0
    %v7474 = vadd.f32 %v7185, %v7473
    %v7475 = vpop.f32.mrf.mxu0
    %v7476 = vpop.f32.mrf.mxu0
    %v7477 = vadd.f32 %v7188, %v7476
    %v7478 = vpop.f32.mrf.mxu0
    %7479 = vmatprep.mubr.bf16.mxu0 0
    %7480 = vmatmul.mubr.bf16.gmra.mxu0 %v7003
    %v7481 = vpop.f32.mrf.mxu0
    %v7482 = vadd.f32 %v7193, %v7481
    %v7483 = vpop.f32.mrf.mxu0
    %v7484 = vpop.f32.mrf.mxu0
    %v7485 = vadd.f32 %v7196, %v7484
    %v7486 = vpop.f32.mrf.mxu0
    %7487 = vmatprep.mubr.bf16.mxu0 0
    %7488 = vmatmul.mubr.bf16.gmra.mxu0 %v7006
    %v7489 = vpop.f32.mrf.mxu0
    %v7490 = vadd.f32 %v7201, %v7489
    %v7491 = vpop.f32.mrf.mxu0
    %v7492 = vpop.f32.mrf.mxu0
    %v7493 = vadd.f32 %v7204, %v7492
    %v7494 = vpop.f32.mrf.mxu0
    %7495 = vmatprep.mubr.bf16.mxu0 0
    %7496 = vmatmul.mubr.bf16.gmra.mxu0 %v7009
    %v7497 = vpop.f32.mrf.mxu0
    %v7498 = vadd.f32 %v7209, %v7497
    %v7499 = vpop.f32.mrf.mxu0
    %v7500 = vpop.f32.mrf.mxu0
    %v7501 = vadd.f32 %v7212, %v7500
    %v7502 = vpop.f32.mrf.mxu0
    %7503 = vmatprep.mubr.bf16.mxu0 0
    %7504 = vmatmul.mubr.bf16.gmra.mxu0 %v7012
    %v7505 = vpop.f32.mrf.mxu0
    %v7506 = vadd.f32 %v7217, %v7505
    %v7507 = vpop.f32.mrf.mxu0
    %v7508 = vpop.f32.mrf.mxu0
    %v7509 = vadd.f32 %v7220, %v7508
    %v7510 = vpop.f32.mrf.mxu0
    %7511 = vmatprep.mubr.bf16.mxu0 0
    %7512 = vmatmul.mubr.bf16.gmra.mxu0 %v7015
    %v7513 = vpop.f32.mrf.mxu0
    %v7514 = vadd.f32 %v7225, %v7513
    %v7515 = vpop.f32.mrf.mxu0
    %v7516 = vpop.f32.mrf.mxu0
    %v7517 = vadd.f32 %v7228, %v7516
    %v7518 = vpop.f32.mrf.mxu0
    %7519 = vmatprep.mubr.bf16.mxu0 0
    %7520 = vmatmul.mubr.bf16.gmra.mxu0 %v7018
    %v7521 = vpop.f32.mrf.mxu0
    %v7522 = vadd.f32 %v7233, %v7521
    %v7523 = vpop.f32.mrf.mxu0
    %v7524 = vpop.f32.mrf.mxu0
    %v7525 = vadd.f32 %v7236, %v7524
    %v7526 = vpop.f32.mrf.mxu0
    %7527 = vmatprep.mubr.bf16.mxu0 0
    %7528 = vmatmul.mubr.bf16.gmra.mxu0 %v7021
    %v7529 = vpop.f32.mrf.mxu0
    %v7530 = vadd.f32 %v7241, %v7529
    %v7531 = vpop.f32.mrf.mxu0
    %v7532 = vpop.f32.mrf.mxu0
    %v7533 = vadd.f32 %v7244, %v7532
    %v7534 = vpop.f32.mrf.mxu0
    %7535 = vmatprep.mubr.bf16.mxu0 0
    %7536 = vmatmul.mubr.bf16.gmra.mxu0 %v7024
    %v7537 = vpop.f32.mrf.mxu0
    %v7538 = vadd.f32 %v7249, %v7537
    %v7539 = vpop.f32.mrf.mxu0
    %v7540 = vpop.f32.mrf.mxu0
    %v7541 = vadd.f32 %v7252, %v7540
    %v7542 = vpop.f32.mrf.mxu0
    %7543 = vmatprep.mubr.bf16.mxu0 0
    %7544 = vmatmul.mubr.bf16.gmra.mxu0 %v7027
    %v7545 = vpop.f32.mrf.mxu0
    %v7546 = vadd.f32 %v7257, %v7545
    %v7547 = vpop.f32.mrf.mxu0
    %v7548 = vpop.f32.mrf.mxu0
    %v7549 = vadd.f32 %v7260, %v7548
    %v7550 = vpop.f32.mrf.mxu0
    %7551 = vmatprep.mubr.bf16.mxu0 0
    %7552 = vmatmul.mubr.bf16.gmra.mxu0 %v7030
    %v7553 = vpop.f32.mrf.mxu0
    %v7554 = vadd.f32 %v7265, %v7553
    %v7555 = vpop.f32.mrf.mxu0
    %v7556 = vpop.f32.mrf.mxu0
    %v7557 = vadd.f32 %v7268, %v7556
    %v7558 = vpop.f32.mrf.mxu0
    %7559 = vmatprep.mubr.bf16.mxu0 0
    %7560 = vmatmul.mubr.bf16.gmra.mxu0 %v7033
    %v7561 = vpop.f32.mrf.mxu0
    %v7562 = vadd.f32 %v7273, %v7561
    %v7563 = vpop.f32.mrf.mxu0
    %v7564 = vpop.f32.mrf.mxu0
    %v7565 = vadd.f32 %v7276, %v7564
    %v7566 = vpop.f32.mrf.mxu0
    %7567 = vmatprep.mubr.bf16.mxu0 0
    %7568 = vmatmul.mubr.bf16.gmra.mxu0 %v7036
    %v7569 = vpop.f32.mrf.mxu0
    %v7570 = vadd.f32 %v7281, %v7569
    %v7571 = vpop.f32.mrf.mxu0
    %v7572 = vpop.f32.mrf.mxu0
    %v7573 = vadd.f32 %v7284, %v7572
    %v7574 = vpop.f32.mrf.mxu0
    %7575 = vmatprep.mubr.bf16.mxu0 0
    %7576 = vmatmul.mubr.bf16.gmra.mxu0 %v7039
    %v7577 = vpop.f32.mrf.mxu0
    %v7578 = vadd.f32 %v7289, %v7577
    %v7579 = vpop.f32.mrf.mxu0
    %v7580 = vpop.f32.mrf.mxu0
    %v7581 = vadd.f32 %v7292, %v7580
    %v7582 = vpop.f32.mrf.mxu0
    %7583 = vmatprep.mubr.bf16.mxu0 0
    %7584 = vmatmul.mubr.bf16.gmra.mxu0 %v7042
    %v7585 = vpop.f32.mrf.mxu0
    %v7586 = vadd.f32 %v7297, %v7585
    %v7587 = vpop.f32.mrf.mxu0
    %v7588 = vpop.f32.mrf.mxu0
    %v7589 = vadd.f32 %v7300, %v7588
    %v7590 = vpop.f32.mrf.mxu0
    %7591 = vmatprep.mubr.bf16.mxu0 0
    %7592 = vmatmul.mubr.bf16.gmra.mxu0 %v7045
    %v7593 = vpop.f32.mrf.mxu0
    %v7594 = vadd.f32 %v7305, %v7593
    %v7595 = vpop.f32.mrf.mxu0
    %v7596 = vpop.f32.mrf.mxu0
    %v7597 = vadd.f32 %v7308, %v7596
    %v7598 = vpop.f32.mrf.mxu0
    %7599 = vmatprep.mubr.bf16.mxu0 0
    %7600 = vmatmul.mubr.bf16.gmra.mxu0 %v7048
    %v7601 = vpop.f32.mrf.mxu0
    %v7602 = vadd.f32 %v7313, %v7601
    %v7603 = vpop.f32.mrf.mxu0
    %v7604 = vpop.f32.mrf.mxu0
    %v7605 = vadd.f32 %v7316, %v7604
    %v7606 = vpop.f32.mrf.mxu0
    %7607 = vmatprep.mubr.bf16.mxu0 0
    %7608 = vmatmul.mubr.bf16.gmra.mxu0 %v7051
    %v7609 = vpop.f32.mrf.mxu0
    %v7610 = vadd.f32 %v7321, %v7609
    %v7611 = vpop.f32.mrf.mxu0
    %v7612 = vpop.f32.mrf.mxu0
    %v7613 = vadd.f32 %v7324, %v7612
    %v7614 = vpop.f32.mrf.mxu0
    %7615 = vmatprep.mubr.bf16.mxu0 0
    %7616 = vmatmul.mubr.bf16.gmra.mxu0 %v7054
    %v7617 = vpop.f32.mrf.mxu0
    %v7618 = vadd.f32 %v7329, %v7617
    %v7619 = vpop.f32.mrf.mxu0
    %v7620 = vpop.f32.mrf.mxu0
    %v7621 = vadd.f32 %v7332, %v7620
    %v7622 = vpop.f32.mrf.mxu0
    %7623 = vmatprep.mubr.bf16.mxu0 0
    %7624 = vmatmul.mubr.bf16.gmra.mxu0 %v7057
    %v7625 = vpop.f32.mrf.mxu0
    %v7626 = vadd.f32 %v7337, %v7625
    %v7627 = vpop.f32.mrf.mxu0
    %v7628 = vpop.f32.mrf.mxu0
    %v7629 = vadd.f32 %v7340, %v7628
    %v7630 = vpop.f32.mrf.mxu0
    %7631 = vmatprep.mubr.bf16.mxu0 0
    %7632 = vmatmul.mubr.bf16.gmra.mxu0 %v7060
    %v7633 = vpop.f32.mrf.mxu0
    %v7634 = vadd.f32 %v7345, %v7633
    %v7635 = vpop.f32.mrf.mxu0
    %v7636 = vpop.f32.mrf.mxu0
    %v7637 = vadd.f32 %v7348, %v7636
    %v7638 = vpop.f32.mrf.mxu0
    %7639 = vdwg.mxu0
    %v7640 = vtanh.pop %v7386
    %v7641 = vtanh.pop %v7389
    %v7642 = vtanh.pop %v7394
    %v7643 = vtanh.pop %v7397
    %v7644 = vtanh.pop %v7402
    %v7645 = vtanh.pop %v7405
    %v7646 = vtanh.pop %v7410
    %v7647 = vtanh.pop %v7413
    %v7648 = vtanh.pop %v7418
    %v7649 = vtanh.pop %v7421
    %v7650 = vtanh.pop %v7426
    %v7651 = vtanh.pop %v7429
    %v7652 = vtanh.pop %v7434
    %v7653 = vtanh.pop %v7437
    %v7654 = vtanh.pop %v7442
    %v7655 = vtanh.pop %v7445
    %v7656 = vtanh.pop %v7450
    %v7657 = vtanh.pop %v7453
    %v7658 = vtanh.pop %v7458
    %v7659 = vtanh.pop %v7461
    %v7660 = vtanh.pop %v7466
    %v7661 = vtanh.pop %v7469
    %v7662 = vtanh.pop %v7474
    %v7663 = vtanh.pop %v7477
    %v7664 = vtanh.pop %v7482
    %v7665 = vtanh.pop %v7485
    %v7666 = vtanh.pop %v7490
    %v7667 = vtanh.pop %v7493
    %v7668 = vtanh.pop %v7498
    %v7669 = vtanh.pop %v7501
    %v7670 = vtanh.pop %v7506
    %v7671 = vtanh.pop %v7509
    %v7672 = vtanh.pop %v7514
    %v7673 = vtanh.pop %v7517
    %v7674 = vtanh.pop %v7522
    %v7675 = vtanh.pop %v7525
    %v7676 = vtanh.pop %v7530
    %v7677 = vtanh.pop %v7533
    %v7678 = vtanh.pop %v7538
    %v7679 = vtanh.pop %v7541
    %v7680 = vtanh.pop %v7546
    %v7681 = vtanh.pop %v7549
    %v7682 = vtanh.pop %v7554
    %v7683 = vtanh.pop %v7557
    %v7684 = vtanh.pop %v7562
    %v7685 = vtanh.pop %v7565
    %v7686 = vtanh.pop %v7570
    %v7687 = vtanh.pop %v7573
    %v7688 = vtanh.pop %v7578
    %v7689 = vtanh.pop %v7581
    %v7690 = vtanh.pop %v7586
    %v7691 = vtanh.pop %v7589
    %v7692 = vtanh.pop %v7594
    %v7693 = vtanh.pop %v7597
    %v7694 = vtanh.pop %v7602
    %v7695 = vtanh.pop %v7605
    %v7696 = vtanh.pop %v7610
    %v7697 = vtanh.pop %v7613
    %v7698 = vtanh.pop %v7618
    %v7699 = vtanh.pop %v7621
    %v7700 = vtanh.pop %v7626
    %v7701 = vtanh.pop %v7629
    %v7702 = vtanh.pop %v7634
    %v7703 = vtanh.pop %v7637
    %7704 = vst [vmem:[#allocation4] sm:$0xff] %v7640
    %7705 = vst [vmem:[#allocation4 + $0x8] sm:$0xff] %v7641
    %7706 = vst [vmem:[#allocation4 + $0x10] sm:$0xff] %v7642
    %7707 = vst [vmem:[#allocation4 + $0x18] sm:$0xff] %v7643
    %7708 = vst [vmem:[#allocation4 + $0x20] sm:$0xff] %v7644
    %7709 = vst [vmem:[#allocation4 + $0x28] sm:$0xff] %v7645
    %7710 = vst [vmem:[#allocation4 + $0x30] sm:$0xff] %v7646
    %7711 = vst [vmem:[#allocation4 + $0x38] sm:$0xff] %v7647
    %7712 = vst [vmem:[#allocation4 + $0x40] sm:$0xff] %v7648
    %7713 = vst [vmem:[#allocation4 + $0x48] sm:$0xff] %v7649
    %7714 = vst [vmem:[#allocation4 + $0x50] sm:$0xff] %v7650
    %7715 = vst [vmem:[#allocation4 + $0x58] sm:$0xff] %v7651
    %7716 = vst [vmem:[#allocation4 + $0x60] sm:$0xff] %v7652
    %7717 = vst [vmem:[#allocation4 + $0x68] sm:$0xff] %v7653
    %7718 = vst [vmem:[#allocation4 + $0x70] sm:$0xff] %v7654
    %7719 = vst [vmem:[#allocation4 + $0x78] sm:$0xff] %v7655
    %7720 = vst [vmem:[#allocation4 + $0x80] sm:$0xff] %v7656
    %7721 = vst [vmem:[#allocation4 + $0x88] sm:$0xff] %v7657
    %7722 = vst [vmem:[#allocation4 + $0x90] sm:$0xff] %v7658
    %7723 = vst [vmem:[#allocation4 + $0x98] sm:$0xff] %v7659
    %7724 = vst [vmem:[#allocation4 + $0xa0] sm:$0xff] %v7660
    %7725 = vst [vmem:[#allocation4 + $0xa8] sm:$0xff] %v7661
    %7726 = vst [vmem:[#allocation4 + $0xb0] sm:$0xff] %v7662
    %7727 = vst [vmem:[#allocation4 + $0xb8] sm:$0xff] %v7663
    %7728 = vst [vmem:[#allocation4 + $0xc0] sm:$0xff] %v7664
    %7729 = vst [vmem:[#allocation4 + $0xc8] sm:$0xff] %v7665
    %7730 = vst [vmem:[#allocation4 + $0xd0] sm:$0xff] %v7666
    %7731 = vst [vmem:[#allocation4 + $0xd8] sm:$0xff] %v7667
    %7732 = vst [vmem:[#allocation4 + $0xe0] sm:$0xff] %v7668
    %7733 = vst [vmem:[#allocation4 + $0xe8] sm:$0xff] %v7669
    %7734 = vst [vmem:[#allocation4 + $0xf0] sm:$0xff] %v7670
    %7735 = vst [vmem:[#allocation4 + $0xf8] sm:$0xff] %v7671
    %7736 = vst [vmem:[#allocation4 + $0x100] sm:$0xff] %v7672
    %7737 = vst [vmem:[#allocation4 + $0x108] sm:$0xff] %v7673
    %7738 = vst [vmem:[#allocation4 + $0x110] sm:$0xff] %v7674
    %7739 = vst [vmem:[#allocation4 + $0x118] sm:$0xff] %v7675
    %7740 = vst [vmem:[#allocation4 + $0x120] sm:$0xff] %v7676
    %7741 = vst [vmem:[#allocation4 + $0x128] sm:$0xff] %v7677
    %7742 = vst [vmem:[#allocation4 + $0x130] sm:$0xff] %v7678
    %7743 = vst [vmem:[#allocation4 + $0x138] sm:$0xff] %v7679
    %7744 = vst [vmem:[#allocation4 + $0x140] sm:$0xff] %v7680
    %7745 = vst [vmem:[#allocation4 + $0x148] sm:$0xff] %v7681
    %7746 = vst [vmem:[#allocation4 + $0x150] sm:$0xff] %v7682
    %7747 = vst [vmem:[#allocation4 + $0x158] sm:$0xff] %v7683
    %7748 = vst [vmem:[#allocation4 + $0x160] sm:$0xff] %v7684
    %7749 = vst [vmem:[#allocation4 + $0x168] sm:$0xff] %v7685
    %7750 = vst [vmem:[#allocation4 + $0x170] sm:$0xff] %v7686
    %7751 = vst [vmem:[#allocation4 + $0x178] sm:$0xff] %v7687
    %7752 = vst [vmem:[#allocation4 + $0x180] sm:$0xff] %v7688
    %7753 = vst [vmem:[#allocation4 + $0x188] sm:$0xff] %v7689
    %7754 = vst [vmem:[#allocation4 + $0x190] sm:$0xff] %v7690
    %7755 = vst [vmem:[#allocation4 + $0x198] sm:$0xff] %v7691
    %7756 = vst [vmem:[#allocation4 + $0x1a0] sm:$0xff] %v7692
    %7757 = vst [vmem:[#allocation4 + $0x1a8] sm:$0xff] %v7693
    %7758 = vst [vmem:[#allocation4 + $0x1b0] sm:$0xff] %v7694
    %7759 = vst [vmem:[#allocation4 + $0x1b8] sm:$0xff] %v7695
    %7760 = vst [vmem:[#allocation4 + $0x1c0] sm:$0xff] %v7696
    %7761 = vst [vmem:[#allocation4 + $0x1c8] sm:$0xff] %v7697
    %7762 = vst [vmem:[#allocation4 + $0x1d0] sm:$0xff] %v7698
    %7763 = vst [vmem:[#allocation4 + $0x1d8] sm:$0xff] %v7699
    %7764 = vst [vmem:[#allocation4 + $0x1e0] sm:$0xff] %v7700
    %7765 = vst [vmem:[#allocation4 + $0x1e8] sm:$0xff] %v7701
    %7766 = vst [vmem:[#allocation4 + $0x1f0] sm:$0xff] %v7702
    %7767 = vst [vmem:[#allocation4 + $0x1f8] sm:$0xff] %v7703
    // Predicated region
    $region22: #{tpu_custom_call.1} parent=1 // pred_check
      _
    $region23: #{tpu_custom_call.1} parent=1 // pred_check_branch
      %7769 = sbr.rel (0) target = $region25
    $region24: #{tpu_custom_call.1} parent=1 // pred_region
      %s7771 = ssub.s32 8192, 8192
      %7772 = vsyncadd [#allocation5], %s7771
      %s7773 = sshll.u32 [#allocation4], 4
      %s7774 = int_to_ptr.vmem [resolvable:$true] %s7773
      %7779 = dma.vmem_to_hbm [thread:$0]  %s7774, 8192, %s5, [#allocation5], 128, 128, 8
    $region25: #{tpu_custom_call.1} parent=1 // pred_fallthru
      _
    // Predicated region
    $region26: #{tpu_custom_call.1} parent=1 // pred_check
      _
    $region27: #{tpu_custom_call.1} parent=1 // pred_check_branch
      %7781 = sbr.rel (0) target = $region29
    $region28: #{tpu_custom_call.1} parent=1 // pred_region
      %7782 = dma.done [#allocation5], 8192
    $region29: #{tpu_custom_call.1} parent=1 // pred_fallthru
      _
    %7783 = vsyncpa [#allocation5], 1

</llo_original>
